<compile_context>
chip_gen: v7x
topology: tpu7x:2x2x1
jax: 0.10.0
libtpu: 0.0.40
codegen_flags: <defaults>
</compile_context>

<pallas_src>
import math

import jax
import jax.numpy as jnp
from jax.experimental import pallas as pl
from jax.experimental.pallas import tpu as pltpu

# ----------------------------- model hyper-params ---------------------------
B, T, S = 2, 8, 16          # batch, target len, memory len
D = 32                      # attention_dim
H = 4                       # attention_heads
DK = D // H                 # per-head dim
U = 64                      # linear_units (FFN hidden)
L = 2                       # num_blocks
ODIM = 16                   # output vocab size
OUT_PAD = 128               # lane-dense padded output width
EPS = 1e-12                 # espnet LayerNorm eps
NEG = -1e30                 # additive mask bias (exp underflows to exactly 0)
SCALE = 1.0 / math.sqrt(DK)

BF = jnp.bfloat16
F32 = jnp.float32


# ----------------------------- in-kernel helpers ----------------------------
def _ln(x, g, b):
    """Two-pass LayerNorm (matches torch/espnet numerics), f32 throughout."""
    mu = jnp.mean(x, axis=-1, keepdims=True)
    xc = x - mu
    var = jnp.mean(xc * xc, axis=-1, keepdims=True)
    return xc * jax.lax.rsqrt(var + EPS) * g + b


def _mha(q, k, v, bias, tq, tk):
    """All-(batch, head) attention in one batched einsum pair.

    q: (B*tq, D) f32 (1/sqrt(dk) already folded into the Q projection);
    k, v: (B*tk, D) f32; bias: additive mask (B*H, tq or 1, tk) f32.
    Returns (B*tq, D) f32.
    """
    qh = q.reshape(B, tq, H, DK).transpose(0, 2, 1, 3).reshape(B * H, tq, DK)
    kh = k.reshape(B, tk, H, DK).transpose(0, 2, 1, 3).reshape(B * H, tk, DK)
    vh = v.reshape(B, tk, H, DK).transpose(0, 2, 1, 3).reshape(B * H, tk, DK)
    s = jnp.einsum('bqd,bkd->bqk', qh.astype(BF), kh.astype(BF),
                   preferred_element_type=F32) + bias
    m = jnp.max(s, axis=-1, keepdims=True)
    e = jnp.exp(s - m)
    a = e * pl.reciprocal(jnp.sum(e, axis=-1, keepdims=True), approx=True)
    ctx = jnp.einsum('bqk,bkd->bqd', a.astype(BF), vh.astype(BF),
                     preferred_element_type=F32)            # (B*H, tq, DK)
    return ctx.reshape(B, H, tq, DK).transpose(0, 2, 1, 3).reshape(B * tq, D)


# --------------------------------- kernel -----------------------------------
# Weight slab w_ref (L+1, 128, 256) bf16:
#   layer l < L : rows 0:32   cols 0:256 -> [q_s|k_s|v_s|o_s|q_c|k_c|v_c|o_c] (D each)
#                 rows 32:64  cols 0:64  -> FFN w1 (D,U)
#                 rows 64:128 cols 0:32  -> FFN w2 (U,D)
#   layer L     : rows 0:32   cols 0:128 -> output_layer weight, zero-padded
# Vector slab b_ref (L+1, 8, 256) f32:
#   layer l < L : row 0 -> attn biases (256);  row 1 -> [f1b(64)|f2b(32)]
#                 row 2 -> [ln1_g|ln1_b|ln2_g|ln2_b|ln3_g|ln3_b] (32 each)
#   layer L     : row 0 cols 0:128 -> output bias (padded);  row 2 -> [an_g|an_b]
def decoder_kernel(x_ref, tmask_ref, mem_ref, mmask_ref, w_ref, b_ref, o_ref):
    x = x_ref[...].reshape(B * T, D)                       # f32 residual stream
    mem = mem_ref[...].reshape(B * S, D).astype(BF)

    # additive attention biases, computed ONCE and pre-broadcast over heads
    tb = (1.0 - tmask_ref[...]) * NEG                      # (B, T, T)
    mb = (1.0 - mmask_ref[...]) * NEG                      # (B, 1, S)
    tbias = jnp.broadcast_to(tb[:, None], (B, H, T, T)).reshape(B * H, T, T)
    mbias = jnp.broadcast_to(mb[:, None], (B, H, 1, S)).reshape(B * H, 1, S)

    for l in range(L):                                     # static unrolled
        # ---- self attention: fused QKV projection over the whole batch ----
        xn = _ln(x, b_ref[l, 2:3, 0:D], b_ref[l, 2:3, D:2 * D]).astype(BF)
        qkv = jnp.dot(xn, w_ref[l, 0:D, 0:3 * D],
                      preferred_element_type=F32) + b_ref[l, 0:1, 0:3 * D]
        ctx = _mha(qkv[:, 0:D], qkv[:, D:2 * D], qkv[:, 2 * D:3 * D], tbias, T, T)
        x = x + jnp.dot(ctx.astype(BF), w_ref[l, 0:D, 3 * D:4 * D],
                        preferred_element_type=F32) + b_ref[l, 0:1, 3 * D:4 * D]

        # ---- source attention: fused KV projection of memory ----
        xn = _ln(x, b_ref[l, 2:3, 2 * D:3 * D], b_ref[l, 2:3, 3 * D:4 * D]).astype(BF)
        q = jnp.dot(xn, w_ref[l, 0:D, 4 * D:5 * D],
                    preferred_element_type=F32) + b_ref[l, 0:1, 4 * D:5 * D]
        kv = jnp.dot(mem, w_ref[l, 0:D, 5 * D:7 * D],
                     preferred_element_type=F32) + b_ref[l, 0:1, 5 * D:7 * D]
        ctx = _mha(q, kv[:, 0:D], kv[:, D:2 * D], mbias, T, S)
        x = x + jnp.dot(ctx.astype(BF), w_ref[l, 0:D, 7 * D:8 * D],
                        preferred_element_type=F32) + b_ref[l, 0:1, 7 * D:8 * D]

        # ---- position-wise feed forward ----
        xn = _ln(x, b_ref[l, 2:3, 4 * D:5 * D], b_ref[l, 2:3, 5 * D:6 * D]).astype(BF)
        h = jnp.maximum(jnp.dot(xn, w_ref[l, D:2 * D, 0:U],
                                preferred_element_type=F32)
                        + b_ref[l, 1:2, 0:U], 0.0)
        x = x + jnp.dot(h.astype(BF), w_ref[l, 2 * D:2 * D + U, 0:D],
                        preferred_element_type=F32) + b_ref[l, 1:2, U:U + D]

    # ---- after_norm + output layer; lane-dense (B*T, 128) f32 store ----
    xn = _ln(x, b_ref[L, 2:3, 0:D], b_ref[L, 2:3, D:2 * D]).astype(BF)
    o_ref[...] = (jnp.dot(xn, w_ref[L, 0:D, 0:OUT_PAD],
                          preferred_element_type=F32) + b_ref[L, 0:1, 0:OUT_PAD])


# --------------------------------- wrapper ----------------------------------
def decoder_forward(x_embed, tgt_mask_f, memory, memory_mask_f, wslab, bslab):
    vmem = pl.BlockSpec(memory_space=pltpu.MemorySpace.VMEM)
    out = pl.pallas_call(
        decoder_kernel,
        out_shape=jax.ShapeDtypeStruct((B * T, OUT_PAD), jnp.float32),
        in_specs=[vmem] * 6,
        out_specs=vmem,
    )(x_embed, tgt_mask_f, memory, memory_mask_f, wslab, bslab)
    scores = out[:, :ODIM].reshape(B, T, ODIM)             # strip lane padding
    return scores, tgt_mask_f       # module returns (scores, tgt_mask)


# ------------------------- pure-JAX reference (check) -----------------------
def _ln_ref(x, g, b):
    mu = jnp.mean(x, axis=-1, keepdims=True)
    var = jnp.mean((x - mu) ** 2, axis=-1, keepdims=True)
    return (x - mu) * jax.lax.rsqrt(var + EPS) * g + b


def _mha_ref(xq, xkv, wq, bq, wk, bk, wv, bv, wo, bo, mask):
    q = xq @ wq + bq
    k = xkv @ wk + bk
    v = xkv @ wv + bv
    out = jnp.zeros((xq.shape[0], wo.shape[1]), jnp.float32)
    big_neg = float(jnp.finfo(jnp.float32).min)
    for h in range(H):
        sl = slice(h * DK, (h + 1) * DK)
        s = (q[:, sl] @ k[:, sl].T) / math.sqrt(DK)
        s = jnp.where(mask > 0, s, big_neg)
        a = jax.nn.softmax(s, axis=-1)
        a = jnp.where(mask > 0, a, 0.0)
        out = out + (a @ v[:, sl]) @ wo[sl, :]
    return out + bo


def ref_decoder(xb, tmb, memb, mmb, P):
    (n1g, n1b, sqw, sqb, skw, skb, svw, svb, sow, sob,
     n2g, n2b, cqw, cqb, ckw, ckb, cvw, cvb, cow, cob,
     n3g, n3b, f1w, f1b, f2w, f2b, ang, anb, outw, outb) = P
    x = xb
    for l in range(L):
        xn = _ln_ref(x, n1g[l], n1b[l])
        x = x + _mha_ref(xn, xn, sqw[l], sqb[l], skw[l], skb[l],
                         svw[l], svb[l], sow[l], sob[l], tmb)
        xn = _ln_ref(x, n2g[l], n2b[l])
        x = x + _mha_ref(xn, memb, cqw[l], cqb[l], ckw[l], ckb[l],
                         cvw[l], cvb[l], cow[l], cob[l], mmb)
        xn = _ln_ref(x, n3g[l], n3b[l])
        h = jnp.maximum(xn @ f1w[l] + f1b[l], 0.0)
        x = x + h @ f2w[l] + f2b[l]
    x = _ln_ref(x, ang, anb)
    return x @ outw + outb


# ----------------------------------- main -----------------------------------
if __name__ == "__main__":
    key = jax.random.PRNGKey(0)

    def nrm(k, shape, scale=0.02):
        return scale * jax.random.normal(k, shape, jnp.float32)

    keys = iter(jax.random.split(key, 64))

    # ---- parameters (deterministic synthetic init) ----
    emb_table = nrm(next(keys), (ODIM, D), 1.0)

    n1g = jnp.ones((L, 1, D), F32); n1b = jnp.zeros((L, 1, D), F32)
    n2g = jnp.ones((L, 1, D), F32); n2b = jnp.zeros((L, 1, D), F32)
    n3g = jnp.ones((L, 1, D), F32); n3b = jnp.zeros((L, 1, D), F32)

    sqw = nrm(next(keys), (L, D, D)); sqb = nrm(next(keys), (L, 1, D))
    skw = nrm(next(keys), (L, D, D)); skb = nrm(next(keys), (L, 1, D))
    svw = nrm(next(keys), (L, D, D)); svb = nrm(next(keys), (L, 1, D))
    sow = nrm(next(keys), (L, D, D)); sob = nrm(next(keys), (L, 1, D))

    cqw = nrm(next(keys), (L, D, D)); cqb = nrm(next(keys), (L, 1, D))
    ckw = nrm(next(keys), (L, D, D)); ckb = nrm(next(keys), (L, 1, D))
    cvw = nrm(next(keys), (L, D, D)); cvb = nrm(next(keys), (L, 1, D))
    cow = nrm(next(keys), (L, D, D)); cob = nrm(next(keys), (L, 1, D))

    f1w = nrm(next(keys), (L, D, U)); f1b = nrm(next(keys), (L, 1, U))
    f2w = nrm(next(keys), (L, U, D)); f2b = nrm(next(keys), (L, 1, D))

    ang = jnp.ones((1, D), F32); anb = jnp.zeros((1, D), F32)
    outw = nrm(next(keys), (D, ODIM)); outb = nrm(next(keys), (1, ODIM))

    # ---- pack weights into ONE bf16 slab; 1/sqrt(dk) folded into Q columns ----
    wslab = jnp.zeros((L + 1, 128, 8 * D), F32)
    attn_w = jnp.concatenate([sqw * SCALE, skw, svw, sow,
                              cqw * SCALE, ckw, cvw, cow], axis=-1)       # (L,D,8D)
    wslab = wslab.at[:L, 0:D, :].set(attn_w)
    wslab = wslab.at[:L, D:2 * D, 0:U].set(f1w)
    wslab = wslab.at[:L, 2 * D:2 * D + U, 0:D].set(f2w)
    wslab = wslab.at[L, 0:D, 0:ODIM].set(outw)              # zero-padded to 128 lanes
    wslab = wslab.astype(BF)

    # ---- pack all biases / LayerNorm params into ONE f32 slab ----
    bslab = jnp.zeros((L + 1, 8, 8 * D), F32)
    attn_b = jnp.concatenate([sqb * SCALE, skb, svb, sob,
                              cqb * SCALE, ckb, cvb, cob], axis=-1)       # (L,1,8D)
    bslab = bslab.at[:L, 0:1, :].set(attn_b)
    bslab = bslab.at[:L, 1:2, 0:U].set(f1b)
    bslab = bslab.at[:L, 1:2, U:U + D].set(f2b)
    ln_row = jnp.concatenate([n1g, n1b, n2g, n2b, n3g, n3b], axis=-1)     # (L,1,6D)
    bslab = bslab.at[:L, 2:3, 0:6 * D].set(ln_row)
    bslab = bslab.at[L, 0, 0:ODIM].set(outb[0])
    bslab = bslab.at[L, 2, 0:D].set(ang[0])
    bslab = bslab.at[L, 2, D:2 * D].set(anb[0])

    unpacked = [n1g, n1b, sqw, sqb, skw, skb, svw, svb, sow, sob,
                n2g, n2b, cqw, cqb, ckw, ckb, cvw, cvb, cow, cob,
                n3g, n3b, f1w, f1b, f2w, f2b, ang, anb, outw, outb]

    # ---- inputs ----
    tgt = jax.random.randint(next(keys), (B, T), 0, ODIM)          # token ids
    memory = nrm(next(keys), (B, S, D), 1.0)                       # encoder out

    # embedding + sinusoidal positional encoding (glue, plain JAX)
    pos = jnp.arange(T, dtype=F32)[:, None]
    div = jnp.exp(jnp.arange(0, D, 2, dtype=F32) * (-math.log(10000.0) / D))
    pe = jnp.zeros((T, D), F32)
    pe = pe.at[:, 0::2].set(jnp.sin(pos * div))
    pe = pe.at[:, 1::2].set(jnp.cos(pos * div))
    x_embed = emb_table[tgt] * math.sqrt(D) + pe[None, :, :]       # (B, T, D)

    # masks (bool in torch; passed as float32 {0,1} here)
    tgt_mask_bool = jnp.tril(jnp.ones((T, T), bool))[None].repeat(B, axis=0)
    mem_lens = jnp.array([S, S - 4])
    memory_mask_bool = (jnp.arange(S)[None, :] < mem_lens[:, None])[:, None, :]
    tgt_mask_f = tgt_mask_bool.astype(F32)                         # (B, T, T)
    memory_mask_f = memory_mask_bool.astype(F32)                   # (B, 1, S)

    # ---- run Pallas kernel ----
    out, out_mask = decoder_forward(x_embed, tgt_mask_f, memory,
                                    memory_mask_f, wslab, bslab)
    out = jax.block_until_ready(out)

    # ---- verify against pure-JAX f32 reference (independent math path) ----
    # Tolerance loosened slightly vs pure-f32 because MXU operands are bf16
    # (f32 accumulation); estimated max deviation is well under 2e-3.
    ref = jnp.stack([ref_decoder(x_embed[b], tgt_mask_f[b], memory[b],
                                 memory_mask_f[b], unpacked) for b in range(B)])
    assert jnp.allclose(out, ref, rtol=1e-2, atol=5e-3), \
        f"mismatch: {jnp.max(jnp.abs(out - ref))}"

    print("KERNEL_OK")
</pallas_src>

<mosaic_0001>
module attributes {stable_mosaic.version = 11 : i64} {
  func.func @decoder_kernel(%arg0: memref<2x8x32xf32, #tpu.memory_space<vmem>>, %arg1: memref<2x8x8xf32, #tpu.memory_space<vmem>>, %arg2: memref<2x16x32xf32, #tpu.memory_space<vmem>>, %arg3: memref<2x1x16xf32, #tpu.memory_space<vmem>>, %arg4: memref<3x128x256xbf16, #tpu.memory_space<vmem>>, %arg5: memref<3x8x256xf32, #tpu.memory_space<vmem>>, %arg6: memref<16x128xf32, #tpu.memory_space<vmem>>) attributes {dimension_semantics = [], scalar_prefetch = 0 : i64, scratch_operands = 0 : i64, tpu.core_type = #tpu.core_type<tc>} {
    %c0 = arith.constant 0 : index
    %c0_0 = arith.constant 0 : index
    %c0_1 = arith.constant 0 : index
    %0 = vector.load %arg0[%c0, %c0_0, %c0_1] : memref<2x8x32xf32, #tpu.memory_space<vmem>>, vector<2x8x32xf32>
    %1 = vector.shape_cast %0 : vector<2x8x32xf32> to vector<16x32xf32>
    %c0_2 = arith.constant 0 : index
    %c0_3 = arith.constant 0 : index
    %c0_4 = arith.constant 0 : index
    %2 = vector.load %arg2[%c0_2, %c0_3, %c0_4] : memref<2x16x32xf32, #tpu.memory_space<vmem>>, vector<2x16x32xf32>
    %3 = vector.shape_cast %2 : vector<2x16x32xf32> to vector<32x32xf32>
    %4 = arith.truncf %3 : vector<32x32xf32> to vector<32x32xbf16>
    %c0_5 = arith.constant 0 : index
    %c0_6 = arith.constant 0 : index
    %c0_7 = arith.constant 0 : index
    %5 = vector.load %arg1[%c0_5, %c0_6, %c0_7] : memref<2x8x8xf32, #tpu.memory_space<vmem>>, vector<2x8x8xf32>
    %cst = arith.constant 1.000000e+00 : f32
    %6 = vector.broadcast %cst : f32 to vector<2x8x8xf32>
    %7 = arith.subf %6, %5 : vector<2x8x8xf32>
    %cst_8 = arith.constant -1.000000e+30 : f32
    %8 = vector.broadcast %cst_8 : f32 to vector<2x8x8xf32>
    %9 = arith.mulf %7, %8 : vector<2x8x8xf32>
    %c0_9 = arith.constant 0 : index
    %c0_10 = arith.constant 0 : index
    %c0_11 = arith.constant 0 : index
    %10 = vector.load %arg3[%c0_9, %c0_10, %c0_11] : memref<2x1x16xf32, #tpu.memory_space<vmem>>, vector<2x1x16xf32>
    %cst_12 = arith.constant 1.000000e+00 : f32
    %11 = vector.broadcast %cst_12 : f32 to vector<2x1x16xf32>
    %12 = arith.subf %11, %10 : vector<2x1x16xf32>
    %cst_13 = arith.constant -1.000000e+30 : f32
    %13 = vector.broadcast %cst_13 : f32 to vector<2x1x16xf32>
    %14 = arith.mulf %12, %13 : vector<2x1x16xf32>
    %15 = vector.shape_cast %9 : vector<2x8x8xf32> to vector<2x1x8x8xf32>
    %16 = vector.shape_cast %15 : vector<2x1x8x8xf32> to vector<2x1x8x8xf32>
    %17 = vector.broadcast %16 : vector<2x1x8x8xf32> to vector<2x4x8x8xf32>
    %18 = vector.shape_cast %17 : vector<2x4x8x8xf32> to vector<8x8x8xf32>
    %19 = vector.shape_cast %14 : vector<2x1x16xf32> to vector<2x1x1x16xf32>
    %20 = vector.shape_cast %19 : vector<2x1x1x16xf32> to vector<2x1x1x16xf32>
    %21 = vector.broadcast %20 : vector<2x1x1x16xf32> to vector<2x4x1x16xf32>
    %22 = vector.shape_cast %21 : vector<2x4x1x16xf32> to vector<8x1x16xf32>
    %c0_14 = arith.constant 0 : index
    %c2 = arith.constant 2 : index
    %c0_15 = arith.constant 0 : index
    %23 = vector.load %arg5[%c0_14, %c2, %c0_15] : memref<3x8x256xf32, #tpu.memory_space<vmem>>, vector<1x1x32xf32>
    %24 = vector.shape_cast %23 : vector<1x1x32xf32> to vector<1x32xf32>
    %c0_16 = arith.constant 0 : index
    %c2_17 = arith.constant 2 : index
    %c32 = arith.constant 32 : index
    %25 = vector.load %arg5[%c0_16, %c2_17, %c32] : memref<3x8x256xf32, #tpu.memory_space<vmem>>, vector<1x1x32xf32>
    %26 = vector.shape_cast %25 : vector<1x1x32xf32> to vector<1x32xf32>
    %cst_18 = arith.constant dense<0.000000e+00> : vector<16xf32>
    %27 = vector.multi_reduction <add>, %1, %cst_18 [1] : vector<16x32xf32> to vector<16xf32>
    %28 = vector.shape_cast %27 : vector<16xf32> to vector<16x1xf32>
    %cst_19 = arith.constant 3.200000e+01 : f32
    %29 = vector.broadcast %cst_19 : f32 to vector<16x1xf32>
    %30 = arith.divf %28, %29 : vector<16x1xf32>
    %31 = vector.broadcast %30 : vector<16x1xf32> to vector<16x32xf32>
    %32 = arith.subf %1, %31 : vector<16x32xf32>
    %33 = arith.mulf %32, %32 : vector<16x32xf32>
    %cst_20 = arith.constant dense<0.000000e+00> : vector<16xf32>
    %34 = vector.multi_reduction <add>, %33, %cst_20 [1] : vector<16x32xf32> to vector<16xf32>
    %35 = vector.shape_cast %34 : vector<16xf32> to vector<16x1xf32>
    %cst_21 = arith.constant 3.200000e+01 : f32
    %36 = vector.broadcast %cst_21 : f32 to vector<16x1xf32>
    %37 = arith.divf %35, %36 : vector<16x1xf32>
    %cst_22 = arith.constant 9.99999996E-13 : f32
    %38 = vector.broadcast %cst_22 : f32 to vector<16x1xf32>
    %39 = arith.addf %37, %38 : vector<16x1xf32>
    %40 = math.rsqrt %39 : vector<16x1xf32>
    %41 = vector.broadcast %40 : vector<16x1xf32> to vector<16x32xf32>
    %42 = arith.mulf %32, %41 : vector<16x32xf32>
    %43 = vector.broadcast %24 : vector<1x32xf32> to vector<16x32xf32>
    %44 = arith.mulf %42, %43 : vector<16x32xf32>
    %45 = vector.broadcast %26 : vector<1x32xf32> to vector<16x32xf32>
    %46 = arith.addf %44, %45 : vector<16x32xf32>
    %47 = arith.truncf %46 : vector<16x32xf32> to vector<16x32xbf16>
    %c0_23 = arith.constant 0 : index
    %c0_24 = arith.constant 0 : index
    %c0_25 = arith.constant 0 : index
    %48 = vector.load %arg4[%c0_23, %c0_24, %c0_25] : memref<3x128x256xbf16, #tpu.memory_space<vmem>>, vector<1x32x96xbf16>
    %49 = vector.shape_cast %48 : vector<1x32x96xbf16> to vector<32x96xbf16>
    %cst_26 = arith.constant dense<0.000000e+00> : vector<16x96xf32>
    %50 = tpu.matmul %47, %49, %cst_26 {dimension_numbers = #tpu.dot_dimension_numbers<[1], [0], [0], [1], [0, 0, 1, 1], [], []>} : vector<16x32xbf16>, vector<32x96xbf16>, vector<16x96xf32> -> vector<16x96xf32>
    %c0_27 = arith.constant 0 : index
    %c0_28 = arith.constant 0 : index
    %c0_29 = arith.constant 0 : index
    %51 = vector.load %arg5[%c0_27, %c0_28, %c0_29] : memref<3x8x256xf32, #tpu.memory_space<vmem>>, vector<1x1x96xf32>
    %52 = vector.shape_cast %51 : vector<1x1x96xf32> to vector<1x96xf32>
    %53 = vector.broadcast %52 : vector<1x96xf32> to vector<16x96xf32>
    %54 = arith.addf %50, %53 : vector<16x96xf32>
    %55 = vector.extract_strided_slice %54 {offsets = [0, 0], sizes = [16, 32], strides = [1, 1]} : vector<16x96xf32> to vector<16x32xf32>
    %56 = vector.extract_strided_slice %54 {offsets = [0, 32], sizes = [16, 32], strides = [1, 1]} : vector<16x96xf32> to vector<16x32xf32>
    %57 = vector.extract_strided_slice %54 {offsets = [0, 64], sizes = [16, 32], strides = [1, 1]} : vector<16x96xf32> to vector<16x32xf32>
    %58 = vector.shape_cast %55 : vector<16x32xf32> to vector<2x8x4x8xf32>
    %59 = tpu.transpose %58, [0, 2, 1, 3] : vector<2x8x4x8xf32> -> vector<2x4x8x8xf32>
    %60 = vector.shape_cast %59 : vector<2x4x8x8xf32> to vector<8x8x8xf32>
    %61 = vector.shape_cast %56 : vector<16x32xf32> to vector<2x8x4x8xf32>
    %62 = tpu.transpose %61, [0, 2, 1, 3] : vector<2x8x4x8xf32> -> vector<2x4x8x8xf32>
    %63 = vector.shape_cast %62 : vector<2x4x8x8xf32> to vector<8x8x8xf32>
    %64 = vector.shape_cast %57 : vector<16x32xf32> to vector<2x8x4x8xf32>
    %65 = tpu.transpose %64, [0, 2, 1, 3] : vector<2x8x4x8xf32> -> vector<2x4x8x8xf32>
    %66 = vector.shape_cast %65 : vector<2x4x8x8xf32> to vector<8x8x8xf32>
    %67 = arith.truncf %60 : vector<8x8x8xf32> to vector<8x8x8xbf16>
    %68 = arith.truncf %63 : vector<8x8x8xf32> to vector<8x8x8xbf16>
    "tpu.trace_start"() <{level = 10 : i32, message = "bqd,bkd->bqk"}> : () -> ()
    %cst_30 = arith.constant dense<0.000000e+00> : vector<8x8x8xf32>
    %69 = tpu.matmul %67, %68, %cst_30 {dimension_numbers = #tpu.dot_dimension_numbers<[2], [2], [1], [1], [0, 0, 0, 1, 1, 1], [0], [0]>} : vector<8x8x8xbf16>, vector<8x8x8xbf16>, vector<8x8x8xf32> -> vector<8x8x8xf32>
    "tpu.trace_stop"() : () -> ()
    %70 = arith.addf %69, %18 : vector<8x8x8xf32>
    %cst_31 = arith.constant dense<0xFF800000> : vector<8x8xf32>
    %71 = vector.multi_reduction <maximumf>, %70, %cst_31 [2] : vector<8x8x8xf32> to vector<8x8xf32>
    %72 = vector.shape_cast %71 : vector<8x8xf32> to vector<8x8x1xf32>
    %73 = vector.broadcast %72 : vector<8x8x1xf32> to vector<8x8x8xf32>
    %74 = arith.subf %70, %73 : vector<8x8x8xf32>
    %75 = math.exp %74 : vector<8x8x8xf32>
    %cst_32 = arith.constant dense<0.000000e+00> : vector<8x8xf32>
    %76 = vector.multi_reduction <add>, %75, %cst_32 [2] : vector<8x8x8xf32> to vector<8x8xf32>
    %77 = vector.shape_cast %76 : vector<8x8xf32> to vector<8x8x1xf32>
    %78 = tpu.reciprocal %77 {approx = true} : vector<8x8x1xf32> -> vector<8x8x1xf32>
    %79 = vector.broadcast %78 : vector<8x8x1xf32> to vector<8x8x8xf32>
    %80 = arith.mulf %75, %79 : vector<8x8x8xf32>
    %81 = arith.truncf %80 : vector<8x8x8xf32> to vector<8x8x8xbf16>
    %82 = arith.truncf %66 : vector<8x8x8xf32> to vector<8x8x8xbf16>
    "tpu.trace_start"() <{level = 10 : i32, message = "bqk,bkd->bqd"}> : () -> ()
    %cst_33 = arith.constant dense<0.000000e+00> : vector<8x8x8xf32>
    %83 = tpu.matmul %81, %82, %cst_33 {dimension_numbers = #tpu.dot_dimension_numbers<[2], [1], [1], [2], [0, 0, 0, 1, 1, 2], [0], [0]>} : vector<8x8x8xbf16>, vector<8x8x8xbf16>, vector<8x8x8xf32> -> vector<8x8x8xf32>
    "tpu.trace_stop"() : () -> ()
    %84 = vector.shape_cast %83 : vector<8x8x8xf32> to vector<2x4x8x8xf32>
    %85 = tpu.transpose %84, [0, 2, 1, 3] : vector<2x4x8x8xf32> -> vector<2x8x4x8xf32>
    %86 = vector.shape_cast %85 : vector<2x8x4x8xf32> to vector<16x32xf32>
    %87 = arith.truncf %86 : vector<16x32xf32> to vector<16x32xbf16>
    %c0_34 = arith.constant 0 : index
    %c0_35 = arith.constant 0 : index
    %c96 = arith.constant 96 : index
    %88 = vector.load %arg4[%c0_34, %c0_35, %c96] : memref<3x128x256xbf16, #tpu.memory_space<vmem>>, vector<1x32x32xbf16>
    %89 = vector.shape_cast %88 : vector<1x32x32xbf16> to vector<32x32xbf16>
    %cst_36 = arith.constant dense<0.000000e+00> : vector<16x32xf32>
    %90 = tpu.matmul %87, %89, %cst_36 {dimension_numbers = #tpu.dot_dimension_numbers<[1], [0], [0], [1], [0, 0, 1, 1], [], []>} : vector<16x32xbf16>, vector<32x32xbf16>, vector<16x32xf32> -> vector<16x32xf32>
    %91 = arith.addf %1, %90 : vector<16x32xf32>
    %c0_37 = arith.constant 0 : index
    %c0_38 = arith.constant 0 : index
    %c96_39 = arith.constant 96 : index
    %92 = vector.load %arg5[%c0_37, %c0_38, %c96_39] : memref<3x8x256xf32, #tpu.memory_space<vmem>>, vector<1x1x32xf32>
    %93 = vector.shape_cast %92 : vector<1x1x32xf32> to vector<1x32xf32>
    %94 = vector.broadcast %93 : vector<1x32xf32> to vector<16x32xf32>
    %95 = arith.addf %91, %94 : vector<16x32xf32>
    %c0_40 = arith.constant 0 : index
    %c2_41 = arith.constant 2 : index
    %c64 = arith.constant 64 : index
    %96 = vector.load %arg5[%c0_40, %c2_41, %c64] : memref<3x8x256xf32, #tpu.memory_space<vmem>>, vector<1x1x32xf32>
    %97 = vector.shape_cast %96 : vector<1x1x32xf32> to vector<1x32xf32>
    %c0_42 = arith.constant 0 : index
    %c2_43 = arith.constant 2 : index
    %c96_44 = arith.constant 96 : index
    %98 = vector.load %arg5[%c0_42, %c2_43, %c96_44] : memref<3x8x256xf32, #tpu.memory_space<vmem>>, vector<1x1x32xf32>
    %99 = vector.shape_cast %98 : vector<1x1x32xf32> to vector<1x32xf32>
    %cst_45 = arith.constant dense<0.000000e+00> : vector<16xf32>
    %100 = vector.multi_reduction <add>, %95, %cst_45 [1] : vector<16x32xf32> to vector<16xf32>
    %101 = vector.shape_cast %100 : vector<16xf32> to vector<16x1xf32>
    %cst_46 = arith.constant 3.200000e+01 : f32
    %102 = vector.broadcast %cst_46 : f32 to vector<16x1xf32>
    %103 = arith.divf %101, %102 : vector<16x1xf32>
    %104 = vector.broadcast %103 : vector<16x1xf32> to vector<16x32xf32>
    %105 = arith.subf %95, %104 : vector<16x32xf32>
    %106 = arith.mulf %105, %105 : vector<16x32xf32>
    %cst_47 = arith.constant dense<0.000000e+00> : vector<16xf32>
    %107 = vector.multi_reduction <add>, %106, %cst_47 [1] : vector<16x32xf32> to vector<16xf32>
    %108 = vector.shape_cast %107 : vector<16xf32> to vector<16x1xf32>
    %cst_48 = arith.constant 3.200000e+01 : f32
    %109 = vector.broadcast %cst_48 : f32 to vector<16x1xf32>
    %110 = arith.divf %108, %109 : vector<16x1xf32>
    %cst_49 = arith.constant 9.99999996E-13 : f32
    %111 = vector.broadcast %cst_49 : f32 to vector<16x1xf32>
    %112 = arith.addf %110, %111 : vector<16x1xf32>
    %113 = math.rsqrt %112 : vector<16x1xf32>
    %114 = vector.broadcast %113 : vector<16x1xf32> to vector<16x32xf32>
    %115 = arith.mulf %105, %114 : vector<16x32xf32>
    %116 = vector.broadcast %97 : vector<1x32xf32> to vector<16x32xf32>
    %117 = arith.mulf %115, %116 : vector<16x32xf32>
    %118 = vector.broadcast %99 : vector<1x32xf32> to vector<16x32xf32>
    %119 = arith.addf %117, %118 : vector<16x32xf32>
    %120 = arith.truncf %119 : vector<16x32xf32> to vector<16x32xbf16>
    %c0_50 = arith.constant 0 : index
    %c0_51 = arith.constant 0 : index
    %c128 = arith.constant 128 : index
    %121 = vector.load %arg4[%c0_50, %c0_51, %c128] : memref<3x128x256xbf16, #tpu.memory_space<vmem>>, vector<1x32x32xbf16>
    %122 = vector.shape_cast %121 : vector<1x32x32xbf16> to vector<32x32xbf16>
    %cst_52 = arith.constant dense<0.000000e+00> : vector<16x32xf32>
    %123 = tpu.matmul %120, %122, %cst_52 {dimension_numbers = #tpu.dot_dimension_numbers<[1], [0], [0], [1], [0, 0, 1, 1], [], []>} : vector<16x32xbf16>, vector<32x32xbf16>, vector<16x32xf32> -> vector<16x32xf32>
    %c0_53 = arith.constant 0 : index
    %c0_54 = arith.constant 0 : index
    %c128_55 = arith.constant 128 : index
    %124 = vector.load %arg5[%c0_53, %c0_54, %c128_55] : memref<3x8x256xf32, #tpu.memory_space<vmem>>, vector<1x1x32xf32>
    %125 = vector.shape_cast %124 : vector<1x1x32xf32> to vector<1x32xf32>
    %126 = vector.broadcast %125 : vector<1x32xf32> to vector<16x32xf32>
    %127 = arith.addf %123, %126 : vector<16x32xf32>
    %c0_56 = arith.constant 0 : index
    %c0_57 = arith.constant 0 : index
    %c160 = arith.constant 160 : index
    %128 = vector.load %arg4[%c0_56, %c0_57, %c160] : memref<3x128x256xbf16, #tpu.memory_space<vmem>>, vector<1x32x64xbf16>
    %129 = vector.shape_cast %128 : vector<1x32x64xbf16> to vector<32x64xbf16>
    %cst_58 = arith.constant dense<0.000000e+00> : vector<32x64xf32>
    %130 = tpu.matmul %4, %129, %cst_58 {dimension_numbers = #tpu.dot_dimension_numbers<[1], [0], [0], [1], [0, 0, 1, 1], [], []>} : vector<32x32xbf16>, vector<32x64xbf16>, vector<32x64xf32> -> vector<32x64xf32>
    %c0_59 = arith.constant 0 : index
    %c0_60 = arith.constant 0 : index
    %c160_61 = arith.constant 160 : index
    %131 = vector.load %arg5[%c0_59, %c0_60, %c160_61] : memref<3x8x256xf32, #tpu.memory_space<vmem>>, vector<1x1x64xf32>
    %132 = vector.shape_cast %131 : vector<1x1x64xf32> to vector<1x64xf32>
    %133 = vector.broadcast %132 : vector<1x64xf32> to vector<32x64xf32>
    %134 = arith.addf %130, %133 : vector<32x64xf32>
    %135 = vector.extract_strided_slice %134 {offsets = [0, 0], sizes = [32, 32], strides = [1, 1]} : vector<32x64xf32> to vector<32x32xf32>
    %136 = vector.extract_strided_slice %134 {offsets = [0, 32], sizes = [32, 32], strides = [1, 1]} : vector<32x64xf32> to vector<32x32xf32>
    %137 = vector.shape_cast %127 : vector<16x32xf32> to vector<2x8x4x8xf32>
    %138 = tpu.transpose %137, [0, 2, 1, 3] : vector<2x8x4x8xf32> -> vector<2x4x8x8xf32>
    %139 = vector.shape_cast %138 : vector<2x4x8x8xf32> to vector<8x8x8xf32>
    %140 = vector.shape_cast %135 : vector<32x32xf32> to vector<2x16x4x8xf32>
    %141 = tpu.transpose %140, [0, 2, 1, 3] : vector<2x16x4x8xf32> -> vector<2x4x16x8xf32>
    %142 = vector.shape_cast %141 : vector<2x4x16x8xf32> to vector<8x16x8xf32>
    %143 = vector.shape_cast %136 : vector<32x32xf32> to vector<2x16x4x8xf32>
    %144 = tpu.transpose %143, [0, 2, 1, 3] : vector<2x16x4x8xf32> -> vector<2x4x16x8xf32>
    %145 = vector.shape_cast %144 : vector<2x4x16x8xf32> to vector<8x16x8xf32>
    %146 = arith.truncf %139 : vector<8x8x8xf32> to vector<8x8x8xbf16>
    %147 = arith.truncf %142 : vector<8x16x8xf32> to vector<8x16x8xbf16>
    "tpu.trace_start"() <{level = 10 : i32, message = "bqd,bkd->bqk"}> : () -> ()
    %cst_62 = arith.constant dense<0.000000e+00> : vector<8x8x16xf32>
    %148 = tpu.matmul %146, %147, %cst_62 {dimension_numbers = #tpu.dot_dimension_numbers<[2], [2], [1], [1], [0, 0, 0, 1, 1, 1], [0], [0]>} : vector<8x8x8xbf16>, vector<8x16x8xbf16>, vector<8x8x16xf32> -> vector<8x8x16xf32>
    "tpu.trace_stop"() : () -> ()
    %149 = vector.broadcast %22 : vector<8x1x16xf32> to vector<8x8x16xf32>
    %150 = arith.addf %148, %149 : vector<8x8x16xf32>
    %cst_63 = arith.constant dense<0xFF800000> : vector<8x8xf32>
    %151 = vector.multi_reduction <maximumf>, %150, %cst_63 [2] : vector<8x8x16xf32> to vector<8x8xf32>
    %152 = vector.shape_cast %151 : vector<8x8xf32> to vector<8x8x1xf32>
    %153 = vector.broadcast %152 : vector<8x8x1xf32> to vector<8x8x16xf32>
    %154 = arith.subf %150, %153 : vector<8x8x16xf32>
    %155 = math.exp %154 : vector<8x8x16xf32>
    %cst_64 = arith.constant dense<0.000000e+00> : vector<8x8xf32>
    %156 = vector.multi_reduction <add>, %155, %cst_64 [2] : vector<8x8x16xf32> to vector<8x8xf32>
    %157 = vector.shape_cast %156 : vector<8x8xf32> to vector<8x8x1xf32>
    %158 = tpu.reciprocal %157 {approx = true} : vector<8x8x1xf32> -> vector<8x8x1xf32>
    %159 = vector.broadcast %158 : vector<8x8x1xf32> to vector<8x8x16xf32>
    %160 = arith.mulf %155, %159 : vector<8x8x16xf32>
    %161 = arith.truncf %160 : vector<8x8x16xf32> to vector<8x8x16xbf16>
    %162 = arith.truncf %145 : vector<8x16x8xf32> to vector<8x16x8xbf16>
    "tpu.trace_start"() <{level = 10 : i32, message = "bqk,bkd->bqd"}> : () -> ()
    %cst_65 = arith.constant dense<0.000000e+00> : vector<8x8x8xf32>
    %163 = tpu.matmul %161, %162, %cst_65 {dimension_numbers = #tpu.dot_dimension_numbers<[2], [1], [1], [2], [0, 0, 0, 1, 1, 2], [0], [0]>} : vector<8x8x16xbf16>, vector<8x16x8xbf16>, vector<8x8x8xf32> -> vector<8x8x8xf32>
    "tpu.trace_stop"() : () -> ()
    %164 = vector.shape_cast %163 : vector<8x8x8xf32> to vector<2x4x8x8xf32>
    %165 = tpu.transpose %164, [0, 2, 1, 3] : vector<2x4x8x8xf32> -> vector<2x8x4x8xf32>
    %166 = vector.shape_cast %165 : vector<2x8x4x8xf32> to vector<16x32xf32>
    %167 = arith.truncf %166 : vector<16x32xf32> to vector<16x32xbf16>
    %c0_66 = arith.constant 0 : index
    %c0_67 = arith.constant 0 : index
    %c224 = arith.constant 224 : index
    %168 = vector.load %arg4[%c0_66, %c0_67, %c224] : memref<3x128x256xbf16, #tpu.memory_space<vmem>>, vector<1x32x32xbf16>
    %169 = vector.shape_cast %168 : vector<1x32x32xbf16> to vector<32x32xbf16>
    %cst_68 = arith.constant dense<0.000000e+00> : vector<16x32xf32>
    %170 = tpu.matmul %167, %169, %cst_68 {dimension_numbers = #tpu.dot_dimension_numbers<[1], [0], [0], [1], [0, 0, 1, 1], [], []>} : vector<16x32xbf16>, vector<32x32xbf16>, vector<16x32xf32> -> vector<16x32xf32>
    %171 = arith.addf %95, %170 : vector<16x32xf32>
    %c0_69 = arith.constant 0 : index
    %c0_70 = arith.constant 0 : index
    %c224_71 = arith.constant 224 : index
    %172 = vector.load %arg5[%c0_69, %c0_70, %c224_71] : memref<3x8x256xf32, #tpu.memory_space<vmem>>, vector<1x1x32xf32>
    %173 = vector.shape_cast %172 : vector<1x1x32xf32> to vector<1x32xf32>
    %174 = vector.broadcast %173 : vector<1x32xf32> to vector<16x32xf32>
    %175 = arith.addf %171, %174 : vector<16x32xf32>
    %c0_72 = arith.constant 0 : index
    %c2_73 = arith.constant 2 : index
    %c128_74 = arith.constant 128 : index
    %176 = vector.load %arg5[%c0_72, %c2_73, %c128_74] : memref<3x8x256xf32, #tpu.memory_space<vmem>>, vector<1x1x32xf32>
    %177 = vector.shape_cast %176 : vector<1x1x32xf32> to vector<1x32xf32>
    %c0_75 = arith.constant 0 : index
    %c2_76 = arith.constant 2 : index
    %c160_77 = arith.constant 160 : index
    %178 = vector.load %arg5[%c0_75, %c2_76, %c160_77] : memref<3x8x256xf32, #tpu.memory_space<vmem>>, vector<1x1x32xf32>
    %179 = vector.shape_cast %178 : vector<1x1x32xf32> to vector<1x32xf32>
    %cst_78 = arith.constant dense<0.000000e+00> : vector<16xf32>
    %180 = vector.multi_reduction <add>, %175, %cst_78 [1] : vector<16x32xf32> to vector<16xf32>
    %181 = vector.shape_cast %180 : vector<16xf32> to vector<16x1xf32>
    %cst_79 = arith.constant 3.200000e+01 : f32
    %182 = vector.broadcast %cst_79 : f32 to vector<16x1xf32>
    %183 = arith.divf %181, %182 : vector<16x1xf32>
    %184 = vector.broadcast %183 : vector<16x1xf32> to vector<16x32xf32>
    %185 = arith.subf %175, %184 : vector<16x32xf32>
    %186 = arith.mulf %185, %185 : vector<16x32xf32>
    %cst_80 = arith.constant dense<0.000000e+00> : vector<16xf32>
    %187 = vector.multi_reduction <add>, %186, %cst_80 [1] : vector<16x32xf32> to vector<16xf32>
    %188 = vector.shape_cast %187 : vector<16xf32> to vector<16x1xf32>
    %cst_81 = arith.constant 3.200000e+01 : f32
    %189 = vector.broadcast %cst_81 : f32 to vector<16x1xf32>
    %190 = arith.divf %188, %189 : vector<16x1xf32>
    %cst_82 = arith.constant 9.99999996E-13 : f32
    %191 = vector.broadcast %cst_82 : f32 to vector<16x1xf32>
    %192 = arith.addf %190, %191 : vector<16x1xf32>
    %193 = math.rsqrt %192 : vector<16x1xf32>
    %194 = vector.broadcast %193 : vector<16x1xf32> to vector<16x32xf32>
    %195 = arith.mulf %185, %194 : vector<16x32xf32>
    %196 = vector.broadcast %177 : vector<1x32xf32> to vector<16x32xf32>
    %197 = arith.mulf %195, %196 : vector<16x32xf32>
    %198 = vector.broadcast %179 : vector<1x32xf32> to vector<16x32xf32>
    %199 = arith.addf %197, %198 : vector<16x32xf32>
    %200 = arith.truncf %199 : vector<16x32xf32> to vector<16x32xbf16>
    %c0_83 = arith.constant 0 : index
    %c32_84 = arith.constant 32 : index
    %c0_85 = arith.constant 0 : index
    %201 = vector.load %arg4[%c0_83, %c32_84, %c0_85] : memref<3x128x256xbf16, #tpu.memory_space<vmem>>, vector<1x32x64xbf16>
    %202 = vector.shape_cast %201 : vector<1x32x64xbf16> to vector<32x64xbf16>
    %cst_86 = arith.constant dense<0.000000e+00> : vector<16x64xf32>
    %203 = tpu.matmul %200, %202, %cst_86 {dimension_numbers = #tpu.dot_dimension_numbers<[1], [0], [0], [1], [0, 0, 1, 1], [], []>} : vector<16x32xbf16>, vector<32x64xbf16>, vector<16x64xf32> -> vector<16x64xf32>
    %c0_87 = arith.constant 0 : index
    %c1 = arith.constant 1 : index
    %c0_88 = arith.constant 0 : index
    %204 = vector.load %arg5[%c0_87, %c1, %c0_88] : memref<3x8x256xf32, #tpu.memory_space<vmem>>, vector<1x1x64xf32>
    %205 = vector.shape_cast %204 : vector<1x1x64xf32> to vector<1x64xf32>
    %206 = vector.broadcast %205 : vector<1x64xf32> to vector<16x64xf32>
    %207 = arith.addf %203, %206 : vector<16x64xf32>
    %cst_89 = arith.constant 0.000000e+00 : f32
    %208 = vector.broadcast %cst_89 : f32 to vector<16x64xf32>
    %209 = arith.maximumf %207, %208 : vector<16x64xf32>
    %210 = arith.truncf %209 : vector<16x64xf32> to vector<16x64xbf16>
    %c0_90 = arith.constant 0 : index
    %c64_91 = arith.constant 64 : index
    %c0_92 = arith.constant 0 : index
    %211 = vector.load %arg4[%c0_90, %c64_91, %c0_92] : memref<3x128x256xbf16, #tpu.memory_space<vmem>>, vector<1x64x32xbf16>
    %212 = vector.shape_cast %211 : vector<1x64x32xbf16> to vector<64x32xbf16>
    %cst_93 = arith.constant dense<0.000000e+00> : vector<16x32xf32>
    %213 = tpu.matmul %210, %212, %cst_93 {dimension_numbers = #tpu.dot_dimension_numbers<[1], [0], [0], [1], [0, 0, 1, 1], [], []>} : vector<16x64xbf16>, vector<64x32xbf16>, vector<16x32xf32> -> vector<16x32xf32>
    %214 = arith.addf %175, %213 : vector<16x32xf32>
    %c0_94 = arith.constant 0 : index
    %c1_95 = arith.constant 1 : index
    %c64_96 = arith.constant 64 : index
    %215 = vector.load %arg5[%c0_94, %c1_95, %c64_96] : memref<3x8x256xf32, #tpu.memory_space<vmem>>, vector<1x1x32xf32>
    %216 = vector.shape_cast %215 : vector<1x1x32xf32> to vector<1x32xf32>
    %217 = vector.broadcast %216 : vector<1x32xf32> to vector<16x32xf32>
    %218 = arith.addf %214, %217 : vector<16x32xf32>
    %c1_97 = arith.constant 1 : index
    %c2_98 = arith.constant 2 : index
    %c0_99 = arith.constant 0 : index
    %219 = vector.load %arg5[%c1_97, %c2_98, %c0_99] : memref<3x8x256xf32, #tpu.memory_space<vmem>>, vector<1x1x32xf32>
    %220 = vector.shape_cast %219 : vector<1x1x32xf32> to vector<1x32xf32>
    %c1_100 = arith.constant 1 : index
    %c2_101 = arith.constant 2 : index
    %c32_102 = arith.constant 32 : index
    %221 = vector.load %arg5[%c1_100, %c2_101, %c32_102] : memref<3x8x256xf32, #tpu.memory_space<vmem>>, vector<1x1x32xf32>
    %222 = vector.shape_cast %221 : vector<1x1x32xf32> to vector<1x32xf32>
    %cst_103 = arith.constant dense<0.000000e+00> : vector<16xf32>
    %223 = vector.multi_reduction <add>, %218, %cst_103 [1] : vector<16x32xf32> to vector<16xf32>
    %224 = vector.shape_cast %223 : vector<16xf32> to vector<16x1xf32>
    %cst_104 = arith.constant 3.200000e+01 : f32
    %225 = vector.broadcast %cst_104 : f32 to vector<16x1xf32>
    %226 = arith.divf %224, %225 : vector<16x1xf32>
    %227 = vector.broadcast %226 : vector<16x1xf32> to vector<16x32xf32>
    %228 = arith.subf %218, %227 : vector<16x32xf32>
    %229 = arith.mulf %228, %228 : vector<16x32xf32>
    %cst_105 = arith.constant dense<0.000000e+00> : vector<16xf32>
    %230 = vector.multi_reduction <add>, %229, %cst_105 [1] : vector<16x32xf32> to vector<16xf32>
    %231 = vector.shape_cast %230 : vector<16xf32> to vector<16x1xf32>
    %cst_106 = arith.constant 3.200000e+01 : f32
    %232 = vector.broadcast %cst_106 : f32 to vector<16x1xf32>
    %233 = arith.divf %231, %232 : vector<16x1xf32>
    %cst_107 = arith.constant 9.99999996E-13 : f32
    %234 = vector.broadcast %cst_107 : f32 to vector<16x1xf32>
    %235 = arith.addf %233, %234 : vector<16x1xf32>
    %236 = math.rsqrt %235 : vector<16x1xf32>
    %237 = vector.broadcast %236 : vector<16x1xf32> to vector<16x32xf32>
    %238 = arith.mulf %228, %237 : vector<16x32xf32>
    %239 = vector.broadcast %220 : vector<1x32xf32> to vector<16x32xf32>
    %240 = arith.mulf %238, %239 : vector<16x32xf32>
    %241 = vector.broadcast %222 : vector<1x32xf32> to vector<16x32xf32>
    %242 = arith.addf %240, %241 : vector<16x32xf32>
    %243 = arith.truncf %242 : vector<16x32xf32> to vector<16x32xbf16>
    %c1_108 = arith.constant 1 : index
    %c0_109 = arith.constant 0 : index
    %c0_110 = arith.constant 0 : index
    %244 = vector.load %arg4[%c1_108, %c0_109, %c0_110] : memref<3x128x256xbf16, #tpu.memory_space<vmem>>, vector<1x32x96xbf16>
    %245 = vector.shape_cast %244 : vector<1x32x96xbf16> to vector<32x96xbf16>
    %cst_111 = arith.constant dense<0.000000e+00> : vector<16x96xf32>
    %246 = tpu.matmul %243, %245, %cst_111 {dimension_numbers = #tpu.dot_dimension_numbers<[1], [0], [0], [1], [0, 0, 1, 1], [], []>} : vector<16x32xbf16>, vector<32x96xbf16>, vector<16x96xf32> -> vector<16x96xf32>
    %c1_112 = arith.constant 1 : index
    %c0_113 = arith.constant 0 : index
    %c0_114 = arith.constant 0 : index
    %247 = vector.load %arg5[%c1_112, %c0_113, %c0_114] : memref<3x8x256xf32, #tpu.memory_space<vmem>>, vector<1x1x96xf32>
    %248 = vector.shape_cast %247 : vector<1x1x96xf32> to vector<1x96xf32>
    %249 = vector.broadcast %248 : vector<1x96xf32> to vector<16x96xf32>
    %250 = arith.addf %246, %249 : vector<16x96xf32>
    %251 = vector.extract_strided_slice %250 {offsets = [0, 0], sizes = [16, 32], strides = [1, 1]} : vector<16x96xf32> to vector<16x32xf32>
    %252 = vector.extract_strided_slice %250 {offsets = [0, 32], sizes = [16, 32], strides = [1, 1]} : vector<16x96xf32> to vector<16x32xf32>
    %253 = vector.extract_strided_slice %250 {offsets = [0, 64], sizes = [16, 32], strides = [1, 1]} : vector<16x96xf32> to vector<16x32xf32>
    %254 = vector.shape_cast %251 : vector<16x32xf32> to vector<2x8x4x8xf32>
    %255 = tpu.transpose %254, [0, 2, 1, 3] : vector<2x8x4x8xf32> -> vector<2x4x8x8xf32>
    %256 = vector.shape_cast %255 : vector<2x4x8x8xf32> to vector<8x8x8xf32>
    %257 = vector.shape_cast %252 : vector<16x32xf32> to vector<2x8x4x8xf32>
    %258 = tpu.transpose %257, [0, 2, 1, 3] : vector<2x8x4x8xf32> -> vector<2x4x8x8xf32>
    %259 = vector.shape_cast %258 : vector<2x4x8x8xf32> to vector<8x8x8xf32>
    %260 = vector.shape_cast %253 : vector<16x32xf32> to vector<2x8x4x8xf32>
    %261 = tpu.transpose %260, [0, 2, 1, 3] : vector<2x8x4x8xf32> -> vector<2x4x8x8xf32>
    %262 = vector.shape_cast %261 : vector<2x4x8x8xf32> to vector<8x8x8xf32>
    %263 = arith.truncf %256 : vector<8x8x8xf32> to vector<8x8x8xbf16>
    %264 = arith.truncf %259 : vector<8x8x8xf32> to vector<8x8x8xbf16>
    "tpu.trace_start"() <{level = 10 : i32, message = "bqd,bkd->bqk"}> : () -> ()
    %cst_115 = arith.constant dense<0.000000e+00> : vector<8x8x8xf32>
    %265 = tpu.matmul %263, %264, %cst_115 {dimension_numbers = #tpu.dot_dimension_numbers<[2], [2], [1], [1], [0, 0, 0, 1, 1, 1], [0], [0]>} : vector<8x8x8xbf16>, vector<8x8x8xbf16>, vector<8x8x8xf32> -> vector<8x8x8xf32>
    "tpu.trace_stop"() : () -> ()
    %266 = arith.addf %265, %18 : vector<8x8x8xf32>
    %cst_116 = arith.constant dense<0xFF800000> : vector<8x8xf32>
    %267 = vector.multi_reduction <maximumf>, %266, %cst_116 [2] : vector<8x8x8xf32> to vector<8x8xf32>
    %268 = vector.shape_cast %267 : vector<8x8xf32> to vector<8x8x1xf32>
    %269 = vector.broadcast %268 : vector<8x8x1xf32> to vector<8x8x8xf32>
    %270 = arith.subf %266, %269 : vector<8x8x8xf32>
    %271 = math.exp %270 : vector<8x8x8xf32>
    %cst_117 = arith.constant dense<0.000000e+00> : vector<8x8xf32>
    %272 = vector.multi_reduction <add>, %271, %cst_117 [2] : vector<8x8x8xf32> to vector<8x8xf32>
    %273 = vector.shape_cast %272 : vector<8x8xf32> to vector<8x8x1xf32>
    %274 = tpu.reciprocal %273 {approx = true} : vector<8x8x1xf32> -> vector<8x8x1xf32>
    %275 = vector.broadcast %274 : vector<8x8x1xf32> to vector<8x8x8xf32>
    %276 = arith.mulf %271, %275 : vector<8x8x8xf32>
    %277 = arith.truncf %276 : vector<8x8x8xf32> to vector<8x8x8xbf16>
    %278 = arith.truncf %262 : vector<8x8x8xf32> to vector<8x8x8xbf16>
    "tpu.trace_start"() <{level = 10 : i32, message = "bqk,bkd->bqd"}> : () -> ()
    %cst_118 = arith.constant dense<0.000000e+00> : vector<8x8x8xf32>
    %279 = tpu.matmul %277, %278, %cst_118 {dimension_numbers = #tpu.dot_dimension_numbers<[2], [1], [1], [2], [0, 0, 0, 1, 1, 2], [0], [0]>} : vector<8x8x8xbf16>, vector<8x8x8xbf16>, vector<8x8x8xf32> -> vector<8x8x8xf32>
    "tpu.trace_stop"() : () -> ()
    %280 = vector.shape_cast %279 : vector<8x8x8xf32> to vector<2x4x8x8xf32>
    %281 = tpu.transpose %280, [0, 2, 1, 3] : vector<2x4x8x8xf32> -> vector<2x8x4x8xf32>
    %282 = vector.shape_cast %281 : vector<2x8x4x8xf32> to vector<16x32xf32>
    %283 = arith.truncf %282 : vector<16x32xf32> to vector<16x32xbf16>
    %c1_119 = arith.constant 1 : index
    %c0_120 = arith.constant 0 : index
    %c96_121 = arith.constant 96 : index
    %284 = vector.load %arg4[%c1_119, %c0_120, %c96_121] : memref<3x128x256xbf16, #tpu.memory_space<vmem>>, vector<1x32x32xbf16>
    %285 = vector.shape_cast %284 : vector<1x32x32xbf16> to vector<32x32xbf16>
    %cst_122 = arith.constant dense<0.000000e+00> : vector<16x32xf32>
    %286 = tpu.matmul %283, %285, %cst_122 {dimension_numbers = #tpu.dot_dimension_numbers<[1], [0], [0], [1], [0, 0, 1, 1], [], []>} : vector<16x32xbf16>, vector<32x32xbf16>, vector<16x32xf32> -> vector<16x32xf32>
    %287 = arith.addf %218, %286 : vector<16x32xf32>
    %c1_123 = arith.constant 1 : index
    %c0_124 = arith.constant 0 : index
    %c96_125 = arith.constant 96 : index
    %288 = vector.load %arg5[%c1_123, %c0_124, %c96_125] : memref<3x8x256xf32, #tpu.memory_space<vmem>>, vector<1x1x32xf32>
    %289 = vector.shape_cast %288 : vector<1x1x32xf32> to vector<1x32xf32>
    %290 = vector.broadcast %289 : vector<1x32xf32> to vector<16x32xf32>
    %291 = arith.addf %287, %290 : vector<16x32xf32>
    %c1_126 = arith.constant 1 : index
    %c2_127 = arith.constant 2 : index
    %c64_128 = arith.constant 64 : index
    %292 = vector.load %arg5[%c1_126, %c2_127, %c64_128] : memref<3x8x256xf32, #tpu.memory_space<vmem>>, vector<1x1x32xf32>
    %293 = vector.shape_cast %292 : vector<1x1x32xf32> to vector<1x32xf32>
    %c1_129 = arith.constant 1 : index
    %c2_130 = arith.constant 2 : index
    %c96_131 = arith.constant 96 : index
    %294 = vector.load %arg5[%c1_129, %c2_130, %c96_131] : memref<3x8x256xf32, #tpu.memory_space<vmem>>, vector<1x1x32xf32>
    %295 = vector.shape_cast %294 : vector<1x1x32xf32> to vector<1x32xf32>
    %cst_132 = arith.constant dense<0.000000e+00> : vector<16xf32>
    %296 = vector.multi_reduction <add>, %291, %cst_132 [1] : vector<16x32xf32> to vector<16xf32>
    %297 = vector.shape_cast %296 : vector<16xf32> to vector<16x1xf32>
    %cst_133 = arith.constant 3.200000e+01 : f32
    %298 = vector.broadcast %cst_133 : f32 to vector<16x1xf32>
    %299 = arith.divf %297, %298 : vector<16x1xf32>
    %300 = vector.broadcast %299 : vector<16x1xf32> to vector<16x32xf32>
    %301 = arith.subf %291, %300 : vector<16x32xf32>
    %302 = arith.mulf %301, %301 : vector<16x32xf32>
    %cst_134 = arith.constant dense<0.000000e+00> : vector<16xf32>
    %303 = vector.multi_reduction <add>, %302, %cst_134 [1] : vector<16x32xf32> to vector<16xf32>
    %304 = vector.shape_cast %303 : vector<16xf32> to vector<16x1xf32>
    %cst_135 = arith.constant 3.200000e+01 : f32
    %305 = vector.broadcast %cst_135 : f32 to vector<16x1xf32>
    %306 = arith.divf %304, %305 : vector<16x1xf32>
    %cst_136 = arith.constant 9.99999996E-13 : f32
    %307 = vector.broadcast %cst_136 : f32 to vector<16x1xf32>
    %308 = arith.addf %306, %307 : vector<16x1xf32>
    %309 = math.rsqrt %308 : vector<16x1xf32>
    %310 = vector.broadcast %309 : vector<16x1xf32> to vector<16x32xf32>
    %311 = arith.mulf %301, %310 : vector<16x32xf32>
    %312 = vector.broadcast %293 : vector<1x32xf32> to vector<16x32xf32>
    %313 = arith.mulf %311, %312 : vector<16x32xf32>
    %314 = vector.broadcast %295 : vector<1x32xf32> to vector<16x32xf32>
    %315 = arith.addf %313, %314 : vector<16x32xf32>
    %316 = arith.truncf %315 : vector<16x32xf32> to vector<16x32xbf16>
    %c1_137 = arith.constant 1 : index
    %c0_138 = arith.constant 0 : index
    %c128_139 = arith.constant 128 : index
    %317 = vector.load %arg4[%c1_137, %c0_138, %c128_139] : memref<3x128x256xbf16, #tpu.memory_space<vmem>>, vector<1x32x32xbf16>
    %318 = vector.shape_cast %317 : vector<1x32x32xbf16> to vector<32x32xbf16>
    %cst_140 = arith.constant dense<0.000000e+00> : vector<16x32xf32>
    %319 = tpu.matmul %316, %318, %cst_140 {dimension_numbers = #tpu.dot_dimension_numbers<[1], [0], [0], [1], [0, 0, 1, 1], [], []>} : vector<16x32xbf16>, vector<32x32xbf16>, vector<16x32xf32> -> vector<16x32xf32>
    %c1_141 = arith.constant 1 : index
    %c0_142 = arith.constant 0 : index
    %c128_143 = arith.constant 128 : index
    %320 = vector.load %arg5[%c1_141, %c0_142, %c128_143] : memref<3x8x256xf32, #tpu.memory_space<vmem>>, vector<1x1x32xf32>
    %321 = vector.shape_cast %320 : vector<1x1x32xf32> to vector<1x32xf32>
    %322 = vector.broadcast %321 : vector<1x32xf32> to vector<16x32xf32>
    %323 = arith.addf %319, %322 : vector<16x32xf32>
    %c1_144 = arith.constant 1 : index
    %c0_145 = arith.constant 0 : index
    %c160_146 = arith.constant 160 : index
    %324 = vector.load %arg4[%c1_144, %c0_145, %c160_146] : memref<3x128x256xbf16, #tpu.memory_space<vmem>>, vector<1x32x64xbf16>
    %325 = vector.shape_cast %324 : vector<1x32x64xbf16> to vector<32x64xbf16>
    %cst_147 = arith.constant dense<0.000000e+00> : vector<32x64xf32>
    %326 = tpu.matmul %4, %325, %cst_147 {dimension_numbers = #tpu.dot_dimension_numbers<[1], [0], [0], [1], [0, 0, 1, 1], [], []>} : vector<32x32xbf16>, vector<32x64xbf16>, vector<32x64xf32> -> vector<32x64xf32>
    %c1_148 = arith.constant 1 : index
    %c0_149 = arith.constant 0 : index
    %c160_150 = arith.constant 160 : index
    %327 = vector.load %arg5[%c1_148, %c0_149, %c160_150] : memref<3x8x256xf32, #tpu.memory_space<vmem>>, vector<1x1x64xf32>
    %328 = vector.shape_cast %327 : vector<1x1x64xf32> to vector<1x64xf32>
    %329 = vector.broadcast %328 : vector<1x64xf32> to vector<32x64xf32>
    %330 = arith.addf %326, %329 : vector<32x64xf32>
    %331 = vector.extract_strided_slice %330 {offsets = [0, 0], sizes = [32, 32], strides = [1, 1]} : vector<32x64xf32> to vector<32x32xf32>
    %332 = vector.extract_strided_slice %330 {offsets = [0, 32], sizes = [32, 32], strides = [1, 1]} : vector<32x64xf32> to vector<32x32xf32>
    %333 = vector.shape_cast %323 : vector<16x32xf32> to vector<2x8x4x8xf32>
    %334 = tpu.transpose %333, [0, 2, 1, 3] : vector<2x8x4x8xf32> -> vector<2x4x8x8xf32>
    %335 = vector.shape_cast %334 : vector<2x4x8x8xf32> to vector<8x8x8xf32>
    %336 = vector.shape_cast %331 : vector<32x32xf32> to vector<2x16x4x8xf32>
    %337 = tpu.transpose %336, [0, 2, 1, 3] : vector<2x16x4x8xf32> -> vector<2x4x16x8xf32>
    %338 = vector.shape_cast %337 : vector<2x4x16x8xf32> to vector<8x16x8xf32>
    %339 = vector.shape_cast %332 : vector<32x32xf32> to vector<2x16x4x8xf32>
    %340 = tpu.transpose %339, [0, 2, 1, 3] : vector<2x16x4x8xf32> -> vector<2x4x16x8xf32>
    %341 = vector.shape_cast %340 : vector<2x4x16x8xf32> to vector<8x16x8xf32>
    %342 = arith.truncf %335 : vector<8x8x8xf32> to vector<8x8x8xbf16>
    %343 = arith.truncf %338 : vector<8x16x8xf32> to vector<8x16x8xbf16>
    "tpu.trace_start"() <{level = 10 : i32, message = "bqd,bkd->bqk"}> : () -> ()
    %cst_151 = arith.constant dense<0.000000e+00> : vector<8x8x16xf32>
    %344 = tpu.matmul %342, %343, %cst_151 {dimension_numbers = #tpu.dot_dimension_numbers<[2], [2], [1], [1], [0, 0, 0, 1, 1, 1], [0], [0]>} : vector<8x8x8xbf16>, vector<8x16x8xbf16>, vector<8x8x16xf32> -> vector<8x8x16xf32>
    "tpu.trace_stop"() : () -> ()
    %345 = vector.broadcast %22 : vector<8x1x16xf32> to vector<8x8x16xf32>
    %346 = arith.addf %344, %345 : vector<8x8x16xf32>
    %cst_152 = arith.constant dense<0xFF800000> : vector<8x8xf32>
    %347 = vector.multi_reduction <maximumf>, %346, %cst_152 [2] : vector<8x8x16xf32> to vector<8x8xf32>
    %348 = vector.shape_cast %347 : vector<8x8xf32> to vector<8x8x1xf32>
    %349 = vector.broadcast %348 : vector<8x8x1xf32> to vector<8x8x16xf32>
    %350 = arith.subf %346, %349 : vector<8x8x16xf32>
    %351 = math.exp %350 : vector<8x8x16xf32>
    %cst_153 = arith.constant dense<0.000000e+00> : vector<8x8xf32>
    %352 = vector.multi_reduction <add>, %351, %cst_153 [2] : vector<8x8x16xf32> to vector<8x8xf32>
    %353 = vector.shape_cast %352 : vector<8x8xf32> to vector<8x8x1xf32>
    %354 = tpu.reciprocal %353 {approx = true} : vector<8x8x1xf32> -> vector<8x8x1xf32>
    %355 = vector.broadcast %354 : vector<8x8x1xf32> to vector<8x8x16xf32>
    %356 = arith.mulf %351, %355 : vector<8x8x16xf32>
    %357 = arith.truncf %356 : vector<8x8x16xf32> to vector<8x8x16xbf16>
    %358 = arith.truncf %341 : vector<8x16x8xf32> to vector<8x16x8xbf16>
    "tpu.trace_start"() <{level = 10 : i32, message = "bqk,bkd->bqd"}> : () -> ()
    %cst_154 = arith.constant dense<0.000000e+00> : vector<8x8x8xf32>
    %359 = tpu.matmul %357, %358, %cst_154 {dimension_numbers = #tpu.dot_dimension_numbers<[2], [1], [1], [2], [0, 0, 0, 1, 1, 2], [0], [0]>} : vector<8x8x16xbf16>, vector<8x16x8xbf16>, vector<8x8x8xf32> -> vector<8x8x8xf32>
    "tpu.trace_stop"() : () -> ()
    %360 = vector.shape_cast %359 : vector<8x8x8xf32> to vector<2x4x8x8xf32>
    %361 = tpu.transpose %360, [0, 2, 1, 3] : vector<2x4x8x8xf32> -> vector<2x8x4x8xf32>
    %362 = vector.shape_cast %361 : vector<2x8x4x8xf32> to vector<16x32xf32>
    %363 = arith.truncf %362 : vector<16x32xf32> to vector<16x32xbf16>
    %c1_155 = arith.constant 1 : index
    %c0_156 = arith.constant 0 : index
    %c224_157 = arith.constant 224 : index
    %364 = vector.load %arg4[%c1_155, %c0_156, %c224_157] : memref<3x128x256xbf16, #tpu.memory_space<vmem>>, vector<1x32x32xbf16>
    %365 = vector.shape_cast %364 : vector<1x32x32xbf16> to vector<32x32xbf16>
    %cst_158 = arith.constant dense<0.000000e+00> : vector<16x32xf32>
    %366 = tpu.matmul %363, %365, %cst_158 {dimension_numbers = #tpu.dot_dimension_numbers<[1], [0], [0], [1], [0, 0, 1, 1], [], []>} : vector<16x32xbf16>, vector<32x32xbf16>, vector<16x32xf32> -> vector<16x32xf32>
    %367 = arith.addf %291, %366 : vector<16x32xf32>
    %c1_159 = arith.constant 1 : index
    %c0_160 = arith.constant 0 : index
    %c224_161 = arith.constant 224 : index
    %368 = vector.load %arg5[%c1_159, %c0_160, %c224_161] : memref<3x8x256xf32, #tpu.memory_space<vmem>>, vector<1x1x32xf32>
    %369 = vector.shape_cast %368 : vector<1x1x32xf32> to vector<1x32xf32>
    %370 = vector.broadcast %369 : vector<1x32xf32> to vector<16x32xf32>
    %371 = arith.addf %367, %370 : vector<16x32xf32>
    %c1_162 = arith.constant 1 : index
    %c2_163 = arith.constant 2 : index
    %c128_164 = arith.constant 128 : index
    %372 = vector.load %arg5[%c1_162, %c2_163, %c128_164] : memref<3x8x256xf32, #tpu.memory_space<vmem>>, vector<1x1x32xf32>
    %373 = vector.shape_cast %372 : vector<1x1x32xf32> to vector<1x32xf32>
    %c1_165 = arith.constant 1 : index
    %c2_166 = arith.constant 2 : index
    %c160_167 = arith.constant 160 : index
    %374 = vector.load %arg5[%c1_165, %c2_166, %c160_167] : memref<3x8x256xf32, #tpu.memory_space<vmem>>, vector<1x1x32xf32>
    %375 = vector.shape_cast %374 : vector<1x1x32xf32> to vector<1x32xf32>
    %cst_168 = arith.constant dense<0.000000e+00> : vector<16xf32>
    %376 = vector.multi_reduction <add>, %371, %cst_168 [1] : vector<16x32xf32> to vector<16xf32>
    %377 = vector.shape_cast %376 : vector<16xf32> to vector<16x1xf32>
    %cst_169 = arith.constant 3.200000e+01 : f32
    %378 = vector.broadcast %cst_169 : f32 to vector<16x1xf32>
    %379 = arith.divf %377, %378 : vector<16x1xf32>
    %380 = vector.broadcast %379 : vector<16x1xf32> to vector<16x32xf32>
    %381 = arith.subf %371, %380 : vector<16x32xf32>
    %382 = arith.mulf %381, %381 : vector<16x32xf32>
    %cst_170 = arith.constant dense<0.000000e+00> : vector<16xf32>
    %383 = vector.multi_reduction <add>, %382, %cst_170 [1] : vector<16x32xf32> to vector<16xf32>
    %384 = vector.shape_cast %383 : vector<16xf32> to vector<16x1xf32>
    %cst_171 = arith.constant 3.200000e+01 : f32
    %385 = vector.broadcast %cst_171 : f32 to vector<16x1xf32>
    %386 = arith.divf %384, %385 : vector<16x1xf32>
    %cst_172 = arith.constant 9.99999996E-13 : f32
    %387 = vector.broadcast %cst_172 : f32 to vector<16x1xf32>
    %388 = arith.addf %386, %387 : vector<16x1xf32>
    %389 = math.rsqrt %388 : vector<16x1xf32>
    %390 = vector.broadcast %389 : vector<16x1xf32> to vector<16x32xf32>
    %391 = arith.mulf %381, %390 : vector<16x32xf32>
    %392 = vector.broadcast %373 : vector<1x32xf32> to vector<16x32xf32>
    %393 = arith.mulf %391, %392 : vector<16x32xf32>
    %394 = vector.broadcast %375 : vector<1x32xf32> to vector<16x32xf32>
    %395 = arith.addf %393, %394 : vector<16x32xf32>
    %396 = arith.truncf %395 : vector<16x32xf32> to vector<16x32xbf16>
    %c1_173 = arith.constant 1 : index
    %c32_174 = arith.constant 32 : index
    %c0_175 = arith.constant 0 : index
    %397 = vector.load %arg4[%c1_173, %c32_174, %c0_175] : memref<3x128x256xbf16, #tpu.memory_space<vmem>>, vector<1x32x64xbf16>
    %398 = vector.shape_cast %397 : vector<1x32x64xbf16> to vector<32x64xbf16>
    %cst_176 = arith.constant dense<0.000000e+00> : vector<16x64xf32>
    %399 = tpu.matmul %396, %398, %cst_176 {dimension_numbers = #tpu.dot_dimension_numbers<[1], [0], [0], [1], [0, 0, 1, 1], [], []>} : vector<16x32xbf16>, vector<32x64xbf16>, vector<16x64xf32> -> vector<16x64xf32>
    %c1_177 = arith.constant 1 : index
    %c1_178 = arith.constant 1 : index
    %c0_179 = arith.constant 0 : index
    %400 = vector.load %arg5[%c1_177, %c1_178, %c0_179] : memref<3x8x256xf32, #tpu.memory_space<vmem>>, vector<1x1x64xf32>
    %401 = vector.shape_cast %400 : vector<1x1x64xf32> to vector<1x64xf32>
    %402 = vector.broadcast %401 : vector<1x64xf32> to vector<16x64xf32>
    %403 = arith.addf %399, %402 : vector<16x64xf32>
    %cst_180 = arith.constant 0.000000e+00 : f32
    %404 = vector.broadcast %cst_180 : f32 to vector<16x64xf32>
    %405 = arith.maximumf %403, %404 : vector<16x64xf32>
    %406 = arith.truncf %405 : vector<16x64xf32> to vector<16x64xbf16>
    %c1_181 = arith.constant 1 : index
    %c64_182 = arith.constant 64 : index
    %c0_183 = arith.constant 0 : index
    %407 = vector.load %arg4[%c1_181, %c64_182, %c0_183] : memref<3x128x256xbf16, #tpu.memory_space<vmem>>, vector<1x64x32xbf16>
    %408 = vector.shape_cast %407 : vector<1x64x32xbf16> to vector<64x32xbf16>
    %cst_184 = arith.constant dense<0.000000e+00> : vector<16x32xf32>
    %409 = tpu.matmul %406, %408, %cst_184 {dimension_numbers = #tpu.dot_dimension_numbers<[1], [0], [0], [1], [0, 0, 1, 1], [], []>} : vector<16x64xbf16>, vector<64x32xbf16>, vector<16x32xf32> -> vector<16x32xf32>
    %410 = arith.addf %371, %409 : vector<16x32xf32>
    %c1_185 = arith.constant 1 : index
    %c1_186 = arith.constant 1 : index
    %c64_187 = arith.constant 64 : index
    %411 = vector.load %arg5[%c1_185, %c1_186, %c64_187] : memref<3x8x256xf32, #tpu.memory_space<vmem>>, vector<1x1x32xf32>
    %412 = vector.shape_cast %411 : vector<1x1x32xf32> to vector<1x32xf32>
    %413 = vector.broadcast %412 : vector<1x32xf32> to vector<16x32xf32>
    %414 = arith.addf %410, %413 : vector<16x32xf32>
    %c2_188 = arith.constant 2 : index
    %c2_189 = arith.constant 2 : index
    %c0_190 = arith.constant 0 : index
    %415 = vector.load %arg5[%c2_188, %c2_189, %c0_190] : memref<3x8x256xf32, #tpu.memory_space<vmem>>, vector<1x1x32xf32>
    %416 = vector.shape_cast %415 : vector<1x1x32xf32> to vector<1x32xf32>
    %c2_191 = arith.constant 2 : index
    %c2_192 = arith.constant 2 : index
    %c32_193 = arith.constant 32 : index
    %417 = vector.load %arg5[%c2_191, %c2_192, %c32_193] : memref<3x8x256xf32, #tpu.memory_space<vmem>>, vector<1x1x32xf32>
    %418 = vector.shape_cast %417 : vector<1x1x32xf32> to vector<1x32xf32>
    %cst_194 = arith.constant dense<0.000000e+00> : vector<16xf32>
    %419 = vector.multi_reduction <add>, %414, %cst_194 [1] : vector<16x32xf32> to vector<16xf32>
    %420 = vector.shape_cast %419 : vector<16xf32> to vector<16x1xf32>
    %cst_195 = arith.constant 3.200000e+01 : f32
    %421 = vector.broadcast %cst_195 : f32 to vector<16x1xf32>
    %422 = arith.divf %420, %421 : vector<16x1xf32>
    %423 = vector.broadcast %422 : vector<16x1xf32> to vector<16x32xf32>
    %424 = arith.subf %414, %423 : vector<16x32xf32>
    %425 = arith.mulf %424, %424 : vector<16x32xf32>
    %cst_196 = arith.constant dense<0.000000e+00> : vector<16xf32>
    %426 = vector.multi_reduction <add>, %425, %cst_196 [1] : vector<16x32xf32> to vector<16xf32>
    %427 = vector.shape_cast %426 : vector<16xf32> to vector<16x1xf32>
    %cst_197 = arith.constant 3.200000e+01 : f32
    %428 = vector.broadcast %cst_197 : f32 to vector<16x1xf32>
    %429 = arith.divf %427, %428 : vector<16x1xf32>
    %cst_198 = arith.constant 9.99999996E-13 : f32
    %430 = vector.broadcast %cst_198 : f32 to vector<16x1xf32>
    %431 = arith.addf %429, %430 : vector<16x1xf32>
    %432 = math.rsqrt %431 : vector<16x1xf32>
    %433 = vector.broadcast %432 : vector<16x1xf32> to vector<16x32xf32>
    %434 = arith.mulf %424, %433 : vector<16x32xf32>
    %435 = vector.broadcast %416 : vector<1x32xf32> to vector<16x32xf32>
    %436 = arith.mulf %434, %435 : vector<16x32xf32>
    %437 = vector.broadcast %418 : vector<1x32xf32> to vector<16x32xf32>
    %438 = arith.addf %436, %437 : vector<16x32xf32>
    %439 = arith.truncf %438 : vector<16x32xf32> to vector<16x32xbf16>
    %c2_199 = arith.constant 2 : index
    %c0_200 = arith.constant 0 : index
    %c0_201 = arith.constant 0 : index
    %440 = vector.load %arg4[%c2_199, %c0_200, %c0_201] : memref<3x128x256xbf16, #tpu.memory_space<vmem>>, vector<1x32x128xbf16>
    %441 = vector.shape_cast %440 : vector<1x32x128xbf16> to vector<32x128xbf16>
    %cst_202 = arith.constant dense<0.000000e+00> : vector<16x128xf32>
    %442 = tpu.matmul %439, %441, %cst_202 {dimension_numbers = #tpu.dot_dimension_numbers<[1], [0], [0], [1], [0, 0, 1, 1], [], []>} : vector<16x32xbf16>, vector<32x128xbf16>, vector<16x128xf32> -> vector<16x128xf32>
    %c2_203 = arith.constant 2 : index
    %c0_204 = arith.constant 0 : index
    %c0_205 = arith.constant 0 : index
    %443 = vector.load %arg5[%c2_203, %c0_204, %c0_205] : memref<3x8x256xf32, #tpu.memory_space<vmem>>, vector<1x1x128xf32>
    %444 = vector.shape_cast %443 : vector<1x1x128xf32> to vector<1x128xf32>
    %445 = vector.broadcast %444 : vector<1x128xf32> to vector<16x128xf32>
    %446 = arith.addf %442, %445 : vector<16x128xf32>
    %c0_206 = arith.constant 0 : index
    %c0_207 = arith.constant 0 : index
    %447 = vector.load %arg6[%c0_206, %c0_207] : memref<16x128xf32, #tpu.memory_space<vmem>>, vector<16x128xf32>
    tpu.vector_store %arg6[%c0_206, %c0_207], %446 {strides = array<i32>} : memref<16x128xf32, #tpu.memory_space<vmem>>, vector<16x128xf32>,
    return
  }
}

</mosaic_0001>

<llo_original>
// kernel: tpu_custom_call.1
$region0: #{tpu_custom_call.1}
  #allocation0 [shape = 'u32[]', space=smem, size = 0x4, offset = 0x4, fixed_abs, tag = 'smem constant byte address 0x4 - core index']
  #allocation1 [shape = 'u32[144,128]{1,0:T(1,128)}', space=vmem, size = 0x12000, scoped, tag = 'internal scratch']
  %s0 = inlined_call_operand.hbm [shape: f32[2,8,32], index: 0, kind: input, shape index: {}]
  %s1 = inlined_call_operand.hbm [shape: f32[2,8,8], index: 1, kind: input, shape index: {}]
  %s2 = inlined_call_operand.hbm [shape: f32[2,16,32], index: 2, kind: input, shape index: {}]
  %s3 = inlined_call_operand.vmem [shape: f32[2,1,16], index: 3, kind: input, shape index: {}]
  %s4 = inlined_call_operand.hbm [shape: bf16[3,128,256], index: 4, kind: input, shape index: {}]
  %s5 = inlined_call_operand.hbm [shape: f32[3,8,256], index: 5, kind: input, shape index: {}]
  %s6 = inlined_call_operand.hbm [shape: f32[16,128], index: 6, kind: output, shape index: {}]
  %s7 = sld [smem:[#allocation0]]
  $region54: #{tpu_custom_call.1} parent=0
    _
  %s9 = ssub.s32 1, %s7
  %s10 = scalar_select 0, %s9, %s7
  $region1: #{tpu_custom_call.1} parent=0
    #allocation2 [shape = 'u8[8192]{0}', space=vmem, size = 0x2000, scoped, tag = 'input window, operand 0, single buffered']
    #allocation3 [shape = 's32[1]{0}', space=sflag, size = 0x4, scoped, tag = 'scoped memory for tpu_custom_call.1']
    #allocation4 [shape = 's32[1]{0}', space=sflag, size = 0x4, scoped, tag = 'scoped memory for tpu_custom_call.1']
    #allocation5 [shape = 'u8[8192]{0}', space=vmem, size = 0x2000, scoped, tag = 'input window, operand 1, single buffered']
    #allocation6 [shape = 's32[1]{0}', space=sflag, size = 0x4, scoped, tag = 'scoped memory for tpu_custom_call.1']
    #allocation7 [shape = 'u8[16384]{0}', space=vmem, size = 0x4000, scoped, tag = 'input window, operand 2, single buffered']
    #allocation8 [shape = 'u8[196608]{0}', space=vmem, size = 0x30000, scoped, tag = 'input window, operand 4, single buffered']
    #allocation9 [shape = 's32[1]{0}', space=sflag, size = 0x4, scoped, tag = 'scoped memory for tpu_custom_call.1']
    #allocation10 [shape = 'u8[24576]{0}', space=vmem, size = 0x6000, scoped, tag = 'input window, operand 5, single buffered']
    #allocation11 [shape = 'u8[8192]{0}', space=vmem, size = 0x2000, scoped, tag = 'output window, operand 0, single buffered']
    %11 = vsyncpa [#allocation3], 0
    %12 = vsyncpa [#allocation6], 0
    %13 = vsyncpa [#allocation9], 0
    %14 = vsyncpa [#allocation4], 0
    // Predicated region
    $region2: #{tpu_custom_call.1} parent=1 // pred_check
      _
    $region3: #{tpu_custom_call.1} parent=1 // pred_check_branch
      %16 = sbr.rel (0) target = $region5
    $region4: #{tpu_custom_call.1} parent=1 // pred_region
      %s18 = ssub.s32 256, 256
      %19 = vsyncadd [#allocation3], %s18
      %s20 = sshll.u32 [#allocation2], 4
      %s21 = int_to_ptr.vmem [resolvable:$true] %s20
      %26 = dma.hbm_to_vmem [thread:$0]  %s0, 256, %s21, [#allocation3], 128, 128, 8
    $region5: #{tpu_custom_call.1} parent=1 // pred_fallthru
      _
    // Predicated region
    $region6: #{tpu_custom_call.1} parent=1 // pred_check
      _
    $region7: #{tpu_custom_call.1} parent=1 // pred_check_branch
      %28 = sbr.rel (0) target = $region9
    $region8: #{tpu_custom_call.1} parent=1 // pred_region
      %s30 = ssub.s32 256, 256
      %31 = vsyncadd [#allocation6], %s30
      %s32 = sshll.u32 [#allocation5], 4
      %s33 = int_to_ptr.vmem [resolvable:$true] %s32
      %38 = dma.hbm_to_vmem [thread:$0]  %s1, 256, %s33, [#allocation6], 128, 128, 8
    $region9: #{tpu_custom_call.1} parent=1 // pred_fallthru
      _
    // Predicated region
    $region10: #{tpu_custom_call.1} parent=1 // pred_check
      _
    $region11: #{tpu_custom_call.1} parent=1 // pred_check_branch
      %40 = sbr.rel (0) target = $region13
    $region12: #{tpu_custom_call.1} parent=1 // pred_region
      %s42 = ssub.s32 512, 512
      %43 = vsyncadd [#allocation6], %s42
      %s44 = sshll.u32 [#allocation7], 4
      %s45 = int_to_ptr.vmem [resolvable:$true] %s44
      %50 = dma.hbm_to_vmem [thread:$0]  %s2, 512, %s45, [#allocation6], 128, 128, 8
    $region13: #{tpu_custom_call.1} parent=1 // pred_fallthru
      _
    // Predicated region
    $region14: #{tpu_custom_call.1} parent=1 // pred_check
      _
    $region15: #{tpu_custom_call.1} parent=1 // pred_check_branch
      %52 = sbr.rel (0) target = $region17
    $region16: #{tpu_custom_call.1} parent=1 // pred_region
      _
    $region17: #{tpu_custom_call.1} parent=1 // pred_fallthru
      _
    // Predicated region
    $region18: #{tpu_custom_call.1} parent=1 // pred_check
      _
    $region19: #{tpu_custom_call.1} parent=1 // pred_check_branch
      %54 = sbr.rel (0) target = $region21
    $region20: #{tpu_custom_call.1} parent=1 // pred_region
      %s56 = ssub.s32 6144, 6144
      %57 = vsyncadd [#allocation9], %s56
      %s58 = sshll.u32 [#allocation8], 4
      %s59 = int_to_ptr.vmem [resolvable:$true] %s58
      %64 = dma.hbm_to_vmem [thread:$0]  %s4, 6144, %s59, [#allocation9], 128, 128, 8
    $region21: #{tpu_custom_call.1} parent=1 // pred_fallthru
      _
    // Predicated region
    $region22: #{tpu_custom_call.1} parent=1 // pred_check
      _
    $region23: #{tpu_custom_call.1} parent=1 // pred_check_branch
      %66 = sbr.rel (0) target = $region25
    $region24: #{tpu_custom_call.1} parent=1 // pred_region
      %s68 = ssub.s32 768, 768
      %69 = vsyncadd [#allocation9], %s68
      %s70 = sshll.u32 [#allocation10], 4
      %s71 = int_to_ptr.vmem [resolvable:$true] %s70
      %76 = dma.hbm_to_vmem [thread:$0]  %s5, 768, %s71, [#allocation9], 256, 256, 16
    $region25: #{tpu_custom_call.1} parent=1 // pred_fallthru
      _
    // Predicated region
    $region26: #{tpu_custom_call.1} parent=1 // pred_check
      _
    $region27: #{tpu_custom_call.1} parent=1 // pred_check_branch
      %78 = sbr.rel (0) target = $region29
    $region28: #{tpu_custom_call.1} parent=1 // pred_region
      %79 = dma.done [#allocation3], 256
    $region29: #{tpu_custom_call.1} parent=1 // pred_fallthru
      _
    // Predicated region
    $region30: #{tpu_custom_call.1} parent=1 // pred_check
      _
    $region31: #{tpu_custom_call.1} parent=1 // pred_check_branch
      %81 = sbr.rel (0) target = $region33
    $region32: #{tpu_custom_call.1} parent=1 // pred_region
      %82 = dma.done [#allocation6], 256
    $region33: #{tpu_custom_call.1} parent=1 // pred_fallthru
      _
    // Predicated region
    $region34: #{tpu_custom_call.1} parent=1 // pred_check
      _
    $region35: #{tpu_custom_call.1} parent=1 // pred_check_branch
      %84 = sbr.rel (0) target = $region37
    $region36: #{tpu_custom_call.1} parent=1 // pred_region
      %85 = dma.done [#allocation6], 512
    $region37: #{tpu_custom_call.1} parent=1 // pred_fallthru
      _
    // Predicated region
    $region38: #{tpu_custom_call.1} parent=1 // pred_check
      _
    $region39: #{tpu_custom_call.1} parent=1 // pred_check_branch
      %87 = sbr.rel (0) target = $region41
    $region40: #{tpu_custom_call.1} parent=1 // pred_region
      %88 = dma.done [#allocation9], 6144
    $region41: #{tpu_custom_call.1} parent=1 // pred_fallthru
      _
    // Predicated region
    $region42: #{tpu_custom_call.1} parent=1 // pred_check
      _
    $region43: #{tpu_custom_call.1} parent=1 // pred_check_branch
      %90 = sbr.rel (0) target = $region45
    $region44: #{tpu_custom_call.1} parent=1 // pred_region
      %91 = dma.done [#allocation9], 768
    $region45: #{tpu_custom_call.1} parent=1 // pred_fallthru
      _
    %v93 = vld [vmem:[#allocation2] sm:$0xff]
    %v94 = vld [vmem:[#allocation2 + $0x8] sm:$0xff]
    %v95 = vld [vmem:[#allocation7] sm:$0xff]
    %v96 = vld [vmem:[#allocation7 + $0x8] sm:$0xff]
    %v97 = vld [vmem:[#allocation7 + $0x10] sm:$0xff]
    %v98 = vld [vmem:[#allocation7 + $0x18] sm:$0xff]
    %v99 = vpack.c.bf16 %v96, %v95
    %v100 = vpack.c.bf16 %v98, %v97
    %v101 = vld [vmem:[#allocation5] sm:$0xff]
    %v102 = vld [vmem:[#allocation5 + $0x8] sm:$0xff]
    %v103 = vsub.f32 1.0, %v101
    %v104 = vsub.f32 1.0, %v102
    %v105 = vmul.f32 %v103, -1e+30
    %v106 = vmul.f32 %v104, -1e+30
    %v107 = vld [vmem:[%s3] sm:$0x1]
    %v108 = vld [vmem:[%s3 + $0x1] sm:$0x1]
    %v109 = vsub.f32 1.0, %v107
    %v110 = vsub.f32 1.0, %v108
    %v111 = vmul.f32 %v109, -1e+30
    %v112 = vmul.f32 %v110, -1e+30
    %v113 = vld [vmem:[#allocation10 + $0x2] ss:$0 sm:$0xff]
    %vm114 = vcmask 261120
    %v115 = vsel %vm114, %v93, 0.0
    %116 = vadd.xlane.f32.xlu0 %v115
    %v117 = vpop.xlane.xlu0 %116
    %v118 = vsel %vm114, %v94, 0.0
    %119 = vadd.xlane.f32.xlu0 %v118
    %v120 = vpop.xlane.xlu0 %119
    %v121 = vrcp.pop 32.0
    %v122 = vmul.f32 %v117, %v121
    %v123 = vmul.f32 %v120, %v121
    %v124 = vsub.f32 %v93, %v122
    %v125 = vsub.f32 %v94, %v123
    %v126 = vmul.f32 %v124, %v124
    %v127 = vmul.f32 %v125, %v125
    %v128 = vsel %vm114, %v126, 0.0
    %129 = vadd.xlane.f32.xlu0 %v128
    %v130 = vpop.xlane.xlu0 %129
    %v131 = vsel %vm114, %v127, 0.0
    %132 = vadd.xlane.f32.xlu0 %v131
    %v133 = vpop.xlane.xlu0 %132
    %v134 = vmul.f32 %v130, %v121
    %v135 = vmul.f32 %v133, %v121
    %v136 = vadd.f32 %v134, 1e-12
    %v137 = vadd.f32 %v135, 1e-12
    %v138 = vrsqrt.pop %v136
    %v139 = vrsqrt.pop %v137
    %v140 = vmul.f32 %v124, %v138
    %v141 = vmul.f32 %v125, %v139
    %v142 = vmul.f32 %v140, %v113
    %v143 = vmul.f32 %v141, %v113
    %145 = vrot.lane.b32.xlu0 %v113, 96
    %v146 = vpop.permute.xlu0 %145
    %v148 = vadd.f32 %v142, %v146
    %v149 = vadd.f32 %v143, %v146
    %v150 = vpack.c.bf16 %v149, %v148
    %v151 = vld [vmem:[#allocation8] sm:$0xf]
    %v152 = vld [vmem:[#allocation8 + $0x8] sm:$0xf]
    %v153 = vld [vmem:[#allocation8 + $0x10] sm:$0xf]
    %v154 = vld [vmem:[#allocation8 + $0x18] sm:$0xf]
    %v155 = vld [vmem:[#allocation10] ss:$0 sm:$0xff]
    %v160 = vunpack.c.l.b16 %v151
    %v161 = vunpack.c.l.b16 %v152
    %v162 = vunpack.c.l.b16 %v153
    %v163 = vunpack.c.l.b16 %v154
    %v164 = vpack.c.b16 %v161, %v160
    %v165 = vpack.c.b16 %v163, %v162
    %v169 = vsel %vm114, %v150, 0
    %171 = vmatprep.subr.bf16.mxu0 0
    %172 = vmatpush1.bf16.msra.mxu0 %v164
    %173 = vmatprep.subr.bf16.mxu0 0
    %174 = vmatpush1.bf16.msra.mxu0 %v165
    %175 = vmatprep.subr.bf16.mxu0 0
    %176 = vmatpush1.bf16.msra.mxu0 0
    %177 = vmatprep.subr.bf16.mxu0 0
    %178 = vmatpush1.bf16.msra.mxu0 0
    %179 = vmatprep.subr.bf16.mxu0 0
    %180 = vmatpush1.bf16.msra.mxu0 0
    %181 = vmatprep.subr.bf16.mxu0 0
    %182 = vmatpush1.bf16.msra.mxu0 0
    %183 = vmatprep.subr.bf16.mxu0 0
    %184 = vmatpush1.bf16.msra.mxu0 0
    %185 = vmatprep.subr.bf16.mxu0 0
    %186 = vmatpush1.bf16.msra.mxu0 0
    %187 = vmatprep.subr.bf16.mxu0 0
    %188 = vmatpush1.bf16.msra.mxu0 0
    %189 = vmatprep.subr.bf16.mxu0 0
    %190 = vmatpush1.bf16.msra.mxu0 0
    %191 = vmatprep.subr.bf16.mxu0 0
    %192 = vmatpush1.bf16.msra.mxu0 0
    %193 = vmatprep.subr.bf16.mxu0 0
    %194 = vmatpush1.bf16.msra.mxu0 0
    %195 = vmatprep.subr.bf16.mxu0 0
    %196 = vmatpush1.bf16.msra.mxu0 0
    %197 = vmatprep.subr.bf16.mxu0 0
    %198 = vmatpush1.bf16.msra.mxu0 0
    %199 = vmatprep.subr.bf16.mxu0 0
    %200 = vmatpush1.bf16.msra.mxu0 0
    %201 = vmatprep.subr.bf16.mxu0 0
    %202 = vmatpush1.bf16.msra.mxu0 0
    %203 = vmatprep.mubr.bf16.mxu0 0
    %204 = vmatmul.mubr.bf16.gmra.mrb[0].mxu0 %v169
    %v205 = vpop.f32.mrb[0].mxu0
    %v206 = vadd.f32 %v155, %v205
    %v207 = vpop.f32.mrb[0].mxu0
    %v208 = vpop.f32.mrb[0].mxu0
    %v209 = vadd.f32 %v155, %v208
    %v210 = vpop.f32.mrb[0].mxu0
    %211 = vdwg.mxu0
    %214 = vrot.lane.b32.xlu0 %v206, 120
    %v215 = vpop.permute.xlu0 %214
    %216 = vrot.lane.b32.xlu0 %v209, 120
    %v217 = vpop.permute.xlu0 %216
    %220 = vrot.lane.b32.xlu0 %v206, 112
    %v221 = vpop.permute.xlu0 %220
    %222 = vrot.lane.b32.xlu0 %v209, 112
    %v223 = vpop.permute.xlu0 %222
    %226 = vrot.lane.b32.xlu0 %v206, 104
    %v227 = vpop.permute.xlu0 %226
    %228 = vrot.lane.b32.xlu0 %v209, 104
    %v229 = vpop.permute.xlu0 %228
    %v232 = vcombine.low %v206, %v221
    %v233 = vcombine.high %v206, %v221
    %v235 = vunpack.c.l.s4 1983009808
    %v236 = vunpack.c.0.s8 %v235
    %v237 = vlaneseq
    %v238 = vshrl.u32 %v237, 7
    %v239 = vsub.s32 %v236, %v238
    %v240 = vrot.slane %v232, %v239
    %v242 = vunpack.c.l.s4 1983009808
    %v243 = vunpack.c.0.s8 %v242
    %v244 = vlaneseq
    %v245 = vshrl.u32 %v244, 7
    %v246 = vsub.s32 %v243, %v245
    %v247 = vrot.slane %v233, %v246
    %v248 = vcombine.low %v215, %v227
    %v249 = vcombine.high %v215, %v227
    %v251 = vunpack.c.l.s4 1983009808
    %v252 = vunpack.c.0.s8 %v251
    %v253 = vlaneseq
    %v254 = vshrl.u32 %v253, 7
    %v255 = vsub.s32 %v252, %v254
    %v256 = vrot.slane %v248, %v255
    %v258 = vunpack.c.l.s4 1983009808
    %v259 = vunpack.c.0.s8 %v258
    %v260 = vlaneseq
    %v261 = vshrl.u32 %v260, 7
    %v262 = vsub.s32 %v259, %v261
    %v263 = vrot.slane %v249, %v262
    %v264 = vcombine.low %v240, %v256
    %v265 = vcombine.high %v240, %v256
    %v267 = vunpack.c.l.s4 1934713408
    %v268 = vunpack.c.0.s8 %v267
    %v269 = vlaneseq
    %v270 = vshrl.u32 %v269, 7
    %v271 = vsub.s32 %v268, %v270
    %v272 = vrot.slane %v264, %v271
    %v274 = vunpack.c.l.s4 1934713408
    %v275 = vunpack.c.0.s8 %v274
    %v276 = vlaneseq
    %v277 = vshrl.u32 %v276, 7
    %v278 = vsub.s32 %v275, %v277
    %v279 = vrot.slane %v265, %v278
    %v280 = vcombine.low %v247, %v263
    %v281 = vcombine.high %v247, %v263
    %v283 = vunpack.c.l.s4 1934713408
    %v284 = vunpack.c.0.s8 %v283
    %v285 = vlaneseq
    %v286 = vshrl.u32 %v285, 7
    %v287 = vsub.s32 %v284, %v286
    %v288 = vrot.slane %v280, %v287
    %v290 = vunpack.c.l.s4 1934713408
    %v291 = vunpack.c.0.s8 %v290
    %v292 = vlaneseq
    %v293 = vshrl.u32 %v292, 7
    %v294 = vsub.s32 %v291, %v293
    %v295 = vrot.slane %v281, %v294
    %v296 = vcombine.high %v272, 0.0
    %v297 = vcombine.high %v279, 0.0
    %v298 = vcombine.high %v288, 0.0
    %v299 = vcombine.high %v295, 0.0
    %v300 = vcombine.low %v209, %v223
    %v301 = vcombine.high %v209, %v223
    %v303 = vunpack.c.l.s4 1983009808
    %v304 = vunpack.c.0.s8 %v303
    %v305 = vlaneseq
    %v306 = vshrl.u32 %v305, 7
    %v307 = vsub.s32 %v304, %v306
    %v308 = vrot.slane %v300, %v307
    %v310 = vunpack.c.l.s4 1983009808
    %v311 = vunpack.c.0.s8 %v310
    %v312 = vlaneseq
    %v313 = vshrl.u32 %v312, 7
    %v314 = vsub.s32 %v311, %v313
    %v315 = vrot.slane %v301, %v314
    %v316 = vcombine.low %v217, %v229
    %v317 = vcombine.high %v217, %v229
    %v319 = vunpack.c.l.s4 1983009808
    %v320 = vunpack.c.0.s8 %v319
    %v321 = vlaneseq
    %v322 = vshrl.u32 %v321, 7
    %v323 = vsub.s32 %v320, %v322
    %v324 = vrot.slane %v316, %v323
    %v326 = vunpack.c.l.s4 1983009808
    %v327 = vunpack.c.0.s8 %v326
    %v328 = vlaneseq
    %v329 = vshrl.u32 %v328, 7
    %v330 = vsub.s32 %v327, %v329
    %v331 = vrot.slane %v317, %v330
    %v332 = vcombine.low %v308, %v324
    %v333 = vcombine.high %v308, %v324
    %v335 = vunpack.c.l.s4 1934713408
    %v336 = vunpack.c.0.s8 %v335
    %v337 = vlaneseq
    %v338 = vshrl.u32 %v337, 7
    %v339 = vsub.s32 %v336, %v338
    %v340 = vrot.slane %v332, %v339
    %v342 = vunpack.c.l.s4 1934713408
    %v343 = vunpack.c.0.s8 %v342
    %v344 = vlaneseq
    %v345 = vshrl.u32 %v344, 7
    %v346 = vsub.s32 %v343, %v345
    %v347 = vrot.slane %v333, %v346
    %v348 = vcombine.low %v315, %v331
    %v349 = vcombine.high %v315, %v331
    %v351 = vunpack.c.l.s4 1934713408
    %v352 = vunpack.c.0.s8 %v351
    %v353 = vlaneseq
    %v354 = vshrl.u32 %v353, 7
    %v355 = vsub.s32 %v352, %v354
    %v356 = vrot.slane %v348, %v355
    %v358 = vunpack.c.l.s4 1934713408
    %v359 = vunpack.c.0.s8 %v358
    %v360 = vlaneseq
    %v361 = vshrl.u32 %v360, 7
    %v362 = vsub.s32 %v359, %v361
    %v363 = vrot.slane %v349, %v362
    %v364 = vcombine.high %v340, 0.0
    %v365 = vcombine.high %v347, 0.0
    %v366 = vcombine.high %v356, 0.0
    %v367 = vcombine.high %v363, 0.0
    %v368 = vcombine.low %v272, %v279
    %v370 = vunpack.c.l.s4 1983009808
    %v371 = vunpack.c.0.s8 %v370
    %v372 = vlaneseq
    %v373 = vshrl.u32 %v372, 7
    %v374 = vsub.s32 %v371, %v373
    %v375 = vrot.slane %v368, %v374
    %v376 = vcombine.low %v296, %v297
    %v378 = vunpack.c.l.s4 1983009808
    %v379 = vunpack.c.0.s8 %v378
    %v380 = vlaneseq
    %v381 = vshrl.u32 %v380, 7
    %v382 = vsub.s32 %v379, %v381
    %v383 = vrot.slane %v376, %v382
    %v384 = vcombine.low %v288, %v295
    %v386 = vunpack.c.l.s4 1983009808
    %v387 = vunpack.c.0.s8 %v386
    %v388 = vlaneseq
    %v389 = vshrl.u32 %v388, 7
    %v390 = vsub.s32 %v387, %v389
    %v391 = vrot.slane %v384, %v390
    %v392 = vcombine.low %v298, %v299
    %v394 = vunpack.c.l.s4 1983009808
    %v395 = vunpack.c.0.s8 %v394
    %v396 = vlaneseq
    %v397 = vshrl.u32 %v396, 7
    %v398 = vsub.s32 %v395, %v397
    %v399 = vrot.slane %v392, %v398
    %v400 = vcombine.low %v375, %v383
    %v401 = vcombine.high %v375, %v383
    %v403 = vunpack.c.l.s4 1934713408
    %v404 = vunpack.c.0.s8 %v403
    %v405 = vlaneseq
    %v406 = vshrl.u32 %v405, 7
    %v407 = vsub.s32 %v404, %v406
    %v408 = vrot.slane %v400, %v407
    %v410 = vunpack.c.l.s4 1934713408
    %v411 = vunpack.c.0.s8 %v410
    %v412 = vlaneseq
    %v413 = vshrl.u32 %v412, 7
    %v414 = vsub.s32 %v411, %v413
    %v415 = vrot.slane %v401, %v414
    %v416 = vcombine.low %v391, %v399
    %v417 = vcombine.high %v391, %v399
    %v419 = vunpack.c.l.s4 1934713408
    %v420 = vunpack.c.0.s8 %v419
    %v421 = vlaneseq
    %v422 = vshrl.u32 %v421, 7
    %v423 = vsub.s32 %v420, %v422
    %v424 = vrot.slane %v416, %v423
    %v426 = vunpack.c.l.s4 1934713408
    %v427 = vunpack.c.0.s8 %v426
    %v428 = vlaneseq
    %v429 = vshrl.u32 %v428, 7
    %v430 = vsub.s32 %v427, %v429
    %v431 = vrot.slane %v417, %v430
    %v432 = vcombine.low %v408, %v424
    %v433 = vcombine.high %v408, %v424
    %v434 = vcombine.low %v415, %v431
    %v435 = vcombine.high %v415, %v431
    %v436 = vcombine.low %v340, %v347
    %v438 = vunpack.c.l.s4 1983009808
    %v439 = vunpack.c.0.s8 %v438
    %v440 = vlaneseq
    %v441 = vshrl.u32 %v440, 7
    %v442 = vsub.s32 %v439, %v441
    %v443 = vrot.slane %v436, %v442
    %v444 = vcombine.low %v364, %v365
    %v446 = vunpack.c.l.s4 1983009808
    %v447 = vunpack.c.0.s8 %v446
    %v448 = vlaneseq
    %v449 = vshrl.u32 %v448, 7
    %v450 = vsub.s32 %v447, %v449
    %v451 = vrot.slane %v444, %v450
    %v452 = vcombine.low %v356, %v363
    %v454 = vunpack.c.l.s4 1983009808
    %v455 = vunpack.c.0.s8 %v454
    %v456 = vlaneseq
    %v457 = vshrl.u32 %v456, 7
    %v458 = vsub.s32 %v455, %v457
    %v459 = vrot.slane %v452, %v458
    %v460 = vcombine.low %v366, %v367
    %v462 = vunpack.c.l.s4 1983009808
    %v463 = vunpack.c.0.s8 %v462
    %v464 = vlaneseq
    %v465 = vshrl.u32 %v464, 7
    %v466 = vsub.s32 %v463, %v465
    %v467 = vrot.slane %v460, %v466
    %v468 = vcombine.low %v443, %v451
    %v469 = vcombine.high %v443, %v451
    %v471 = vunpack.c.l.s4 1934713408
    %v472 = vunpack.c.0.s8 %v471
    %v473 = vlaneseq
    %v474 = vshrl.u32 %v473, 7
    %v475 = vsub.s32 %v472, %v474
    %v476 = vrot.slane %v468, %v475
    %v478 = vunpack.c.l.s4 1934713408
    %v479 = vunpack.c.0.s8 %v478
    %v480 = vlaneseq
    %v481 = vshrl.u32 %v480, 7
    %v482 = vsub.s32 %v479, %v481
    %v483 = vrot.slane %v469, %v482
    %v484 = vcombine.low %v459, %v467
    %v485 = vcombine.high %v459, %v467
    %v487 = vunpack.c.l.s4 1934713408
    %v488 = vunpack.c.0.s8 %v487
    %v489 = vlaneseq
    %v490 = vshrl.u32 %v489, 7
    %v491 = vsub.s32 %v488, %v490
    %v492 = vrot.slane %v484, %v491
    %v494 = vunpack.c.l.s4 1934713408
    %v495 = vunpack.c.0.s8 %v494
    %v496 = vlaneseq
    %v497 = vshrl.u32 %v496, 7
    %v498 = vsub.s32 %v495, %v497
    %v499 = vrot.slane %v485, %v498
    %v500 = vcombine.low %v476, %v492
    %v501 = vcombine.high %v476, %v492
    %v502 = vcombine.low %v483, %v499
    %v503 = vcombine.high %v483, %v499
    %504 = vrot.lane.b32.xlu0 %v206, 96
    %v505 = vpop.permute.xlu0 %504
    %506 = vrot.lane.b32.xlu0 %v209, 96
    %v507 = vpop.permute.xlu0 %506
    %508 = vrot.lane.b32.xlu0 %v215, 96
    %v509 = vpop.permute.xlu0 %508
    %510 = vrot.lane.b32.xlu0 %v217, 96
    %v511 = vpop.permute.xlu0 %510
    %512 = vrot.lane.b32.xlu0 %v221, 96
    %v513 = vpop.permute.xlu0 %512
    %514 = vrot.lane.b32.xlu0 %v223, 96
    %v515 = vpop.permute.xlu0 %514
    %516 = vrot.lane.b32.xlu0 %v227, 96
    %v517 = vpop.permute.xlu0 %516
    %518 = vrot.lane.b32.xlu0 %v229, 96
    %v519 = vpop.permute.xlu0 %518
    %v528 = vcombine.low %v505, %v513
    %v529 = vcombine.high %v505, %v513
    %v531 = vunpack.c.l.s4 1983009808
    %v532 = vunpack.c.0.s8 %v531
    %v533 = vlaneseq
    %v534 = vshrl.u32 %v533, 7
    %v535 = vsub.s32 %v532, %v534
    %v536 = vrot.slane %v528, %v535
    %v538 = vunpack.c.l.s4 1983009808
    %v539 = vunpack.c.0.s8 %v538
    %v540 = vlaneseq
    %v541 = vshrl.u32 %v540, 7
    %v542 = vsub.s32 %v539, %v541
    %v543 = vrot.slane %v529, %v542
    %v544 = vcombine.low %v509, %v517
    %v545 = vcombine.high %v509, %v517
    %v547 = vunpack.c.l.s4 1983009808
    %v548 = vunpack.c.0.s8 %v547
    %v549 = vlaneseq
    %v550 = vshrl.u32 %v549, 7
    %v551 = vsub.s32 %v548, %v550
    %v552 = vrot.slane %v544, %v551
    %v554 = vunpack.c.l.s4 1983009808
    %v555 = vunpack.c.0.s8 %v554
    %v556 = vlaneseq
    %v557 = vshrl.u32 %v556, 7
    %v558 = vsub.s32 %v555, %v557
    %v559 = vrot.slane %v545, %v558
    %v560 = vcombine.low %v536, %v552
    %v561 = vcombine.high %v536, %v552
    %v563 = vunpack.c.l.s4 1934713408
    %v564 = vunpack.c.0.s8 %v563
    %v565 = vlaneseq
    %v566 = vshrl.u32 %v565, 7
    %v567 = vsub.s32 %v564, %v566
    %v568 = vrot.slane %v560, %v567
    %v570 = vunpack.c.l.s4 1934713408
    %v571 = vunpack.c.0.s8 %v570
    %v572 = vlaneseq
    %v573 = vshrl.u32 %v572, 7
    %v574 = vsub.s32 %v571, %v573
    %v575 = vrot.slane %v561, %v574
    %v576 = vcombine.low %v543, %v559
    %v577 = vcombine.high %v543, %v559
    %v579 = vunpack.c.l.s4 1934713408
    %v580 = vunpack.c.0.s8 %v579
    %v581 = vlaneseq
    %v582 = vshrl.u32 %v581, 7
    %v583 = vsub.s32 %v580, %v582
    %v584 = vrot.slane %v576, %v583
    %v586 = vunpack.c.l.s4 1934713408
    %v587 = vunpack.c.0.s8 %v586
    %v588 = vlaneseq
    %v589 = vshrl.u32 %v588, 7
    %v590 = vsub.s32 %v587, %v589
    %v591 = vrot.slane %v577, %v590
    %v592 = vcombine.high %v568, 0.0
    %v593 = vcombine.high %v575, 0.0
    %v594 = vcombine.high %v584, 0.0
    %v595 = vcombine.high %v591, 0.0
    %v596 = vcombine.low %v507, %v515
    %v597 = vcombine.high %v507, %v515
    %v599 = vunpack.c.l.s4 1983009808
    %v600 = vunpack.c.0.s8 %v599
    %v601 = vlaneseq
    %v602 = vshrl.u32 %v601, 7
    %v603 = vsub.s32 %v600, %v602
    %v604 = vrot.slane %v596, %v603
    %v606 = vunpack.c.l.s4 1983009808
    %v607 = vunpack.c.0.s8 %v606
    %v608 = vlaneseq
    %v609 = vshrl.u32 %v608, 7
    %v610 = vsub.s32 %v607, %v609
    %v611 = vrot.slane %v597, %v610
    %v612 = vcombine.low %v511, %v519
    %v613 = vcombine.high %v511, %v519
    %v615 = vunpack.c.l.s4 1983009808
    %v616 = vunpack.c.0.s8 %v615
    %v617 = vlaneseq
    %v618 = vshrl.u32 %v617, 7
    %v619 = vsub.s32 %v616, %v618
    %v620 = vrot.slane %v612, %v619
    %v622 = vunpack.c.l.s4 1983009808
    %v623 = vunpack.c.0.s8 %v622
    %v624 = vlaneseq
    %v625 = vshrl.u32 %v624, 7
    %v626 = vsub.s32 %v623, %v625
    %v627 = vrot.slane %v613, %v626
    %v628 = vcombine.low %v604, %v620
    %v629 = vcombine.high %v604, %v620
    %v631 = vunpack.c.l.s4 1934713408
    %v632 = vunpack.c.0.s8 %v631
    %v633 = vlaneseq
    %v634 = vshrl.u32 %v633, 7
    %v635 = vsub.s32 %v632, %v634
    %v636 = vrot.slane %v628, %v635
    %v638 = vunpack.c.l.s4 1934713408
    %v639 = vunpack.c.0.s8 %v638
    %v640 = vlaneseq
    %v641 = vshrl.u32 %v640, 7
    %v642 = vsub.s32 %v639, %v641
    %v643 = vrot.slane %v629, %v642
    %v644 = vcombine.low %v611, %v627
    %v645 = vcombine.high %v611, %v627
    %v647 = vunpack.c.l.s4 1934713408
    %v648 = vunpack.c.0.s8 %v647
    %v649 = vlaneseq
    %v650 = vshrl.u32 %v649, 7
    %v651 = vsub.s32 %v648, %v650
    %v652 = vrot.slane %v644, %v651
    %v654 = vunpack.c.l.s4 1934713408
    %v655 = vunpack.c.0.s8 %v654
    %v656 = vlaneseq
    %v657 = vshrl.u32 %v656, 7
    %v658 = vsub.s32 %v655, %v657
    %v659 = vrot.slane %v645, %v658
    %v660 = vcombine.high %v636, 0.0
    %v661 = vcombine.high %v643, 0.0
    %v662 = vcombine.high %v652, 0.0
    %v663 = vcombine.high %v659, 0.0
    %v664 = vcombine.low %v568, %v575
    %v666 = vunpack.c.l.s4 1983009808
    %v667 = vunpack.c.0.s8 %v666
    %v668 = vlaneseq
    %v669 = vshrl.u32 %v668, 7
    %v670 = vsub.s32 %v667, %v669
    %v671 = vrot.slane %v664, %v670
    %v672 = vcombine.low %v592, %v593
    %v674 = vunpack.c.l.s4 1983009808
    %v675 = vunpack.c.0.s8 %v674
    %v676 = vlaneseq
    %v677 = vshrl.u32 %v676, 7
    %v678 = vsub.s32 %v675, %v677
    %v679 = vrot.slane %v672, %v678
    %v680 = vcombine.low %v584, %v591
    %v682 = vunpack.c.l.s4 1983009808
    %v683 = vunpack.c.0.s8 %v682
    %v684 = vlaneseq
    %v685 = vshrl.u32 %v684, 7
    %v686 = vsub.s32 %v683, %v685
    %v687 = vrot.slane %v680, %v686
    %v688 = vcombine.low %v594, %v595
    %v690 = vunpack.c.l.s4 1983009808
    %v691 = vunpack.c.0.s8 %v690
    %v692 = vlaneseq
    %v693 = vshrl.u32 %v692, 7
    %v694 = vsub.s32 %v691, %v693
    %v695 = vrot.slane %v688, %v694
    %v696 = vcombine.low %v671, %v679
    %v697 = vcombine.high %v671, %v679
    %v699 = vunpack.c.l.s4 1934713408
    %v700 = vunpack.c.0.s8 %v699
    %v701 = vlaneseq
    %v702 = vshrl.u32 %v701, 7
    %v703 = vsub.s32 %v700, %v702
    %v704 = vrot.slane %v696, %v703
    %v706 = vunpack.c.l.s4 1934713408
    %v707 = vunpack.c.0.s8 %v706
    %v708 = vlaneseq
    %v709 = vshrl.u32 %v708, 7
    %v710 = vsub.s32 %v707, %v709
    %v711 = vrot.slane %v697, %v710
    %v712 = vcombine.low %v687, %v695
    %v713 = vcombine.high %v687, %v695
    %v715 = vunpack.c.l.s4 1934713408
    %v716 = vunpack.c.0.s8 %v715
    %v717 = vlaneseq
    %v718 = vshrl.u32 %v717, 7
    %v719 = vsub.s32 %v716, %v718
    %v720 = vrot.slane %v712, %v719
    %v722 = vunpack.c.l.s4 1934713408
    %v723 = vunpack.c.0.s8 %v722
    %v724 = vlaneseq
    %v725 = vshrl.u32 %v724, 7
    %v726 = vsub.s32 %v723, %v725
    %v727 = vrot.slane %v713, %v726
    %v728 = vcombine.low %v704, %v720
    %v729 = vcombine.high %v704, %v720
    %v730 = vcombine.low %v711, %v727
    %v731 = vcombine.high %v711, %v727
    %v732 = vcombine.low %v636, %v643
    %v734 = vunpack.c.l.s4 1983009808
    %v735 = vunpack.c.0.s8 %v734
    %v736 = vlaneseq
    %v737 = vshrl.u32 %v736, 7
    %v738 = vsub.s32 %v735, %v737
    %v739 = vrot.slane %v732, %v738
    %v740 = vcombine.low %v660, %v661
    %v742 = vunpack.c.l.s4 1983009808
    %v743 = vunpack.c.0.s8 %v742
    %v744 = vlaneseq
    %v745 = vshrl.u32 %v744, 7
    %v746 = vsub.s32 %v743, %v745
    %v747 = vrot.slane %v740, %v746
    %v748 = vcombine.low %v652, %v659
    %v750 = vunpack.c.l.s4 1983009808
    %v751 = vunpack.c.0.s8 %v750
    %v752 = vlaneseq
    %v753 = vshrl.u32 %v752, 7
    %v754 = vsub.s32 %v751, %v753
    %v755 = vrot.slane %v748, %v754
    %v756 = vcombine.low %v662, %v663
    %v758 = vunpack.c.l.s4 1983009808
    %v759 = vunpack.c.0.s8 %v758
    %v760 = vlaneseq
    %v761 = vshrl.u32 %v760, 7
    %v762 = vsub.s32 %v759, %v761
    %v763 = vrot.slane %v756, %v762
    %v764 = vcombine.low %v739, %v747
    %v765 = vcombine.high %v739, %v747
    %v767 = vunpack.c.l.s4 1934713408
    %v768 = vunpack.c.0.s8 %v767
    %v769 = vlaneseq
    %v770 = vshrl.u32 %v769, 7
    %v771 = vsub.s32 %v768, %v770
    %v772 = vrot.slane %v764, %v771
    %v774 = vunpack.c.l.s4 1934713408
    %v775 = vunpack.c.0.s8 %v774
    %v776 = vlaneseq
    %v777 = vshrl.u32 %v776, 7
    %v778 = vsub.s32 %v775, %v777
    %v779 = vrot.slane %v765, %v778
    %v780 = vcombine.low %v755, %v763
    %v781 = vcombine.high %v755, %v763
    %v783 = vunpack.c.l.s4 1934713408
    %v784 = vunpack.c.0.s8 %v783
    %v785 = vlaneseq
    %v786 = vshrl.u32 %v785, 7
    %v787 = vsub.s32 %v784, %v786
    %v788 = vrot.slane %v780, %v787
    %v790 = vunpack.c.l.s4 1934713408
    %v791 = vunpack.c.0.s8 %v790
    %v792 = vlaneseq
    %v793 = vshrl.u32 %v792, 7
    %v794 = vsub.s32 %v791, %v793
    %v795 = vrot.slane %v781, %v794
    %v796 = vcombine.low %v772, %v788
    %v797 = vcombine.high %v772, %v788
    %v798 = vcombine.low %v779, %v795
    %v799 = vcombine.high %v779, %v795
    %800 = vrot.lane.b32.xlu0 %v206, 64
    %v801 = vpop.permute.xlu0 %800
    %802 = vrot.lane.b32.xlu0 %v209, 64
    %v803 = vpop.permute.xlu0 %802
    %804 = vrot.lane.b32.xlu0 %v215, 64
    %v805 = vpop.permute.xlu0 %804
    %806 = vrot.lane.b32.xlu0 %v217, 64
    %v807 = vpop.permute.xlu0 %806
    %808 = vrot.lane.b32.xlu0 %v221, 64
    %v809 = vpop.permute.xlu0 %808
    %810 = vrot.lane.b32.xlu0 %v223, 64
    %v811 = vpop.permute.xlu0 %810
    %812 = vrot.lane.b32.xlu0 %v227, 64
    %v813 = vpop.permute.xlu0 %812
    %814 = vrot.lane.b32.xlu0 %v229, 64
    %v815 = vpop.permute.xlu0 %814
    %v824 = vcombine.low %v801, %v809
    %v825 = vcombine.high %v801, %v809
    %v827 = vunpack.c.l.s4 1983009808
    %v828 = vunpack.c.0.s8 %v827
    %v829 = vlaneseq
    %v830 = vshrl.u32 %v829, 7
    %v831 = vsub.s32 %v828, %v830
    %v832 = vrot.slane %v824, %v831
    %v834 = vunpack.c.l.s4 1983009808
    %v835 = vunpack.c.0.s8 %v834
    %v836 = vlaneseq
    %v837 = vshrl.u32 %v836, 7
    %v838 = vsub.s32 %v835, %v837
    %v839 = vrot.slane %v825, %v838
    %v840 = vcombine.low %v805, %v813
    %v841 = vcombine.high %v805, %v813
    %v843 = vunpack.c.l.s4 1983009808
    %v844 = vunpack.c.0.s8 %v843
    %v845 = vlaneseq
    %v846 = vshrl.u32 %v845, 7
    %v847 = vsub.s32 %v844, %v846
    %v848 = vrot.slane %v840, %v847
    %v850 = vunpack.c.l.s4 1983009808
    %v851 = vunpack.c.0.s8 %v850
    %v852 = vlaneseq
    %v853 = vshrl.u32 %v852, 7
    %v854 = vsub.s32 %v851, %v853
    %v855 = vrot.slane %v841, %v854
    %v856 = vcombine.low %v832, %v848
    %v857 = vcombine.high %v832, %v848
    %v859 = vunpack.c.l.s4 1934713408
    %v860 = vunpack.c.0.s8 %v859
    %v861 = vlaneseq
    %v862 = vshrl.u32 %v861, 7
    %v863 = vsub.s32 %v860, %v862
    %v864 = vrot.slane %v856, %v863
    %v866 = vunpack.c.l.s4 1934713408
    %v867 = vunpack.c.0.s8 %v866
    %v868 = vlaneseq
    %v869 = vshrl.u32 %v868, 7
    %v870 = vsub.s32 %v867, %v869
    %v871 = vrot.slane %v857, %v870
    %v872 = vcombine.low %v839, %v855
    %v873 = vcombine.high %v839, %v855
    %v875 = vunpack.c.l.s4 1934713408
    %v876 = vunpack.c.0.s8 %v875
    %v877 = vlaneseq
    %v878 = vshrl.u32 %v877, 7
    %v879 = vsub.s32 %v876, %v878
    %v880 = vrot.slane %v872, %v879
    %v882 = vunpack.c.l.s4 1934713408
    %v883 = vunpack.c.0.s8 %v882
    %v884 = vlaneseq
    %v885 = vshrl.u32 %v884, 7
    %v886 = vsub.s32 %v883, %v885
    %v887 = vrot.slane %v873, %v886
    %v888 = vcombine.high %v864, 0.0
    %v889 = vcombine.high %v871, 0.0
    %v890 = vcombine.high %v880, 0.0
    %v891 = vcombine.high %v887, 0.0
    %v892 = vcombine.low %v803, %v811
    %v893 = vcombine.high %v803, %v811
    %v895 = vunpack.c.l.s4 1983009808
    %v896 = vunpack.c.0.s8 %v895
    %v897 = vlaneseq
    %v898 = vshrl.u32 %v897, 7
    %v899 = vsub.s32 %v896, %v898
    %v900 = vrot.slane %v892, %v899
    %v902 = vunpack.c.l.s4 1983009808
    %v903 = vunpack.c.0.s8 %v902
    %v904 = vlaneseq
    %v905 = vshrl.u32 %v904, 7
    %v906 = vsub.s32 %v903, %v905
    %v907 = vrot.slane %v893, %v906
    %v908 = vcombine.low %v807, %v815
    %v909 = vcombine.high %v807, %v815
    %v911 = vunpack.c.l.s4 1983009808
    %v912 = vunpack.c.0.s8 %v911
    %v913 = vlaneseq
    %v914 = vshrl.u32 %v913, 7
    %v915 = vsub.s32 %v912, %v914
    %v916 = vrot.slane %v908, %v915
    %v918 = vunpack.c.l.s4 1983009808
    %v919 = vunpack.c.0.s8 %v918
    %v920 = vlaneseq
    %v921 = vshrl.u32 %v920, 7
    %v922 = vsub.s32 %v919, %v921
    %v923 = vrot.slane %v909, %v922
    %v924 = vcombine.low %v900, %v916
    %v925 = vcombine.high %v900, %v916
    %v927 = vunpack.c.l.s4 1934713408
    %v928 = vunpack.c.0.s8 %v927
    %v929 = vlaneseq
    %v930 = vshrl.u32 %v929, 7
    %v931 = vsub.s32 %v928, %v930
    %v932 = vrot.slane %v924, %v931
    %v934 = vunpack.c.l.s4 1934713408
    %v935 = vunpack.c.0.s8 %v934
    %v936 = vlaneseq
    %v937 = vshrl.u32 %v936, 7
    %v938 = vsub.s32 %v935, %v937
    %v939 = vrot.slane %v925, %v938
    %v940 = vcombine.low %v907, %v923
    %v941 = vcombine.high %v907, %v923
    %v943 = vunpack.c.l.s4 1934713408
    %v944 = vunpack.c.0.s8 %v943
    %v945 = vlaneseq
    %v946 = vshrl.u32 %v945, 7
    %v947 = vsub.s32 %v944, %v946
    %v948 = vrot.slane %v940, %v947
    %v950 = vunpack.c.l.s4 1934713408
    %v951 = vunpack.c.0.s8 %v950
    %v952 = vlaneseq
    %v953 = vshrl.u32 %v952, 7
    %v954 = vsub.s32 %v951, %v953
    %v955 = vrot.slane %v941, %v954
    %v956 = vcombine.high %v932, 0.0
    %v957 = vcombine.high %v939, 0.0
    %v958 = vcombine.high %v948, 0.0
    %v959 = vcombine.high %v955, 0.0
    %v960 = vcombine.low %v864, %v871
    %v962 = vunpack.c.l.s4 1983009808
    %v963 = vunpack.c.0.s8 %v962
    %v964 = vlaneseq
    %v965 = vshrl.u32 %v964, 7
    %v966 = vsub.s32 %v963, %v965
    %v967 = vrot.slane %v960, %v966
    %v968 = vcombine.low %v888, %v889
    %v970 = vunpack.c.l.s4 1983009808
    %v971 = vunpack.c.0.s8 %v970
    %v972 = vlaneseq
    %v973 = vshrl.u32 %v972, 7
    %v974 = vsub.s32 %v971, %v973
    %v975 = vrot.slane %v968, %v974
    %v976 = vcombine.low %v880, %v887
    %v978 = vunpack.c.l.s4 1983009808
    %v979 = vunpack.c.0.s8 %v978
    %v980 = vlaneseq
    %v981 = vshrl.u32 %v980, 7
    %v982 = vsub.s32 %v979, %v981
    %v983 = vrot.slane %v976, %v982
    %v984 = vcombine.low %v890, %v891
    %v986 = vunpack.c.l.s4 1983009808
    %v987 = vunpack.c.0.s8 %v986
    %v988 = vlaneseq
    %v989 = vshrl.u32 %v988, 7
    %v990 = vsub.s32 %v987, %v989
    %v991 = vrot.slane %v984, %v990
    %v992 = vcombine.low %v967, %v975
    %v993 = vcombine.high %v967, %v975
    %v995 = vunpack.c.l.s4 1934713408
    %v996 = vunpack.c.0.s8 %v995
    %v997 = vlaneseq
    %v998 = vshrl.u32 %v997, 7
    %v999 = vsub.s32 %v996, %v998
    %v1000 = vrot.slane %v992, %v999
    %v1002 = vunpack.c.l.s4 1934713408
    %v1003 = vunpack.c.0.s8 %v1002
    %v1004 = vlaneseq
    %v1005 = vshrl.u32 %v1004, 7
    %v1006 = vsub.s32 %v1003, %v1005
    %v1007 = vrot.slane %v993, %v1006
    %v1008 = vcombine.low %v983, %v991
    %v1009 = vcombine.high %v983, %v991
    %v1011 = vunpack.c.l.s4 1934713408
    %v1012 = vunpack.c.0.s8 %v1011
    %v1013 = vlaneseq
    %v1014 = vshrl.u32 %v1013, 7
    %v1015 = vsub.s32 %v1012, %v1014
    %v1016 = vrot.slane %v1008, %v1015
    %v1018 = vunpack.c.l.s4 1934713408
    %v1019 = vunpack.c.0.s8 %v1018
    %v1020 = vlaneseq
    %v1021 = vshrl.u32 %v1020, 7
    %v1022 = vsub.s32 %v1019, %v1021
    %v1023 = vrot.slane %v1009, %v1022
    %v1024 = vcombine.low %v1000, %v1016
    %v1025 = vcombine.high %v1000, %v1016
    %v1026 = vcombine.low %v1007, %v1023
    %v1027 = vcombine.high %v1007, %v1023
    %v1028 = vcombine.low %v932, %v939
    %v1030 = vunpack.c.l.s4 1983009808
    %v1031 = vunpack.c.0.s8 %v1030
    %v1032 = vlaneseq
    %v1033 = vshrl.u32 %v1032, 7
    %v1034 = vsub.s32 %v1031, %v1033
    %v1035 = vrot.slane %v1028, %v1034
    %v1036 = vcombine.low %v956, %v957
    %v1038 = vunpack.c.l.s4 1983009808
    %v1039 = vunpack.c.0.s8 %v1038
    %v1040 = vlaneseq
    %v1041 = vshrl.u32 %v1040, 7
    %v1042 = vsub.s32 %v1039, %v1041
    %v1043 = vrot.slane %v1036, %v1042
    %v1044 = vcombine.low %v948, %v955
    %v1046 = vunpack.c.l.s4 1983009808
    %v1047 = vunpack.c.0.s8 %v1046
    %v1048 = vlaneseq
    %v1049 = vshrl.u32 %v1048, 7
    %v1050 = vsub.s32 %v1047, %v1049
    %v1051 = vrot.slane %v1044, %v1050
    %v1052 = vcombine.low %v958, %v959
    %v1054 = vunpack.c.l.s4 1983009808
    %v1055 = vunpack.c.0.s8 %v1054
    %v1056 = vlaneseq
    %v1057 = vshrl.u32 %v1056, 7
    %v1058 = vsub.s32 %v1055, %v1057
    %v1059 = vrot.slane %v1052, %v1058
    %v1060 = vcombine.low %v1035, %v1043
    %v1061 = vcombine.high %v1035, %v1043
    %v1063 = vunpack.c.l.s4 1934713408
    %v1064 = vunpack.c.0.s8 %v1063
    %v1065 = vlaneseq
    %v1066 = vshrl.u32 %v1065, 7
    %v1067 = vsub.s32 %v1064, %v1066
    %v1068 = vrot.slane %v1060, %v1067
    %v1070 = vunpack.c.l.s4 1934713408
    %v1071 = vunpack.c.0.s8 %v1070
    %v1072 = vlaneseq
    %v1073 = vshrl.u32 %v1072, 7
    %v1074 = vsub.s32 %v1071, %v1073
    %v1075 = vrot.slane %v1061, %v1074
    %v1076 = vcombine.low %v1051, %v1059
    %v1077 = vcombine.high %v1051, %v1059
    %v1079 = vunpack.c.l.s4 1934713408
    %v1080 = vunpack.c.0.s8 %v1079
    %v1081 = vlaneseq
    %v1082 = vshrl.u32 %v1081, 7
    %v1083 = vsub.s32 %v1080, %v1082
    %v1084 = vrot.slane %v1076, %v1083
    %v1086 = vunpack.c.l.s4 1934713408
    %v1087 = vunpack.c.0.s8 %v1086
    %v1088 = vlaneseq
    %v1089 = vshrl.u32 %v1088, 7
    %v1090 = vsub.s32 %v1087, %v1089
    %v1091 = vrot.slane %v1077, %v1090
    %v1092 = vcombine.low %v1068, %v1084
    %v1093 = vcombine.high %v1068, %v1084
    %v1094 = vcombine.low %v1075, %v1091
    %v1095 = vcombine.high %v1075, %v1091
    %v1096 = vpack.c.bf16 %v432, %v432
    %v1097 = vpack.c.bf16 %v433, %v433
    %v1098 = vpack.c.bf16 %v434, %v434
    %v1099 = vpack.c.bf16 %v435, %v435
    %v1100 = vpack.c.bf16 %v500, %v500
    %v1101 = vpack.c.bf16 %v501, %v501
    %v1102 = vpack.c.bf16 %v502, %v502
    %v1103 = vpack.c.bf16 %v503, %v503
    %v1104 = vpack.c.bf16 %v728, %v728
    %v1105 = vpack.c.bf16 %v729, %v729
    %v1106 = vpack.c.bf16 %v730, %v730
    %v1107 = vpack.c.bf16 %v731, %v731
    %v1108 = vpack.c.bf16 %v796, %v796
    %v1109 = vpack.c.bf16 %v797, %v797
    %v1110 = vpack.c.bf16 %v798, %v798
    %v1111 = vpack.c.bf16 %v799, %v799
    %vm1112 = vcmask 64512
    %v1114 = vsel %vm1112, %v1096, 0
    %v1117 = vsel %vm1112, %v1104, 0
    %1119 = vmatprep.subr.bf16.mxu0 0
    %1120 = vmatpush1.bf16.xpose.msra.mxu0 %v1117
    %1121 = vmatprep.subr.bf16.mxu0 0
    %1122 = vmatpush1.bf16.xpose.msra.mxu0 0
    %1123 = vmatprep.subr.bf16.mxu0 0
    %1124 = vmatpush1.bf16.xpose.msra.mxu0 0
    %1125 = vmatprep.subr.bf16.mxu0 0
    %1126 = vmatpush1.bf16.xpose.msra.mxu0 0
    %1127 = vmatprep.subr.bf16.mxu0 0
    %1128 = vmatpush1.bf16.xpose.msra.mxu0 0
    %1129 = vmatprep.subr.bf16.mxu0 0
    %1130 = vmatpush1.bf16.xpose.msra.mxu0 0
    %1131 = vmatprep.subr.bf16.mxu0 0
    %1132 = vmatpush1.bf16.xpose.msra.mxu0 0
    %1133 = vmatprep.subr.bf16.mxu0 0
    %1134 = vmatpush1.bf16.xpose.msra.mxu0 0
    %1135 = vmatprep.subr.bf16.mxu0 0
    %1136 = vmatpush1.bf16.xpose.msra.mxu0 0
    %1137 = vmatprep.subr.bf16.mxu0 0
    %1138 = vmatpush1.bf16.xpose.msra.mxu0 0
    %1139 = vmatprep.subr.bf16.mxu0 0
    %1140 = vmatpush1.bf16.xpose.msra.mxu0 0
    %1141 = vmatprep.subr.bf16.mxu0 0
    %1142 = vmatpush1.bf16.xpose.msra.mxu0 0
    %1143 = vmatprep.subr.bf16.mxu0 0
    %1144 = vmatpush1.bf16.xpose.msra.mxu0 0
    %1145 = vmatprep.subr.bf16.mxu0 0
    %1146 = vmatpush1.bf16.xpose.msra.mxu0 0
    %1147 = vmatprep.subr.bf16.mxu0 0
    %1148 = vmatpush1.bf16.xpose.msra.mxu0 0
    %1149 = vmatprep.subr.bf16.mxu0 0
    %1150 = vmatpush1.bf16.xpose.msra.mxu0 0
    %1151 = vmatprep.mubr.bf16.mxu0 0
    %1152 = vmatmul.mubr.bf16.gmra.mrb[0].mxu0 %v1114
    %v1153 = vpop.f32.mrb[0].mxu0
    %v1154 = vadd.f32 %v105, %v1153
    %v1155 = vpop.f32.mrb[0].mxu0
    %v1156 = vpop.f32.mrb[0].mxu0
    %v1157 = vpop.f32.mrb[0].mxu0
    %1158 = vdwg.mxu0
    %v1160 = vsel %vm1112, %v1097, 0
    %v1163 = vsel %vm1112, %v1105, 0
    %1165 = vmatprep.subr.bf16.mxu0 0
    %1166 = vmatpush1.bf16.xpose.msra.mxu0 %v1163
    %1167 = vmatprep.subr.bf16.mxu0 0
    %1168 = vmatpush1.bf16.xpose.msra.mxu0 0
    %1169 = vmatprep.subr.bf16.mxu0 0
    %1170 = vmatpush1.bf16.xpose.msra.mxu0 0
    %1171 = vmatprep.subr.bf16.mxu0 0
    %1172 = vmatpush1.bf16.xpose.msra.mxu0 0
    %1173 = vmatprep.subr.bf16.mxu0 0
    %1174 = vmatpush1.bf16.xpose.msra.mxu0 0
    %1175 = vmatprep.subr.bf16.mxu0 0
    %1176 = vmatpush1.bf16.xpose.msra.mxu0 0
    %1177 = vmatprep.subr.bf16.mxu0 0
    %1178 = vmatpush1.bf16.xpose.msra.mxu0 0
    %1179 = vmatprep.subr.bf16.mxu0 0
    %1180 = vmatpush1.bf16.xpose.msra.mxu0 0
    %1181 = vmatprep.subr.bf16.mxu0 0
    %1182 = vmatpush1.bf16.xpose.msra.mxu0 0
    %1183 = vmatprep.subr.bf16.mxu0 0
    %1184 = vmatpush1.bf16.xpose.msra.mxu0 0
    %1185 = vmatprep.subr.bf16.mxu0 0
    %1186 = vmatpush1.bf16.xpose.msra.mxu0 0
    %1187 = vmatprep.subr.bf16.mxu0 0
    %1188 = vmatpush1.bf16.xpose.msra.mxu0 0
    %1189 = vmatprep.subr.bf16.mxu0 0
    %1190 = vmatpush1.bf16.xpose.msra.mxu0 0
    %1191 = vmatprep.subr.bf16.mxu0 0
    %1192 = vmatpush1.bf16.xpose.msra.mxu0 0
    %1193 = vmatprep.subr.bf16.mxu0 0
    %1194 = vmatpush1.bf16.xpose.msra.mxu0 0
    %1195 = vmatprep.subr.bf16.mxu0 0
    %1196 = vmatpush1.bf16.xpose.msra.mxu0 0
    %1197 = vmatprep.mubr.bf16.mxu0 0
    %1198 = vmatmul.mubr.bf16.gmra.mrb[0].mxu0 %v1160
    %v1199 = vpop.f32.mrb[0].mxu0
    %v1200 = vadd.f32 %v105, %v1199
    %v1201 = vpop.f32.mrb[0].mxu0
    %v1202 = vpop.f32.mrb[0].mxu0
    %v1203 = vpop.f32.mrb[0].mxu0
    %1204 = vdwg.mxu0
    %v1206 = vsel %vm1112, %v1098, 0
    %v1209 = vsel %vm1112, %v1106, 0
    %1211 = vmatprep.subr.bf16.mxu0 0
    %1212 = vmatpush1.bf16.xpose.msra.mxu0 %v1209
    %1213 = vmatprep.subr.bf16.mxu0 0
    %1214 = vmatpush1.bf16.xpose.msra.mxu0 0
    %1215 = vmatprep.subr.bf16.mxu0 0
    %1216 = vmatpush1.bf16.xpose.msra.mxu0 0
    %1217 = vmatprep.subr.bf16.mxu0 0
    %1218 = vmatpush1.bf16.xpose.msra.mxu0 0
    %1219 = vmatprep.subr.bf16.mxu0 0
    %1220 = vmatpush1.bf16.xpose.msra.mxu0 0
    %1221 = vmatprep.subr.bf16.mxu0 0
    %1222 = vmatpush1.bf16.xpose.msra.mxu0 0
    %1223 = vmatprep.subr.bf16.mxu0 0
    %1224 = vmatpush1.bf16.xpose.msra.mxu0 0
    %1225 = vmatprep.subr.bf16.mxu0 0
    %1226 = vmatpush1.bf16.xpose.msra.mxu0 0
    %1227 = vmatprep.subr.bf16.mxu0 0
    %1228 = vmatpush1.bf16.xpose.msra.mxu0 0
    %1229 = vmatprep.subr.bf16.mxu0 0
    %1230 = vmatpush1.bf16.xpose.msra.mxu0 0
    %1231 = vmatprep.subr.bf16.mxu0 0
    %1232 = vmatpush1.bf16.xpose.msra.mxu0 0
    %1233 = vmatprep.subr.bf16.mxu0 0
    %1234 = vmatpush1.bf16.xpose.msra.mxu0 0
    %1235 = vmatprep.subr.bf16.mxu0 0
    %1236 = vmatpush1.bf16.xpose.msra.mxu0 0
    %1237 = vmatprep.subr.bf16.mxu0 0
    %1238 = vmatpush1.bf16.xpose.msra.mxu0 0
    %1239 = vmatprep.subr.bf16.mxu0 0
    %1240 = vmatpush1.bf16.xpose.msra.mxu0 0
    %1241 = vmatprep.subr.bf16.mxu0 0
    %1242 = vmatpush1.bf16.xpose.msra.mxu0 0
    %1243 = vmatprep.mubr.bf16.mxu0 0
    %1244 = vmatmul.mubr.bf16.gmra.mrb[0].mxu0 %v1206
    %v1245 = vpop.f32.mrb[0].mxu0
    %v1246 = vadd.f32 %v105, %v1245
    %v1247 = vpop.f32.mrb[0].mxu0
    %v1248 = vpop.f32.mrb[0].mxu0
    %v1249 = vpop.f32.mrb[0].mxu0
    %1250 = vdwg.mxu0
    %v1252 = vsel %vm1112, %v1099, 0
    %v1255 = vsel %vm1112, %v1107, 0
    %1257 = vmatprep.subr.bf16.mxu0 0
    %1258 = vmatpush1.bf16.xpose.msra.mxu0 %v1255
    %1259 = vmatprep.subr.bf16.mxu0 0
    %1260 = vmatpush1.bf16.xpose.msra.mxu0 0
    %1261 = vmatprep.subr.bf16.mxu0 0
    %1262 = vmatpush1.bf16.xpose.msra.mxu0 0
    %1263 = vmatprep.subr.bf16.mxu0 0
    %1264 = vmatpush1.bf16.xpose.msra.mxu0 0
    %1265 = vmatprep.subr.bf16.mxu0 0
    %1266 = vmatpush1.bf16.xpose.msra.mxu0 0
    %1267 = vmatprep.subr.bf16.mxu0 0
    %1268 = vmatpush1.bf16.xpose.msra.mxu0 0
    %1269 = vmatprep.subr.bf16.mxu0 0
    %1270 = vmatpush1.bf16.xpose.msra.mxu0 0
    %1271 = vmatprep.subr.bf16.mxu0 0
    %1272 = vmatpush1.bf16.xpose.msra.mxu0 0
    %1273 = vmatprep.subr.bf16.mxu0 0
    %1274 = vmatpush1.bf16.xpose.msra.mxu0 0
    %1275 = vmatprep.subr.bf16.mxu0 0
    %1276 = vmatpush1.bf16.xpose.msra.mxu0 0
    %1277 = vmatprep.subr.bf16.mxu0 0
    %1278 = vmatpush1.bf16.xpose.msra.mxu0 0
    %1279 = vmatprep.subr.bf16.mxu0 0
    %1280 = vmatpush1.bf16.xpose.msra.mxu0 0
    %1281 = vmatprep.subr.bf16.mxu0 0
    %1282 = vmatpush1.bf16.xpose.msra.mxu0 0
    %1283 = vmatprep.subr.bf16.mxu0 0
    %1284 = vmatpush1.bf16.xpose.msra.mxu0 0
    %1285 = vmatprep.subr.bf16.mxu0 0
    %1286 = vmatpush1.bf16.xpose.msra.mxu0 0
    %1287 = vmatprep.subr.bf16.mxu0 0
    %1288 = vmatpush1.bf16.xpose.msra.mxu0 0
    %1289 = vmatprep.mubr.bf16.mxu0 0
    %1290 = vmatmul.mubr.bf16.gmra.mrb[0].mxu0 %v1252
    %v1291 = vpop.f32.mrb[0].mxu0
    %v1292 = vadd.f32 %v105, %v1291
    %v1293 = vpop.f32.mrb[0].mxu0
    %v1294 = vpop.f32.mrb[0].mxu0
    %v1295 = vpop.f32.mrb[0].mxu0
    %1296 = vdwg.mxu0
    %v1298 = vsel %vm1112, %v1100, 0
    %v1301 = vsel %vm1112, %v1108, 0
    %1303 = vmatprep.subr.bf16.mxu0 0
    %1304 = vmatpush1.bf16.xpose.msra.mxu0 %v1301
    %1305 = vmatprep.subr.bf16.mxu0 0
    %1306 = vmatpush1.bf16.xpose.msra.mxu0 0
    %1307 = vmatprep.subr.bf16.mxu0 0
    %1308 = vmatpush1.bf16.xpose.msra.mxu0 0
    %1309 = vmatprep.subr.bf16.mxu0 0
    %1310 = vmatpush1.bf16.xpose.msra.mxu0 0
    %1311 = vmatprep.subr.bf16.mxu0 0
    %1312 = vmatpush1.bf16.xpose.msra.mxu0 0
    %1313 = vmatprep.subr.bf16.mxu0 0
    %1314 = vmatpush1.bf16.xpose.msra.mxu0 0
    %1315 = vmatprep.subr.bf16.mxu0 0
    %1316 = vmatpush1.bf16.xpose.msra.mxu0 0
    %1317 = vmatprep.subr.bf16.mxu0 0
    %1318 = vmatpush1.bf16.xpose.msra.mxu0 0
    %1319 = vmatprep.subr.bf16.mxu0 0
    %1320 = vmatpush1.bf16.xpose.msra.mxu0 0
    %1321 = vmatprep.subr.bf16.mxu0 0
    %1322 = vmatpush1.bf16.xpose.msra.mxu0 0
    %1323 = vmatprep.subr.bf16.mxu0 0
    %1324 = vmatpush1.bf16.xpose.msra.mxu0 0
    %1325 = vmatprep.subr.bf16.mxu0 0
    %1326 = vmatpush1.bf16.xpose.msra.mxu0 0
    %1327 = vmatprep.subr.bf16.mxu0 0
    %1328 = vmatpush1.bf16.xpose.msra.mxu0 0
    %1329 = vmatprep.subr.bf16.mxu0 0
    %1330 = vmatpush1.bf16.xpose.msra.mxu0 0
    %1331 = vmatprep.subr.bf16.mxu0 0
    %1332 = vmatpush1.bf16.xpose.msra.mxu0 0
    %1333 = vmatprep.subr.bf16.mxu0 0
    %1334 = vmatpush1.bf16.xpose.msra.mxu0 0
    %1335 = vmatprep.mubr.bf16.mxu0 0
    %1336 = vmatmul.mubr.bf16.gmra.mrb[0].mxu0 %v1298
    %v1337 = vpop.f32.mrb[0].mxu0
    %v1338 = vadd.f32 %v106, %v1337
    %v1339 = vpop.f32.mrb[0].mxu0
    %v1340 = vpop.f32.mrb[0].mxu0
    %v1341 = vpop.f32.mrb[0].mxu0
    %1342 = vdwg.mxu0
    %v1344 = vsel %vm1112, %v1101, 0
    %v1347 = vsel %vm1112, %v1109, 0
    %1349 = vmatprep.subr.bf16.mxu0 0
    %1350 = vmatpush1.bf16.xpose.msra.mxu0 %v1347
    %1351 = vmatprep.subr.bf16.mxu0 0
    %1352 = vmatpush1.bf16.xpose.msra.mxu0 0
    %1353 = vmatprep.subr.bf16.mxu0 0
    %1354 = vmatpush1.bf16.xpose.msra.mxu0 0
    %1355 = vmatprep.subr.bf16.mxu0 0
    %1356 = vmatpush1.bf16.xpose.msra.mxu0 0
    %1357 = vmatprep.subr.bf16.mxu0 0
    %1358 = vmatpush1.bf16.xpose.msra.mxu0 0
    %1359 = vmatprep.subr.bf16.mxu0 0
    %1360 = vmatpush1.bf16.xpose.msra.mxu0 0
    %1361 = vmatprep.subr.bf16.mxu0 0
    %1362 = vmatpush1.bf16.xpose.msra.mxu0 0
    %1363 = vmatprep.subr.bf16.mxu0 0
    %1364 = vmatpush1.bf16.xpose.msra.mxu0 0
    %1365 = vmatprep.subr.bf16.mxu0 0
    %1366 = vmatpush1.bf16.xpose.msra.mxu0 0
    %1367 = vmatprep.subr.bf16.mxu0 0
    %1368 = vmatpush1.bf16.xpose.msra.mxu0 0
    %1369 = vmatprep.subr.bf16.mxu0 0
    %1370 = vmatpush1.bf16.xpose.msra.mxu0 0
    %1371 = vmatprep.subr.bf16.mxu0 0
    %1372 = vmatpush1.bf16.xpose.msra.mxu0 0
    %1373 = vmatprep.subr.bf16.mxu0 0
    %1374 = vmatpush1.bf16.xpose.msra.mxu0 0
    %1375 = vmatprep.subr.bf16.mxu0 0
    %1376 = vmatpush1.bf16.xpose.msra.mxu0 0
    %1377 = vmatprep.subr.bf16.mxu0 0
    %1378 = vmatpush1.bf16.xpose.msra.mxu0 0
    %1379 = vmatprep.subr.bf16.mxu0 0
    %1380 = vmatpush1.bf16.xpose.msra.mxu0 0
    %1381 = vmatprep.mubr.bf16.mxu0 0
    %1382 = vmatmul.mubr.bf16.gmra.mrb[0].mxu0 %v1344
    %v1383 = vpop.f32.mrb[0].mxu0
    %v1384 = vadd.f32 %v106, %v1383
    %v1385 = vpop.f32.mrb[0].mxu0
    %v1386 = vpop.f32.mrb[0].mxu0
    %v1387 = vpop.f32.mrb[0].mxu0
    %1388 = vdwg.mxu0
    %v1390 = vsel %vm1112, %v1102, 0
    %v1393 = vsel %vm1112, %v1110, 0
    %1395 = vmatprep.subr.bf16.mxu0 0
    %1396 = vmatpush1.bf16.xpose.msra.mxu0 %v1393
    %1397 = vmatprep.subr.bf16.mxu0 0
    %1398 = vmatpush1.bf16.xpose.msra.mxu0 0
    %1399 = vmatprep.subr.bf16.mxu0 0
    %1400 = vmatpush1.bf16.xpose.msra.mxu0 0
    %1401 = vmatprep.subr.bf16.mxu0 0
    %1402 = vmatpush1.bf16.xpose.msra.mxu0 0
    %1403 = vmatprep.subr.bf16.mxu0 0
    %1404 = vmatpush1.bf16.xpose.msra.mxu0 0
    %1405 = vmatprep.subr.bf16.mxu0 0
    %1406 = vmatpush1.bf16.xpose.msra.mxu0 0
    %1407 = vmatprep.subr.bf16.mxu0 0
    %1408 = vmatpush1.bf16.xpose.msra.mxu0 0
    %1409 = vmatprep.subr.bf16.mxu0 0
    %1410 = vmatpush1.bf16.xpose.msra.mxu0 0
    %1411 = vmatprep.subr.bf16.mxu0 0
    %1412 = vmatpush1.bf16.xpose.msra.mxu0 0
    %1413 = vmatprep.subr.bf16.mxu0 0
    %1414 = vmatpush1.bf16.xpose.msra.mxu0 0
    %1415 = vmatprep.subr.bf16.mxu0 0
    %1416 = vmatpush1.bf16.xpose.msra.mxu0 0
    %1417 = vmatprep.subr.bf16.mxu0 0
    %1418 = vmatpush1.bf16.xpose.msra.mxu0 0
    %1419 = vmatprep.subr.bf16.mxu0 0
    %1420 = vmatpush1.bf16.xpose.msra.mxu0 0
    %1421 = vmatprep.subr.bf16.mxu0 0
    %1422 = vmatpush1.bf16.xpose.msra.mxu0 0
    %1423 = vmatprep.subr.bf16.mxu0 0
    %1424 = vmatpush1.bf16.xpose.msra.mxu0 0
    %1425 = vmatprep.subr.bf16.mxu0 0
    %1426 = vmatpush1.bf16.xpose.msra.mxu0 0
    %1427 = vmatprep.mubr.bf16.mxu0 0
    %1428 = vmatmul.mubr.bf16.gmra.mrb[0].mxu0 %v1390
    %v1429 = vpop.f32.mrb[0].mxu0
    %v1430 = vadd.f32 %v106, %v1429
    %v1431 = vpop.f32.mrb[0].mxu0
    %v1432 = vpop.f32.mrb[0].mxu0
    %v1433 = vpop.f32.mrb[0].mxu0
    %1434 = vdwg.mxu0
    %v1436 = vsel %vm1112, %v1103, 0
    %v1439 = vsel %vm1112, %v1111, 0
    %1441 = vmatprep.subr.bf16.mxu0 0
    %1442 = vmatpush1.bf16.xpose.msra.mxu0 %v1439
    %1443 = vmatprep.subr.bf16.mxu0 0
    %1444 = vmatpush1.bf16.xpose.msra.mxu0 0
    %1445 = vmatprep.subr.bf16.mxu0 0
    %1446 = vmatpush1.bf16.xpose.msra.mxu0 0
    %1447 = vmatprep.subr.bf16.mxu0 0
    %1448 = vmatpush1.bf16.xpose.msra.mxu0 0
    %1449 = vmatprep.subr.bf16.mxu0 0
    %1450 = vmatpush1.bf16.xpose.msra.mxu0 0
    %1451 = vmatprep.subr.bf16.mxu0 0
    %1452 = vmatpush1.bf16.xpose.msra.mxu0 0
    %1453 = vmatprep.subr.bf16.mxu0 0
    %1454 = vmatpush1.bf16.xpose.msra.mxu0 0
    %1455 = vmatprep.subr.bf16.mxu0 0
    %1456 = vmatpush1.bf16.xpose.msra.mxu0 0
    %1457 = vmatprep.subr.bf16.mxu0 0
    %1458 = vmatpush1.bf16.xpose.msra.mxu0 0
    %1459 = vmatprep.subr.bf16.mxu0 0
    %1460 = vmatpush1.bf16.xpose.msra.mxu0 0
    %1461 = vmatprep.subr.bf16.mxu0 0
    %1462 = vmatpush1.bf16.xpose.msra.mxu0 0
    %1463 = vmatprep.subr.bf16.mxu0 0
    %1464 = vmatpush1.bf16.xpose.msra.mxu0 0
    %1465 = vmatprep.subr.bf16.mxu0 0
    %1466 = vmatpush1.bf16.xpose.msra.mxu0 0
    %1467 = vmatprep.subr.bf16.mxu0 0
    %1468 = vmatpush1.bf16.xpose.msra.mxu0 0
    %1469 = vmatprep.subr.bf16.mxu0 0
    %1470 = vmatpush1.bf16.xpose.msra.mxu0 0
    %1471 = vmatprep.subr.bf16.mxu0 0
    %1472 = vmatpush1.bf16.xpose.msra.mxu0 0
    %1473 = vmatprep.mubr.bf16.mxu0 0
    %1474 = vmatmul.mubr.bf16.gmra.mrb[0].mxu0 %v1436
    %v1475 = vpop.f32.mrb[0].mxu0
    %v1476 = vadd.f32 %v106, %v1475
    %v1477 = vpop.f32.mrb[0].mxu0
    %v1478 = vpop.f32.mrb[0].mxu0
    %v1479 = vpop.f32.mrb[0].mxu0
    %1480 = vdwg.mxu0
    %v1481 = vsel %vm1112, %v1154, -inf
    %1482 = vmax.xlane.f32.xlu0 %v1481
    %v1483 = vpop.xlane.xlu0 %1482
    %v1484 = vsel %vm1112, %v1200, -inf
    %1485 = vmax.xlane.f32.xlu0 %v1484
    %v1486 = vpop.xlane.xlu0 %1485
    %v1487 = vsel %vm1112, %v1246, -inf
    %1488 = vmax.xlane.f32.xlu0 %v1487
    %v1489 = vpop.xlane.xlu0 %1488
    %v1490 = vsel %vm1112, %v1292, -inf
    %1491 = vmax.xlane.f32.xlu0 %v1490
    %v1492 = vpop.xlane.xlu0 %1491
    %v1493 = vsel %vm1112, %v1338, -inf
    %1494 = vmax.xlane.f32.xlu0 %v1493
    %v1495 = vpop.xlane.xlu0 %1494
    %v1496 = vsel %vm1112, %v1384, -inf
    %1497 = vmax.xlane.f32.xlu0 %v1496
    %v1498 = vpop.xlane.xlu0 %1497
    %v1499 = vsel %vm1112, %v1430, -inf
    %1500 = vmax.xlane.f32.xlu0 %v1499
    %v1501 = vpop.xlane.xlu0 %1500
    %v1502 = vsel %vm1112, %v1476, -inf
    %1503 = vmax.xlane.f32.xlu0 %v1502
    %v1504 = vpop.xlane.xlu0 %1503
    %v1505 = vsub.f32 %v1154, %v1483
    %v1506 = vsub.f32 %v1200, %v1486
    %v1507 = vsub.f32 %v1246, %v1489
    %v1508 = vsub.f32 %v1292, %v1492
    %v1509 = vsub.f32 %v1338, %v1495
    %v1510 = vsub.f32 %v1384, %v1498
    %v1511 = vsub.f32 %v1430, %v1501
    %v1512 = vsub.f32 %v1476, %v1504
    %v1513 = vmul.f32 %v1505, 1.442695
    %v1514 = vpow.pop %v1513
    %v1515 = vmul.f32 %v1506, 1.442695
    %v1516 = vpow.pop %v1515
    %v1517 = vmul.f32 %v1507, 1.442695
    %v1518 = vpow.pop %v1517
    %v1519 = vmul.f32 %v1508, 1.442695
    %v1520 = vpow.pop %v1519
    %v1521 = vmul.f32 %v1509, 1.442695
    %v1522 = vpow.pop %v1521
    %v1523 = vmul.f32 %v1510, 1.442695
    %v1524 = vpow.pop %v1523
    %v1525 = vmul.f32 %v1511, 1.442695
    %v1526 = vpow.pop %v1525
    %v1527 = vmul.f32 %v1512, 1.442695
    %v1528 = vpow.pop %v1527
    %v1529 = vsel %vm1112, %v1514, 0.0
    %1530 = vadd.xlane.f32.xlu0 %v1529
    %v1531 = vpop.xlane.xlu0 %1530
    %v1532 = vsel %vm1112, %v1516, 0.0
    %1533 = vadd.xlane.f32.xlu0 %v1532
    %v1534 = vpop.xlane.xlu0 %1533
    %v1535 = vsel %vm1112, %v1518, 0.0
    %1536 = vadd.xlane.f32.xlu0 %v1535
    %v1537 = vpop.xlane.xlu0 %1536
    %v1538 = vsel %vm1112, %v1520, 0.0
    %1539 = vadd.xlane.f32.xlu0 %v1538
    %v1540 = vpop.xlane.xlu0 %1539
    %v1541 = vsel %vm1112, %v1522, 0.0
    %1542 = vadd.xlane.f32.xlu0 %v1541
    %v1543 = vpop.xlane.xlu0 %1542
    %v1544 = vsel %vm1112, %v1524, 0.0
    %1545 = vadd.xlane.f32.xlu0 %v1544
    %v1546 = vpop.xlane.xlu0 %1545
    %v1547 = vsel %vm1112, %v1526, 0.0
    %1548 = vadd.xlane.f32.xlu0 %v1547
    %v1549 = vpop.xlane.xlu0 %1548
    %v1550 = vsel %vm1112, %v1528, 0.0
    %1551 = vadd.xlane.f32.xlu0 %v1550
    %v1552 = vpop.xlane.xlu0 %1551
    %v1553 = vrcp.pop %v1531
    %v1554 = vrcp.pop %v1534
    %v1555 = vrcp.pop %v1537
    %v1556 = vrcp.pop %v1540
    %v1557 = vrcp.pop %v1543
    %v1558 = vrcp.pop %v1546
    %v1559 = vrcp.pop %v1549
    %v1560 = vrcp.pop %v1552
    %v1561 = vmul.f32 %v1514, %v1553
    %v1562 = vmul.f32 %v1516, %v1554
    %v1563 = vmul.f32 %v1518, %v1555
    %v1564 = vmul.f32 %v1520, %v1556
    %v1565 = vmul.f32 %v1522, %v1557
    %v1566 = vmul.f32 %v1524, %v1558
    %v1567 = vmul.f32 %v1526, %v1559
    %v1568 = vmul.f32 %v1528, %v1560
    %v1569 = vpack.c.bf16 %v1561, %v1561
    %v1570 = vpack.c.bf16 %v1562, %v1562
    %v1571 = vpack.c.bf16 %v1563, %v1563
    %v1572 = vpack.c.bf16 %v1564, %v1564
    %v1573 = vpack.c.bf16 %v1565, %v1565
    %v1574 = vpack.c.bf16 %v1566, %v1566
    %v1575 = vpack.c.bf16 %v1567, %v1567
    %v1576 = vpack.c.bf16 %v1568, %v1568
    %v1577 = vpack.c.bf16 %v1024, %v1024
    %v1578 = vpack.c.bf16 %v1025, %v1025
    %v1579 = vpack.c.bf16 %v1026, %v1026
    %v1580 = vpack.c.bf16 %v1027, %v1027
    %v1581 = vpack.c.bf16 %v1092, %v1092
    %v1582 = vpack.c.bf16 %v1093, %v1093
    %v1583 = vpack.c.bf16 %v1094, %v1094
    %v1584 = vpack.c.bf16 %v1095, %v1095
    %v1586 = vsel %vm1112, %v1569, 0
    %vm1588 = vcmask 1043456
    %v1590 = vsel %vm1588, %v1577, 0
    %1592 = vmatprep.subr.bf16.mxu0 0
    %1593 = vmatpush1.bf16.msra.mxu0 %v1590
    %1594 = vmatprep.subr.bf16.mxu0 0
    %1595 = vmatpush1.bf16.msra.mxu0 0
    %1596 = vmatprep.subr.bf16.mxu0 0
    %1597 = vmatpush1.bf16.msra.mxu0 0
    %1598 = vmatprep.subr.bf16.mxu0 0
    %1599 = vmatpush1.bf16.msra.mxu0 0
    %1600 = vmatprep.subr.bf16.mxu0 0
    %1601 = vmatpush1.bf16.msra.mxu0 0
    %1602 = vmatprep.subr.bf16.mxu0 0
    %1603 = vmatpush1.bf16.msra.mxu0 0
    %1604 = vmatprep.subr.bf16.mxu0 0
    %1605 = vmatpush1.bf16.msra.mxu0 0
    %1606 = vmatprep.subr.bf16.mxu0 0
    %1607 = vmatpush1.bf16.msra.mxu0 0
    %1608 = vmatprep.subr.bf16.mxu0 0
    %1609 = vmatpush1.bf16.msra.mxu0 0
    %1610 = vmatprep.subr.bf16.mxu0 0
    %1611 = vmatpush1.bf16.msra.mxu0 0
    %1612 = vmatprep.subr.bf16.mxu0 0
    %1613 = vmatpush1.bf16.msra.mxu0 0
    %1614 = vmatprep.subr.bf16.mxu0 0
    %1615 = vmatpush1.bf16.msra.mxu0 0
    %1616 = vmatprep.subr.bf16.mxu0 0
    %1617 = vmatpush1.bf16.msra.mxu0 0
    %1618 = vmatprep.subr.bf16.mxu0 0
    %1619 = vmatpush1.bf16.msra.mxu0 0
    %1620 = vmatprep.subr.bf16.mxu0 0
    %1621 = vmatpush1.bf16.msra.mxu0 0
    %1622 = vmatprep.subr.bf16.mxu0 0
    %1623 = vmatpush1.bf16.msra.mxu0 0
    %1624 = vmatprep.mubr.bf16.mxu0 0
    %1625 = vmatmul.mubr.bf16.gmra.mrb[0].mxu0 %v1586
    %v1626 = vpop.f32.mrb[0].mxu0
    %v1627 = vadd.f32 0.0, %v1626
    %v1628 = vpop.f32.mrb[0].mxu0
    %v1629 = vpop.f32.mrb[0].mxu0
    %v1630 = vpop.f32.mrb[0].mxu0
    %1631 = vdwg.mxu0
    %v1633 = vsel %vm1112, %v1570, 0
    %v1636 = vsel %vm1588, %v1578, 0
    %1638 = vmatprep.subr.bf16.mxu0 0
    %1639 = vmatpush1.bf16.msra.mxu0 %v1636
    %1640 = vmatprep.subr.bf16.mxu0 0
    %1641 = vmatpush1.bf16.msra.mxu0 0
    %1642 = vmatprep.subr.bf16.mxu0 0
    %1643 = vmatpush1.bf16.msra.mxu0 0
    %1644 = vmatprep.subr.bf16.mxu0 0
    %1645 = vmatpush1.bf16.msra.mxu0 0
    %1646 = vmatprep.subr.bf16.mxu0 0
    %1647 = vmatpush1.bf16.msra.mxu0 0
    %1648 = vmatprep.subr.bf16.mxu0 0
    %1649 = vmatpush1.bf16.msra.mxu0 0
    %1650 = vmatprep.subr.bf16.mxu0 0
    %1651 = vmatpush1.bf16.msra.mxu0 0
    %1652 = vmatprep.subr.bf16.mxu0 0
    %1653 = vmatpush1.bf16.msra.mxu0 0
    %1654 = vmatprep.subr.bf16.mxu0 0
    %1655 = vmatpush1.bf16.msra.mxu0 0
    %1656 = vmatprep.subr.bf16.mxu0 0
    %1657 = vmatpush1.bf16.msra.mxu0 0
    %1658 = vmatprep.subr.bf16.mxu0 0
    %1659 = vmatpush1.bf16.msra.mxu0 0
    %1660 = vmatprep.subr.bf16.mxu0 0
    %1661 = vmatpush1.bf16.msra.mxu0 0
    %1662 = vmatprep.subr.bf16.mxu0 0
    %1663 = vmatpush1.bf16.msra.mxu0 0
    %1664 = vmatprep.subr.bf16.mxu0 0
    %1665 = vmatpush1.bf16.msra.mxu0 0
    %1666 = vmatprep.subr.bf16.mxu0 0
    %1667 = vmatpush1.bf16.msra.mxu0 0
    %1668 = vmatprep.subr.bf16.mxu0 0
    %1669 = vmatpush1.bf16.msra.mxu0 0
    %1670 = vmatprep.mubr.bf16.mxu0 0
    %1671 = vmatmul.mubr.bf16.gmra.mrb[0].mxu0 %v1633
    %v1672 = vpop.f32.mrb[0].mxu0
    %v1673 = vadd.f32 0.0, %v1672
    %v1674 = vpop.f32.mrb[0].mxu0
    %v1675 = vpop.f32.mrb[0].mxu0
    %v1676 = vpop.f32.mrb[0].mxu0
    %1677 = vdwg.mxu0
    %v1679 = vsel %vm1112, %v1571, 0
    %v1682 = vsel %vm1588, %v1579, 0
    %1684 = vmatprep.subr.bf16.mxu0 0
    %1685 = vmatpush1.bf16.msra.mxu0 %v1682
    %1686 = vmatprep.subr.bf16.mxu0 0
    %1687 = vmatpush1.bf16.msra.mxu0 0
    %1688 = vmatprep.subr.bf16.mxu0 0
    %1689 = vmatpush1.bf16.msra.mxu0 0
    %1690 = vmatprep.subr.bf16.mxu0 0
    %1691 = vmatpush1.bf16.msra.mxu0 0
    %1692 = vmatprep.subr.bf16.mxu0 0
    %1693 = vmatpush1.bf16.msra.mxu0 0
    %1694 = vmatprep.subr.bf16.mxu0 0
    %1695 = vmatpush1.bf16.msra.mxu0 0
    %1696 = vmatprep.subr.bf16.mxu0 0
    %1697 = vmatpush1.bf16.msra.mxu0 0
    %1698 = vmatprep.subr.bf16.mxu0 0
    %1699 = vmatpush1.bf16.msra.mxu0 0
    %1700 = vmatprep.subr.bf16.mxu0 0
    %1701 = vmatpush1.bf16.msra.mxu0 0
    %1702 = vmatprep.subr.bf16.mxu0 0
    %1703 = vmatpush1.bf16.msra.mxu0 0
    %1704 = vmatprep.subr.bf16.mxu0 0
    %1705 = vmatpush1.bf16.msra.mxu0 0
    %1706 = vmatprep.subr.bf16.mxu0 0
    %1707 = vmatpush1.bf16.msra.mxu0 0
    %1708 = vmatprep.subr.bf16.mxu0 0
    %1709 = vmatpush1.bf16.msra.mxu0 0
    %1710 = vmatprep.subr.bf16.mxu0 0
    %1711 = vmatpush1.bf16.msra.mxu0 0
    %1712 = vmatprep.subr.bf16.mxu0 0
    %1713 = vmatpush1.bf16.msra.mxu0 0
    %1714 = vmatprep.subr.bf16.mxu0 0
    %1715 = vmatpush1.bf16.msra.mxu0 0
    %1716 = vmatprep.mubr.bf16.mxu0 0
    %1717 = vmatmul.mubr.bf16.gmra.mrb[0].mxu0 %v1679
    %v1718 = vpop.f32.mrb[0].mxu0
    %v1719 = vadd.f32 0.0, %v1718
    %v1720 = vpop.f32.mrb[0].mxu0
    %v1721 = vpop.f32.mrb[0].mxu0
    %v1722 = vpop.f32.mrb[0].mxu0
    %1723 = vdwg.mxu0
    %v1725 = vsel %vm1112, %v1572, 0
    %v1728 = vsel %vm1588, %v1580, 0
    %1730 = vmatprep.subr.bf16.mxu0 0
    %1731 = vmatpush1.bf16.msra.mxu0 %v1728
    %1732 = vmatprep.subr.bf16.mxu0 0
    %1733 = vmatpush1.bf16.msra.mxu0 0
    %1734 = vmatprep.subr.bf16.mxu0 0
    %1735 = vmatpush1.bf16.msra.mxu0 0
    %1736 = vmatprep.subr.bf16.mxu0 0
    %1737 = vmatpush1.bf16.msra.mxu0 0
    %1738 = vmatprep.subr.bf16.mxu0 0
    %1739 = vmatpush1.bf16.msra.mxu0 0
    %1740 = vmatprep.subr.bf16.mxu0 0
    %1741 = vmatpush1.bf16.msra.mxu0 0
    %1742 = vmatprep.subr.bf16.mxu0 0
    %1743 = vmatpush1.bf16.msra.mxu0 0
    %1744 = vmatprep.subr.bf16.mxu0 0
    %1745 = vmatpush1.bf16.msra.mxu0 0
    %1746 = vmatprep.subr.bf16.mxu0 0
    %1747 = vmatpush1.bf16.msra.mxu0 0
    %1748 = vmatprep.subr.bf16.mxu0 0
    %1749 = vmatpush1.bf16.msra.mxu0 0
    %1750 = vmatprep.subr.bf16.mxu0 0
    %1751 = vmatpush1.bf16.msra.mxu0 0
    %1752 = vmatprep.subr.bf16.mxu0 0
    %1753 = vmatpush1.bf16.msra.mxu0 0
    %1754 = vmatprep.subr.bf16.mxu0 0
    %1755 = vmatpush1.bf16.msra.mxu0 0
    %1756 = vmatprep.subr.bf16.mxu0 0
    %1757 = vmatpush1.bf16.msra.mxu0 0
    %1758 = vmatprep.subr.bf16.mxu0 0
    %1759 = vmatpush1.bf16.msra.mxu0 0
    %1760 = vmatprep.subr.bf16.mxu0 0
    %1761 = vmatpush1.bf16.msra.mxu0 0
    %1762 = vmatprep.mubr.bf16.mxu0 0
    %1763 = vmatmul.mubr.bf16.gmra.mrb[0].mxu0 %v1725
    %v1764 = vpop.f32.mrb[0].mxu0
    %v1765 = vadd.f32 0.0, %v1764
    %v1766 = vpop.f32.mrb[0].mxu0
    %v1767 = vpop.f32.mrb[0].mxu0
    %v1768 = vpop.f32.mrb[0].mxu0
    %1769 = vdwg.mxu0
    %v1771 = vsel %vm1112, %v1573, 0
    %v1774 = vsel %vm1588, %v1581, 0
    %1776 = vmatprep.subr.bf16.mxu0 0
    %1777 = vmatpush1.bf16.msra.mxu0 %v1774
    %1778 = vmatprep.subr.bf16.mxu0 0
    %1779 = vmatpush1.bf16.msra.mxu0 0
    %1780 = vmatprep.subr.bf16.mxu0 0
    %1781 = vmatpush1.bf16.msra.mxu0 0
    %1782 = vmatprep.subr.bf16.mxu0 0
    %1783 = vmatpush1.bf16.msra.mxu0 0
    %1784 = vmatprep.subr.bf16.mxu0 0
    %1785 = vmatpush1.bf16.msra.mxu0 0
    %1786 = vmatprep.subr.bf16.mxu0 0
    %1787 = vmatpush1.bf16.msra.mxu0 0
    %1788 = vmatprep.subr.bf16.mxu0 0
    %1789 = vmatpush1.bf16.msra.mxu0 0
    %1790 = vmatprep.subr.bf16.mxu0 0
    %1791 = vmatpush1.bf16.msra.mxu0 0
    %1792 = vmatprep.subr.bf16.mxu0 0
    %1793 = vmatpush1.bf16.msra.mxu0 0
    %1794 = vmatprep.subr.bf16.mxu0 0
    %1795 = vmatpush1.bf16.msra.mxu0 0
    %1796 = vmatprep.subr.bf16.mxu0 0
    %1797 = vmatpush1.bf16.msra.mxu0 0
    %1798 = vmatprep.subr.bf16.mxu0 0
    %1799 = vmatpush1.bf16.msra.mxu0 0
    %1800 = vmatprep.subr.bf16.mxu0 0
    %1801 = vmatpush1.bf16.msra.mxu0 0
    %1802 = vmatprep.subr.bf16.mxu0 0
    %1803 = vmatpush1.bf16.msra.mxu0 0
    %1804 = vmatprep.subr.bf16.mxu0 0
    %1805 = vmatpush1.bf16.msra.mxu0 0
    %1806 = vmatprep.subr.bf16.mxu0 0
    %1807 = vmatpush1.bf16.msra.mxu0 0
    %1808 = vmatprep.mubr.bf16.mxu0 0
    %1809 = vmatmul.mubr.bf16.gmra.mrb[0].mxu0 %v1771
    %v1810 = vpop.f32.mrb[0].mxu0
    %v1811 = vadd.f32 0.0, %v1810
    %v1812 = vpop.f32.mrb[0].mxu0
    %v1813 = vpop.f32.mrb[0].mxu0
    %v1814 = vpop.f32.mrb[0].mxu0
    %1815 = vdwg.mxu0
    %v1817 = vsel %vm1112, %v1574, 0
    %v1820 = vsel %vm1588, %v1582, 0
    %1822 = vmatprep.subr.bf16.mxu0 0
    %1823 = vmatpush1.bf16.msra.mxu0 %v1820
    %1824 = vmatprep.subr.bf16.mxu0 0
    %1825 = vmatpush1.bf16.msra.mxu0 0
    %1826 = vmatprep.subr.bf16.mxu0 0
    %1827 = vmatpush1.bf16.msra.mxu0 0
    %1828 = vmatprep.subr.bf16.mxu0 0
    %1829 = vmatpush1.bf16.msra.mxu0 0
    %1830 = vmatprep.subr.bf16.mxu0 0
    %1831 = vmatpush1.bf16.msra.mxu0 0
    %1832 = vmatprep.subr.bf16.mxu0 0
    %1833 = vmatpush1.bf16.msra.mxu0 0
    %1834 = vmatprep.subr.bf16.mxu0 0
    %1835 = vmatpush1.bf16.msra.mxu0 0
    %1836 = vmatprep.subr.bf16.mxu0 0
    %1837 = vmatpush1.bf16.msra.mxu0 0
    %1838 = vmatprep.subr.bf16.mxu0 0
    %1839 = vmatpush1.bf16.msra.mxu0 0
    %1840 = vmatprep.subr.bf16.mxu0 0
    %1841 = vmatpush1.bf16.msra.mxu0 0
    %1842 = vmatprep.subr.bf16.mxu0 0
    %1843 = vmatpush1.bf16.msra.mxu0 0
    %1844 = vmatprep.subr.bf16.mxu0 0
    %1845 = vmatpush1.bf16.msra.mxu0 0
    %1846 = vmatprep.subr.bf16.mxu0 0
    %1847 = vmatpush1.bf16.msra.mxu0 0
    %1848 = vmatprep.subr.bf16.mxu0 0
    %1849 = vmatpush1.bf16.msra.mxu0 0
    %1850 = vmatprep.subr.bf16.mxu0 0
    %1851 = vmatpush1.bf16.msra.mxu0 0
    %1852 = vmatprep.subr.bf16.mxu0 0
    %1853 = vmatpush1.bf16.msra.mxu0 0
    %1854 = vmatprep.mubr.bf16.mxu0 0
    %1855 = vmatmul.mubr.bf16.gmra.mrb[0].mxu0 %v1817
    %v1856 = vpop.f32.mrb[0].mxu0
    %v1857 = vadd.f32 0.0, %v1856
    %v1858 = vpop.f32.mrb[0].mxu0
    %v1859 = vpop.f32.mrb[0].mxu0
    %v1860 = vpop.f32.mrb[0].mxu0
    %1861 = vdwg.mxu0
    %v1863 = vsel %vm1112, %v1575, 0
    %v1866 = vsel %vm1588, %v1583, 0
    %1868 = vmatprep.subr.bf16.mxu0 0
    %1869 = vmatpush1.bf16.msra.mxu0 %v1866
    %1870 = vmatprep.subr.bf16.mxu0 0
    %1871 = vmatpush1.bf16.msra.mxu0 0
    %1872 = vmatprep.subr.bf16.mxu0 0
    %1873 = vmatpush1.bf16.msra.mxu0 0
    %1874 = vmatprep.subr.bf16.mxu0 0
    %1875 = vmatpush1.bf16.msra.mxu0 0
    %1876 = vmatprep.subr.bf16.mxu0 0
    %1877 = vmatpush1.bf16.msra.mxu0 0
    %1878 = vmatprep.subr.bf16.mxu0 0
    %1879 = vmatpush1.bf16.msra.mxu0 0
    %1880 = vmatprep.subr.bf16.mxu0 0
    %1881 = vmatpush1.bf16.msra.mxu0 0
    %1882 = vmatprep.subr.bf16.mxu0 0
    %1883 = vmatpush1.bf16.msra.mxu0 0
    %1884 = vmatprep.subr.bf16.mxu0 0
    %1885 = vmatpush1.bf16.msra.mxu0 0
    %1886 = vmatprep.subr.bf16.mxu0 0
    %1887 = vmatpush1.bf16.msra.mxu0 0
    %1888 = vmatprep.subr.bf16.mxu0 0
    %1889 = vmatpush1.bf16.msra.mxu0 0
    %1890 = vmatprep.subr.bf16.mxu0 0
    %1891 = vmatpush1.bf16.msra.mxu0 0
    %1892 = vmatprep.subr.bf16.mxu0 0
    %1893 = vmatpush1.bf16.msra.mxu0 0
    %1894 = vmatprep.subr.bf16.mxu0 0
    %1895 = vmatpush1.bf16.msra.mxu0 0
    %1896 = vmatprep.subr.bf16.mxu0 0
    %1897 = vmatpush1.bf16.msra.mxu0 0
    %1898 = vmatprep.subr.bf16.mxu0 0
    %1899 = vmatpush1.bf16.msra.mxu0 0
    %1900 = vmatprep.mubr.bf16.mxu0 0
    %1901 = vmatmul.mubr.bf16.gmra.mrb[0].mxu0 %v1863
    %v1902 = vpop.f32.mrb[0].mxu0
    %v1903 = vadd.f32 0.0, %v1902
    %v1904 = vpop.f32.mrb[0].mxu0
    %v1905 = vpop.f32.mrb[0].mxu0
    %v1906 = vpop.f32.mrb[0].mxu0
    %1907 = vdwg.mxu0
    %v1909 = vsel %vm1112, %v1576, 0
    %v1912 = vsel %vm1588, %v1584, 0
    %1914 = vmatprep.subr.bf16.mxu0 0
    %1915 = vmatpush1.bf16.msra.mxu0 %v1912
    %1916 = vmatprep.subr.bf16.mxu0 0
    %1917 = vmatpush1.bf16.msra.mxu0 0
    %1918 = vmatprep.subr.bf16.mxu0 0
    %1919 = vmatpush1.bf16.msra.mxu0 0
    %1920 = vmatprep.subr.bf16.mxu0 0
    %1921 = vmatpush1.bf16.msra.mxu0 0
    %1922 = vmatprep.subr.bf16.mxu0 0
    %1923 = vmatpush1.bf16.msra.mxu0 0
    %1924 = vmatprep.subr.bf16.mxu0 0
    %1925 = vmatpush1.bf16.msra.mxu0 0
    %1926 = vmatprep.subr.bf16.mxu0 0
    %1927 = vmatpush1.bf16.msra.mxu0 0
    %1928 = vmatprep.subr.bf16.mxu0 0
    %1929 = vmatpush1.bf16.msra.mxu0 0
    %1930 = vmatprep.subr.bf16.mxu0 0
    %1931 = vmatpush1.bf16.msra.mxu0 0
    %1932 = vmatprep.subr.bf16.mxu0 0
    %1933 = vmatpush1.bf16.msra.mxu0 0
    %1934 = vmatprep.subr.bf16.mxu0 0
    %1935 = vmatpush1.bf16.msra.mxu0 0
    %1936 = vmatprep.subr.bf16.mxu0 0
    %1937 = vmatpush1.bf16.msra.mxu0 0
    %1938 = vmatprep.subr.bf16.mxu0 0
    %1939 = vmatpush1.bf16.msra.mxu0 0
    %1940 = vmatprep.subr.bf16.mxu0 0
    %1941 = vmatpush1.bf16.msra.mxu0 0
    %1942 = vmatprep.subr.bf16.mxu0 0
    %1943 = vmatpush1.bf16.msra.mxu0 0
    %1944 = vmatprep.subr.bf16.mxu0 0
    %1945 = vmatpush1.bf16.msra.mxu0 0
    %1946 = vmatprep.mubr.bf16.mxu0 0
    %1947 = vmatmul.mubr.bf16.gmra.mrb[0].mxu0 %v1909
    %v1948 = vpop.f32.mrb[0].mxu0
    %v1949 = vadd.f32 0.0, %v1948
    %v1950 = vpop.f32.mrb[0].mxu0
    %v1951 = vpop.f32.mrb[0].mxu0
    %v1952 = vpop.f32.mrb[0].mxu0
    %1953 = vdwg.mxu0
    %v1954 = vcombine.low %v1627, %v1719
    %v1955 = vcombine.high %v1627, %v1719
    %v1957 = vunpack.c.l.s4 1983009808
    %v1958 = vunpack.c.0.s8 %v1957
    %v1959 = vlaneseq
    %v1960 = vshrl.u32 %v1959, 7
    %v1961 = vsub.s32 %v1958, %v1960
    %v1962 = vrot.slane %v1954, %v1961
    %v1964 = vunpack.c.l.s4 1983009808
    %v1965 = vunpack.c.0.s8 %v1964
    %v1966 = vlaneseq
    %v1967 = vshrl.u32 %v1966, 7
    %v1968 = vsub.s32 %v1965, %v1967
    %v1969 = vrot.slane %v1955, %v1968
    %v1970 = vcombine.low %v1673, %v1765
    %v1971 = vcombine.high %v1673, %v1765
    %v1973 = vunpack.c.l.s4 1983009808
    %v1974 = vunpack.c.0.s8 %v1973
    %v1975 = vlaneseq
    %v1976 = vshrl.u32 %v1975, 7
    %v1977 = vsub.s32 %v1974, %v1976
    %v1978 = vrot.slane %v1970, %v1977
    %v1980 = vunpack.c.l.s4 1983009808
    %v1981 = vunpack.c.0.s8 %v1980
    %v1982 = vlaneseq
    %v1983 = vshrl.u32 %v1982, 7
    %v1984 = vsub.s32 %v1981, %v1983
    %v1985 = vrot.slane %v1971, %v1984
    %v1986 = vcombine.low %v1962, %v1978
    %v1987 = vcombine.high %v1962, %v1978
    %v1989 = vunpack.c.l.s4 1934713408
    %v1990 = vunpack.c.0.s8 %v1989
    %v1991 = vlaneseq
    %v1992 = vshrl.u32 %v1991, 7
    %v1993 = vsub.s32 %v1990, %v1992
    %v1994 = vrot.slane %v1986, %v1993
    %v1996 = vunpack.c.l.s4 1934713408
    %v1997 = vunpack.c.0.s8 %v1996
    %v1998 = vlaneseq
    %v1999 = vshrl.u32 %v1998, 7
    %v2000 = vsub.s32 %v1997, %v1999
    %v2001 = vrot.slane %v1987, %v2000
    %v2002 = vcombine.low %v1969, %v1985
    %v2003 = vcombine.high %v1969, %v1985
    %v2005 = vunpack.c.l.s4 1934713408
    %v2006 = vunpack.c.0.s8 %v2005
    %v2007 = vlaneseq
    %v2008 = vshrl.u32 %v2007, 7
    %v2009 = vsub.s32 %v2006, %v2008
    %v2010 = vrot.slane %v2002, %v2009
    %v2012 = vunpack.c.l.s4 1934713408
    %v2013 = vunpack.c.0.s8 %v2012
    %v2014 = vlaneseq
    %v2015 = vshrl.u32 %v2014, 7
    %v2016 = vsub.s32 %v2013, %v2015
    %v2017 = vrot.slane %v2003, %v2016
    %v2018 = vcombine.high %v1994, 0.0
    %v2019 = vcombine.high %v2001, 0.0
    %v2020 = vcombine.high %v2010, 0.0
    %v2021 = vcombine.high %v2017, 0.0
    %v2022 = vcombine.low %v1811, %v1903
    %v2023 = vcombine.high %v1811, %v1903
    %v2025 = vunpack.c.l.s4 1983009808
    %v2026 = vunpack.c.0.s8 %v2025
    %v2027 = vlaneseq
    %v2028 = vshrl.u32 %v2027, 7
    %v2029 = vsub.s32 %v2026, %v2028
    %v2030 = vrot.slane %v2022, %v2029
    %v2032 = vunpack.c.l.s4 1983009808
    %v2033 = vunpack.c.0.s8 %v2032
    %v2034 = vlaneseq
    %v2035 = vshrl.u32 %v2034, 7
    %v2036 = vsub.s32 %v2033, %v2035
    %v2037 = vrot.slane %v2023, %v2036
    %v2038 = vcombine.low %v1857, %v1949
    %v2039 = vcombine.high %v1857, %v1949
    %v2041 = vunpack.c.l.s4 1983009808
    %v2042 = vunpack.c.0.s8 %v2041
    %v2043 = vlaneseq
    %v2044 = vshrl.u32 %v2043, 7
    %v2045 = vsub.s32 %v2042, %v2044
    %v2046 = vrot.slane %v2038, %v2045
    %v2048 = vunpack.c.l.s4 1983009808
    %v2049 = vunpack.c.0.s8 %v2048
    %v2050 = vlaneseq
    %v2051 = vshrl.u32 %v2050, 7
    %v2052 = vsub.s32 %v2049, %v2051
    %v2053 = vrot.slane %v2039, %v2052
    %v2054 = vcombine.low %v2030, %v2046
    %v2055 = vcombine.high %v2030, %v2046
    %v2057 = vunpack.c.l.s4 1934713408
    %v2058 = vunpack.c.0.s8 %v2057
    %v2059 = vlaneseq
    %v2060 = vshrl.u32 %v2059, 7
    %v2061 = vsub.s32 %v2058, %v2060
    %v2062 = vrot.slane %v2054, %v2061
    %v2064 = vunpack.c.l.s4 1934713408
    %v2065 = vunpack.c.0.s8 %v2064
    %v2066 = vlaneseq
    %v2067 = vshrl.u32 %v2066, 7
    %v2068 = vsub.s32 %v2065, %v2067
    %v2069 = vrot.slane %v2055, %v2068
    %v2070 = vcombine.low %v2037, %v2053
    %v2071 = vcombine.high %v2037, %v2053
    %v2073 = vunpack.c.l.s4 1934713408
    %v2074 = vunpack.c.0.s8 %v2073
    %v2075 = vlaneseq
    %v2076 = vshrl.u32 %v2075, 7
    %v2077 = vsub.s32 %v2074, %v2076
    %v2078 = vrot.slane %v2070, %v2077
    %v2080 = vunpack.c.l.s4 1934713408
    %v2081 = vunpack.c.0.s8 %v2080
    %v2082 = vlaneseq
    %v2083 = vshrl.u32 %v2082, 7
    %v2084 = vsub.s32 %v2081, %v2083
    %v2085 = vrot.slane %v2071, %v2084
    %v2086 = vcombine.high %v2062, 0.0
    %v2087 = vcombine.high %v2069, 0.0
    %v2088 = vcombine.high %v2078, 0.0
    %v2089 = vcombine.high %v2085, 0.0
    %v2090 = vcombine.low %v1994, %v2001
    %v2092 = vunpack.c.l.s4 1983009808
    %v2093 = vunpack.c.0.s8 %v2092
    %v2094 = vlaneseq
    %v2095 = vshrl.u32 %v2094, 7
    %v2096 = vsub.s32 %v2093, %v2095
    %v2097 = vrot.slane %v2090, %v2096
    %v2098 = vcombine.low %v2018, %v2019
    %v2100 = vunpack.c.l.s4 1983009808
    %v2101 = vunpack.c.0.s8 %v2100
    %v2102 = vlaneseq
    %v2103 = vshrl.u32 %v2102, 7
    %v2104 = vsub.s32 %v2101, %v2103
    %v2105 = vrot.slane %v2098, %v2104
    %v2106 = vcombine.low %v2010, %v2017
    %v2108 = vunpack.c.l.s4 1983009808
    %v2109 = vunpack.c.0.s8 %v2108
    %v2110 = vlaneseq
    %v2111 = vshrl.u32 %v2110, 7
    %v2112 = vsub.s32 %v2109, %v2111
    %v2113 = vrot.slane %v2106, %v2112
    %v2114 = vcombine.low %v2020, %v2021
    %v2116 = vunpack.c.l.s4 1983009808
    %v2117 = vunpack.c.0.s8 %v2116
    %v2118 = vlaneseq
    %v2119 = vshrl.u32 %v2118, 7
    %v2120 = vsub.s32 %v2117, %v2119
    %v2121 = vrot.slane %v2114, %v2120
    %v2122 = vcombine.low %v2097, %v2105
    %v2123 = vcombine.high %v2097, %v2105
    %v2125 = vunpack.c.l.s4 1934713408
    %v2126 = vunpack.c.0.s8 %v2125
    %v2127 = vlaneseq
    %v2128 = vshrl.u32 %v2127, 7
    %v2129 = vsub.s32 %v2126, %v2128
    %v2130 = vrot.slane %v2122, %v2129
    %v2132 = vunpack.c.l.s4 1934713408
    %v2133 = vunpack.c.0.s8 %v2132
    %v2134 = vlaneseq
    %v2135 = vshrl.u32 %v2134, 7
    %v2136 = vsub.s32 %v2133, %v2135
    %v2137 = vrot.slane %v2123, %v2136
    %v2138 = vcombine.low %v2113, %v2121
    %v2139 = vcombine.high %v2113, %v2121
    %v2141 = vunpack.c.l.s4 1934713408
    %v2142 = vunpack.c.0.s8 %v2141
    %v2143 = vlaneseq
    %v2144 = vshrl.u32 %v2143, 7
    %v2145 = vsub.s32 %v2142, %v2144
    %v2146 = vrot.slane %v2138, %v2145
    %v2148 = vunpack.c.l.s4 1934713408
    %v2149 = vunpack.c.0.s8 %v2148
    %v2150 = vlaneseq
    %v2151 = vshrl.u32 %v2150, 7
    %v2152 = vsub.s32 %v2149, %v2151
    %v2153 = vrot.slane %v2139, %v2152
    %v2154 = vcombine.low %v2130, %v2146
    %v2155 = vcombine.high %v2130, %v2146
    %v2156 = vcombine.low %v2137, %v2153
    %v2157 = vcombine.high %v2137, %v2153
    %v2158 = vcombine.low %v2062, %v2069
    %v2160 = vunpack.c.l.s4 1983009808
    %v2161 = vunpack.c.0.s8 %v2160
    %v2162 = vlaneseq
    %v2163 = vshrl.u32 %v2162, 7
    %v2164 = vsub.s32 %v2161, %v2163
    %v2165 = vrot.slane %v2158, %v2164
    %v2166 = vcombine.low %v2086, %v2087
    %v2168 = vunpack.c.l.s4 1983009808
    %v2169 = vunpack.c.0.s8 %v2168
    %v2170 = vlaneseq
    %v2171 = vshrl.u32 %v2170, 7
    %v2172 = vsub.s32 %v2169, %v2171
    %v2173 = vrot.slane %v2166, %v2172
    %v2174 = vcombine.low %v2078, %v2085
    %v2176 = vunpack.c.l.s4 1983009808
    %v2177 = vunpack.c.0.s8 %v2176
    %v2178 = vlaneseq
    %v2179 = vshrl.u32 %v2178, 7
    %v2180 = vsub.s32 %v2177, %v2179
    %v2181 = vrot.slane %v2174, %v2180
    %v2182 = vcombine.low %v2088, %v2089
    %v2184 = vunpack.c.l.s4 1983009808
    %v2185 = vunpack.c.0.s8 %v2184
    %v2186 = vlaneseq
    %v2187 = vshrl.u32 %v2186, 7
    %v2188 = vsub.s32 %v2185, %v2187
    %v2189 = vrot.slane %v2182, %v2188
    %v2190 = vcombine.low %v2165, %v2173
    %v2191 = vcombine.high %v2165, %v2173
    %v2193 = vunpack.c.l.s4 1934713408
    %v2194 = vunpack.c.0.s8 %v2193
    %v2195 = vlaneseq
    %v2196 = vshrl.u32 %v2195, 7
    %v2197 = vsub.s32 %v2194, %v2196
    %v2198 = vrot.slane %v2190, %v2197
    %v2200 = vunpack.c.l.s4 1934713408
    %v2201 = vunpack.c.0.s8 %v2200
    %v2202 = vlaneseq
    %v2203 = vshrl.u32 %v2202, 7
    %v2204 = vsub.s32 %v2201, %v2203
    %v2205 = vrot.slane %v2191, %v2204
    %v2206 = vcombine.low %v2181, %v2189
    %v2207 = vcombine.high %v2181, %v2189
    %v2209 = vunpack.c.l.s4 1934713408
    %v2210 = vunpack.c.0.s8 %v2209
    %v2211 = vlaneseq
    %v2212 = vshrl.u32 %v2211, 7
    %v2213 = vsub.s32 %v2210, %v2212
    %v2214 = vrot.slane %v2206, %v2213
    %v2216 = vunpack.c.l.s4 1934713408
    %v2217 = vunpack.c.0.s8 %v2216
    %v2218 = vlaneseq
    %v2219 = vshrl.u32 %v2218, 7
    %v2220 = vsub.s32 %v2217, %v2219
    %v2221 = vrot.slane %v2207, %v2220
    %v2222 = vcombine.low %v2198, %v2214
    %v2223 = vcombine.high %v2198, %v2214
    %v2224 = vcombine.low %v2205, %v2221
    %v2225 = vcombine.high %v2205, %v2221
    %2228 = vrot.lane.b32.xlu0 %v2155, 8
    %v2229 = vpop.permute.xlu0 %2228
    %2230 = vrot.lane.b32.xlu0 %v2223, 8
    %v2231 = vpop.permute.xlu0 %2230
    %2236 = vrot.lane.b32.xlu0 %v2156, 16
    %v2237 = vpop.permute.xlu0 %2236
    %2238 = vrot.lane.b32.xlu0 %v2224, 16
    %v2239 = vpop.permute.xlu0 %2238
    %2244 = vrot.lane.b32.xlu0 %v2157, 24
    %v2245 = vpop.permute.xlu0 %2244
    %2246 = vrot.lane.b32.xlu0 %v2225, 24
    %v2247 = vpop.permute.xlu0 %2246
    %v2250 = vsel %vm1112, %v2154, %v2229
    %v2251 = vsel %vm1112, %v2222, %v2231
    %vm2252 = vcmask 130048
    %v2253 = vsel %vm2252, %v2250, %v2237
    %v2254 = vsel %vm2252, %v2251, %v2239
    %vm2255 = vcmask 195584
    %v2256 = vsel %vm2255, %v2253, %v2245
    %v2257 = vsel %vm2255, %v2254, %v2247
    %v2258 = vpack.c.bf16 %v2257, %v2256
    %v2259 = vld [vmem:[#allocation8] sm:$0xf]
    %v2260 = vld [vmem:[#allocation8 + $0x8] sm:$0xf]
    %v2261 = vld [vmem:[#allocation8 + $0x10] sm:$0xf]
    %v2262 = vld [vmem:[#allocation8 + $0x18] sm:$0xf]
    %v2267 = vunpack.c.l.b16 %v2259
    %v2268 = vunpack.c.l.b16 %v2260
    %v2269 = vunpack.c.l.b16 %v2261
    %v2270 = vunpack.c.l.b16 %v2262
    %v2271 = vpack.c.b16 %v2268, %v2267
    %v2272 = vpack.c.b16 %v2270, %v2269
    %2273 = vrot.lane.b32.xlu0 %v2271, 32
    %v2274 = vpop.permute.xlu0 %2273
    %2275 = vrot.lane.b32.xlu0 %v2272, 32
    %v2276 = vpop.permute.xlu0 %2275
    %v2280 = vsel %vm114, %v2258, 0
    %2282 = vmatprep.subr.bf16.mxu0 0
    %2283 = vmatpush1.bf16.msra.mxu0 %v2274
    %2284 = vmatprep.subr.bf16.mxu0 0
    %2285 = vmatpush1.bf16.msra.mxu0 %v2276
    %2286 = vmatprep.subr.bf16.mxu0 0
    %2287 = vmatpush1.bf16.msra.mxu0 0
    %2288 = vmatprep.subr.bf16.mxu0 0
    %2289 = vmatpush1.bf16.msra.mxu0 0
    %2290 = vmatprep.subr.bf16.mxu0 0
    %2291 = vmatpush1.bf16.msra.mxu0 0
    %2292 = vmatprep.subr.bf16.mxu0 0
    %2293 = vmatpush1.bf16.msra.mxu0 0
    %2294 = vmatprep.subr.bf16.mxu0 0
    %2295 = vmatpush1.bf16.msra.mxu0 0
    %2296 = vmatprep.subr.bf16.mxu0 0
    %2297 = vmatpush1.bf16.msra.mxu0 0
    %2298 = vmatprep.subr.bf16.mxu0 0
    %2299 = vmatpush1.bf16.msra.mxu0 0
    %2300 = vmatprep.subr.bf16.mxu0 0
    %2301 = vmatpush1.bf16.msra.mxu0 0
    %2302 = vmatprep.subr.bf16.mxu0 0
    %2303 = vmatpush1.bf16.msra.mxu0 0
    %2304 = vmatprep.subr.bf16.mxu0 0
    %2305 = vmatpush1.bf16.msra.mxu0 0
    %2306 = vmatprep.subr.bf16.mxu0 0
    %2307 = vmatpush1.bf16.msra.mxu0 0
    %2308 = vmatprep.subr.bf16.mxu0 0
    %2309 = vmatpush1.bf16.msra.mxu0 0
    %2310 = vmatprep.subr.bf16.mxu0 0
    %2311 = vmatpush1.bf16.msra.mxu0 0
    %2312 = vmatprep.subr.bf16.mxu0 0
    %2313 = vmatpush1.bf16.msra.mxu0 0
    %2314 = vmatprep.mubr.bf16.mxu0 0
    %2315 = vmatmul.mubr.bf16.gmra.mrb[0].mxu0 %v2280
    %v2316 = vpop.f32.mrb[0].mxu0
    %v2317 = vadd.f32 0.0, %v2316
    %v2318 = vpop.f32.mrb[0].mxu0
    %v2319 = vpop.f32.mrb[0].mxu0
    %v2320 = vadd.f32 0.0, %v2319
    %v2321 = vpop.f32.mrb[0].mxu0
    %2322 = vdwg.mxu0
    %v2323 = vadd.f32 %v93, %v2317
    %v2324 = vadd.f32 %v94, %v2320
    %v2325 = vld [vmem:[#allocation10] ss:$0 sm:$0xff]
    %2327 = vrot.lane.b32.xlu0 %v2325, 32
    %v2328 = vpop.permute.xlu0 %2327
    %v2330 = vadd.f32 %v2323, %v2328
    %v2331 = vadd.f32 %v2324, %v2328
    %v2332 = vld [vmem:[#allocation10 + $0x2] ss:$0 sm:$0xff]
    %v2333 = vsel %vm114, %v2330, 0.0
    %2334 = vadd.xlane.f32.xlu0 %v2333
    %v2335 = vpop.xlane.xlu0 %2334
    %v2336 = vsel %vm114, %v2331, 0.0
    %2337 = vadd.xlane.f32.xlu0 %v2336
    %v2338 = vpop.xlane.xlu0 %2337
    %v2339 = vmul.f32 %v2335, %v121
    %v2340 = vmul.f32 %v2338, %v121
    %v2341 = vsub.f32 %v2330, %v2339
    %v2342 = vsub.f32 %v2331, %v2340
    %v2343 = vmul.f32 %v2341, %v2341
    %v2344 = vmul.f32 %v2342, %v2342
    %v2345 = vsel %vm114, %v2343, 0.0
    %2346 = vadd.xlane.f32.xlu0 %v2345
    %v2347 = vpop.xlane.xlu0 %2346
    %v2348 = vsel %vm114, %v2344, 0.0
    %2349 = vadd.xlane.f32.xlu0 %v2348
    %v2350 = vpop.xlane.xlu0 %2349
    %v2351 = vmul.f32 %v2347, %v121
    %v2352 = vmul.f32 %v2350, %v121
    %v2353 = vadd.f32 %v2351, 1e-12
    %v2354 = vadd.f32 %v2352, 1e-12
    %v2355 = vrsqrt.pop %v2353
    %v2356 = vrsqrt.pop %v2354
    %v2357 = vmul.f32 %v2341, %v2355
    %v2358 = vmul.f32 %v2342, %v2356
    %2360 = vrot.lane.b32.xlu0 %v2332, 64
    %v2361 = vpop.permute.xlu0 %2360
    %v2363 = vmul.f32 %v2357, %v2361
    %v2364 = vmul.f32 %v2358, %v2361
    %2365 = vrot.lane.b32.xlu0 %v2332, 32
    %v2366 = vpop.permute.xlu0 %2365
    %v2368 = vadd.f32 %v2363, %v2366
    %v2369 = vadd.f32 %v2364, %v2366
    %v2370 = vpack.c.bf16 %v2369, %v2368
    %v2371 = vld [vmem:[#allocation8 + $0x4] sm:$0xf]
    %v2372 = vld [vmem:[#allocation8 + $0xc] sm:$0xf]
    %v2373 = vld [vmem:[#allocation8 + $0x14] sm:$0xf]
    %v2374 = vld [vmem:[#allocation8 + $0x1c] sm:$0xf]
    %v2375 = vld [vmem:[#allocation10 + $0x8] ss:$0 sm:$0xff]
    %v2380 = vunpack.c.l.b16 %v2371
    %v2381 = vunpack.c.l.b16 %v2372
    %v2382 = vunpack.c.l.b16 %v2373
    %v2383 = vunpack.c.l.b16 %v2374
    %v2384 = vpack.c.b16 %v2381, %v2380
    %v2385 = vpack.c.b16 %v2383, %v2382
    %v2389 = vsel %vm114, %v2370, 0
    %2391 = vmatprep.subr.bf16.mxu0 0
    %2392 = vmatpush1.bf16.msra.mxu0 %v2384
    %2393 = vmatprep.subr.bf16.mxu0 0
    %2394 = vmatpush1.bf16.msra.mxu0 %v2385
    %2395 = vmatprep.subr.bf16.mxu0 0
    %2396 = vmatpush1.bf16.msra.mxu0 0
    %2397 = vmatprep.subr.bf16.mxu0 0
    %2398 = vmatpush1.bf16.msra.mxu0 0
    %2399 = vmatprep.subr.bf16.mxu0 0
    %2400 = vmatpush1.bf16.msra.mxu0 0
    %2401 = vmatprep.subr.bf16.mxu0 0
    %2402 = vmatpush1.bf16.msra.mxu0 0
    %2403 = vmatprep.subr.bf16.mxu0 0
    %2404 = vmatpush1.bf16.msra.mxu0 0
    %2405 = vmatprep.subr.bf16.mxu0 0
    %2406 = vmatpush1.bf16.msra.mxu0 0
    %2407 = vmatprep.subr.bf16.mxu0 0
    %2408 = vmatpush1.bf16.msra.mxu0 0
    %2409 = vmatprep.subr.bf16.mxu0 0
    %2410 = vmatpush1.bf16.msra.mxu0 0
    %2411 = vmatprep.subr.bf16.mxu0 0
    %2412 = vmatpush1.bf16.msra.mxu0 0
    %2413 = vmatprep.subr.bf16.mxu0 0
    %2414 = vmatpush1.bf16.msra.mxu0 0
    %2415 = vmatprep.subr.bf16.mxu0 0
    %2416 = vmatpush1.bf16.msra.mxu0 0
    %2417 = vmatprep.subr.bf16.mxu0 0
    %2418 = vmatpush1.bf16.msra.mxu0 0
    %2419 = vmatprep.subr.bf16.mxu0 0
    %2420 = vmatpush1.bf16.msra.mxu0 0
    %2421 = vmatprep.subr.bf16.mxu0 0
    %2422 = vmatpush1.bf16.msra.mxu0 0
    %2423 = vmatprep.mubr.bf16.mxu0 0
    %2424 = vmatmul.mubr.bf16.gmra.mrb[0].mxu0 %v2389
    %v2425 = vpop.f32.mrb[0].mxu0
    %v2426 = vadd.f32 %v2375, %v2425
    %v2427 = vpop.f32.mrb[0].mxu0
    %v2428 = vpop.f32.mrb[0].mxu0
    %v2429 = vadd.f32 %v2375, %v2428
    %v2430 = vpop.f32.mrb[0].mxu0
    %2431 = vdwg.mxu0
    %2432 = vrot.lane.b32.xlu0 %v2384, 96
    %v2433 = vpop.permute.xlu0 %2432
    %2434 = vrot.lane.b32.xlu0 %v2385, 96
    %v2435 = vpop.permute.xlu0 %2434
    %2439 = vrot.lane.b32.xlu0 %v2375, 96
    %v2440 = vpop.permute.xlu0 %2439
    %v2443 = vsel %vm114, %v99, 0
    %v2446 = vsel %vm114, %v100, 0
    %2448 = vmatprep.subr.bf16.mxu0 0
    %2449 = vmatpush1.bf16.msra.mxu0 %v2433
    %2450 = vmatprep.subr.bf16.mxu0 0
    %2451 = vmatpush1.bf16.msra.mxu0 %v2435
    %2452 = vmatprep.subr.bf16.mxu0 0
    %2453 = vmatpush1.bf16.msra.mxu0 0
    %2454 = vmatprep.subr.bf16.mxu0 0
    %2455 = vmatpush1.bf16.msra.mxu0 0
    %2456 = vmatprep.subr.bf16.mxu0 0
    %2457 = vmatpush1.bf16.msra.mxu0 0
    %2458 = vmatprep.subr.bf16.mxu0 0
    %2459 = vmatpush1.bf16.msra.mxu0 0
    %2460 = vmatprep.subr.bf16.mxu0 0
    %2461 = vmatpush1.bf16.msra.mxu0 0
    %2462 = vmatprep.subr.bf16.mxu0 0
    %2463 = vmatpush1.bf16.msra.mxu0 0
    %2464 = vmatprep.subr.bf16.mxu0 0
    %2465 = vmatpush1.bf16.msra.mxu0 0
    %2466 = vmatprep.subr.bf16.mxu0 0
    %2467 = vmatpush1.bf16.msra.mxu0 0
    %2468 = vmatprep.subr.bf16.mxu0 0
    %2469 = vmatpush1.bf16.msra.mxu0 0
    %2470 = vmatprep.subr.bf16.mxu0 0
    %2471 = vmatpush1.bf16.msra.mxu0 0
    %2472 = vmatprep.subr.bf16.mxu0 0
    %2473 = vmatpush1.bf16.msra.mxu0 0
    %2474 = vmatprep.subr.bf16.mxu0 0
    %2475 = vmatpush1.bf16.msra.mxu0 0
    %2476 = vmatprep.subr.bf16.mxu0 0
    %2477 = vmatpush1.bf16.msra.mxu0 0
    %2478 = vmatprep.subr.bf16.mxu0 0
    %2479 = vmatpush1.bf16.msra.mxu0 0
    %2480 = vmatprep.mubr.bf16.mxu0 0
    %2481 = vmatmul.mubr.bf16.gmra.mrb[0].mxu0 %v2443
    %v2482 = vpop.f32.mrb[0].mxu0
    %v2483 = vadd.f32 %v2440, %v2482
    %v2484 = vpop.f32.mrb[0].mxu0
    %v2485 = vpop.f32.mrb[0].mxu0
    %v2486 = vadd.f32 %v2440, %v2485
    %v2487 = vpop.f32.mrb[0].mxu0
    %2488 = vmatprep.mubr.bf16.mxu0 0
    %2489 = vmatmul.mubr.bf16.gmra.mrb[0].mxu0 %v2446
    %v2490 = vpop.f32.mrb[0].mxu0
    %v2491 = vadd.f32 %v2440, %v2490
    %v2492 = vpop.f32.mrb[0].mxu0
    %v2493 = vpop.f32.mrb[0].mxu0
    %v2494 = vadd.f32 %v2440, %v2493
    %v2495 = vpop.f32.mrb[0].mxu0
    %2496 = vdwg.mxu0
    %2499 = vrot.lane.b32.xlu0 %v2426, 120
    %v2500 = vpop.permute.xlu0 %2499
    %2501 = vrot.lane.b32.xlu0 %v2429, 120
    %v2502 = vpop.permute.xlu0 %2501
    %2505 = vrot.lane.b32.xlu0 %v2426, 112
    %v2506 = vpop.permute.xlu0 %2505
    %2507 = vrot.lane.b32.xlu0 %v2429, 112
    %v2508 = vpop.permute.xlu0 %2507
    %2511 = vrot.lane.b32.xlu0 %v2426, 104
    %v2512 = vpop.permute.xlu0 %2511
    %2513 = vrot.lane.b32.xlu0 %v2429, 104
    %v2514 = vpop.permute.xlu0 %2513
    %v2517 = vcombine.low %v2426, %v2506
    %v2518 = vcombine.high %v2426, %v2506
    %v2520 = vunpack.c.l.s4 1983009808
    %v2521 = vunpack.c.0.s8 %v2520
    %v2522 = vlaneseq
    %v2523 = vshrl.u32 %v2522, 7
    %v2524 = vsub.s32 %v2521, %v2523
    %v2525 = vrot.slane %v2517, %v2524
    %v2527 = vunpack.c.l.s4 1983009808
    %v2528 = vunpack.c.0.s8 %v2527
    %v2529 = vlaneseq
    %v2530 = vshrl.u32 %v2529, 7
    %v2531 = vsub.s32 %v2528, %v2530
    %v2532 = vrot.slane %v2518, %v2531
    %v2533 = vcombine.low %v2500, %v2512
    %v2534 = vcombine.high %v2500, %v2512
    %v2536 = vunpack.c.l.s4 1983009808
    %v2537 = vunpack.c.0.s8 %v2536
    %v2538 = vlaneseq
    %v2539 = vshrl.u32 %v2538, 7
    %v2540 = vsub.s32 %v2537, %v2539
    %v2541 = vrot.slane %v2533, %v2540
    %v2543 = vunpack.c.l.s4 1983009808
    %v2544 = vunpack.c.0.s8 %v2543
    %v2545 = vlaneseq
    %v2546 = vshrl.u32 %v2545, 7
    %v2547 = vsub.s32 %v2544, %v2546
    %v2548 = vrot.slane %v2534, %v2547
    %v2549 = vcombine.low %v2525, %v2541
    %v2550 = vcombine.high %v2525, %v2541
    %v2552 = vunpack.c.l.s4 1934713408
    %v2553 = vunpack.c.0.s8 %v2552
    %v2554 = vlaneseq
    %v2555 = vshrl.u32 %v2554, 7
    %v2556 = vsub.s32 %v2553, %v2555
    %v2557 = vrot.slane %v2549, %v2556
    %v2559 = vunpack.c.l.s4 1934713408
    %v2560 = vunpack.c.0.s8 %v2559
    %v2561 = vlaneseq
    %v2562 = vshrl.u32 %v2561, 7
    %v2563 = vsub.s32 %v2560, %v2562
    %v2564 = vrot.slane %v2550, %v2563
    %v2565 = vcombine.low %v2532, %v2548
    %v2566 = vcombine.high %v2532, %v2548
    %v2568 = vunpack.c.l.s4 1934713408
    %v2569 = vunpack.c.0.s8 %v2568
    %v2570 = vlaneseq
    %v2571 = vshrl.u32 %v2570, 7
    %v2572 = vsub.s32 %v2569, %v2571
    %v2573 = vrot.slane %v2565, %v2572
    %v2575 = vunpack.c.l.s4 1934713408
    %v2576 = vunpack.c.0.s8 %v2575
    %v2577 = vlaneseq
    %v2578 = vshrl.u32 %v2577, 7
    %v2579 = vsub.s32 %v2576, %v2578
    %v2580 = vrot.slane %v2566, %v2579
    %v2581 = vcombine.high %v2557, 0.0
    %v2582 = vcombine.high %v2564, 0.0
    %v2583 = vcombine.high %v2573, 0.0
    %v2584 = vcombine.high %v2580, 0.0
    %v2585 = vcombine.low %v2429, %v2508
    %v2586 = vcombine.high %v2429, %v2508
    %v2588 = vunpack.c.l.s4 1983009808
    %v2589 = vunpack.c.0.s8 %v2588
    %v2590 = vlaneseq
    %v2591 = vshrl.u32 %v2590, 7
    %v2592 = vsub.s32 %v2589, %v2591
    %v2593 = vrot.slane %v2585, %v2592
    %v2595 = vunpack.c.l.s4 1983009808
    %v2596 = vunpack.c.0.s8 %v2595
    %v2597 = vlaneseq
    %v2598 = vshrl.u32 %v2597, 7
    %v2599 = vsub.s32 %v2596, %v2598
    %v2600 = vrot.slane %v2586, %v2599
    %v2601 = vcombine.low %v2502, %v2514
    %v2602 = vcombine.high %v2502, %v2514
    %v2604 = vunpack.c.l.s4 1983009808
    %v2605 = vunpack.c.0.s8 %v2604
    %v2606 = vlaneseq
    %v2607 = vshrl.u32 %v2606, 7
    %v2608 = vsub.s32 %v2605, %v2607
    %v2609 = vrot.slane %v2601, %v2608
    %v2611 = vunpack.c.l.s4 1983009808
    %v2612 = vunpack.c.0.s8 %v2611
    %v2613 = vlaneseq
    %v2614 = vshrl.u32 %v2613, 7
    %v2615 = vsub.s32 %v2612, %v2614
    %v2616 = vrot.slane %v2602, %v2615
    %v2617 = vcombine.low %v2593, %v2609
    %v2618 = vcombine.high %v2593, %v2609
    %v2620 = vunpack.c.l.s4 1934713408
    %v2621 = vunpack.c.0.s8 %v2620
    %v2622 = vlaneseq
    %v2623 = vshrl.u32 %v2622, 7
    %v2624 = vsub.s32 %v2621, %v2623
    %v2625 = vrot.slane %v2617, %v2624
    %v2627 = vunpack.c.l.s4 1934713408
    %v2628 = vunpack.c.0.s8 %v2627
    %v2629 = vlaneseq
    %v2630 = vshrl.u32 %v2629, 7
    %v2631 = vsub.s32 %v2628, %v2630
    %v2632 = vrot.slane %v2618, %v2631
    %v2633 = vcombine.low %v2600, %v2616
    %v2634 = vcombine.high %v2600, %v2616
    %v2636 = vunpack.c.l.s4 1934713408
    %v2637 = vunpack.c.0.s8 %v2636
    %v2638 = vlaneseq
    %v2639 = vshrl.u32 %v2638, 7
    %v2640 = vsub.s32 %v2637, %v2639
    %v2641 = vrot.slane %v2633, %v2640
    %v2643 = vunpack.c.l.s4 1934713408
    %v2644 = vunpack.c.0.s8 %v2643
    %v2645 = vlaneseq
    %v2646 = vshrl.u32 %v2645, 7
    %v2647 = vsub.s32 %v2644, %v2646
    %v2648 = vrot.slane %v2634, %v2647
    %v2649 = vcombine.high %v2625, 0.0
    %v2650 = vcombine.high %v2632, 0.0
    %v2651 = vcombine.high %v2641, 0.0
    %v2652 = vcombine.high %v2648, 0.0
    %v2653 = vcombine.low %v2557, %v2564
    %v2655 = vunpack.c.l.s4 1983009808
    %v2656 = vunpack.c.0.s8 %v2655
    %v2657 = vlaneseq
    %v2658 = vshrl.u32 %v2657, 7
    %v2659 = vsub.s32 %v2656, %v2658
    %v2660 = vrot.slane %v2653, %v2659
    %v2661 = vcombine.low %v2581, %v2582
    %v2663 = vunpack.c.l.s4 1983009808
    %v2664 = vunpack.c.0.s8 %v2663
    %v2665 = vlaneseq
    %v2666 = vshrl.u32 %v2665, 7
    %v2667 = vsub.s32 %v2664, %v2666
    %v2668 = vrot.slane %v2661, %v2667
    %v2669 = vcombine.low %v2573, %v2580
    %v2671 = vunpack.c.l.s4 1983009808
    %v2672 = vunpack.c.0.s8 %v2671
    %v2673 = vlaneseq
    %v2674 = vshrl.u32 %v2673, 7
    %v2675 = vsub.s32 %v2672, %v2674
    %v2676 = vrot.slane %v2669, %v2675
    %v2677 = vcombine.low %v2583, %v2584
    %v2679 = vunpack.c.l.s4 1983009808
    %v2680 = vunpack.c.0.s8 %v2679
    %v2681 = vlaneseq
    %v2682 = vshrl.u32 %v2681, 7
    %v2683 = vsub.s32 %v2680, %v2682
    %v2684 = vrot.slane %v2677, %v2683
    %v2685 = vcombine.low %v2660, %v2668
    %v2686 = vcombine.high %v2660, %v2668
    %v2688 = vunpack.c.l.s4 1934713408
    %v2689 = vunpack.c.0.s8 %v2688
    %v2690 = vlaneseq
    %v2691 = vshrl.u32 %v2690, 7
    %v2692 = vsub.s32 %v2689, %v2691
    %v2693 = vrot.slane %v2685, %v2692
    %v2695 = vunpack.c.l.s4 1934713408
    %v2696 = vunpack.c.0.s8 %v2695
    %v2697 = vlaneseq
    %v2698 = vshrl.u32 %v2697, 7
    %v2699 = vsub.s32 %v2696, %v2698
    %v2700 = vrot.slane %v2686, %v2699
    %v2701 = vcombine.low %v2676, %v2684
    %v2702 = vcombine.high %v2676, %v2684
    %v2704 = vunpack.c.l.s4 1934713408
    %v2705 = vunpack.c.0.s8 %v2704
    %v2706 = vlaneseq
    %v2707 = vshrl.u32 %v2706, 7
    %v2708 = vsub.s32 %v2705, %v2707
    %v2709 = vrot.slane %v2701, %v2708
    %v2711 = vunpack.c.l.s4 1934713408
    %v2712 = vunpack.c.0.s8 %v2711
    %v2713 = vlaneseq
    %v2714 = vshrl.u32 %v2713, 7
    %v2715 = vsub.s32 %v2712, %v2714
    %v2716 = vrot.slane %v2702, %v2715
    %v2717 = vcombine.low %v2693, %v2709
    %v2718 = vcombine.high %v2693, %v2709
    %v2719 = vcombine.low %v2700, %v2716
    %v2720 = vcombine.high %v2700, %v2716
    %v2721 = vcombine.low %v2625, %v2632
    %v2723 = vunpack.c.l.s4 1983009808
    %v2724 = vunpack.c.0.s8 %v2723
    %v2725 = vlaneseq
    %v2726 = vshrl.u32 %v2725, 7
    %v2727 = vsub.s32 %v2724, %v2726
    %v2728 = vrot.slane %v2721, %v2727
    %v2729 = vcombine.low %v2649, %v2650
    %v2731 = vunpack.c.l.s4 1983009808
    %v2732 = vunpack.c.0.s8 %v2731
    %v2733 = vlaneseq
    %v2734 = vshrl.u32 %v2733, 7
    %v2735 = vsub.s32 %v2732, %v2734
    %v2736 = vrot.slane %v2729, %v2735
    %v2737 = vcombine.low %v2641, %v2648
    %v2739 = vunpack.c.l.s4 1983009808
    %v2740 = vunpack.c.0.s8 %v2739
    %v2741 = vlaneseq
    %v2742 = vshrl.u32 %v2741, 7
    %v2743 = vsub.s32 %v2740, %v2742
    %v2744 = vrot.slane %v2737, %v2743
    %v2745 = vcombine.low %v2651, %v2652
    %v2747 = vunpack.c.l.s4 1983009808
    %v2748 = vunpack.c.0.s8 %v2747
    %v2749 = vlaneseq
    %v2750 = vshrl.u32 %v2749, 7
    %v2751 = vsub.s32 %v2748, %v2750
    %v2752 = vrot.slane %v2745, %v2751
    %v2753 = vcombine.low %v2728, %v2736
    %v2754 = vcombine.high %v2728, %v2736
    %v2756 = vunpack.c.l.s4 1934713408
    %v2757 = vunpack.c.0.s8 %v2756
    %v2758 = vlaneseq
    %v2759 = vshrl.u32 %v2758, 7
    %v2760 = vsub.s32 %v2757, %v2759
    %v2761 = vrot.slane %v2753, %v2760
    %v2763 = vunpack.c.l.s4 1934713408
    %v2764 = vunpack.c.0.s8 %v2763
    %v2765 = vlaneseq
    %v2766 = vshrl.u32 %v2765, 7
    %v2767 = vsub.s32 %v2764, %v2766
    %v2768 = vrot.slane %v2754, %v2767
    %v2769 = vcombine.low %v2744, %v2752
    %v2770 = vcombine.high %v2744, %v2752
    %v2772 = vunpack.c.l.s4 1934713408
    %v2773 = vunpack.c.0.s8 %v2772
    %v2774 = vlaneseq
    %v2775 = vshrl.u32 %v2774, 7
    %v2776 = vsub.s32 %v2773, %v2775
    %v2777 = vrot.slane %v2769, %v2776
    %v2779 = vunpack.c.l.s4 1934713408
    %v2780 = vunpack.c.0.s8 %v2779
    %v2781 = vlaneseq
    %v2782 = vshrl.u32 %v2781, 7
    %v2783 = vsub.s32 %v2780, %v2782
    %v2784 = vrot.slane %v2770, %v2783
    %v2785 = vcombine.low %v2761, %v2777
    %v2786 = vcombine.high %v2761, %v2777
    %v2787 = vcombine.low %v2768, %v2784
    %v2788 = vcombine.high %v2768, %v2784
    %2793 = vrot.lane.b32.xlu0 %v2483, 120
    %v2794 = vpop.permute.xlu0 %2793
    %2795 = vrot.lane.b32.xlu0 %v2486, 120
    %v2796 = vpop.permute.xlu0 %2795
    %2797 = vrot.lane.b32.xlu0 %v2491, 120
    %v2798 = vpop.permute.xlu0 %2797
    %2799 = vrot.lane.b32.xlu0 %v2494, 120
    %v2800 = vpop.permute.xlu0 %2799
    %2805 = vrot.lane.b32.xlu0 %v2483, 112
    %v2806 = vpop.permute.xlu0 %2805
    %2807 = vrot.lane.b32.xlu0 %v2486, 112
    %v2808 = vpop.permute.xlu0 %2807
    %2809 = vrot.lane.b32.xlu0 %v2491, 112
    %v2810 = vpop.permute.xlu0 %2809
    %2811 = vrot.lane.b32.xlu0 %v2494, 112
    %v2812 = vpop.permute.xlu0 %2811
    %2817 = vrot.lane.b32.xlu0 %v2483, 104
    %v2818 = vpop.permute.xlu0 %2817
    %2819 = vrot.lane.b32.xlu0 %v2486, 104
    %v2820 = vpop.permute.xlu0 %2819
    %2821 = vrot.lane.b32.xlu0 %v2491, 104
    %v2822 = vpop.permute.xlu0 %2821
    %2823 = vrot.lane.b32.xlu0 %v2494, 104
    %v2824 = vpop.permute.xlu0 %2823
    %v2829 = vcombine.low %v2483, %v2806
    %v2830 = vcombine.high %v2483, %v2806
    %v2832 = vunpack.c.l.s4 1983009808
    %v2833 = vunpack.c.0.s8 %v2832
    %v2834 = vlaneseq
    %v2835 = vshrl.u32 %v2834, 7
    %v2836 = vsub.s32 %v2833, %v2835
    %v2837 = vrot.slane %v2829, %v2836
    %v2839 = vunpack.c.l.s4 1983009808
    %v2840 = vunpack.c.0.s8 %v2839
    %v2841 = vlaneseq
    %v2842 = vshrl.u32 %v2841, 7
    %v2843 = vsub.s32 %v2840, %v2842
    %v2844 = vrot.slane %v2830, %v2843
    %v2845 = vcombine.low %v2794, %v2818
    %v2846 = vcombine.high %v2794, %v2818
    %v2848 = vunpack.c.l.s4 1983009808
    %v2849 = vunpack.c.0.s8 %v2848
    %v2850 = vlaneseq
    %v2851 = vshrl.u32 %v2850, 7
    %v2852 = vsub.s32 %v2849, %v2851
    %v2853 = vrot.slane %v2845, %v2852
    %v2855 = vunpack.c.l.s4 1983009808
    %v2856 = vunpack.c.0.s8 %v2855
    %v2857 = vlaneseq
    %v2858 = vshrl.u32 %v2857, 7
    %v2859 = vsub.s32 %v2856, %v2858
    %v2860 = vrot.slane %v2846, %v2859
    %v2861 = vcombine.low %v2837, %v2853
    %v2862 = vcombine.high %v2837, %v2853
    %v2864 = vunpack.c.l.s4 1934713408
    %v2865 = vunpack.c.0.s8 %v2864
    %v2866 = vlaneseq
    %v2867 = vshrl.u32 %v2866, 7
    %v2868 = vsub.s32 %v2865, %v2867
    %v2869 = vrot.slane %v2861, %v2868
    %v2871 = vunpack.c.l.s4 1934713408
    %v2872 = vunpack.c.0.s8 %v2871
    %v2873 = vlaneseq
    %v2874 = vshrl.u32 %v2873, 7
    %v2875 = vsub.s32 %v2872, %v2874
    %v2876 = vrot.slane %v2862, %v2875
    %v2877 = vcombine.low %v2844, %v2860
    %v2878 = vcombine.high %v2844, %v2860
    %v2880 = vunpack.c.l.s4 1934713408
    %v2881 = vunpack.c.0.s8 %v2880
    %v2882 = vlaneseq
    %v2883 = vshrl.u32 %v2882, 7
    %v2884 = vsub.s32 %v2881, %v2883
    %v2885 = vrot.slane %v2877, %v2884
    %v2887 = vunpack.c.l.s4 1934713408
    %v2888 = vunpack.c.0.s8 %v2887
    %v2889 = vlaneseq
    %v2890 = vshrl.u32 %v2889, 7
    %v2891 = vsub.s32 %v2888, %v2890
    %v2892 = vrot.slane %v2878, %v2891
    %v2893 = vcombine.high %v2869, 0.0
    %v2894 = vcombine.high %v2876, 0.0
    %v2895 = vcombine.high %v2885, 0.0
    %v2896 = vcombine.high %v2892, 0.0
    %v2897 = vcombine.low %v2486, %v2808
    %v2898 = vcombine.high %v2486, %v2808
    %v2900 = vunpack.c.l.s4 1983009808
    %v2901 = vunpack.c.0.s8 %v2900
    %v2902 = vlaneseq
    %v2903 = vshrl.u32 %v2902, 7
    %v2904 = vsub.s32 %v2901, %v2903
    %v2905 = vrot.slane %v2897, %v2904
    %v2907 = vunpack.c.l.s4 1983009808
    %v2908 = vunpack.c.0.s8 %v2907
    %v2909 = vlaneseq
    %v2910 = vshrl.u32 %v2909, 7
    %v2911 = vsub.s32 %v2908, %v2910
    %v2912 = vrot.slane %v2898, %v2911
    %v2913 = vcombine.low %v2796, %v2820
    %v2914 = vcombine.high %v2796, %v2820
    %v2916 = vunpack.c.l.s4 1983009808
    %v2917 = vunpack.c.0.s8 %v2916
    %v2918 = vlaneseq
    %v2919 = vshrl.u32 %v2918, 7
    %v2920 = vsub.s32 %v2917, %v2919
    %v2921 = vrot.slane %v2913, %v2920
    %v2923 = vunpack.c.l.s4 1983009808
    %v2924 = vunpack.c.0.s8 %v2923
    %v2925 = vlaneseq
    %v2926 = vshrl.u32 %v2925, 7
    %v2927 = vsub.s32 %v2924, %v2926
    %v2928 = vrot.slane %v2914, %v2927
    %v2929 = vcombine.low %v2905, %v2921
    %v2930 = vcombine.high %v2905, %v2921
    %v2932 = vunpack.c.l.s4 1934713408
    %v2933 = vunpack.c.0.s8 %v2932
    %v2934 = vlaneseq
    %v2935 = vshrl.u32 %v2934, 7
    %v2936 = vsub.s32 %v2933, %v2935
    %v2937 = vrot.slane %v2929, %v2936
    %v2939 = vunpack.c.l.s4 1934713408
    %v2940 = vunpack.c.0.s8 %v2939
    %v2941 = vlaneseq
    %v2942 = vshrl.u32 %v2941, 7
    %v2943 = vsub.s32 %v2940, %v2942
    %v2944 = vrot.slane %v2930, %v2943
    %v2945 = vcombine.low %v2912, %v2928
    %v2946 = vcombine.high %v2912, %v2928
    %v2948 = vunpack.c.l.s4 1934713408
    %v2949 = vunpack.c.0.s8 %v2948
    %v2950 = vlaneseq
    %v2951 = vshrl.u32 %v2950, 7
    %v2952 = vsub.s32 %v2949, %v2951
    %v2953 = vrot.slane %v2945, %v2952
    %v2955 = vunpack.c.l.s4 1934713408
    %v2956 = vunpack.c.0.s8 %v2955
    %v2957 = vlaneseq
    %v2958 = vshrl.u32 %v2957, 7
    %v2959 = vsub.s32 %v2956, %v2958
    %v2960 = vrot.slane %v2946, %v2959
    %v2961 = vcombine.high %v2937, 0.0
    %v2962 = vcombine.high %v2944, 0.0
    %v2963 = vcombine.high %v2953, 0.0
    %v2964 = vcombine.high %v2960, 0.0
    %v2965 = vcombine.low %v2491, %v2810
    %v2966 = vcombine.high %v2491, %v2810
    %v2968 = vunpack.c.l.s4 1983009808
    %v2969 = vunpack.c.0.s8 %v2968
    %v2970 = vlaneseq
    %v2971 = vshrl.u32 %v2970, 7
    %v2972 = vsub.s32 %v2969, %v2971
    %v2973 = vrot.slane %v2965, %v2972
    %v2975 = vunpack.c.l.s4 1983009808
    %v2976 = vunpack.c.0.s8 %v2975
    %v2977 = vlaneseq
    %v2978 = vshrl.u32 %v2977, 7
    %v2979 = vsub.s32 %v2976, %v2978
    %v2980 = vrot.slane %v2966, %v2979
    %v2981 = vcombine.low %v2798, %v2822
    %v2982 = vcombine.high %v2798, %v2822
    %v2984 = vunpack.c.l.s4 1983009808
    %v2985 = vunpack.c.0.s8 %v2984
    %v2986 = vlaneseq
    %v2987 = vshrl.u32 %v2986, 7
    %v2988 = vsub.s32 %v2985, %v2987
    %v2989 = vrot.slane %v2981, %v2988
    %v2991 = vunpack.c.l.s4 1983009808
    %v2992 = vunpack.c.0.s8 %v2991
    %v2993 = vlaneseq
    %v2994 = vshrl.u32 %v2993, 7
    %v2995 = vsub.s32 %v2992, %v2994
    %v2996 = vrot.slane %v2982, %v2995
    %v2997 = vcombine.low %v2973, %v2989
    %v2998 = vcombine.high %v2973, %v2989
    %v3000 = vunpack.c.l.s4 1934713408
    %v3001 = vunpack.c.0.s8 %v3000
    %v3002 = vlaneseq
    %v3003 = vshrl.u32 %v3002, 7
    %v3004 = vsub.s32 %v3001, %v3003
    %v3005 = vrot.slane %v2997, %v3004
    %v3007 = vunpack.c.l.s4 1934713408
    %v3008 = vunpack.c.0.s8 %v3007
    %v3009 = vlaneseq
    %v3010 = vshrl.u32 %v3009, 7
    %v3011 = vsub.s32 %v3008, %v3010
    %v3012 = vrot.slane %v2998, %v3011
    %v3013 = vcombine.low %v2980, %v2996
    %v3014 = vcombine.high %v2980, %v2996
    %v3016 = vunpack.c.l.s4 1934713408
    %v3017 = vunpack.c.0.s8 %v3016
    %v3018 = vlaneseq
    %v3019 = vshrl.u32 %v3018, 7
    %v3020 = vsub.s32 %v3017, %v3019
    %v3021 = vrot.slane %v3013, %v3020
    %v3023 = vunpack.c.l.s4 1934713408
    %v3024 = vunpack.c.0.s8 %v3023
    %v3025 = vlaneseq
    %v3026 = vshrl.u32 %v3025, 7
    %v3027 = vsub.s32 %v3024, %v3026
    %v3028 = vrot.slane %v3014, %v3027
    %v3029 = vcombine.high %v3005, 0.0
    %v3030 = vcombine.high %v3012, 0.0
    %v3031 = vcombine.high %v3021, 0.0
    %v3032 = vcombine.high %v3028, 0.0
    %v3033 = vcombine.low %v2494, %v2812
    %v3034 = vcombine.high %v2494, %v2812
    %v3036 = vunpack.c.l.s4 1983009808
    %v3037 = vunpack.c.0.s8 %v3036
    %v3038 = vlaneseq
    %v3039 = vshrl.u32 %v3038, 7
    %v3040 = vsub.s32 %v3037, %v3039
    %v3041 = vrot.slane %v3033, %v3040
    %v3043 = vunpack.c.l.s4 1983009808
    %v3044 = vunpack.c.0.s8 %v3043
    %v3045 = vlaneseq
    %v3046 = vshrl.u32 %v3045, 7
    %v3047 = vsub.s32 %v3044, %v3046
    %v3048 = vrot.slane %v3034, %v3047
    %v3049 = vcombine.low %v2800, %v2824
    %v3050 = vcombine.high %v2800, %v2824
    %v3052 = vunpack.c.l.s4 1983009808
    %v3053 = vunpack.c.0.s8 %v3052
    %v3054 = vlaneseq
    %v3055 = vshrl.u32 %v3054, 7
    %v3056 = vsub.s32 %v3053, %v3055
    %v3057 = vrot.slane %v3049, %v3056
    %v3059 = vunpack.c.l.s4 1983009808
    %v3060 = vunpack.c.0.s8 %v3059
    %v3061 = vlaneseq
    %v3062 = vshrl.u32 %v3061, 7
    %v3063 = vsub.s32 %v3060, %v3062
    %v3064 = vrot.slane %v3050, %v3063
    %v3065 = vcombine.low %v3041, %v3057
    %v3066 = vcombine.high %v3041, %v3057
    %v3068 = vunpack.c.l.s4 1934713408
    %v3069 = vunpack.c.0.s8 %v3068
    %v3070 = vlaneseq
    %v3071 = vshrl.u32 %v3070, 7
    %v3072 = vsub.s32 %v3069, %v3071
    %v3073 = vrot.slane %v3065, %v3072
    %v3075 = vunpack.c.l.s4 1934713408
    %v3076 = vunpack.c.0.s8 %v3075
    %v3077 = vlaneseq
    %v3078 = vshrl.u32 %v3077, 7
    %v3079 = vsub.s32 %v3076, %v3078
    %v3080 = vrot.slane %v3066, %v3079
    %v3081 = vcombine.low %v3048, %v3064
    %v3082 = vcombine.high %v3048, %v3064
    %v3084 = vunpack.c.l.s4 1934713408
    %v3085 = vunpack.c.0.s8 %v3084
    %v3086 = vlaneseq
    %v3087 = vshrl.u32 %v3086, 7
    %v3088 = vsub.s32 %v3085, %v3087
    %v3089 = vrot.slane %v3081, %v3088
    %v3091 = vunpack.c.l.s4 1934713408
    %v3092 = vunpack.c.0.s8 %v3091
    %v3093 = vlaneseq
    %v3094 = vshrl.u32 %v3093, 7
    %v3095 = vsub.s32 %v3092, %v3094
    %v3096 = vrot.slane %v3082, %v3095
    %v3097 = vcombine.high %v3073, 0.0
    %v3098 = vcombine.high %v3080, 0.0
    %v3099 = vcombine.high %v3089, 0.0
    %v3100 = vcombine.high %v3096, 0.0
    %v3101 = vcombine.low %v2869, %v2876
    %v3103 = vunpack.c.l.s4 1983009808
    %v3104 = vunpack.c.0.s8 %v3103
    %v3105 = vlaneseq
    %v3106 = vshrl.u32 %v3105, 7
    %v3107 = vsub.s32 %v3104, %v3106
    %v3108 = vrot.slane %v3101, %v3107
    %v3109 = vcombine.low %v2893, %v2894
    %v3111 = vunpack.c.l.s4 1983009808
    %v3112 = vunpack.c.0.s8 %v3111
    %v3113 = vlaneseq
    %v3114 = vshrl.u32 %v3113, 7
    %v3115 = vsub.s32 %v3112, %v3114
    %v3116 = vrot.slane %v3109, %v3115
    %v3117 = vcombine.low %v2885, %v2892
    %v3119 = vunpack.c.l.s4 1983009808
    %v3120 = vunpack.c.0.s8 %v3119
    %v3121 = vlaneseq
    %v3122 = vshrl.u32 %v3121, 7
    %v3123 = vsub.s32 %v3120, %v3122
    %v3124 = vrot.slane %v3117, %v3123
    %v3125 = vcombine.low %v2895, %v2896
    %v3127 = vunpack.c.l.s4 1983009808
    %v3128 = vunpack.c.0.s8 %v3127
    %v3129 = vlaneseq
    %v3130 = vshrl.u32 %v3129, 7
    %v3131 = vsub.s32 %v3128, %v3130
    %v3132 = vrot.slane %v3125, %v3131
    %v3133 = vcombine.low %v3108, %v3116
    %v3134 = vcombine.high %v3108, %v3116
    %v3136 = vunpack.c.l.s4 1934713408
    %v3137 = vunpack.c.0.s8 %v3136
    %v3138 = vlaneseq
    %v3139 = vshrl.u32 %v3138, 7
    %v3140 = vsub.s32 %v3137, %v3139
    %v3141 = vrot.slane %v3133, %v3140
    %v3143 = vunpack.c.l.s4 1934713408
    %v3144 = vunpack.c.0.s8 %v3143
    %v3145 = vlaneseq
    %v3146 = vshrl.u32 %v3145, 7
    %v3147 = vsub.s32 %v3144, %v3146
    %v3148 = vrot.slane %v3134, %v3147
    %v3149 = vcombine.low %v3124, %v3132
    %v3150 = vcombine.high %v3124, %v3132
    %v3152 = vunpack.c.l.s4 1934713408
    %v3153 = vunpack.c.0.s8 %v3152
    %v3154 = vlaneseq
    %v3155 = vshrl.u32 %v3154, 7
    %v3156 = vsub.s32 %v3153, %v3155
    %v3157 = vrot.slane %v3149, %v3156
    %v3159 = vunpack.c.l.s4 1934713408
    %v3160 = vunpack.c.0.s8 %v3159
    %v3161 = vlaneseq
    %v3162 = vshrl.u32 %v3161, 7
    %v3163 = vsub.s32 %v3160, %v3162
    %v3164 = vrot.slane %v3150, %v3163
    %v3165 = vcombine.low %v3141, %v3157
    %v3166 = vcombine.high %v3141, %v3157
    %v3167 = vcombine.low %v3148, %v3164
    %v3168 = vcombine.high %v3148, %v3164
    %v3169 = vcombine.low %v2937, %v2944
    %v3171 = vunpack.c.l.s4 1983009808
    %v3172 = vunpack.c.0.s8 %v3171
    %v3173 = vlaneseq
    %v3174 = vshrl.u32 %v3173, 7
    %v3175 = vsub.s32 %v3172, %v3174
    %v3176 = vrot.slane %v3169, %v3175
    %v3177 = vcombine.low %v2961, %v2962
    %v3179 = vunpack.c.l.s4 1983009808
    %v3180 = vunpack.c.0.s8 %v3179
    %v3181 = vlaneseq
    %v3182 = vshrl.u32 %v3181, 7
    %v3183 = vsub.s32 %v3180, %v3182
    %v3184 = vrot.slane %v3177, %v3183
    %v3185 = vcombine.low %v2953, %v2960
    %v3187 = vunpack.c.l.s4 1983009808
    %v3188 = vunpack.c.0.s8 %v3187
    %v3189 = vlaneseq
    %v3190 = vshrl.u32 %v3189, 7
    %v3191 = vsub.s32 %v3188, %v3190
    %v3192 = vrot.slane %v3185, %v3191
    %v3193 = vcombine.low %v2963, %v2964
    %v3195 = vunpack.c.l.s4 1983009808
    %v3196 = vunpack.c.0.s8 %v3195
    %v3197 = vlaneseq
    %v3198 = vshrl.u32 %v3197, 7
    %v3199 = vsub.s32 %v3196, %v3198
    %v3200 = vrot.slane %v3193, %v3199
    %v3201 = vcombine.low %v3176, %v3184
    %v3202 = vcombine.high %v3176, %v3184
    %v3204 = vunpack.c.l.s4 1934713408
    %v3205 = vunpack.c.0.s8 %v3204
    %v3206 = vlaneseq
    %v3207 = vshrl.u32 %v3206, 7
    %v3208 = vsub.s32 %v3205, %v3207
    %v3209 = vrot.slane %v3201, %v3208
    %v3211 = vunpack.c.l.s4 1934713408
    %v3212 = vunpack.c.0.s8 %v3211
    %v3213 = vlaneseq
    %v3214 = vshrl.u32 %v3213, 7
    %v3215 = vsub.s32 %v3212, %v3214
    %v3216 = vrot.slane %v3202, %v3215
    %v3217 = vcombine.low %v3192, %v3200
    %v3218 = vcombine.high %v3192, %v3200
    %v3220 = vunpack.c.l.s4 1934713408
    %v3221 = vunpack.c.0.s8 %v3220
    %v3222 = vlaneseq
    %v3223 = vshrl.u32 %v3222, 7
    %v3224 = vsub.s32 %v3221, %v3223
    %v3225 = vrot.slane %v3217, %v3224
    %v3227 = vunpack.c.l.s4 1934713408
    %v3228 = vunpack.c.0.s8 %v3227
    %v3229 = vlaneseq
    %v3230 = vshrl.u32 %v3229, 7
    %v3231 = vsub.s32 %v3228, %v3230
    %v3232 = vrot.slane %v3218, %v3231
    %v3233 = vcombine.low %v3209, %v3225
    %v3234 = vcombine.high %v3209, %v3225
    %v3235 = vcombine.low %v3216, %v3232
    %v3236 = vcombine.high %v3216, %v3232
    %v3237 = vcombine.low %v3005, %v3012
    %v3239 = vunpack.c.l.s4 1983009808
    %v3240 = vunpack.c.0.s8 %v3239
    %v3241 = vlaneseq
    %v3242 = vshrl.u32 %v3241, 7
    %v3243 = vsub.s32 %v3240, %v3242
    %v3244 = vrot.slane %v3237, %v3243
    %v3245 = vcombine.low %v3029, %v3030
    %v3247 = vunpack.c.l.s4 1983009808
    %v3248 = vunpack.c.0.s8 %v3247
    %v3249 = vlaneseq
    %v3250 = vshrl.u32 %v3249, 7
    %v3251 = vsub.s32 %v3248, %v3250
    %v3252 = vrot.slane %v3245, %v3251
    %v3253 = vcombine.low %v3021, %v3028
    %v3255 = vunpack.c.l.s4 1983009808
    %v3256 = vunpack.c.0.s8 %v3255
    %v3257 = vlaneseq
    %v3258 = vshrl.u32 %v3257, 7
    %v3259 = vsub.s32 %v3256, %v3258
    %v3260 = vrot.slane %v3253, %v3259
    %v3261 = vcombine.low %v3031, %v3032
    %v3263 = vunpack.c.l.s4 1983009808
    %v3264 = vunpack.c.0.s8 %v3263
    %v3265 = vlaneseq
    %v3266 = vshrl.u32 %v3265, 7
    %v3267 = vsub.s32 %v3264, %v3266
    %v3268 = vrot.slane %v3261, %v3267
    %v3269 = vcombine.low %v3244, %v3252
    %v3270 = vcombine.high %v3244, %v3252
    %v3272 = vunpack.c.l.s4 1934713408
    %v3273 = vunpack.c.0.s8 %v3272
    %v3274 = vlaneseq
    %v3275 = vshrl.u32 %v3274, 7
    %v3276 = vsub.s32 %v3273, %v3275
    %v3277 = vrot.slane %v3269, %v3276
    %v3279 = vunpack.c.l.s4 1934713408
    %v3280 = vunpack.c.0.s8 %v3279
    %v3281 = vlaneseq
    %v3282 = vshrl.u32 %v3281, 7
    %v3283 = vsub.s32 %v3280, %v3282
    %v3284 = vrot.slane %v3270, %v3283
    %v3285 = vcombine.low %v3260, %v3268
    %v3286 = vcombine.high %v3260, %v3268
    %v3288 = vunpack.c.l.s4 1934713408
    %v3289 = vunpack.c.0.s8 %v3288
    %v3290 = vlaneseq
    %v3291 = vshrl.u32 %v3290, 7
    %v3292 = vsub.s32 %v3289, %v3291
    %v3293 = vrot.slane %v3285, %v3292
    %v3295 = vunpack.c.l.s4 1934713408
    %v3296 = vunpack.c.0.s8 %v3295
    %v3297 = vlaneseq
    %v3298 = vshrl.u32 %v3297, 7
    %v3299 = vsub.s32 %v3296, %v3298
    %v3300 = vrot.slane %v3286, %v3299
    %v3301 = vcombine.low %v3277, %v3293
    %v3302 = vcombine.high %v3277, %v3293
    %v3303 = vcombine.low %v3284, %v3300
    %v3304 = vcombine.high %v3284, %v3300
    %v3305 = vcombine.low %v3073, %v3080
    %v3307 = vunpack.c.l.s4 1983009808
    %v3308 = vunpack.c.0.s8 %v3307
    %v3309 = vlaneseq
    %v3310 = vshrl.u32 %v3309, 7
    %v3311 = vsub.s32 %v3308, %v3310
    %v3312 = vrot.slane %v3305, %v3311
    %v3313 = vcombine.low %v3097, %v3098
    %v3315 = vunpack.c.l.s4 1983009808
    %v3316 = vunpack.c.0.s8 %v3315
    %v3317 = vlaneseq
    %v3318 = vshrl.u32 %v3317, 7
    %v3319 = vsub.s32 %v3316, %v3318
    %v3320 = vrot.slane %v3313, %v3319
    %v3321 = vcombine.low %v3089, %v3096
    %v3323 = vunpack.c.l.s4 1983009808
    %v3324 = vunpack.c.0.s8 %v3323
    %v3325 = vlaneseq
    %v3326 = vshrl.u32 %v3325, 7
    %v3327 = vsub.s32 %v3324, %v3326
    %v3328 = vrot.slane %v3321, %v3327
    %v3329 = vcombine.low %v3099, %v3100
    %v3331 = vunpack.c.l.s4 1983009808
    %v3332 = vunpack.c.0.s8 %v3331
    %v3333 = vlaneseq
    %v3334 = vshrl.u32 %v3333, 7
    %v3335 = vsub.s32 %v3332, %v3334
    %v3336 = vrot.slane %v3329, %v3335
    %v3337 = vcombine.low %v3312, %v3320
    %v3338 = vcombine.high %v3312, %v3320
    %v3340 = vunpack.c.l.s4 1934713408
    %v3341 = vunpack.c.0.s8 %v3340
    %v3342 = vlaneseq
    %v3343 = vshrl.u32 %v3342, 7
    %v3344 = vsub.s32 %v3341, %v3343
    %v3345 = vrot.slane %v3337, %v3344
    %v3347 = vunpack.c.l.s4 1934713408
    %v3348 = vunpack.c.0.s8 %v3347
    %v3349 = vlaneseq
    %v3350 = vshrl.u32 %v3349, 7
    %v3351 = vsub.s32 %v3348, %v3350
    %v3352 = vrot.slane %v3338, %v3351
    %v3353 = vcombine.low %v3328, %v3336
    %v3354 = vcombine.high %v3328, %v3336
    %v3356 = vunpack.c.l.s4 1934713408
    %v3357 = vunpack.c.0.s8 %v3356
    %v3358 = vlaneseq
    %v3359 = vshrl.u32 %v3358, 7
    %v3360 = vsub.s32 %v3357, %v3359
    %v3361 = vrot.slane %v3353, %v3360
    %v3363 = vunpack.c.l.s4 1934713408
    %v3364 = vunpack.c.0.s8 %v3363
    %v3365 = vlaneseq
    %v3366 = vshrl.u32 %v3365, 7
    %v3367 = vsub.s32 %v3364, %v3366
    %v3368 = vrot.slane %v3354, %v3367
    %v3369 = vcombine.low %v3345, %v3361
    %v3370 = vcombine.high %v3345, %v3361
    %v3371 = vcombine.low %v3352, %v3368
    %v3372 = vcombine.high %v3352, %v3368
    %3373 = vrot.lane.b32.xlu0 %v2483, 96
    %v3374 = vpop.permute.xlu0 %3373
    %3375 = vrot.lane.b32.xlu0 %v2486, 96
    %v3376 = vpop.permute.xlu0 %3375
    %3377 = vrot.lane.b32.xlu0 %v2491, 96
    %v3378 = vpop.permute.xlu0 %3377
    %3379 = vrot.lane.b32.xlu0 %v2494, 96
    %v3380 = vpop.permute.xlu0 %3379
    %3381 = vrot.lane.b32.xlu0 %v2794, 96
    %v3382 = vpop.permute.xlu0 %3381
    %3383 = vrot.lane.b32.xlu0 %v2796, 96
    %v3384 = vpop.permute.xlu0 %3383
    %3385 = vrot.lane.b32.xlu0 %v2798, 96
    %v3386 = vpop.permute.xlu0 %3385
    %3387 = vrot.lane.b32.xlu0 %v2800, 96
    %v3388 = vpop.permute.xlu0 %3387
    %3389 = vrot.lane.b32.xlu0 %v2806, 96
    %v3390 = vpop.permute.xlu0 %3389
    %3391 = vrot.lane.b32.xlu0 %v2808, 96
    %v3392 = vpop.permute.xlu0 %3391
    %3393 = vrot.lane.b32.xlu0 %v2810, 96
    %v3394 = vpop.permute.xlu0 %3393
    %3395 = vrot.lane.b32.xlu0 %v2812, 96
    %v3396 = vpop.permute.xlu0 %3395
    %3397 = vrot.lane.b32.xlu0 %v2818, 96
    %v3398 = vpop.permute.xlu0 %3397
    %3399 = vrot.lane.b32.xlu0 %v2820, 96
    %v3400 = vpop.permute.xlu0 %3399
    %3401 = vrot.lane.b32.xlu0 %v2822, 96
    %v3402 = vpop.permute.xlu0 %3401
    %3403 = vrot.lane.b32.xlu0 %v2824, 96
    %v3404 = vpop.permute.xlu0 %3403
    %v3421 = vcombine.low %v3374, %v3390
    %v3422 = vcombine.high %v3374, %v3390
    %v3424 = vunpack.c.l.s4 1983009808
    %v3425 = vunpack.c.0.s8 %v3424
    %v3426 = vlaneseq
    %v3427 = vshrl.u32 %v3426, 7
    %v3428 = vsub.s32 %v3425, %v3427
    %v3429 = vrot.slane %v3421, %v3428
    %v3431 = vunpack.c.l.s4 1983009808
    %v3432 = vunpack.c.0.s8 %v3431
    %v3433 = vlaneseq
    %v3434 = vshrl.u32 %v3433, 7
    %v3435 = vsub.s32 %v3432, %v3434
    %v3436 = vrot.slane %v3422, %v3435
    %v3437 = vcombine.low %v3382, %v3398
    %v3438 = vcombine.high %v3382, %v3398
    %v3440 = vunpack.c.l.s4 1983009808
    %v3441 = vunpack.c.0.s8 %v3440
    %v3442 = vlaneseq
    %v3443 = vshrl.u32 %v3442, 7
    %v3444 = vsub.s32 %v3441, %v3443
    %v3445 = vrot.slane %v3437, %v3444
    %v3447 = vunpack.c.l.s4 1983009808
    %v3448 = vunpack.c.0.s8 %v3447
    %v3449 = vlaneseq
    %v3450 = vshrl.u32 %v3449, 7
    %v3451 = vsub.s32 %v3448, %v3450
    %v3452 = vrot.slane %v3438, %v3451
    %v3453 = vcombine.low %v3429, %v3445
    %v3454 = vcombine.high %v3429, %v3445
    %v3456 = vunpack.c.l.s4 1934713408
    %v3457 = vunpack.c.0.s8 %v3456
    %v3458 = vlaneseq
    %v3459 = vshrl.u32 %v3458, 7
    %v3460 = vsub.s32 %v3457, %v3459
    %v3461 = vrot.slane %v3453, %v3460
    %v3463 = vunpack.c.l.s4 1934713408
    %v3464 = vunpack.c.0.s8 %v3463
    %v3465 = vlaneseq
    %v3466 = vshrl.u32 %v3465, 7
    %v3467 = vsub.s32 %v3464, %v3466
    %v3468 = vrot.slane %v3454, %v3467
    %v3469 = vcombine.low %v3436, %v3452
    %v3470 = vcombine.high %v3436, %v3452
    %v3472 = vunpack.c.l.s4 1934713408
    %v3473 = vunpack.c.0.s8 %v3472
    %v3474 = vlaneseq
    %v3475 = vshrl.u32 %v3474, 7
    %v3476 = vsub.s32 %v3473, %v3475
    %v3477 = vrot.slane %v3469, %v3476
    %v3479 = vunpack.c.l.s4 1934713408
    %v3480 = vunpack.c.0.s8 %v3479
    %v3481 = vlaneseq
    %v3482 = vshrl.u32 %v3481, 7
    %v3483 = vsub.s32 %v3480, %v3482
    %v3484 = vrot.slane %v3470, %v3483
    %v3485 = vcombine.high %v3461, 0.0
    %v3486 = vcombine.high %v3468, 0.0
    %v3487 = vcombine.high %v3477, 0.0
    %v3488 = vcombine.high %v3484, 0.0
    %v3489 = vcombine.low %v3376, %v3392
    %v3490 = vcombine.high %v3376, %v3392
    %v3492 = vunpack.c.l.s4 1983009808
    %v3493 = vunpack.c.0.s8 %v3492
    %v3494 = vlaneseq
    %v3495 = vshrl.u32 %v3494, 7
    %v3496 = vsub.s32 %v3493, %v3495
    %v3497 = vrot.slane %v3489, %v3496
    %v3499 = vunpack.c.l.s4 1983009808
    %v3500 = vunpack.c.0.s8 %v3499
    %v3501 = vlaneseq
    %v3502 = vshrl.u32 %v3501, 7
    %v3503 = vsub.s32 %v3500, %v3502
    %v3504 = vrot.slane %v3490, %v3503
    %v3505 = vcombine.low %v3384, %v3400
    %v3506 = vcombine.high %v3384, %v3400
    %v3508 = vunpack.c.l.s4 1983009808
    %v3509 = vunpack.c.0.s8 %v3508
    %v3510 = vlaneseq
    %v3511 = vshrl.u32 %v3510, 7
    %v3512 = vsub.s32 %v3509, %v3511
    %v3513 = vrot.slane %v3505, %v3512
    %v3515 = vunpack.c.l.s4 1983009808
    %v3516 = vunpack.c.0.s8 %v3515
    %v3517 = vlaneseq
    %v3518 = vshrl.u32 %v3517, 7
    %v3519 = vsub.s32 %v3516, %v3518
    %v3520 = vrot.slane %v3506, %v3519
    %v3521 = vcombine.low %v3497, %v3513
    %v3522 = vcombine.high %v3497, %v3513
    %v3524 = vunpack.c.l.s4 1934713408
    %v3525 = vunpack.c.0.s8 %v3524
    %v3526 = vlaneseq
    %v3527 = vshrl.u32 %v3526, 7
    %v3528 = vsub.s32 %v3525, %v3527
    %v3529 = vrot.slane %v3521, %v3528
    %v3531 = vunpack.c.l.s4 1934713408
    %v3532 = vunpack.c.0.s8 %v3531
    %v3533 = vlaneseq
    %v3534 = vshrl.u32 %v3533, 7
    %v3535 = vsub.s32 %v3532, %v3534
    %v3536 = vrot.slane %v3522, %v3535
    %v3537 = vcombine.low %v3504, %v3520
    %v3538 = vcombine.high %v3504, %v3520
    %v3540 = vunpack.c.l.s4 1934713408
    %v3541 = vunpack.c.0.s8 %v3540
    %v3542 = vlaneseq
    %v3543 = vshrl.u32 %v3542, 7
    %v3544 = vsub.s32 %v3541, %v3543
    %v3545 = vrot.slane %v3537, %v3544
    %v3547 = vunpack.c.l.s4 1934713408
    %v3548 = vunpack.c.0.s8 %v3547
    %v3549 = vlaneseq
    %v3550 = vshrl.u32 %v3549, 7
    %v3551 = vsub.s32 %v3548, %v3550
    %v3552 = vrot.slane %v3538, %v3551
    %v3553 = vcombine.high %v3529, 0.0
    %v3554 = vcombine.high %v3536, 0.0
    %v3555 = vcombine.high %v3545, 0.0
    %v3556 = vcombine.high %v3552, 0.0
    %v3557 = vcombine.low %v3378, %v3394
    %v3558 = vcombine.high %v3378, %v3394
    %v3560 = vunpack.c.l.s4 1983009808
    %v3561 = vunpack.c.0.s8 %v3560
    %v3562 = vlaneseq
    %v3563 = vshrl.u32 %v3562, 7
    %v3564 = vsub.s32 %v3561, %v3563
    %v3565 = vrot.slane %v3557, %v3564
    %v3567 = vunpack.c.l.s4 1983009808
    %v3568 = vunpack.c.0.s8 %v3567
    %v3569 = vlaneseq
    %v3570 = vshrl.u32 %v3569, 7
    %v3571 = vsub.s32 %v3568, %v3570
    %v3572 = vrot.slane %v3558, %v3571
    %v3573 = vcombine.low %v3386, %v3402
    %v3574 = vcombine.high %v3386, %v3402
    %v3576 = vunpack.c.l.s4 1983009808
    %v3577 = vunpack.c.0.s8 %v3576
    %v3578 = vlaneseq
    %v3579 = vshrl.u32 %v3578, 7
    %v3580 = vsub.s32 %v3577, %v3579
    %v3581 = vrot.slane %v3573, %v3580
    %v3583 = vunpack.c.l.s4 1983009808
    %v3584 = vunpack.c.0.s8 %v3583
    %v3585 = vlaneseq
    %v3586 = vshrl.u32 %v3585, 7
    %v3587 = vsub.s32 %v3584, %v3586
    %v3588 = vrot.slane %v3574, %v3587
    %v3589 = vcombine.low %v3565, %v3581
    %v3590 = vcombine.high %v3565, %v3581
    %v3592 = vunpack.c.l.s4 1934713408
    %v3593 = vunpack.c.0.s8 %v3592
    %v3594 = vlaneseq
    %v3595 = vshrl.u32 %v3594, 7
    %v3596 = vsub.s32 %v3593, %v3595
    %v3597 = vrot.slane %v3589, %v3596
    %v3599 = vunpack.c.l.s4 1934713408
    %v3600 = vunpack.c.0.s8 %v3599
    %v3601 = vlaneseq
    %v3602 = vshrl.u32 %v3601, 7
    %v3603 = vsub.s32 %v3600, %v3602
    %v3604 = vrot.slane %v3590, %v3603
    %v3605 = vcombine.low %v3572, %v3588
    %v3606 = vcombine.high %v3572, %v3588
    %v3608 = vunpack.c.l.s4 1934713408
    %v3609 = vunpack.c.0.s8 %v3608
    %v3610 = vlaneseq
    %v3611 = vshrl.u32 %v3610, 7
    %v3612 = vsub.s32 %v3609, %v3611
    %v3613 = vrot.slane %v3605, %v3612
    %v3615 = vunpack.c.l.s4 1934713408
    %v3616 = vunpack.c.0.s8 %v3615
    %v3617 = vlaneseq
    %v3618 = vshrl.u32 %v3617, 7
    %v3619 = vsub.s32 %v3616, %v3618
    %v3620 = vrot.slane %v3606, %v3619
    %v3621 = vcombine.high %v3597, 0.0
    %v3622 = vcombine.high %v3604, 0.0
    %v3623 = vcombine.high %v3613, 0.0
    %v3624 = vcombine.high %v3620, 0.0
    %v3625 = vcombine.low %v3380, %v3396
    %v3626 = vcombine.high %v3380, %v3396
    %v3628 = vunpack.c.l.s4 1983009808
    %v3629 = vunpack.c.0.s8 %v3628
    %v3630 = vlaneseq
    %v3631 = vshrl.u32 %v3630, 7
    %v3632 = vsub.s32 %v3629, %v3631
    %v3633 = vrot.slane %v3625, %v3632
    %v3635 = vunpack.c.l.s4 1983009808
    %v3636 = vunpack.c.0.s8 %v3635
    %v3637 = vlaneseq
    %v3638 = vshrl.u32 %v3637, 7
    %v3639 = vsub.s32 %v3636, %v3638
    %v3640 = vrot.slane %v3626, %v3639
    %v3641 = vcombine.low %v3388, %v3404
    %v3642 = vcombine.high %v3388, %v3404
    %v3644 = vunpack.c.l.s4 1983009808
    %v3645 = vunpack.c.0.s8 %v3644
    %v3646 = vlaneseq
    %v3647 = vshrl.u32 %v3646, 7
    %v3648 = vsub.s32 %v3645, %v3647
    %v3649 = vrot.slane %v3641, %v3648
    %v3651 = vunpack.c.l.s4 1983009808
    %v3652 = vunpack.c.0.s8 %v3651
    %v3653 = vlaneseq
    %v3654 = vshrl.u32 %v3653, 7
    %v3655 = vsub.s32 %v3652, %v3654
    %v3656 = vrot.slane %v3642, %v3655
    %v3657 = vcombine.low %v3633, %v3649
    %v3658 = vcombine.high %v3633, %v3649
    %v3660 = vunpack.c.l.s4 1934713408
    %v3661 = vunpack.c.0.s8 %v3660
    %v3662 = vlaneseq
    %v3663 = vshrl.u32 %v3662, 7
    %v3664 = vsub.s32 %v3661, %v3663
    %v3665 = vrot.slane %v3657, %v3664
    %v3667 = vunpack.c.l.s4 1934713408
    %v3668 = vunpack.c.0.s8 %v3667
    %v3669 = vlaneseq
    %v3670 = vshrl.u32 %v3669, 7
    %v3671 = vsub.s32 %v3668, %v3670
    %v3672 = vrot.slane %v3658, %v3671
    %v3673 = vcombine.low %v3640, %v3656
    %v3674 = vcombine.high %v3640, %v3656
    %v3676 = vunpack.c.l.s4 1934713408
    %v3677 = vunpack.c.0.s8 %v3676
    %v3678 = vlaneseq
    %v3679 = vshrl.u32 %v3678, 7
    %v3680 = vsub.s32 %v3677, %v3679
    %v3681 = vrot.slane %v3673, %v3680
    %v3683 = vunpack.c.l.s4 1934713408
    %v3684 = vunpack.c.0.s8 %v3683
    %v3685 = vlaneseq
    %v3686 = vshrl.u32 %v3685, 7
    %v3687 = vsub.s32 %v3684, %v3686
    %v3688 = vrot.slane %v3674, %v3687
    %v3689 = vcombine.high %v3665, 0.0
    %v3690 = vcombine.high %v3672, 0.0
    %v3691 = vcombine.high %v3681, 0.0
    %v3692 = vcombine.high %v3688, 0.0
    %v3693 = vcombine.low %v3461, %v3468
    %v3695 = vunpack.c.l.s4 1983009808
    %v3696 = vunpack.c.0.s8 %v3695
    %v3697 = vlaneseq
    %v3698 = vshrl.u32 %v3697, 7
    %v3699 = vsub.s32 %v3696, %v3698
    %v3700 = vrot.slane %v3693, %v3699
    %v3701 = vcombine.low %v3485, %v3486
    %v3703 = vunpack.c.l.s4 1983009808
    %v3704 = vunpack.c.0.s8 %v3703
    %v3705 = vlaneseq
    %v3706 = vshrl.u32 %v3705, 7
    %v3707 = vsub.s32 %v3704, %v3706
    %v3708 = vrot.slane %v3701, %v3707
    %v3709 = vcombine.low %v3477, %v3484
    %v3711 = vunpack.c.l.s4 1983009808
    %v3712 = vunpack.c.0.s8 %v3711
    %v3713 = vlaneseq
    %v3714 = vshrl.u32 %v3713, 7
    %v3715 = vsub.s32 %v3712, %v3714
    %v3716 = vrot.slane %v3709, %v3715
    %v3717 = vcombine.low %v3487, %v3488
    %v3719 = vunpack.c.l.s4 1983009808
    %v3720 = vunpack.c.0.s8 %v3719
    %v3721 = vlaneseq
    %v3722 = vshrl.u32 %v3721, 7
    %v3723 = vsub.s32 %v3720, %v3722
    %v3724 = vrot.slane %v3717, %v3723
    %v3725 = vcombine.low %v3700, %v3708
    %v3726 = vcombine.high %v3700, %v3708
    %v3728 = vunpack.c.l.s4 1934713408
    %v3729 = vunpack.c.0.s8 %v3728
    %v3730 = vlaneseq
    %v3731 = vshrl.u32 %v3730, 7
    %v3732 = vsub.s32 %v3729, %v3731
    %v3733 = vrot.slane %v3725, %v3732
    %v3735 = vunpack.c.l.s4 1934713408
    %v3736 = vunpack.c.0.s8 %v3735
    %v3737 = vlaneseq
    %v3738 = vshrl.u32 %v3737, 7
    %v3739 = vsub.s32 %v3736, %v3738
    %v3740 = vrot.slane %v3726, %v3739
    %v3741 = vcombine.low %v3716, %v3724
    %v3742 = vcombine.high %v3716, %v3724
    %v3744 = vunpack.c.l.s4 1934713408
    %v3745 = vunpack.c.0.s8 %v3744
    %v3746 = vlaneseq
    %v3747 = vshrl.u32 %v3746, 7
    %v3748 = vsub.s32 %v3745, %v3747
    %v3749 = vrot.slane %v3741, %v3748
    %v3751 = vunpack.c.l.s4 1934713408
    %v3752 = vunpack.c.0.s8 %v3751
    %v3753 = vlaneseq
    %v3754 = vshrl.u32 %v3753, 7
    %v3755 = vsub.s32 %v3752, %v3754
    %v3756 = vrot.slane %v3742, %v3755
    %v3757 = vcombine.low %v3733, %v3749
    %v3758 = vcombine.high %v3733, %v3749
    %v3759 = vcombine.low %v3740, %v3756
    %v3760 = vcombine.high %v3740, %v3756
    %v3761 = vcombine.low %v3529, %v3536
    %v3763 = vunpack.c.l.s4 1983009808
    %v3764 = vunpack.c.0.s8 %v3763
    %v3765 = vlaneseq
    %v3766 = vshrl.u32 %v3765, 7
    %v3767 = vsub.s32 %v3764, %v3766
    %v3768 = vrot.slane %v3761, %v3767
    %v3769 = vcombine.low %v3553, %v3554
    %v3771 = vunpack.c.l.s4 1983009808
    %v3772 = vunpack.c.0.s8 %v3771
    %v3773 = vlaneseq
    %v3774 = vshrl.u32 %v3773, 7
    %v3775 = vsub.s32 %v3772, %v3774
    %v3776 = vrot.slane %v3769, %v3775
    %v3777 = vcombine.low %v3545, %v3552
    %v3779 = vunpack.c.l.s4 1983009808
    %v3780 = vunpack.c.0.s8 %v3779
    %v3781 = vlaneseq
    %v3782 = vshrl.u32 %v3781, 7
    %v3783 = vsub.s32 %v3780, %v3782
    %v3784 = vrot.slane %v3777, %v3783
    %v3785 = vcombine.low %v3555, %v3556
    %v3787 = vunpack.c.l.s4 1983009808
    %v3788 = vunpack.c.0.s8 %v3787
    %v3789 = vlaneseq
    %v3790 = vshrl.u32 %v3789, 7
    %v3791 = vsub.s32 %v3788, %v3790
    %v3792 = vrot.slane %v3785, %v3791
    %v3793 = vcombine.low %v3768, %v3776
    %v3794 = vcombine.high %v3768, %v3776
    %v3796 = vunpack.c.l.s4 1934713408
    %v3797 = vunpack.c.0.s8 %v3796
    %v3798 = vlaneseq
    %v3799 = vshrl.u32 %v3798, 7
    %v3800 = vsub.s32 %v3797, %v3799
    %v3801 = vrot.slane %v3793, %v3800
    %v3803 = vunpack.c.l.s4 1934713408
    %v3804 = vunpack.c.0.s8 %v3803
    %v3805 = vlaneseq
    %v3806 = vshrl.u32 %v3805, 7
    %v3807 = vsub.s32 %v3804, %v3806
    %v3808 = vrot.slane %v3794, %v3807
    %v3809 = vcombine.low %v3784, %v3792
    %v3810 = vcombine.high %v3784, %v3792
    %v3812 = vunpack.c.l.s4 1934713408
    %v3813 = vunpack.c.0.s8 %v3812
    %v3814 = vlaneseq
    %v3815 = vshrl.u32 %v3814, 7
    %v3816 = vsub.s32 %v3813, %v3815
    %v3817 = vrot.slane %v3809, %v3816
    %v3819 = vunpack.c.l.s4 1934713408
    %v3820 = vunpack.c.0.s8 %v3819
    %v3821 = vlaneseq
    %v3822 = vshrl.u32 %v3821, 7
    %v3823 = vsub.s32 %v3820, %v3822
    %v3824 = vrot.slane %v3810, %v3823
    %v3825 = vcombine.low %v3801, %v3817
    %v3826 = vcombine.high %v3801, %v3817
    %v3827 = vcombine.low %v3808, %v3824
    %v3828 = vcombine.high %v3808, %v3824
    %v3829 = vcombine.low %v3597, %v3604
    %v3831 = vunpack.c.l.s4 1983009808
    %v3832 = vunpack.c.0.s8 %v3831
    %v3833 = vlaneseq
    %v3834 = vshrl.u32 %v3833, 7
    %v3835 = vsub.s32 %v3832, %v3834
    %v3836 = vrot.slane %v3829, %v3835
    %v3837 = vcombine.low %v3621, %v3622
    %v3839 = vunpack.c.l.s4 1983009808
    %v3840 = vunpack.c.0.s8 %v3839
    %v3841 = vlaneseq
    %v3842 = vshrl.u32 %v3841, 7
    %v3843 = vsub.s32 %v3840, %v3842
    %v3844 = vrot.slane %v3837, %v3843
    %v3845 = vcombine.low %v3613, %v3620
    %v3847 = vunpack.c.l.s4 1983009808
    %v3848 = vunpack.c.0.s8 %v3847
    %v3849 = vlaneseq
    %v3850 = vshrl.u32 %v3849, 7
    %v3851 = vsub.s32 %v3848, %v3850
    %v3852 = vrot.slane %v3845, %v3851
    %v3853 = vcombine.low %v3623, %v3624
    %v3855 = vunpack.c.l.s4 1983009808
    %v3856 = vunpack.c.0.s8 %v3855
    %v3857 = vlaneseq
    %v3858 = vshrl.u32 %v3857, 7
    %v3859 = vsub.s32 %v3856, %v3858
    %v3860 = vrot.slane %v3853, %v3859
    %v3861 = vcombine.low %v3836, %v3844
    %v3862 = vcombine.high %v3836, %v3844
    %v3864 = vunpack.c.l.s4 1934713408
    %v3865 = vunpack.c.0.s8 %v3864
    %v3866 = vlaneseq
    %v3867 = vshrl.u32 %v3866, 7
    %v3868 = vsub.s32 %v3865, %v3867
    %v3869 = vrot.slane %v3861, %v3868
    %v3871 = vunpack.c.l.s4 1934713408
    %v3872 = vunpack.c.0.s8 %v3871
    %v3873 = vlaneseq
    %v3874 = vshrl.u32 %v3873, 7
    %v3875 = vsub.s32 %v3872, %v3874
    %v3876 = vrot.slane %v3862, %v3875
    %v3877 = vcombine.low %v3852, %v3860
    %v3878 = vcombine.high %v3852, %v3860
    %v3880 = vunpack.c.l.s4 1934713408
    %v3881 = vunpack.c.0.s8 %v3880
    %v3882 = vlaneseq
    %v3883 = vshrl.u32 %v3882, 7
    %v3884 = vsub.s32 %v3881, %v3883
    %v3885 = vrot.slane %v3877, %v3884
    %v3887 = vunpack.c.l.s4 1934713408
    %v3888 = vunpack.c.0.s8 %v3887
    %v3889 = vlaneseq
    %v3890 = vshrl.u32 %v3889, 7
    %v3891 = vsub.s32 %v3888, %v3890
    %v3892 = vrot.slane %v3878, %v3891
    %v3893 = vcombine.low %v3869, %v3885
    %v3894 = vcombine.high %v3869, %v3885
    %v3895 = vcombine.low %v3876, %v3892
    %v3896 = vcombine.high %v3876, %v3892
    %v3897 = vcombine.low %v3665, %v3672
    %v3899 = vunpack.c.l.s4 1983009808
    %v3900 = vunpack.c.0.s8 %v3899
    %v3901 = vlaneseq
    %v3902 = vshrl.u32 %v3901, 7
    %v3903 = vsub.s32 %v3900, %v3902
    %v3904 = vrot.slane %v3897, %v3903
    %v3905 = vcombine.low %v3689, %v3690
    %v3907 = vunpack.c.l.s4 1983009808
    %v3908 = vunpack.c.0.s8 %v3907
    %v3909 = vlaneseq
    %v3910 = vshrl.u32 %v3909, 7
    %v3911 = vsub.s32 %v3908, %v3910
    %v3912 = vrot.slane %v3905, %v3911
    %v3913 = vcombine.low %v3681, %v3688
    %v3915 = vunpack.c.l.s4 1983009808
    %v3916 = vunpack.c.0.s8 %v3915
    %v3917 = vlaneseq
    %v3918 = vshrl.u32 %v3917, 7
    %v3919 = vsub.s32 %v3916, %v3918
    %v3920 = vrot.slane %v3913, %v3919
    %v3921 = vcombine.low %v3691, %v3692
    %v3923 = vunpack.c.l.s4 1983009808
    %v3924 = vunpack.c.0.s8 %v3923
    %v3925 = vlaneseq
    %v3926 = vshrl.u32 %v3925, 7
    %v3927 = vsub.s32 %v3924, %v3926
    %v3928 = vrot.slane %v3921, %v3927
    %v3929 = vcombine.low %v3904, %v3912
    %v3930 = vcombine.high %v3904, %v3912
    %v3932 = vunpack.c.l.s4 1934713408
    %v3933 = vunpack.c.0.s8 %v3932
    %v3934 = vlaneseq
    %v3935 = vshrl.u32 %v3934, 7
    %v3936 = vsub.s32 %v3933, %v3935
    %v3937 = vrot.slane %v3929, %v3936
    %v3939 = vunpack.c.l.s4 1934713408
    %v3940 = vunpack.c.0.s8 %v3939
    %v3941 = vlaneseq
    %v3942 = vshrl.u32 %v3941, 7
    %v3943 = vsub.s32 %v3940, %v3942
    %v3944 = vrot.slane %v3930, %v3943
    %v3945 = vcombine.low %v3920, %v3928
    %v3946 = vcombine.high %v3920, %v3928
    %v3948 = vunpack.c.l.s4 1934713408
    %v3949 = vunpack.c.0.s8 %v3948
    %v3950 = vlaneseq
    %v3951 = vshrl.u32 %v3950, 7
    %v3952 = vsub.s32 %v3949, %v3951
    %v3953 = vrot.slane %v3945, %v3952
    %v3955 = vunpack.c.l.s4 1934713408
    %v3956 = vunpack.c.0.s8 %v3955
    %v3957 = vlaneseq
    %v3958 = vshrl.u32 %v3957, 7
    %v3959 = vsub.s32 %v3956, %v3958
    %v3960 = vrot.slane %v3946, %v3959
    %v3961 = vcombine.low %v3937, %v3953
    %v3962 = vcombine.high %v3937, %v3953
    %v3963 = vcombine.low %v3944, %v3960
    %v3964 = vcombine.high %v3944, %v3960
    %v3965 = vpack.c.bf16 %v2717, %v2717
    %v3966 = vpack.c.bf16 %v2718, %v2718
    %v3967 = vpack.c.bf16 %v2719, %v2719
    %v3968 = vpack.c.bf16 %v2720, %v2720
    %v3969 = vpack.c.bf16 %v2785, %v2785
    %v3970 = vpack.c.bf16 %v2786, %v2786
    %v3971 = vpack.c.bf16 %v2787, %v2787
    %v3972 = vpack.c.bf16 %v2788, %v2788
    %v3973 = vpack.c.bf16 %v3233, %v3165
    %v3974 = vpack.c.bf16 %v3234, %v3166
    %v3975 = vpack.c.bf16 %v3235, %v3167
    %v3976 = vpack.c.bf16 %v3236, %v3168
    %v3977 = vpack.c.bf16 %v3369, %v3301
    %v3978 = vpack.c.bf16 %v3370, %v3302
    %v3979 = vpack.c.bf16 %v3371, %v3303
    %v3980 = vpack.c.bf16 %v3372, %v3304
    %v3983 = vlaneseq
    %v3984 = vshrl.u32 %v3983, 7
    %v3985 = vsub.s32 0, %v3984
    %v3986 = vrot.slane %v111, %v3985
    %v3987 = vlaneseq
    %v3988 = vshrl.u32 %v3987, 7
    %v3989 = vsub.s32 0, %v3988
    %v3990 = vrot.slane %v112, %v3989
    %v3994 = vsel %vm1112, %v3965, 0
    %v3997 = vsel %vm1112, %v3973, 0
    %3999 = vmatprep.subr.bf16.mxu0 0
    %4000 = vmatpush1.bf16.xpose.msra.mxu0 %v3997
    %4001 = vmatprep.subr.bf16.mxu0 0
    %4002 = vmatpush1.bf16.xpose.msra.mxu0 0
    %4003 = vmatprep.subr.bf16.mxu0 0
    %4004 = vmatpush1.bf16.xpose.msra.mxu0 0
    %4005 = vmatprep.subr.bf16.mxu0 0
    %4006 = vmatpush1.bf16.xpose.msra.mxu0 0
    %4007 = vmatprep.subr.bf16.mxu0 0
    %4008 = vmatpush1.bf16.xpose.msra.mxu0 0
    %4009 = vmatprep.subr.bf16.mxu0 0
    %4010 = vmatpush1.bf16.xpose.msra.mxu0 0
    %4011 = vmatprep.subr.bf16.mxu0 0
    %4012 = vmatpush1.bf16.xpose.msra.mxu0 0
    %4013 = vmatprep.subr.bf16.mxu0 0
    %4014 = vmatpush1.bf16.xpose.msra.mxu0 0
    %4015 = vmatprep.subr.bf16.mxu0 0
    %4016 = vmatpush1.bf16.xpose.msra.mxu0 0
    %4017 = vmatprep.subr.bf16.mxu0 0
    %4018 = vmatpush1.bf16.xpose.msra.mxu0 0
    %4019 = vmatprep.subr.bf16.mxu0 0
    %4020 = vmatpush1.bf16.xpose.msra.mxu0 0
    %4021 = vmatprep.subr.bf16.mxu0 0
    %4022 = vmatpush1.bf16.xpose.msra.mxu0 0
    %4023 = vmatprep.subr.bf16.mxu0 0
    %4024 = vmatpush1.bf16.xpose.msra.mxu0 0
    %4025 = vmatprep.subr.bf16.mxu0 0
    %4026 = vmatpush1.bf16.xpose.msra.mxu0 0
    %4027 = vmatprep.subr.bf16.mxu0 0
    %4028 = vmatpush1.bf16.xpose.msra.mxu0 0
    %4029 = vmatprep.subr.bf16.mxu0 0
    %4030 = vmatpush1.bf16.xpose.msra.mxu0 0
    %4031 = vmatprep.mubr.bf16.mxu0 0
    %4032 = vmatmul.mubr.bf16.gmra.mrb[0].mxu0 %v3994
    %v4033 = vpop.f32.mrb[0].mxu0
    %v4034 = vadd.f32 %v3986, %v4033
    %v4035 = vpop.f32.mrb[0].mxu0
    %v4036 = vpop.f32.mrb[0].mxu0
    %v4037 = vpop.f32.mrb[0].mxu0
    %4038 = vdwg.mxu0
    %v4040 = vsel %vm1112, %v3966, 0
    %v4043 = vsel %vm1112, %v3974, 0
    %4045 = vmatprep.subr.bf16.mxu0 0
    %4046 = vmatpush1.bf16.xpose.msra.mxu0 %v4043
    %4047 = vmatprep.subr.bf16.mxu0 0
    %4048 = vmatpush1.bf16.xpose.msra.mxu0 0
    %4049 = vmatprep.subr.bf16.mxu0 0
    %4050 = vmatpush1.bf16.xpose.msra.mxu0 0
    %4051 = vmatprep.subr.bf16.mxu0 0
    %4052 = vmatpush1.bf16.xpose.msra.mxu0 0
    %4053 = vmatprep.subr.bf16.mxu0 0
    %4054 = vmatpush1.bf16.xpose.msra.mxu0 0
    %4055 = vmatprep.subr.bf16.mxu0 0
    %4056 = vmatpush1.bf16.xpose.msra.mxu0 0
    %4057 = vmatprep.subr.bf16.mxu0 0
    %4058 = vmatpush1.bf16.xpose.msra.mxu0 0
    %4059 = vmatprep.subr.bf16.mxu0 0
    %4060 = vmatpush1.bf16.xpose.msra.mxu0 0
    %4061 = vmatprep.subr.bf16.mxu0 0
    %4062 = vmatpush1.bf16.xpose.msra.mxu0 0
    %4063 = vmatprep.subr.bf16.mxu0 0
    %4064 = vmatpush1.bf16.xpose.msra.mxu0 0
    %4065 = vmatprep.subr.bf16.mxu0 0
    %4066 = vmatpush1.bf16.xpose.msra.mxu0 0
    %4067 = vmatprep.subr.bf16.mxu0 0
    %4068 = vmatpush1.bf16.xpose.msra.mxu0 0
    %4069 = vmatprep.subr.bf16.mxu0 0
    %4070 = vmatpush1.bf16.xpose.msra.mxu0 0
    %4071 = vmatprep.subr.bf16.mxu0 0
    %4072 = vmatpush1.bf16.xpose.msra.mxu0 0
    %4073 = vmatprep.subr.bf16.mxu0 0
    %4074 = vmatpush1.bf16.xpose.msra.mxu0 0
    %4075 = vmatprep.subr.bf16.mxu0 0
    %4076 = vmatpush1.bf16.xpose.msra.mxu0 0
    %4077 = vmatprep.mubr.bf16.mxu0 0
    %4078 = vmatmul.mubr.bf16.gmra.mrb[0].mxu0 %v4040
    %v4079 = vpop.f32.mrb[0].mxu0
    %v4080 = vadd.f32 %v3986, %v4079
    %v4081 = vpop.f32.mrb[0].mxu0
    %v4082 = vpop.f32.mrb[0].mxu0
    %v4083 = vpop.f32.mrb[0].mxu0
    %4084 = vdwg.mxu0
    %v4086 = vsel %vm1112, %v3967, 0
    %v4089 = vsel %vm1112, %v3975, 0
    %4091 = vmatprep.subr.bf16.mxu0 0
    %4092 = vmatpush1.bf16.xpose.msra.mxu0 %v4089
    %4093 = vmatprep.subr.bf16.mxu0 0
    %4094 = vmatpush1.bf16.xpose.msra.mxu0 0
    %4095 = vmatprep.subr.bf16.mxu0 0
    %4096 = vmatpush1.bf16.xpose.msra.mxu0 0
    %4097 = vmatprep.subr.bf16.mxu0 0
    %4098 = vmatpush1.bf16.xpose.msra.mxu0 0
    %4099 = vmatprep.subr.bf16.mxu0 0
    %4100 = vmatpush1.bf16.xpose.msra.mxu0 0
    %4101 = vmatprep.subr.bf16.mxu0 0
    %4102 = vmatpush1.bf16.xpose.msra.mxu0 0
    %4103 = vmatprep.subr.bf16.mxu0 0
    %4104 = vmatpush1.bf16.xpose.msra.mxu0 0
    %4105 = vmatprep.subr.bf16.mxu0 0
    %4106 = vmatpush1.bf16.xpose.msra.mxu0 0
    %4107 = vmatprep.subr.bf16.mxu0 0
    %4108 = vmatpush1.bf16.xpose.msra.mxu0 0
    %4109 = vmatprep.subr.bf16.mxu0 0
    %4110 = vmatpush1.bf16.xpose.msra.mxu0 0
    %4111 = vmatprep.subr.bf16.mxu0 0
    %4112 = vmatpush1.bf16.xpose.msra.mxu0 0
    %4113 = vmatprep.subr.bf16.mxu0 0
    %4114 = vmatpush1.bf16.xpose.msra.mxu0 0
    %4115 = vmatprep.subr.bf16.mxu0 0
    %4116 = vmatpush1.bf16.xpose.msra.mxu0 0
    %4117 = vmatprep.subr.bf16.mxu0 0
    %4118 = vmatpush1.bf16.xpose.msra.mxu0 0
    %4119 = vmatprep.subr.bf16.mxu0 0
    %4120 = vmatpush1.bf16.xpose.msra.mxu0 0
    %4121 = vmatprep.subr.bf16.mxu0 0
    %4122 = vmatpush1.bf16.xpose.msra.mxu0 0
    %4123 = vmatprep.mubr.bf16.mxu0 0
    %4124 = vmatmul.mubr.bf16.gmra.mrb[0].mxu0 %v4086
    %v4125 = vpop.f32.mrb[0].mxu0
    %v4126 = vadd.f32 %v3986, %v4125
    %v4127 = vpop.f32.mrb[0].mxu0
    %v4128 = vpop.f32.mrb[0].mxu0
    %v4129 = vpop.f32.mrb[0].mxu0
    %4130 = vdwg.mxu0
    %v4132 = vsel %vm1112, %v3968, 0
    %v4135 = vsel %vm1112, %v3976, 0
    %4137 = vmatprep.subr.bf16.mxu0 0
    %4138 = vmatpush1.bf16.xpose.msra.mxu0 %v4135
    %4139 = vmatprep.subr.bf16.mxu0 0
    %4140 = vmatpush1.bf16.xpose.msra.mxu0 0
    %4141 = vmatprep.subr.bf16.mxu0 0
    %4142 = vmatpush1.bf16.xpose.msra.mxu0 0
    %4143 = vmatprep.subr.bf16.mxu0 0
    %4144 = vmatpush1.bf16.xpose.msra.mxu0 0
    %4145 = vmatprep.subr.bf16.mxu0 0
    %4146 = vmatpush1.bf16.xpose.msra.mxu0 0
    %4147 = vmatprep.subr.bf16.mxu0 0
    %4148 = vmatpush1.bf16.xpose.msra.mxu0 0
    %4149 = vmatprep.subr.bf16.mxu0 0
    %4150 = vmatpush1.bf16.xpose.msra.mxu0 0
    %4151 = vmatprep.subr.bf16.mxu0 0
    %4152 = vmatpush1.bf16.xpose.msra.mxu0 0
    %4153 = vmatprep.subr.bf16.mxu0 0
    %4154 = vmatpush1.bf16.xpose.msra.mxu0 0
    %4155 = vmatprep.subr.bf16.mxu0 0
    %4156 = vmatpush1.bf16.xpose.msra.mxu0 0
    %4157 = vmatprep.subr.bf16.mxu0 0
    %4158 = vmatpush1.bf16.xpose.msra.mxu0 0
    %4159 = vmatprep.subr.bf16.mxu0 0
    %4160 = vmatpush1.bf16.xpose.msra.mxu0 0
    %4161 = vmatprep.subr.bf16.mxu0 0
    %4162 = vmatpush1.bf16.xpose.msra.mxu0 0
    %4163 = vmatprep.subr.bf16.mxu0 0
    %4164 = vmatpush1.bf16.xpose.msra.mxu0 0
    %4165 = vmatprep.subr.bf16.mxu0 0
    %4166 = vmatpush1.bf16.xpose.msra.mxu0 0
    %4167 = vmatprep.subr.bf16.mxu0 0
    %4168 = vmatpush1.bf16.xpose.msra.mxu0 0
    %4169 = vmatprep.mubr.bf16.mxu0 0
    %4170 = vmatmul.mubr.bf16.gmra.mrb[0].mxu0 %v4132
    %v4171 = vpop.f32.mrb[0].mxu0
    %v4172 = vadd.f32 %v3986, %v4171
    %v4173 = vpop.f32.mrb[0].mxu0
    %v4174 = vpop.f32.mrb[0].mxu0
    %v4175 = vpop.f32.mrb[0].mxu0
    %4176 = vdwg.mxu0
    %v4178 = vsel %vm1112, %v3969, 0
    %v4181 = vsel %vm1112, %v3977, 0
    %4183 = vmatprep.subr.bf16.mxu0 0
    %4184 = vmatpush1.bf16.xpose.msra.mxu0 %v4181
    %4185 = vmatprep.subr.bf16.mxu0 0
    %4186 = vmatpush1.bf16.xpose.msra.mxu0 0
    %4187 = vmatprep.subr.bf16.mxu0 0
    %4188 = vmatpush1.bf16.xpose.msra.mxu0 0
    %4189 = vmatprep.subr.bf16.mxu0 0
    %4190 = vmatpush1.bf16.xpose.msra.mxu0 0
    %4191 = vmatprep.subr.bf16.mxu0 0
    %4192 = vmatpush1.bf16.xpose.msra.mxu0 0
    %4193 = vmatprep.subr.bf16.mxu0 0
    %4194 = vmatpush1.bf16.xpose.msra.mxu0 0
    %4195 = vmatprep.subr.bf16.mxu0 0
    %4196 = vmatpush1.bf16.xpose.msra.mxu0 0
    %4197 = vmatprep.subr.bf16.mxu0 0
    %4198 = vmatpush1.bf16.xpose.msra.mxu0 0
    %4199 = vmatprep.subr.bf16.mxu0 0
    %4200 = vmatpush1.bf16.xpose.msra.mxu0 0
    %4201 = vmatprep.subr.bf16.mxu0 0
    %4202 = vmatpush1.bf16.xpose.msra.mxu0 0
    %4203 = vmatprep.subr.bf16.mxu0 0
    %4204 = vmatpush1.bf16.xpose.msra.mxu0 0
    %4205 = vmatprep.subr.bf16.mxu0 0
    %4206 = vmatpush1.bf16.xpose.msra.mxu0 0
    %4207 = vmatprep.subr.bf16.mxu0 0
    %4208 = vmatpush1.bf16.xpose.msra.mxu0 0
    %4209 = vmatprep.subr.bf16.mxu0 0
    %4210 = vmatpush1.bf16.xpose.msra.mxu0 0
    %4211 = vmatprep.subr.bf16.mxu0 0
    %4212 = vmatpush1.bf16.xpose.msra.mxu0 0
    %4213 = vmatprep.subr.bf16.mxu0 0
    %4214 = vmatpush1.bf16.xpose.msra.mxu0 0
    %4215 = vmatprep.mubr.bf16.mxu0 0
    %4216 = vmatmul.mubr.bf16.gmra.mrb[0].mxu0 %v4178
    %v4217 = vpop.f32.mrb[0].mxu0
    %v4218 = vadd.f32 %v3990, %v4217
    %v4219 = vpop.f32.mrb[0].mxu0
    %v4220 = vpop.f32.mrb[0].mxu0
    %v4221 = vpop.f32.mrb[0].mxu0
    %4222 = vdwg.mxu0
    %v4224 = vsel %vm1112, %v3970, 0
    %v4227 = vsel %vm1112, %v3978, 0
    %4229 = vmatprep.subr.bf16.mxu0 0
    %4230 = vmatpush1.bf16.xpose.msra.mxu0 %v4227
    %4231 = vmatprep.subr.bf16.mxu0 0
    %4232 = vmatpush1.bf16.xpose.msra.mxu0 0
    %4233 = vmatprep.subr.bf16.mxu0 0
    %4234 = vmatpush1.bf16.xpose.msra.mxu0 0
    %4235 = vmatprep.subr.bf16.mxu0 0
    %4236 = vmatpush1.bf16.xpose.msra.mxu0 0
    %4237 = vmatprep.subr.bf16.mxu0 0
    %4238 = vmatpush1.bf16.xpose.msra.mxu0 0
    %4239 = vmatprep.subr.bf16.mxu0 0
    %4240 = vmatpush1.bf16.xpose.msra.mxu0 0
    %4241 = vmatprep.subr.bf16.mxu0 0
    %4242 = vmatpush1.bf16.xpose.msra.mxu0 0
    %4243 = vmatprep.subr.bf16.mxu0 0
    %4244 = vmatpush1.bf16.xpose.msra.mxu0 0
    %4245 = vmatprep.subr.bf16.mxu0 0
    %4246 = vmatpush1.bf16.xpose.msra.mxu0 0
    %4247 = vmatprep.subr.bf16.mxu0 0
    %4248 = vmatpush1.bf16.xpose.msra.mxu0 0
    %4249 = vmatprep.subr.bf16.mxu0 0
    %4250 = vmatpush1.bf16.xpose.msra.mxu0 0
    %4251 = vmatprep.subr.bf16.mxu0 0
    %4252 = vmatpush1.bf16.xpose.msra.mxu0 0
    %4253 = vmatprep.subr.bf16.mxu0 0
    %4254 = vmatpush1.bf16.xpose.msra.mxu0 0
    %4255 = vmatprep.subr.bf16.mxu0 0
    %4256 = vmatpush1.bf16.xpose.msra.mxu0 0
    %4257 = vmatprep.subr.bf16.mxu0 0
    %4258 = vmatpush1.bf16.xpose.msra.mxu0 0
    %4259 = vmatprep.subr.bf16.mxu0 0
    %4260 = vmatpush1.bf16.xpose.msra.mxu0 0
    %4261 = vmatprep.mubr.bf16.mxu0 0
    %4262 = vmatmul.mubr.bf16.gmra.mrb[0].mxu0 %v4224
    %v4263 = vpop.f32.mrb[0].mxu0
    %v4264 = vadd.f32 %v3990, %v4263
    %v4265 = vpop.f32.mrb[0].mxu0
    %v4266 = vpop.f32.mrb[0].mxu0
    %v4267 = vpop.f32.mrb[0].mxu0
    %4268 = vdwg.mxu0
    %v4270 = vsel %vm1112, %v3971, 0
    %v4273 = vsel %vm1112, %v3979, 0
    %4275 = vmatprep.subr.bf16.mxu0 0
    %4276 = vmatpush1.bf16.xpose.msra.mxu0 %v4273
    %4277 = vmatprep.subr.bf16.mxu0 0
    %4278 = vmatpush1.bf16.xpose.msra.mxu0 0
    %4279 = vmatprep.subr.bf16.mxu0 0
    %4280 = vmatpush1.bf16.xpose.msra.mxu0 0
    %4281 = vmatprep.subr.bf16.mxu0 0
    %4282 = vmatpush1.bf16.xpose.msra.mxu0 0
    %4283 = vmatprep.subr.bf16.mxu0 0
    %4284 = vmatpush1.bf16.xpose.msra.mxu0 0
    %4285 = vmatprep.subr.bf16.mxu0 0
    %4286 = vmatpush1.bf16.xpose.msra.mxu0 0
    %4287 = vmatprep.subr.bf16.mxu0 0
    %4288 = vmatpush1.bf16.xpose.msra.mxu0 0
    %4289 = vmatprep.subr.bf16.mxu0 0
    %4290 = vmatpush1.bf16.xpose.msra.mxu0 0
    %4291 = vmatprep.subr.bf16.mxu0 0
    %4292 = vmatpush1.bf16.xpose.msra.mxu0 0
    %4293 = vmatprep.subr.bf16.mxu0 0
    %4294 = vmatpush1.bf16.xpose.msra.mxu0 0
    %4295 = vmatprep.subr.bf16.mxu0 0
    %4296 = vmatpush1.bf16.xpose.msra.mxu0 0
    %4297 = vmatprep.subr.bf16.mxu0 0
    %4298 = vmatpush1.bf16.xpose.msra.mxu0 0
    %4299 = vmatprep.subr.bf16.mxu0 0
    %4300 = vmatpush1.bf16.xpose.msra.mxu0 0
    %4301 = vmatprep.subr.bf16.mxu0 0
    %4302 = vmatpush1.bf16.xpose.msra.mxu0 0
    %4303 = vmatprep.subr.bf16.mxu0 0
    %4304 = vmatpush1.bf16.xpose.msra.mxu0 0
    %4305 = vmatprep.subr.bf16.mxu0 0
    %4306 = vmatpush1.bf16.xpose.msra.mxu0 0
    %4307 = vmatprep.mubr.bf16.mxu0 0
    %4308 = vmatmul.mubr.bf16.gmra.mrb[0].mxu0 %v4270
    %v4309 = vpop.f32.mrb[0].mxu0
    %v4310 = vadd.f32 %v3990, %v4309
    %v4311 = vpop.f32.mrb[0].mxu0
    %v4312 = vpop.f32.mrb[0].mxu0
    %v4313 = vpop.f32.mrb[0].mxu0
    %4314 = vdwg.mxu0
    %v4316 = vsel %vm1112, %v3972, 0
    %v4319 = vsel %vm1112, %v3980, 0
    %4321 = vmatprep.subr.bf16.mxu0 0
    %4322 = vmatpush1.bf16.xpose.msra.mxu0 %v4319
    %4323 = vmatprep.subr.bf16.mxu0 0
    %4324 = vmatpush1.bf16.xpose.msra.mxu0 0
    %4325 = vmatprep.subr.bf16.mxu0 0
    %4326 = vmatpush1.bf16.xpose.msra.mxu0 0
    %4327 = vmatprep.subr.bf16.mxu0 0
    %4328 = vmatpush1.bf16.xpose.msra.mxu0 0
    %4329 = vmatprep.subr.bf16.mxu0 0
    %4330 = vmatpush1.bf16.xpose.msra.mxu0 0
    %4331 = vmatprep.subr.bf16.mxu0 0
    %4332 = vmatpush1.bf16.xpose.msra.mxu0 0
    %4333 = vmatprep.subr.bf16.mxu0 0
    %4334 = vmatpush1.bf16.xpose.msra.mxu0 0
    %4335 = vmatprep.subr.bf16.mxu0 0
    %4336 = vmatpush1.bf16.xpose.msra.mxu0 0
    %4337 = vmatprep.subr.bf16.mxu0 0
    %4338 = vmatpush1.bf16.xpose.msra.mxu0 0
    %4339 = vmatprep.subr.bf16.mxu0 0
    %4340 = vmatpush1.bf16.xpose.msra.mxu0 0
    %4341 = vmatprep.subr.bf16.mxu0 0
    %4342 = vmatpush1.bf16.xpose.msra.mxu0 0
    %4343 = vmatprep.subr.bf16.mxu0 0
    %4344 = vmatpush1.bf16.xpose.msra.mxu0 0
    %4345 = vmatprep.subr.bf16.mxu0 0
    %4346 = vmatpush1.bf16.xpose.msra.mxu0 0
    %4347 = vmatprep.subr.bf16.mxu0 0
    %4348 = vmatpush1.bf16.xpose.msra.mxu0 0
    %4349 = vmatprep.subr.bf16.mxu0 0
    %4350 = vmatpush1.bf16.xpose.msra.mxu0 0
    %4351 = vmatprep.subr.bf16.mxu0 0
    %4352 = vmatpush1.bf16.xpose.msra.mxu0 0
    %4353 = vmatprep.mubr.bf16.mxu0 0
    %4354 = vmatmul.mubr.bf16.gmra.mrb[0].mxu0 %v4316
    %v4355 = vpop.f32.mrb[0].mxu0
    %v4356 = vadd.f32 %v3990, %v4355
    %v4357 = vpop.f32.mrb[0].mxu0
    %v4358 = vpop.f32.mrb[0].mxu0
    %v4359 = vpop.f32.mrb[0].mxu0
    %4360 = vdwg.mxu0
    %v4361 = vsel %vm2252, %v4034, -inf
    %4362 = vmax.xlane.f32.xlu0 %v4361
    %v4363 = vpop.xlane.xlu0 %4362
    %v4364 = vsel %vm2252, %v4080, -inf
    %4365 = vmax.xlane.f32.xlu0 %v4364
    %v4366 = vpop.xlane.xlu0 %4365
    %v4367 = vsel %vm2252, %v4126, -inf
    %4368 = vmax.xlane.f32.xlu0 %v4367
    %v4369 = vpop.xlane.xlu0 %4368
    %v4370 = vsel %vm2252, %v4172, -inf
    %4371 = vmax.xlane.f32.xlu0 %v4370
    %v4372 = vpop.xlane.xlu0 %4371
    %v4373 = vsel %vm2252, %v4218, -inf
    %4374 = vmax.xlane.f32.xlu0 %v4373
    %v4375 = vpop.xlane.xlu0 %4374
    %v4376 = vsel %vm2252, %v4264, -inf
    %4377 = vmax.xlane.f32.xlu0 %v4376
    %v4378 = vpop.xlane.xlu0 %4377
    %v4379 = vsel %vm2252, %v4310, -inf
    %4380 = vmax.xlane.f32.xlu0 %v4379
    %v4381 = vpop.xlane.xlu0 %4380
    %v4382 = vsel %vm2252, %v4356, -inf
    %4383 = vmax.xlane.f32.xlu0 %v4382
    %v4384 = vpop.xlane.xlu0 %4383
    %v4385 = vsub.f32 %v4034, %v4363
    %v4386 = vsub.f32 %v4080, %v4366
    %v4387 = vsub.f32 %v4126, %v4369
    %v4388 = vsub.f32 %v4172, %v4372
    %v4389 = vsub.f32 %v4218, %v4375
    %v4390 = vsub.f32 %v4264, %v4378
    %v4391 = vsub.f32 %v4310, %v4381
    %v4392 = vsub.f32 %v4356, %v4384
    %v4393 = vmul.f32 %v4385, 1.442695
    %v4394 = vpow.pop %v4393
    %v4395 = vmul.f32 %v4386, 1.442695
    %v4396 = vpow.pop %v4395
    %v4397 = vmul.f32 %v4387, 1.442695
    %v4398 = vpow.pop %v4397
    %v4399 = vmul.f32 %v4388, 1.442695
    %v4400 = vpow.pop %v4399
    %v4401 = vmul.f32 %v4389, 1.442695
    %v4402 = vpow.pop %v4401
    %v4403 = vmul.f32 %v4390, 1.442695
    %v4404 = vpow.pop %v4403
    %v4405 = vmul.f32 %v4391, 1.442695
    %v4406 = vpow.pop %v4405
    %v4407 = vmul.f32 %v4392, 1.442695
    %v4408 = vpow.pop %v4407
    %v4409 = vsel %vm2252, %v4394, 0.0
    %4410 = vadd.xlane.f32.xlu0 %v4409
    %v4411 = vpop.xlane.xlu0 %4410
    %v4412 = vsel %vm2252, %v4396, 0.0
    %4413 = vadd.xlane.f32.xlu0 %v4412
    %v4414 = vpop.xlane.xlu0 %4413
    %v4415 = vsel %vm2252, %v4398, 0.0
    %4416 = vadd.xlane.f32.xlu0 %v4415
    %v4417 = vpop.xlane.xlu0 %4416
    %v4418 = vsel %vm2252, %v4400, 0.0
    %4419 = vadd.xlane.f32.xlu0 %v4418
    %v4420 = vpop.xlane.xlu0 %4419
    %v4421 = vsel %vm2252, %v4402, 0.0
    %4422 = vadd.xlane.f32.xlu0 %v4421
    %v4423 = vpop.xlane.xlu0 %4422
    %v4424 = vsel %vm2252, %v4404, 0.0
    %4425 = vadd.xlane.f32.xlu0 %v4424
    %v4426 = vpop.xlane.xlu0 %4425
    %v4427 = vsel %vm2252, %v4406, 0.0
    %4428 = vadd.xlane.f32.xlu0 %v4427
    %v4429 = vpop.xlane.xlu0 %4428
    %v4430 = vsel %vm2252, %v4408, 0.0
    %4431 = vadd.xlane.f32.xlu0 %v4430
    %v4432 = vpop.xlane.xlu0 %4431
    %v4433 = vrcp.pop %v4411
    %v4434 = vrcp.pop %v4414
    %v4435 = vrcp.pop %v4417
    %v4436 = vrcp.pop %v4420
    %v4437 = vrcp.pop %v4423
    %v4438 = vrcp.pop %v4426
    %v4439 = vrcp.pop %v4429
    %v4440 = vrcp.pop %v4432
    %v4441 = vmul.f32 %v4394, %v4433
    %v4442 = vmul.f32 %v4396, %v4434
    %v4443 = vmul.f32 %v4398, %v4435
    %v4444 = vmul.f32 %v4400, %v4436
    %v4445 = vmul.f32 %v4402, %v4437
    %v4446 = vmul.f32 %v4404, %v4438
    %v4447 = vmul.f32 %v4406, %v4439
    %v4448 = vmul.f32 %v4408, %v4440
    %v4449 = vpack.c.bf16 %v4441, %v4441
    %v4450 = vpack.c.bf16 %v4442, %v4442
    %v4451 = vpack.c.bf16 %v4443, %v4443
    %v4452 = vpack.c.bf16 %v4444, %v4444
    %v4453 = vpack.c.bf16 %v4445, %v4445
    %v4454 = vpack.c.bf16 %v4446, %v4446
    %v4455 = vpack.c.bf16 %v4447, %v4447
    %v4456 = vpack.c.bf16 %v4448, %v4448
    %v4457 = vpack.c.bf16 %v3825, %v3757
    %v4458 = vpack.c.bf16 %v3826, %v3758
    %v4459 = vpack.c.bf16 %v3827, %v3759
    %v4460 = vpack.c.bf16 %v3828, %v3760
    %v4461 = vpack.c.bf16 %v3961, %v3893
    %v4462 = vpack.c.bf16 %v3962, %v3894
    %v4463 = vpack.c.bf16 %v3963, %v3895
    %v4464 = vpack.c.bf16 %v3964, %v3896
    %v4466 = vsel %vm2252, %v4449, 0
    %4468 = vmatprep.subr.bf16.mxu0 0
    %4469 = vmatpush1.bf16.msra.mxu0 %v4457
    %4470 = vmatprep.subr.bf16.mxu0 0
    %4471 = vmatpush1.bf16.msra.mxu0 0
    %4472 = vmatprep.subr.bf16.mxu0 0
    %4473 = vmatpush1.bf16.msra.mxu0 0
    %4474 = vmatprep.subr.bf16.mxu0 0
    %4475 = vmatpush1.bf16.msra.mxu0 0
    %4476 = vmatprep.subr.bf16.mxu0 0
    %4477 = vmatpush1.bf16.msra.mxu0 0
    %4478 = vmatprep.subr.bf16.mxu0 0
    %4479 = vmatpush1.bf16.msra.mxu0 0
    %4480 = vmatprep.subr.bf16.mxu0 0
    %4481 = vmatpush1.bf16.msra.mxu0 0
    %4482 = vmatprep.subr.bf16.mxu0 0
    %4483 = vmatpush1.bf16.msra.mxu0 0
    %4484 = vmatprep.subr.bf16.mxu0 0
    %4485 = vmatpush1.bf16.msra.mxu0 0
    %4486 = vmatprep.subr.bf16.mxu0 0
    %4487 = vmatpush1.bf16.msra.mxu0 0
    %4488 = vmatprep.subr.bf16.mxu0 0
    %4489 = vmatpush1.bf16.msra.mxu0 0
    %4490 = vmatprep.subr.bf16.mxu0 0
    %4491 = vmatpush1.bf16.msra.mxu0 0
    %4492 = vmatprep.subr.bf16.mxu0 0
    %4493 = vmatpush1.bf16.msra.mxu0 0
    %4494 = vmatprep.subr.bf16.mxu0 0
    %4495 = vmatpush1.bf16.msra.mxu0 0
    %4496 = vmatprep.subr.bf16.mxu0 0
    %4497 = vmatpush1.bf16.msra.mxu0 0
    %4498 = vmatprep.subr.bf16.mxu0 0
    %4499 = vmatpush1.bf16.msra.mxu0 0
    %4500 = vmatprep.mubr.bf16.mxu0 0
    %4501 = vmatmul.mubr.bf16.gmra.mrb[0].mxu0 %v4466
    %v4502 = vpop.f32.mrb[0].mxu0
    %v4503 = vadd.f32 0.0, %v4502
    %v4504 = vpop.f32.mrb[0].mxu0
    %v4505 = vpop.f32.mrb[0].mxu0
    %v4506 = vpop.f32.mrb[0].mxu0
    %4507 = vdwg.mxu0
    %v4509 = vsel %vm2252, %v4450, 0
    %4511 = vmatprep.subr.bf16.mxu0 0
    %4512 = vmatpush1.bf16.msra.mxu0 %v4458
    %4513 = vmatprep.subr.bf16.mxu0 0
    %4514 = vmatpush1.bf16.msra.mxu0 0
    %4515 = vmatprep.subr.bf16.mxu0 0
    %4516 = vmatpush1.bf16.msra.mxu0 0
    %4517 = vmatprep.subr.bf16.mxu0 0
    %4518 = vmatpush1.bf16.msra.mxu0 0
    %4519 = vmatprep.subr.bf16.mxu0 0
    %4520 = vmatpush1.bf16.msra.mxu0 0
    %4521 = vmatprep.subr.bf16.mxu0 0
    %4522 = vmatpush1.bf16.msra.mxu0 0
    %4523 = vmatprep.subr.bf16.mxu0 0
    %4524 = vmatpush1.bf16.msra.mxu0 0
    %4525 = vmatprep.subr.bf16.mxu0 0
    %4526 = vmatpush1.bf16.msra.mxu0 0
    %4527 = vmatprep.subr.bf16.mxu0 0
    %4528 = vmatpush1.bf16.msra.mxu0 0
    %4529 = vmatprep.subr.bf16.mxu0 0
    %4530 = vmatpush1.bf16.msra.mxu0 0
    %4531 = vmatprep.subr.bf16.mxu0 0
    %4532 = vmatpush1.bf16.msra.mxu0 0
    %4533 = vmatprep.subr.bf16.mxu0 0
    %4534 = vmatpush1.bf16.msra.mxu0 0
    %4535 = vmatprep.subr.bf16.mxu0 0
    %4536 = vmatpush1.bf16.msra.mxu0 0
    %4537 = vmatprep.subr.bf16.mxu0 0
    %4538 = vmatpush1.bf16.msra.mxu0 0
    %4539 = vmatprep.subr.bf16.mxu0 0
    %4540 = vmatpush1.bf16.msra.mxu0 0
    %4541 = vmatprep.subr.bf16.mxu0 0
    %4542 = vmatpush1.bf16.msra.mxu0 0
    %4543 = vmatprep.mubr.bf16.mxu0 0
    %4544 = vmatmul.mubr.bf16.gmra.mrb[0].mxu0 %v4509
    %v4545 = vpop.f32.mrb[0].mxu0
    %v4546 = vadd.f32 0.0, %v4545
    %v4547 = vpop.f32.mrb[0].mxu0
    %v4548 = vpop.f32.mrb[0].mxu0
    %v4549 = vpop.f32.mrb[0].mxu0
    %4550 = vdwg.mxu0
    %v4552 = vsel %vm2252, %v4451, 0
    %4554 = vmatprep.subr.bf16.mxu0 0
    %4555 = vmatpush1.bf16.msra.mxu0 %v4459
    %4556 = vmatprep.subr.bf16.mxu0 0
    %4557 = vmatpush1.bf16.msra.mxu0 0
    %4558 = vmatprep.subr.bf16.mxu0 0
    %4559 = vmatpush1.bf16.msra.mxu0 0
    %4560 = vmatprep.subr.bf16.mxu0 0
    %4561 = vmatpush1.bf16.msra.mxu0 0
    %4562 = vmatprep.subr.bf16.mxu0 0
    %4563 = vmatpush1.bf16.msra.mxu0 0
    %4564 = vmatprep.subr.bf16.mxu0 0
    %4565 = vmatpush1.bf16.msra.mxu0 0
    %4566 = vmatprep.subr.bf16.mxu0 0
    %4567 = vmatpush1.bf16.msra.mxu0 0
    %4568 = vmatprep.subr.bf16.mxu0 0
    %4569 = vmatpush1.bf16.msra.mxu0 0
    %4570 = vmatprep.subr.bf16.mxu0 0
    %4571 = vmatpush1.bf16.msra.mxu0 0
    %4572 = vmatprep.subr.bf16.mxu0 0
    %4573 = vmatpush1.bf16.msra.mxu0 0
    %4574 = vmatprep.subr.bf16.mxu0 0
    %4575 = vmatpush1.bf16.msra.mxu0 0
    %4576 = vmatprep.subr.bf16.mxu0 0
    %4577 = vmatpush1.bf16.msra.mxu0 0
    %4578 = vmatprep.subr.bf16.mxu0 0
    %4579 = vmatpush1.bf16.msra.mxu0 0
    %4580 = vmatprep.subr.bf16.mxu0 0
    %4581 = vmatpush1.bf16.msra.mxu0 0
    %4582 = vmatprep.subr.bf16.mxu0 0
    %4583 = vmatpush1.bf16.msra.mxu0 0
    %4584 = vmatprep.subr.bf16.mxu0 0
    %4585 = vmatpush1.bf16.msra.mxu0 0
    %4586 = vmatprep.mubr.bf16.mxu0 0
    %4587 = vmatmul.mubr.bf16.gmra.mrb[0].mxu0 %v4552
    %v4588 = vpop.f32.mrb[0].mxu0
    %v4589 = vadd.f32 0.0, %v4588
    %v4590 = vpop.f32.mrb[0].mxu0
    %v4591 = vpop.f32.mrb[0].mxu0
    %v4592 = vpop.f32.mrb[0].mxu0
    %4593 = vdwg.mxu0
    %v4595 = vsel %vm2252, %v4452, 0
    %4597 = vmatprep.subr.bf16.mxu0 0
    %4598 = vmatpush1.bf16.msra.mxu0 %v4460
    %4599 = vmatprep.subr.bf16.mxu0 0
    %4600 = vmatpush1.bf16.msra.mxu0 0
    %4601 = vmatprep.subr.bf16.mxu0 0
    %4602 = vmatpush1.bf16.msra.mxu0 0
    %4603 = vmatprep.subr.bf16.mxu0 0
    %4604 = vmatpush1.bf16.msra.mxu0 0
    %4605 = vmatprep.subr.bf16.mxu0 0
    %4606 = vmatpush1.bf16.msra.mxu0 0
    %4607 = vmatprep.subr.bf16.mxu0 0
    %4608 = vmatpush1.bf16.msra.mxu0 0
    %4609 = vmatprep.subr.bf16.mxu0 0
    %4610 = vmatpush1.bf16.msra.mxu0 0
    %4611 = vmatprep.subr.bf16.mxu0 0
    %4612 = vmatpush1.bf16.msra.mxu0 0
    %4613 = vmatprep.subr.bf16.mxu0 0
    %4614 = vmatpush1.bf16.msra.mxu0 0
    %4615 = vmatprep.subr.bf16.mxu0 0
    %4616 = vmatpush1.bf16.msra.mxu0 0
    %4617 = vmatprep.subr.bf16.mxu0 0
    %4618 = vmatpush1.bf16.msra.mxu0 0
    %4619 = vmatprep.subr.bf16.mxu0 0
    %4620 = vmatpush1.bf16.msra.mxu0 0
    %4621 = vmatprep.subr.bf16.mxu0 0
    %4622 = vmatpush1.bf16.msra.mxu0 0
    %4623 = vmatprep.subr.bf16.mxu0 0
    %4624 = vmatpush1.bf16.msra.mxu0 0
    %4625 = vmatprep.subr.bf16.mxu0 0
    %4626 = vmatpush1.bf16.msra.mxu0 0
    %4627 = vmatprep.subr.bf16.mxu0 0
    %4628 = vmatpush1.bf16.msra.mxu0 0
    %4629 = vmatprep.mubr.bf16.mxu0 0
    %4630 = vmatmul.mubr.bf16.gmra.mrb[0].mxu0 %v4595
    %v4631 = vpop.f32.mrb[0].mxu0
    %v4632 = vadd.f32 0.0, %v4631
    %v4633 = vpop.f32.mrb[0].mxu0
    %v4634 = vpop.f32.mrb[0].mxu0
    %v4635 = vpop.f32.mrb[0].mxu0
    %4636 = vdwg.mxu0
    %v4638 = vsel %vm2252, %v4453, 0
    %4640 = vmatprep.subr.bf16.mxu0 0
    %4641 = vmatpush1.bf16.msra.mxu0 %v4461
    %4642 = vmatprep.subr.bf16.mxu0 0
    %4643 = vmatpush1.bf16.msra.mxu0 0
    %4644 = vmatprep.subr.bf16.mxu0 0
    %4645 = vmatpush1.bf16.msra.mxu0 0
    %4646 = vmatprep.subr.bf16.mxu0 0
    %4647 = vmatpush1.bf16.msra.mxu0 0
    %4648 = vmatprep.subr.bf16.mxu0 0
    %4649 = vmatpush1.bf16.msra.mxu0 0
    %4650 = vmatprep.subr.bf16.mxu0 0
    %4651 = vmatpush1.bf16.msra.mxu0 0
    %4652 = vmatprep.subr.bf16.mxu0 0
    %4653 = vmatpush1.bf16.msra.mxu0 0
    %4654 = vmatprep.subr.bf16.mxu0 0
    %4655 = vmatpush1.bf16.msra.mxu0 0
    %4656 = vmatprep.subr.bf16.mxu0 0
    %4657 = vmatpush1.bf16.msra.mxu0 0
    %4658 = vmatprep.subr.bf16.mxu0 0
    %4659 = vmatpush1.bf16.msra.mxu0 0
    %4660 = vmatprep.subr.bf16.mxu0 0
    %4661 = vmatpush1.bf16.msra.mxu0 0
    %4662 = vmatprep.subr.bf16.mxu0 0
    %4663 = vmatpush1.bf16.msra.mxu0 0
    %4664 = vmatprep.subr.bf16.mxu0 0
    %4665 = vmatpush1.bf16.msra.mxu0 0
    %4666 = vmatprep.subr.bf16.mxu0 0
    %4667 = vmatpush1.bf16.msra.mxu0 0
    %4668 = vmatprep.subr.bf16.mxu0 0
    %4669 = vmatpush1.bf16.msra.mxu0 0
    %4670 = vmatprep.subr.bf16.mxu0 0
    %4671 = vmatpush1.bf16.msra.mxu0 0
    %4672 = vmatprep.mubr.bf16.mxu0 0
    %4673 = vmatmul.mubr.bf16.gmra.mrb[0].mxu0 %v4638
    %v4674 = vpop.f32.mrb[0].mxu0
    %v4675 = vadd.f32 0.0, %v4674
    %v4676 = vpop.f32.mrb[0].mxu0
    %v4677 = vpop.f32.mrb[0].mxu0
    %v4678 = vpop.f32.mrb[0].mxu0
    %4679 = vdwg.mxu0
    %v4681 = vsel %vm2252, %v4454, 0
    %4683 = vmatprep.subr.bf16.mxu0 0
    %4684 = vmatpush1.bf16.msra.mxu0 %v4462
    %4685 = vmatprep.subr.bf16.mxu0 0
    %4686 = vmatpush1.bf16.msra.mxu0 0
    %4687 = vmatprep.subr.bf16.mxu0 0
    %4688 = vmatpush1.bf16.msra.mxu0 0
    %4689 = vmatprep.subr.bf16.mxu0 0
    %4690 = vmatpush1.bf16.msra.mxu0 0
    %4691 = vmatprep.subr.bf16.mxu0 0
    %4692 = vmatpush1.bf16.msra.mxu0 0
    %4693 = vmatprep.subr.bf16.mxu0 0
    %4694 = vmatpush1.bf16.msra.mxu0 0
    %4695 = vmatprep.subr.bf16.mxu0 0
    %4696 = vmatpush1.bf16.msra.mxu0 0
    %4697 = vmatprep.subr.bf16.mxu0 0
    %4698 = vmatpush1.bf16.msra.mxu0 0
    %4699 = vmatprep.subr.bf16.mxu0 0
    %4700 = vmatpush1.bf16.msra.mxu0 0
    %4701 = vmatprep.subr.bf16.mxu0 0
    %4702 = vmatpush1.bf16.msra.mxu0 0
    %4703 = vmatprep.subr.bf16.mxu0 0
    %4704 = vmatpush1.bf16.msra.mxu0 0
    %4705 = vmatprep.subr.bf16.mxu0 0
    %4706 = vmatpush1.bf16.msra.mxu0 0
    %4707 = vmatprep.subr.bf16.mxu0 0
    %4708 = vmatpush1.bf16.msra.mxu0 0
    %4709 = vmatprep.subr.bf16.mxu0 0
    %4710 = vmatpush1.bf16.msra.mxu0 0
    %4711 = vmatprep.subr.bf16.mxu0 0
    %4712 = vmatpush1.bf16.msra.mxu0 0
    %4713 = vmatprep.subr.bf16.mxu0 0
    %4714 = vmatpush1.bf16.msra.mxu0 0
    %4715 = vmatprep.mubr.bf16.mxu0 0
    %4716 = vmatmul.mubr.bf16.gmra.mrb[0].mxu0 %v4681
    %v4717 = vpop.f32.mrb[0].mxu0
    %v4718 = vadd.f32 0.0, %v4717
    %v4719 = vpop.f32.mrb[0].mxu0
    %v4720 = vpop.f32.mrb[0].mxu0
    %v4721 = vpop.f32.mrb[0].mxu0
    %4722 = vdwg.mxu0
    %v4724 = vsel %vm2252, %v4455, 0
    %4726 = vmatprep.subr.bf16.mxu0 0
    %4727 = vmatpush1.bf16.msra.mxu0 %v4463
    %4728 = vmatprep.subr.bf16.mxu0 0
    %4729 = vmatpush1.bf16.msra.mxu0 0
    %4730 = vmatprep.subr.bf16.mxu0 0
    %4731 = vmatpush1.bf16.msra.mxu0 0
    %4732 = vmatprep.subr.bf16.mxu0 0
    %4733 = vmatpush1.bf16.msra.mxu0 0
    %4734 = vmatprep.subr.bf16.mxu0 0
    %4735 = vmatpush1.bf16.msra.mxu0 0
    %4736 = vmatprep.subr.bf16.mxu0 0
    %4737 = vmatpush1.bf16.msra.mxu0 0
    %4738 = vmatprep.subr.bf16.mxu0 0
    %4739 = vmatpush1.bf16.msra.mxu0 0
    %4740 = vmatprep.subr.bf16.mxu0 0
    %4741 = vmatpush1.bf16.msra.mxu0 0
    %4742 = vmatprep.subr.bf16.mxu0 0
    %4743 = vmatpush1.bf16.msra.mxu0 0
    %4744 = vmatprep.subr.bf16.mxu0 0
    %4745 = vmatpush1.bf16.msra.mxu0 0
    %4746 = vmatprep.subr.bf16.mxu0 0
    %4747 = vmatpush1.bf16.msra.mxu0 0
    %4748 = vmatprep.subr.bf16.mxu0 0
    %4749 = vmatpush1.bf16.msra.mxu0 0
    %4750 = vmatprep.subr.bf16.mxu0 0
    %4751 = vmatpush1.bf16.msra.mxu0 0
    %4752 = vmatprep.subr.bf16.mxu0 0
    %4753 = vmatpush1.bf16.msra.mxu0 0
    %4754 = vmatprep.subr.bf16.mxu0 0
    %4755 = vmatpush1.bf16.msra.mxu0 0
    %4756 = vmatprep.subr.bf16.mxu0 0
    %4757 = vmatpush1.bf16.msra.mxu0 0
    %4758 = vmatprep.mubr.bf16.mxu0 0
    %4759 = vmatmul.mubr.bf16.gmra.mrb[0].mxu0 %v4724
    %v4760 = vpop.f32.mrb[0].mxu0
    %v4761 = vadd.f32 0.0, %v4760
    %v4762 = vpop.f32.mrb[0].mxu0
    %v4763 = vpop.f32.mrb[0].mxu0
    %v4764 = vpop.f32.mrb[0].mxu0
    %4765 = vdwg.mxu0
    %v4767 = vsel %vm2252, %v4456, 0
    %4769 = vmatprep.subr.bf16.mxu0 0
    %4770 = vmatpush1.bf16.msra.mxu0 %v4464
    %4771 = vmatprep.subr.bf16.mxu0 0
    %4772 = vmatpush1.bf16.msra.mxu0 0
    %4773 = vmatprep.subr.bf16.mxu0 0
    %4774 = vmatpush1.bf16.msra.mxu0 0
    %4775 = vmatprep.subr.bf16.mxu0 0
    %4776 = vmatpush1.bf16.msra.mxu0 0
    %4777 = vmatprep.subr.bf16.mxu0 0
    %4778 = vmatpush1.bf16.msra.mxu0 0
    %4779 = vmatprep.subr.bf16.mxu0 0
    %4780 = vmatpush1.bf16.msra.mxu0 0
    %4781 = vmatprep.subr.bf16.mxu0 0
    %4782 = vmatpush1.bf16.msra.mxu0 0
    %4783 = vmatprep.subr.bf16.mxu0 0
    %4784 = vmatpush1.bf16.msra.mxu0 0
    %4785 = vmatprep.subr.bf16.mxu0 0
    %4786 = vmatpush1.bf16.msra.mxu0 0
    %4787 = vmatprep.subr.bf16.mxu0 0
    %4788 = vmatpush1.bf16.msra.mxu0 0
    %4789 = vmatprep.subr.bf16.mxu0 0
    %4790 = vmatpush1.bf16.msra.mxu0 0
    %4791 = vmatprep.subr.bf16.mxu0 0
    %4792 = vmatpush1.bf16.msra.mxu0 0
    %4793 = vmatprep.subr.bf16.mxu0 0
    %4794 = vmatpush1.bf16.msra.mxu0 0
    %4795 = vmatprep.subr.bf16.mxu0 0
    %4796 = vmatpush1.bf16.msra.mxu0 0
    %4797 = vmatprep.subr.bf16.mxu0 0
    %4798 = vmatpush1.bf16.msra.mxu0 0
    %4799 = vmatprep.subr.bf16.mxu0 0
    %4800 = vmatpush1.bf16.msra.mxu0 0
    %4801 = vmatprep.mubr.bf16.mxu0 0
    %4802 = vmatmul.mubr.bf16.gmra.mrb[0].mxu0 %v4767
    %v4803 = vpop.f32.mrb[0].mxu0
    %v4804 = vadd.f32 0.0, %v4803
    %v4805 = vpop.f32.mrb[0].mxu0
    %v4806 = vpop.f32.mrb[0].mxu0
    %v4807 = vpop.f32.mrb[0].mxu0
    %4808 = vdwg.mxu0
    %v4809 = vcombine.low %v4503, %v4589
    %v4810 = vcombine.high %v4503, %v4589
    %v4812 = vunpack.c.l.s4 1983009808
    %v4813 = vunpack.c.0.s8 %v4812
    %v4814 = vlaneseq
    %v4815 = vshrl.u32 %v4814, 7
    %v4816 = vsub.s32 %v4813, %v4815
    %v4817 = vrot.slane %v4809, %v4816
    %v4819 = vunpack.c.l.s4 1983009808
    %v4820 = vunpack.c.0.s8 %v4819
    %v4821 = vlaneseq
    %v4822 = vshrl.u32 %v4821, 7
    %v4823 = vsub.s32 %v4820, %v4822
    %v4824 = vrot.slane %v4810, %v4823
    %v4825 = vcombine.low %v4546, %v4632
    %v4826 = vcombine.high %v4546, %v4632
    %v4828 = vunpack.c.l.s4 1983009808
    %v4829 = vunpack.c.0.s8 %v4828
    %v4830 = vlaneseq
    %v4831 = vshrl.u32 %v4830, 7
    %v4832 = vsub.s32 %v4829, %v4831
    %v4833 = vrot.slane %v4825, %v4832
    %v4835 = vunpack.c.l.s4 1983009808
    %v4836 = vunpack.c.0.s8 %v4835
    %v4837 = vlaneseq
    %v4838 = vshrl.u32 %v4837, 7
    %v4839 = vsub.s32 %v4836, %v4838
    %v4840 = vrot.slane %v4826, %v4839
    %v4841 = vcombine.low %v4817, %v4833
    %v4842 = vcombine.high %v4817, %v4833
    %v4844 = vunpack.c.l.s4 1934713408
    %v4845 = vunpack.c.0.s8 %v4844
    %v4846 = vlaneseq
    %v4847 = vshrl.u32 %v4846, 7
    %v4848 = vsub.s32 %v4845, %v4847
    %v4849 = vrot.slane %v4841, %v4848
    %v4851 = vunpack.c.l.s4 1934713408
    %v4852 = vunpack.c.0.s8 %v4851
    %v4853 = vlaneseq
    %v4854 = vshrl.u32 %v4853, 7
    %v4855 = vsub.s32 %v4852, %v4854
    %v4856 = vrot.slane %v4842, %v4855
    %v4857 = vcombine.low %v4824, %v4840
    %v4858 = vcombine.high %v4824, %v4840
    %v4860 = vunpack.c.l.s4 1934713408
    %v4861 = vunpack.c.0.s8 %v4860
    %v4862 = vlaneseq
    %v4863 = vshrl.u32 %v4862, 7
    %v4864 = vsub.s32 %v4861, %v4863
    %v4865 = vrot.slane %v4857, %v4864
    %v4867 = vunpack.c.l.s4 1934713408
    %v4868 = vunpack.c.0.s8 %v4867
    %v4869 = vlaneseq
    %v4870 = vshrl.u32 %v4869, 7
    %v4871 = vsub.s32 %v4868, %v4870
    %v4872 = vrot.slane %v4858, %v4871
    %v4873 = vcombine.high %v4849, 0.0
    %v4874 = vcombine.high %v4856, 0.0
    %v4875 = vcombine.high %v4865, 0.0
    %v4876 = vcombine.high %v4872, 0.0
    %v4877 = vcombine.low %v4675, %v4761
    %v4878 = vcombine.high %v4675, %v4761
    %v4880 = vunpack.c.l.s4 1983009808
    %v4881 = vunpack.c.0.s8 %v4880
    %v4882 = vlaneseq
    %v4883 = vshrl.u32 %v4882, 7
    %v4884 = vsub.s32 %v4881, %v4883
    %v4885 = vrot.slane %v4877, %v4884
    %v4887 = vunpack.c.l.s4 1983009808
    %v4888 = vunpack.c.0.s8 %v4887
    %v4889 = vlaneseq
    %v4890 = vshrl.u32 %v4889, 7
    %v4891 = vsub.s32 %v4888, %v4890
    %v4892 = vrot.slane %v4878, %v4891
    %v4893 = vcombine.low %v4718, %v4804
    %v4894 = vcombine.high %v4718, %v4804
    %v4896 = vunpack.c.l.s4 1983009808
    %v4897 = vunpack.c.0.s8 %v4896
    %v4898 = vlaneseq
    %v4899 = vshrl.u32 %v4898, 7
    %v4900 = vsub.s32 %v4897, %v4899
    %v4901 = vrot.slane %v4893, %v4900
    %v4903 = vunpack.c.l.s4 1983009808
    %v4904 = vunpack.c.0.s8 %v4903
    %v4905 = vlaneseq
    %v4906 = vshrl.u32 %v4905, 7
    %v4907 = vsub.s32 %v4904, %v4906
    %v4908 = vrot.slane %v4894, %v4907
    %v4909 = vcombine.low %v4885, %v4901
    %v4910 = vcombine.high %v4885, %v4901
    %v4912 = vunpack.c.l.s4 1934713408
    %v4913 = vunpack.c.0.s8 %v4912
    %v4914 = vlaneseq
    %v4915 = vshrl.u32 %v4914, 7
    %v4916 = vsub.s32 %v4913, %v4915
    %v4917 = vrot.slane %v4909, %v4916
    %v4919 = vunpack.c.l.s4 1934713408
    %v4920 = vunpack.c.0.s8 %v4919
    %v4921 = vlaneseq
    %v4922 = vshrl.u32 %v4921, 7
    %v4923 = vsub.s32 %v4920, %v4922
    %v4924 = vrot.slane %v4910, %v4923
    %v4925 = vcombine.low %v4892, %v4908
    %v4926 = vcombine.high %v4892, %v4908
    %v4928 = vunpack.c.l.s4 1934713408
    %v4929 = vunpack.c.0.s8 %v4928
    %v4930 = vlaneseq
    %v4931 = vshrl.u32 %v4930, 7
    %v4932 = vsub.s32 %v4929, %v4931
    %v4933 = vrot.slane %v4925, %v4932
    %v4935 = vunpack.c.l.s4 1934713408
    %v4936 = vunpack.c.0.s8 %v4935
    %v4937 = vlaneseq
    %v4938 = vshrl.u32 %v4937, 7
    %v4939 = vsub.s32 %v4936, %v4938
    %v4940 = vrot.slane %v4926, %v4939
    %v4941 = vcombine.high %v4917, 0.0
    %v4942 = vcombine.high %v4924, 0.0
    %v4943 = vcombine.high %v4933, 0.0
    %v4944 = vcombine.high %v4940, 0.0
    %v4945 = vcombine.low %v4849, %v4856
    %v4947 = vunpack.c.l.s4 1983009808
    %v4948 = vunpack.c.0.s8 %v4947
    %v4949 = vlaneseq
    %v4950 = vshrl.u32 %v4949, 7
    %v4951 = vsub.s32 %v4948, %v4950
    %v4952 = vrot.slane %v4945, %v4951
    %v4953 = vcombine.low %v4873, %v4874
    %v4955 = vunpack.c.l.s4 1983009808
    %v4956 = vunpack.c.0.s8 %v4955
    %v4957 = vlaneseq
    %v4958 = vshrl.u32 %v4957, 7
    %v4959 = vsub.s32 %v4956, %v4958
    %v4960 = vrot.slane %v4953, %v4959
    %v4961 = vcombine.low %v4865, %v4872
    %v4963 = vunpack.c.l.s4 1983009808
    %v4964 = vunpack.c.0.s8 %v4963
    %v4965 = vlaneseq
    %v4966 = vshrl.u32 %v4965, 7
    %v4967 = vsub.s32 %v4964, %v4966
    %v4968 = vrot.slane %v4961, %v4967
    %v4969 = vcombine.low %v4875, %v4876
    %v4971 = vunpack.c.l.s4 1983009808
    %v4972 = vunpack.c.0.s8 %v4971
    %v4973 = vlaneseq
    %v4974 = vshrl.u32 %v4973, 7
    %v4975 = vsub.s32 %v4972, %v4974
    %v4976 = vrot.slane %v4969, %v4975
    %v4977 = vcombine.low %v4952, %v4960
    %v4978 = vcombine.high %v4952, %v4960
    %v4980 = vunpack.c.l.s4 1934713408
    %v4981 = vunpack.c.0.s8 %v4980
    %v4982 = vlaneseq
    %v4983 = vshrl.u32 %v4982, 7
    %v4984 = vsub.s32 %v4981, %v4983
    %v4985 = vrot.slane %v4977, %v4984
    %v4987 = vunpack.c.l.s4 1934713408
    %v4988 = vunpack.c.0.s8 %v4987
    %v4989 = vlaneseq
    %v4990 = vshrl.u32 %v4989, 7
    %v4991 = vsub.s32 %v4988, %v4990
    %v4992 = vrot.slane %v4978, %v4991
    %v4993 = vcombine.low %v4968, %v4976
    %v4994 = vcombine.high %v4968, %v4976
    %v4996 = vunpack.c.l.s4 1934713408
    %v4997 = vunpack.c.0.s8 %v4996
    %v4998 = vlaneseq
    %v4999 = vshrl.u32 %v4998, 7
    %v5000 = vsub.s32 %v4997, %v4999
    %v5001 = vrot.slane %v4993, %v5000
    %v5003 = vunpack.c.l.s4 1934713408
    %v5004 = vunpack.c.0.s8 %v5003
    %v5005 = vlaneseq
    %v5006 = vshrl.u32 %v5005, 7
    %v5007 = vsub.s32 %v5004, %v5006
    %v5008 = vrot.slane %v4994, %v5007
    %v5009 = vcombine.low %v4985, %v5001
    %v5010 = vcombine.high %v4985, %v5001
    %v5011 = vcombine.low %v4992, %v5008
    %v5012 = vcombine.high %v4992, %v5008
    %v5013 = vcombine.low %v4917, %v4924
    %v5015 = vunpack.c.l.s4 1983009808
    %v5016 = vunpack.c.0.s8 %v5015
    %v5017 = vlaneseq
    %v5018 = vshrl.u32 %v5017, 7
    %v5019 = vsub.s32 %v5016, %v5018
    %v5020 = vrot.slane %v5013, %v5019
    %v5021 = vcombine.low %v4941, %v4942
    %v5023 = vunpack.c.l.s4 1983009808
    %v5024 = vunpack.c.0.s8 %v5023
    %v5025 = vlaneseq
    %v5026 = vshrl.u32 %v5025, 7
    %v5027 = vsub.s32 %v5024, %v5026
    %v5028 = vrot.slane %v5021, %v5027
    %v5029 = vcombine.low %v4933, %v4940
    %v5031 = vunpack.c.l.s4 1983009808
    %v5032 = vunpack.c.0.s8 %v5031
    %v5033 = vlaneseq
    %v5034 = vshrl.u32 %v5033, 7
    %v5035 = vsub.s32 %v5032, %v5034
    %v5036 = vrot.slane %v5029, %v5035
    %v5037 = vcombine.low %v4943, %v4944
    %v5039 = vunpack.c.l.s4 1983009808
    %v5040 = vunpack.c.0.s8 %v5039
    %v5041 = vlaneseq
    %v5042 = vshrl.u32 %v5041, 7
    %v5043 = vsub.s32 %v5040, %v5042
    %v5044 = vrot.slane %v5037, %v5043
    %v5045 = vcombine.low %v5020, %v5028
    %v5046 = vcombine.high %v5020, %v5028
    %v5048 = vunpack.c.l.s4 1934713408
    %v5049 = vunpack.c.0.s8 %v5048
    %v5050 = vlaneseq
    %v5051 = vshrl.u32 %v5050, 7
    %v5052 = vsub.s32 %v5049, %v5051
    %v5053 = vrot.slane %v5045, %v5052
    %v5055 = vunpack.c.l.s4 1934713408
    %v5056 = vunpack.c.0.s8 %v5055
    %v5057 = vlaneseq
    %v5058 = vshrl.u32 %v5057, 7
    %v5059 = vsub.s32 %v5056, %v5058
    %v5060 = vrot.slane %v5046, %v5059
    %v5061 = vcombine.low %v5036, %v5044
    %v5062 = vcombine.high %v5036, %v5044
    %v5064 = vunpack.c.l.s4 1934713408
    %v5065 = vunpack.c.0.s8 %v5064
    %v5066 = vlaneseq
    %v5067 = vshrl.u32 %v5066, 7
    %v5068 = vsub.s32 %v5065, %v5067
    %v5069 = vrot.slane %v5061, %v5068
    %v5071 = vunpack.c.l.s4 1934713408
    %v5072 = vunpack.c.0.s8 %v5071
    %v5073 = vlaneseq
    %v5074 = vshrl.u32 %v5073, 7
    %v5075 = vsub.s32 %v5072, %v5074
    %v5076 = vrot.slane %v5062, %v5075
    %v5077 = vcombine.low %v5053, %v5069
    %v5078 = vcombine.high %v5053, %v5069
    %v5079 = vcombine.low %v5060, %v5076
    %v5080 = vcombine.high %v5060, %v5076
    %5083 = vrot.lane.b32.xlu0 %v5010, 8
    %v5084 = vpop.permute.xlu0 %5083
    %5085 = vrot.lane.b32.xlu0 %v5078, 8
    %v5086 = vpop.permute.xlu0 %5085
    %5091 = vrot.lane.b32.xlu0 %v5011, 16
    %v5092 = vpop.permute.xlu0 %5091
    %5093 = vrot.lane.b32.xlu0 %v5079, 16
    %v5094 = vpop.permute.xlu0 %5093
    %5099 = vrot.lane.b32.xlu0 %v5012, 24
    %v5100 = vpop.permute.xlu0 %5099
    %5101 = vrot.lane.b32.xlu0 %v5080, 24
    %v5102 = vpop.permute.xlu0 %5101
    %v5105 = vsel %vm1112, %v5009, %v5084
    %v5106 = vsel %vm1112, %v5077, %v5086
    %v5107 = vsel %vm2252, %v5105, %v5092
    %v5108 = vsel %vm2252, %v5106, %v5094
    %v5109 = vsel %vm2255, %v5107, %v5100
    %v5110 = vsel %vm2255, %v5108, %v5102
    %v5111 = vpack.c.bf16 %v5110, %v5109
    %v5112 = vld [vmem:[#allocation8 + $0x4] sm:$0xf]
    %v5113 = vld [vmem:[#allocation8 + $0xc] sm:$0xf]
    %v5114 = vld [vmem:[#allocation8 + $0x14] sm:$0xf]
    %v5115 = vld [vmem:[#allocation8 + $0x1c] sm:$0xf]
    %v5120 = vunpack.c.l.b16 %v5112
    %v5121 = vunpack.c.l.b16 %v5113
    %v5122 = vunpack.c.l.b16 %v5114
    %v5123 = vunpack.c.l.b16 %v5115
    %v5124 = vpack.c.b16 %v5121, %v5120
    %v5125 = vpack.c.b16 %v5123, %v5122
    %5126 = vrot.lane.b32.xlu0 %v5124, 32
    %v5127 = vpop.permute.xlu0 %5126
    %5128 = vrot.lane.b32.xlu0 %v5125, 32
    %v5129 = vpop.permute.xlu0 %5128
    %v5133 = vsel %vm114, %v5111, 0
    %5135 = vmatprep.subr.bf16.mxu0 0
    %5136 = vmatpush1.bf16.msra.mxu0 %v5127
    %5137 = vmatprep.subr.bf16.mxu0 0
    %5138 = vmatpush1.bf16.msra.mxu0 %v5129
    %5139 = vmatprep.subr.bf16.mxu0 0
    %5140 = vmatpush1.bf16.msra.mxu0 0
    %5141 = vmatprep.subr.bf16.mxu0 0
    %5142 = vmatpush1.bf16.msra.mxu0 0
    %5143 = vmatprep.subr.bf16.mxu0 0
    %5144 = vmatpush1.bf16.msra.mxu0 0
    %5145 = vmatprep.subr.bf16.mxu0 0
    %5146 = vmatpush1.bf16.msra.mxu0 0
    %5147 = vmatprep.subr.bf16.mxu0 0
    %5148 = vmatpush1.bf16.msra.mxu0 0
    %5149 = vmatprep.subr.bf16.mxu0 0
    %5150 = vmatpush1.bf16.msra.mxu0 0
    %5151 = vmatprep.subr.bf16.mxu0 0
    %5152 = vmatpush1.bf16.msra.mxu0 0
    %5153 = vmatprep.subr.bf16.mxu0 0
    %5154 = vmatpush1.bf16.msra.mxu0 0
    %5155 = vmatprep.subr.bf16.mxu0 0
    %5156 = vmatpush1.bf16.msra.mxu0 0
    %5157 = vmatprep.subr.bf16.mxu0 0
    %5158 = vmatpush1.bf16.msra.mxu0 0
    %5159 = vmatprep.subr.bf16.mxu0 0
    %5160 = vmatpush1.bf16.msra.mxu0 0
    %5161 = vmatprep.subr.bf16.mxu0 0
    %5162 = vmatpush1.bf16.msra.mxu0 0
    %5163 = vmatprep.subr.bf16.mxu0 0
    %5164 = vmatpush1.bf16.msra.mxu0 0
    %5165 = vmatprep.subr.bf16.mxu0 0
    %5166 = vmatpush1.bf16.msra.mxu0 0
    %5167 = vmatprep.mubr.bf16.mxu0 0
    %5168 = vmatmul.mubr.bf16.gmra.mrb[0].mxu0 %v5133
    %v5169 = vpop.f32.mrb[0].mxu0
    %v5170 = vadd.f32 0.0, %v5169
    %v5171 = vpop.f32.mrb[0].mxu0
    %v5172 = vpop.f32.mrb[0].mxu0
    %v5173 = vadd.f32 0.0, %v5172
    %v5174 = vpop.f32.mrb[0].mxu0
    %5175 = vdwg.mxu0
    %v5176 = vadd.f32 %v2330, %v5170
    %v5177 = vadd.f32 %v2331, %v5173
    %v5178 = vld [vmem:[#allocation10 + $0x8] ss:$0 sm:$0xff]
    %5180 = vrot.lane.b32.xlu0 %v5178, 32
    %v5181 = vpop.permute.xlu0 %5180
    %v5183 = vadd.f32 %v5176, %v5181
    %v5184 = vadd.f32 %v5177, %v5181
    %v5185 = vld [vmem:[#allocation10 + $0xa] ss:$0 sm:$0xff]
    %v5186 = vsel %vm114, %v5183, 0.0
    %5187 = vadd.xlane.f32.xlu0 %v5186
    %v5188 = vpop.xlane.xlu0 %5187
    %v5189 = vsel %vm114, %v5184, 0.0
    %5190 = vadd.xlane.f32.xlu0 %v5189
    %v5191 = vpop.xlane.xlu0 %5190
    %v5192 = vmul.f32 %v5188, %v121
    %v5193 = vmul.f32 %v5191, %v121
    %v5194 = vsub.f32 %v5183, %v5192
    %v5195 = vsub.f32 %v5184, %v5193
    %v5196 = vmul.f32 %v5194, %v5194
    %v5197 = vmul.f32 %v5195, %v5195
    %v5198 = vsel %vm114, %v5196, 0.0
    %5199 = vadd.xlane.f32.xlu0 %v5198
    %v5200 = vpop.xlane.xlu0 %5199
    %v5201 = vsel %vm114, %v5197, 0.0
    %5202 = vadd.xlane.f32.xlu0 %v5201
    %v5203 = vpop.xlane.xlu0 %5202
    %v5204 = vmul.f32 %v5200, %v121
    %v5205 = vmul.f32 %v5203, %v121
    %v5206 = vadd.f32 %v5204, 1e-12
    %v5207 = vadd.f32 %v5205, 1e-12
    %v5208 = vrsqrt.pop %v5206
    %v5209 = vrsqrt.pop %v5207
    %v5210 = vmul.f32 %v5194, %v5208
    %v5211 = vmul.f32 %v5195, %v5209
    %v5212 = vmul.f32 %v5210, %v5185
    %v5213 = vmul.f32 %v5211, %v5185
    %5215 = vrot.lane.b32.xlu0 %v5185, 96
    %v5216 = vpop.permute.xlu0 %5215
    %v5218 = vadd.f32 %v5212, %v5216
    %v5219 = vadd.f32 %v5213, %v5216
    %v5220 = vpack.c.bf16 %v5219, %v5218
    %v5221 = vld [vmem:[#allocation8 + $0x20] sm:$0xf]
    %v5222 = vld [vmem:[#allocation8 + $0x28] sm:$0xf]
    %v5223 = vld [vmem:[#allocation8 + $0x30] sm:$0xf]
    %v5224 = vld [vmem:[#allocation8 + $0x38] sm:$0xf]
    %v5225 = vld [vmem:[#allocation10 + $0x1] ss:$0 sm:$0xff]
    %v5230 = vunpack.c.l.b16 %v5221
    %v5231 = vunpack.c.l.b16 %v5222
    %v5232 = vunpack.c.l.b16 %v5223
    %v5233 = vunpack.c.l.b16 %v5224
    %v5234 = vpack.c.b16 %v5231, %v5230
    %v5235 = vpack.c.b16 %v5233, %v5232
    %v5239 = vsel %vm114, %v5220, 0
    %5241 = vmatprep.subr.bf16.mxu0 0
    %5242 = vmatpush1.bf16.msra.mxu0 %v5234
    %5243 = vmatprep.subr.bf16.mxu0 0
    %5244 = vmatpush1.bf16.msra.mxu0 %v5235
    %5245 = vmatprep.subr.bf16.mxu0 0
    %5246 = vmatpush1.bf16.msra.mxu0 0
    %5247 = vmatprep.subr.bf16.mxu0 0
    %5248 = vmatpush1.bf16.msra.mxu0 0
    %5249 = vmatprep.subr.bf16.mxu0 0
    %5250 = vmatpush1.bf16.msra.mxu0 0
    %5251 = vmatprep.subr.bf16.mxu0 0
    %5252 = vmatpush1.bf16.msra.mxu0 0
    %5253 = vmatprep.subr.bf16.mxu0 0
    %5254 = vmatpush1.bf16.msra.mxu0 0
    %5255 = vmatprep.subr.bf16.mxu0 0
    %5256 = vmatpush1.bf16.msra.mxu0 0
    %5257 = vmatprep.subr.bf16.mxu0 0
    %5258 = vmatpush1.bf16.msra.mxu0 0
    %5259 = vmatprep.subr.bf16.mxu0 0
    %5260 = vmatpush1.bf16.msra.mxu0 0
    %5261 = vmatprep.subr.bf16.mxu0 0
    %5262 = vmatpush1.bf16.msra.mxu0 0
    %5263 = vmatprep.subr.bf16.mxu0 0
    %5264 = vmatpush1.bf16.msra.mxu0 0
    %5265 = vmatprep.subr.bf16.mxu0 0
    %5266 = vmatpush1.bf16.msra.mxu0 0
    %5267 = vmatprep.subr.bf16.mxu0 0
    %5268 = vmatpush1.bf16.msra.mxu0 0
    %5269 = vmatprep.subr.bf16.mxu0 0
    %5270 = vmatpush1.bf16.msra.mxu0 0
    %5271 = vmatprep.subr.bf16.mxu0 0
    %5272 = vmatpush1.bf16.msra.mxu0 0
    %5273 = vmatprep.mubr.bf16.mxu0 0
    %5274 = vmatmul.mubr.bf16.gmra.mrb[0].mxu0 %v5239
    %v5275 = vpop.f32.mrb[0].mxu0
    %v5276 = vadd.f32 %v5225, %v5275
    %v5277 = vpop.f32.mrb[0].mxu0
    %v5278 = vpop.f32.mrb[0].mxu0
    %v5279 = vadd.f32 %v5225, %v5278
    %v5280 = vpop.f32.mrb[0].mxu0
    %5281 = vdwg.mxu0
    %v5282 = vmax.f32 %v5276, 0.0
    %v5283 = vmax.f32 %v5279, 0.0
    %v5284 = vpack.c.bf16 %v5283, %v5282
    %v5285 = vld [vmem:[#allocation8 + $0x40] sm:$0xf]
    %v5286 = vld [vmem:[#allocation8 + $0x48] sm:$0xf]
    %v5287 = vld [vmem:[#allocation8 + $0x50] sm:$0xf]
    %v5288 = vld [vmem:[#allocation8 + $0x58] sm:$0xf]
    %v5289 = vld [vmem:[#allocation8 + $0x60] sm:$0xf]
    %v5290 = vld [vmem:[#allocation8 + $0x68] sm:$0xf]
    %v5291 = vld [vmem:[#allocation8 + $0x70] sm:$0xf]
    %v5292 = vld [vmem:[#allocation8 + $0x78] sm:$0xf]
    %v5301 = vunpack.c.l.b16 %v5285
    %v5302 = vunpack.c.l.b16 %v5286
    %v5303 = vunpack.c.l.b16 %v5287
    %v5304 = vunpack.c.l.b16 %v5288
    %v5305 = vunpack.c.l.b16 %v5289
    %v5306 = vunpack.c.l.b16 %v5290
    %v5307 = vunpack.c.l.b16 %v5291
    %v5308 = vunpack.c.l.b16 %v5292
    %v5309 = vpack.c.b16 %v5302, %v5301
    %v5310 = vpack.c.b16 %v5304, %v5303
    %v5311 = vpack.c.b16 %v5306, %v5305
    %v5312 = vpack.c.b16 %v5308, %v5307
    %vm5317 = vcmask 523264
    %v5319 = vsel %vm5317, %v5284, 0
    %5321 = vmatprep.subr.bf16.mxu0 0
    %5322 = vmatpush1.bf16.msra.mxu0 %v5309
    %5323 = vmatprep.subr.bf16.mxu0 0
    %5324 = vmatpush1.bf16.msra.mxu0 %v5310
    %5325 = vmatprep.subr.bf16.mxu0 0
    %5326 = vmatpush1.bf16.msra.mxu0 %v5311
    %5327 = vmatprep.subr.bf16.mxu0 0
    %5328 = vmatpush1.bf16.msra.mxu0 %v5312
    %5329 = vmatprep.subr.bf16.mxu0 0
    %5330 = vmatpush1.bf16.msra.mxu0 0
    %5331 = vmatprep.subr.bf16.mxu0 0
    %5332 = vmatpush1.bf16.msra.mxu0 0
    %5333 = vmatprep.subr.bf16.mxu0 0
    %5334 = vmatpush1.bf16.msra.mxu0 0
    %5335 = vmatprep.subr.bf16.mxu0 0
    %5336 = vmatpush1.bf16.msra.mxu0 0
    %5337 = vmatprep.subr.bf16.mxu0 0
    %5338 = vmatpush1.bf16.msra.mxu0 0
    %5339 = vmatprep.subr.bf16.mxu0 0
    %5340 = vmatpush1.bf16.msra.mxu0 0
    %5341 = vmatprep.subr.bf16.mxu0 0
    %5342 = vmatpush1.bf16.msra.mxu0 0
    %5343 = vmatprep.subr.bf16.mxu0 0
    %5344 = vmatpush1.bf16.msra.mxu0 0
    %5345 = vmatprep.subr.bf16.mxu0 0
    %5346 = vmatpush1.bf16.msra.mxu0 0
    %5347 = vmatprep.subr.bf16.mxu0 0
    %5348 = vmatpush1.bf16.msra.mxu0 0
    %5349 = vmatprep.subr.bf16.mxu0 0
    %5350 = vmatpush1.bf16.msra.mxu0 0
    %5351 = vmatprep.subr.bf16.mxu0 0
    %5352 = vmatpush1.bf16.msra.mxu0 0
    %5353 = vmatprep.mubr.bf16.mxu0 0
    %5354 = vmatmul.mubr.bf16.gmra.mrb[0].mxu0 %v5319
    %v5355 = vpop.f32.mrb[0].mxu0
    %v5356 = vadd.f32 0.0, %v5355
    %v5357 = vpop.f32.mrb[0].mxu0
    %v5358 = vpop.f32.mrb[0].mxu0
    %v5359 = vadd.f32 0.0, %v5358
    %v5360 = vpop.f32.mrb[0].mxu0
    %5361 = vdwg.mxu0
    %v5362 = vadd.f32 %v5183, %v5356
    %v5363 = vadd.f32 %v5184, %v5359
    %5365 = vrot.lane.b32.xlu0 %v5225, 64
    %v5366 = vpop.permute.xlu0 %5365
    %v5368 = vadd.f32 %v5362, %v5366
    %v5369 = vadd.f32 %v5363, %v5366
    %s5370 = scalar_lea.vmem [#allocation10], 16
    %v5371 = vld [vmem:[%s5370 + $0x2] ss:$0 sm:$0xff]
    %v5372 = vsel %vm114, %v5368, 0.0
    %5373 = vadd.xlane.f32.xlu0 %v5372
    %v5374 = vpop.xlane.xlu0 %5373
    %v5375 = vsel %vm114, %v5369, 0.0
    %5376 = vadd.xlane.f32.xlu0 %v5375
    %v5377 = vpop.xlane.xlu0 %5376
    %v5378 = vmul.f32 %v5374, %v121
    %v5379 = vmul.f32 %v5377, %v121
    %v5380 = vsub.f32 %v5368, %v5378
    %v5381 = vsub.f32 %v5369, %v5379
    %v5382 = vmul.f32 %v5380, %v5380
    %v5383 = vmul.f32 %v5381, %v5381
    %v5384 = vsel %vm114, %v5382, 0.0
    %5385 = vadd.xlane.f32.xlu0 %v5384
    %v5386 = vpop.xlane.xlu0 %5385
    %v5387 = vsel %vm114, %v5383, 0.0
    %5388 = vadd.xlane.f32.xlu0 %v5387
    %v5389 = vpop.xlane.xlu0 %5388
    %v5390 = vmul.f32 %v5386, %v121
    %v5391 = vmul.f32 %v5389, %v121
    %v5392 = vadd.f32 %v5390, 1e-12
    %v5393 = vadd.f32 %v5391, 1e-12
    %v5394 = vrsqrt.pop %v5392
    %v5395 = vrsqrt.pop %v5393
    %v5396 = vmul.f32 %v5380, %v5394
    %v5397 = vmul.f32 %v5381, %v5395
    %v5398 = vmul.f32 %v5396, %v5371
    %v5399 = vmul.f32 %v5397, %v5371
    %5401 = vrot.lane.b32.xlu0 %v5371, 96
    %v5402 = vpop.permute.xlu0 %5401
    %v5404 = vadd.f32 %v5398, %v5402
    %v5405 = vadd.f32 %v5399, %v5402
    %v5406 = vpack.c.bf16 %v5405, %v5404
    %s5407 = scalar_lea.vmem [#allocation8], 128
    %v5408 = vld [vmem:[%s5407] sm:$0xf]
    %v5409 = vld [vmem:[%s5407 + $0x8] sm:$0xf]
    %v5410 = vld [vmem:[%s5407 + $0x10] sm:$0xf]
    %v5411 = vld [vmem:[%s5407 + $0x18] sm:$0xf]
    %v5412 = vld [vmem:[%s5370] ss:$0 sm:$0xff]
    %v5417 = vunpack.c.l.b16 %v5408
    %v5418 = vunpack.c.l.b16 %v5409
    %v5419 = vunpack.c.l.b16 %v5410
    %v5420 = vunpack.c.l.b16 %v5411
    %v5421 = vpack.c.b16 %v5418, %v5417
    %v5422 = vpack.c.b16 %v5420, %v5419
    %v5426 = vsel %vm114, %v5406, 0
    %5428 = vmatprep.subr.bf16.mxu0 0
    %5429 = vmatpush1.bf16.msra.mxu0 %v5421
    %5430 = vmatprep.subr.bf16.mxu0 0
    %5431 = vmatpush1.bf16.msra.mxu0 %v5422
    %5432 = vmatprep.subr.bf16.mxu0 0
    %5433 = vmatpush1.bf16.msra.mxu0 0
    %5434 = vmatprep.subr.bf16.mxu0 0
    %5435 = vmatpush1.bf16.msra.mxu0 0
    %5436 = vmatprep.subr.bf16.mxu0 0
    %5437 = vmatpush1.bf16.msra.mxu0 0
    %5438 = vmatprep.subr.bf16.mxu0 0
    %5439 = vmatpush1.bf16.msra.mxu0 0
    %5440 = vmatprep.subr.bf16.mxu0 0
    %5441 = vmatpush1.bf16.msra.mxu0 0
    %5442 = vmatprep.subr.bf16.mxu0 0
    %5443 = vmatpush1.bf16.msra.mxu0 0
    %5444 = vmatprep.subr.bf16.mxu0 0
    %5445 = vmatpush1.bf16.msra.mxu0 0
    %5446 = vmatprep.subr.bf16.mxu0 0
    %5447 = vmatpush1.bf16.msra.mxu0 0
    %5448 = vmatprep.subr.bf16.mxu0 0
    %5449 = vmatpush1.bf16.msra.mxu0 0
    %5450 = vmatprep.subr.bf16.mxu0 0
    %5451 = vmatpush1.bf16.msra.mxu0 0
    %5452 = vmatprep.subr.bf16.mxu0 0
    %5453 = vmatpush1.bf16.msra.mxu0 0
    %5454 = vmatprep.subr.bf16.mxu0 0
    %5455 = vmatpush1.bf16.msra.mxu0 0
    %5456 = vmatprep.subr.bf16.mxu0 0
    %5457 = vmatpush1.bf16.msra.mxu0 0
    %5458 = vmatprep.subr.bf16.mxu0 0
    %5459 = vmatpush1.bf16.msra.mxu0 0
    %5460 = vmatprep.mubr.bf16.mxu0 0
    %5461 = vmatmul.mubr.bf16.gmra.mrb[0].mxu0 %v5426
    %v5462 = vpop.f32.mrb[0].mxu0
    %v5463 = vadd.f32 %v5412, %v5462
    %v5464 = vpop.f32.mrb[0].mxu0
    %v5465 = vpop.f32.mrb[0].mxu0
    %v5466 = vadd.f32 %v5412, %v5465
    %v5467 = vpop.f32.mrb[0].mxu0
    %5468 = vdwg.mxu0
    %5471 = vrot.lane.b32.xlu0 %v5463, 120
    %v5472 = vpop.permute.xlu0 %5471
    %5473 = vrot.lane.b32.xlu0 %v5466, 120
    %v5474 = vpop.permute.xlu0 %5473
    %5477 = vrot.lane.b32.xlu0 %v5463, 112
    %v5478 = vpop.permute.xlu0 %5477
    %5479 = vrot.lane.b32.xlu0 %v5466, 112
    %v5480 = vpop.permute.xlu0 %5479
    %5483 = vrot.lane.b32.xlu0 %v5463, 104
    %v5484 = vpop.permute.xlu0 %5483
    %5485 = vrot.lane.b32.xlu0 %v5466, 104
    %v5486 = vpop.permute.xlu0 %5485
    %v5489 = vcombine.low %v5463, %v5478
    %v5490 = vcombine.high %v5463, %v5478
    %v5492 = vunpack.c.l.s4 1983009808
    %v5493 = vunpack.c.0.s8 %v5492
    %v5494 = vlaneseq
    %v5495 = vshrl.u32 %v5494, 7
    %v5496 = vsub.s32 %v5493, %v5495
    %v5497 = vrot.slane %v5489, %v5496
    %v5499 = vunpack.c.l.s4 1983009808
    %v5500 = vunpack.c.0.s8 %v5499
    %v5501 = vlaneseq
    %v5502 = vshrl.u32 %v5501, 7
    %v5503 = vsub.s32 %v5500, %v5502
    %v5504 = vrot.slane %v5490, %v5503
    %v5505 = vcombine.low %v5472, %v5484
    %v5506 = vcombine.high %v5472, %v5484
    %v5508 = vunpack.c.l.s4 1983009808
    %v5509 = vunpack.c.0.s8 %v5508
    %v5510 = vlaneseq
    %v5511 = vshrl.u32 %v5510, 7
    %v5512 = vsub.s32 %v5509, %v5511
    %v5513 = vrot.slane %v5505, %v5512
    %v5515 = vunpack.c.l.s4 1983009808
    %v5516 = vunpack.c.0.s8 %v5515
    %v5517 = vlaneseq
    %v5518 = vshrl.u32 %v5517, 7
    %v5519 = vsub.s32 %v5516, %v5518
    %v5520 = vrot.slane %v5506, %v5519
    %v5521 = vcombine.low %v5497, %v5513
    %v5522 = vcombine.high %v5497, %v5513
    %v5524 = vunpack.c.l.s4 1934713408
    %v5525 = vunpack.c.0.s8 %v5524
    %v5526 = vlaneseq
    %v5527 = vshrl.u32 %v5526, 7
    %v5528 = vsub.s32 %v5525, %v5527
    %v5529 = vrot.slane %v5521, %v5528
    %v5531 = vunpack.c.l.s4 1934713408
    %v5532 = vunpack.c.0.s8 %v5531
    %v5533 = vlaneseq
    %v5534 = vshrl.u32 %v5533, 7
    %v5535 = vsub.s32 %v5532, %v5534
    %v5536 = vrot.slane %v5522, %v5535
    %v5537 = vcombine.low %v5504, %v5520
    %v5538 = vcombine.high %v5504, %v5520
    %v5540 = vunpack.c.l.s4 1934713408
    %v5541 = vunpack.c.0.s8 %v5540
    %v5542 = vlaneseq
    %v5543 = vshrl.u32 %v5542, 7
    %v5544 = vsub.s32 %v5541, %v5543
    %v5545 = vrot.slane %v5537, %v5544
    %v5547 = vunpack.c.l.s4 1934713408
    %v5548 = vunpack.c.0.s8 %v5547
    %v5549 = vlaneseq
    %v5550 = vshrl.u32 %v5549, 7
    %v5551 = vsub.s32 %v5548, %v5550
    %v5552 = vrot.slane %v5538, %v5551
    %v5553 = vcombine.high %v5529, 0.0
    %v5554 = vcombine.high %v5536, 0.0
    %v5555 = vcombine.high %v5545, 0.0
    %v5556 = vcombine.high %v5552, 0.0
    %v5557 = vcombine.low %v5466, %v5480
    %v5558 = vcombine.high %v5466, %v5480
    %v5560 = vunpack.c.l.s4 1983009808
    %v5561 = vunpack.c.0.s8 %v5560
    %v5562 = vlaneseq
    %v5563 = vshrl.u32 %v5562, 7
    %v5564 = vsub.s32 %v5561, %v5563
    %v5565 = vrot.slane %v5557, %v5564
    %v5567 = vunpack.c.l.s4 1983009808
    %v5568 = vunpack.c.0.s8 %v5567
    %v5569 = vlaneseq
    %v5570 = vshrl.u32 %v5569, 7
    %v5571 = vsub.s32 %v5568, %v5570
    %v5572 = vrot.slane %v5558, %v5571
    %v5573 = vcombine.low %v5474, %v5486
    %v5574 = vcombine.high %v5474, %v5486
    %v5576 = vunpack.c.l.s4 1983009808
    %v5577 = vunpack.c.0.s8 %v5576
    %v5578 = vlaneseq
    %v5579 = vshrl.u32 %v5578, 7
    %v5580 = vsub.s32 %v5577, %v5579
    %v5581 = vrot.slane %v5573, %v5580
    %v5583 = vunpack.c.l.s4 1983009808
    %v5584 = vunpack.c.0.s8 %v5583
    %v5585 = vlaneseq
    %v5586 = vshrl.u32 %v5585, 7
    %v5587 = vsub.s32 %v5584, %v5586
    %v5588 = vrot.slane %v5574, %v5587
    %v5589 = vcombine.low %v5565, %v5581
    %v5590 = vcombine.high %v5565, %v5581
    %v5592 = vunpack.c.l.s4 1934713408
    %v5593 = vunpack.c.0.s8 %v5592
    %v5594 = vlaneseq
    %v5595 = vshrl.u32 %v5594, 7
    %v5596 = vsub.s32 %v5593, %v5595
    %v5597 = vrot.slane %v5589, %v5596
    %v5599 = vunpack.c.l.s4 1934713408
    %v5600 = vunpack.c.0.s8 %v5599
    %v5601 = vlaneseq
    %v5602 = vshrl.u32 %v5601, 7
    %v5603 = vsub.s32 %v5600, %v5602
    %v5604 = vrot.slane %v5590, %v5603
    %v5605 = vcombine.low %v5572, %v5588
    %v5606 = vcombine.high %v5572, %v5588
    %v5608 = vunpack.c.l.s4 1934713408
    %v5609 = vunpack.c.0.s8 %v5608
    %v5610 = vlaneseq
    %v5611 = vshrl.u32 %v5610, 7
    %v5612 = vsub.s32 %v5609, %v5611
    %v5613 = vrot.slane %v5605, %v5612
    %v5615 = vunpack.c.l.s4 1934713408
    %v5616 = vunpack.c.0.s8 %v5615
    %v5617 = vlaneseq
    %v5618 = vshrl.u32 %v5617, 7
    %v5619 = vsub.s32 %v5616, %v5618
    %v5620 = vrot.slane %v5606, %v5619
    %v5621 = vcombine.high %v5597, 0.0
    %v5622 = vcombine.high %v5604, 0.0
    %v5623 = vcombine.high %v5613, 0.0
    %v5624 = vcombine.high %v5620, 0.0
    %v5625 = vcombine.low %v5529, %v5536
    %v5627 = vunpack.c.l.s4 1983009808
    %v5628 = vunpack.c.0.s8 %v5627
    %v5629 = vlaneseq
    %v5630 = vshrl.u32 %v5629, 7
    %v5631 = vsub.s32 %v5628, %v5630
    %v5632 = vrot.slane %v5625, %v5631
    %v5633 = vcombine.low %v5553, %v5554
    %v5635 = vunpack.c.l.s4 1983009808
    %v5636 = vunpack.c.0.s8 %v5635
    %v5637 = vlaneseq
    %v5638 = vshrl.u32 %v5637, 7
    %v5639 = vsub.s32 %v5636, %v5638
    %v5640 = vrot.slane %v5633, %v5639
    %v5641 = vcombine.low %v5545, %v5552
    %v5643 = vunpack.c.l.s4 1983009808
    %v5644 = vunpack.c.0.s8 %v5643
    %v5645 = vlaneseq
    %v5646 = vshrl.u32 %v5645, 7
    %v5647 = vsub.s32 %v5644, %v5646
    %v5648 = vrot.slane %v5641, %v5647
    %v5649 = vcombine.low %v5555, %v5556
    %v5651 = vunpack.c.l.s4 1983009808
    %v5652 = vunpack.c.0.s8 %v5651
    %v5653 = vlaneseq
    %v5654 = vshrl.u32 %v5653, 7
    %v5655 = vsub.s32 %v5652, %v5654
    %v5656 = vrot.slane %v5649, %v5655
    %v5657 = vcombine.low %v5632, %v5640
    %v5658 = vcombine.high %v5632, %v5640
    %v5660 = vunpack.c.l.s4 1934713408
    %v5661 = vunpack.c.0.s8 %v5660
    %v5662 = vlaneseq
    %v5663 = vshrl.u32 %v5662, 7
    %v5664 = vsub.s32 %v5661, %v5663
    %v5665 = vrot.slane %v5657, %v5664
    %v5667 = vunpack.c.l.s4 1934713408
    %v5668 = vunpack.c.0.s8 %v5667
    %v5669 = vlaneseq
    %v5670 = vshrl.u32 %v5669, 7
    %v5671 = vsub.s32 %v5668, %v5670
    %v5672 = vrot.slane %v5658, %v5671
    %v5673 = vcombine.low %v5648, %v5656
    %v5674 = vcombine.high %v5648, %v5656
    %v5676 = vunpack.c.l.s4 1934713408
    %v5677 = vunpack.c.0.s8 %v5676
    %v5678 = vlaneseq
    %v5679 = vshrl.u32 %v5678, 7
    %v5680 = vsub.s32 %v5677, %v5679
    %v5681 = vrot.slane %v5673, %v5680
    %v5683 = vunpack.c.l.s4 1934713408
    %v5684 = vunpack.c.0.s8 %v5683
    %v5685 = vlaneseq
    %v5686 = vshrl.u32 %v5685, 7
    %v5687 = vsub.s32 %v5684, %v5686
    %v5688 = vrot.slane %v5674, %v5687
    %v5689 = vcombine.low %v5665, %v5681
    %v5690 = vcombine.high %v5665, %v5681
    %v5691 = vcombine.low %v5672, %v5688
    %v5692 = vcombine.high %v5672, %v5688
    %v5693 = vcombine.low %v5597, %v5604
    %v5695 = vunpack.c.l.s4 1983009808
    %v5696 = vunpack.c.0.s8 %v5695
    %v5697 = vlaneseq
    %v5698 = vshrl.u32 %v5697, 7
    %v5699 = vsub.s32 %v5696, %v5698
    %v5700 = vrot.slane %v5693, %v5699
    %v5701 = vcombine.low %v5621, %v5622
    %v5703 = vunpack.c.l.s4 1983009808
    %v5704 = vunpack.c.0.s8 %v5703
    %v5705 = vlaneseq
    %v5706 = vshrl.u32 %v5705, 7
    %v5707 = vsub.s32 %v5704, %v5706
    %v5708 = vrot.slane %v5701, %v5707
    %v5709 = vcombine.low %v5613, %v5620
    %v5711 = vunpack.c.l.s4 1983009808
    %v5712 = vunpack.c.0.s8 %v5711
    %v5713 = vlaneseq
    %v5714 = vshrl.u32 %v5713, 7
    %v5715 = vsub.s32 %v5712, %v5714
    %v5716 = vrot.slane %v5709, %v5715
    %v5717 = vcombine.low %v5623, %v5624
    %v5719 = vunpack.c.l.s4 1983009808
    %v5720 = vunpack.c.0.s8 %v5719
    %v5721 = vlaneseq
    %v5722 = vshrl.u32 %v5721, 7
    %v5723 = vsub.s32 %v5720, %v5722
    %v5724 = vrot.slane %v5717, %v5723
    %v5725 = vcombine.low %v5700, %v5708
    %v5726 = vcombine.high %v5700, %v5708
    %v5728 = vunpack.c.l.s4 1934713408
    %v5729 = vunpack.c.0.s8 %v5728
    %v5730 = vlaneseq
    %v5731 = vshrl.u32 %v5730, 7
    %v5732 = vsub.s32 %v5729, %v5731
    %v5733 = vrot.slane %v5725, %v5732
    %v5735 = vunpack.c.l.s4 1934713408
    %v5736 = vunpack.c.0.s8 %v5735
    %v5737 = vlaneseq
    %v5738 = vshrl.u32 %v5737, 7
    %v5739 = vsub.s32 %v5736, %v5738
    %v5740 = vrot.slane %v5726, %v5739
    %v5741 = vcombine.low %v5716, %v5724
    %v5742 = vcombine.high %v5716, %v5724
    %v5744 = vunpack.c.l.s4 1934713408
    %v5745 = vunpack.c.0.s8 %v5744
    %v5746 = vlaneseq
    %v5747 = vshrl.u32 %v5746, 7
    %v5748 = vsub.s32 %v5745, %v5747
    %v5749 = vrot.slane %v5741, %v5748
    %v5751 = vunpack.c.l.s4 1934713408
    %v5752 = vunpack.c.0.s8 %v5751
    %v5753 = vlaneseq
    %v5754 = vshrl.u32 %v5753, 7
    %v5755 = vsub.s32 %v5752, %v5754
    %v5756 = vrot.slane %v5742, %v5755
    %v5757 = vcombine.low %v5733, %v5749
    %v5758 = vcombine.high %v5733, %v5749
    %v5759 = vcombine.low %v5740, %v5756
    %v5760 = vcombine.high %v5740, %v5756
    %5761 = vrot.lane.b32.xlu0 %v5463, 96
    %v5762 = vpop.permute.xlu0 %5761
    %5763 = vrot.lane.b32.xlu0 %v5466, 96
    %v5764 = vpop.permute.xlu0 %5763
    %5765 = vrot.lane.b32.xlu0 %v5472, 96
    %v5766 = vpop.permute.xlu0 %5765
    %5767 = vrot.lane.b32.xlu0 %v5474, 96
    %v5768 = vpop.permute.xlu0 %5767
    %5769 = vrot.lane.b32.xlu0 %v5478, 96
    %v5770 = vpop.permute.xlu0 %5769
    %5771 = vrot.lane.b32.xlu0 %v5480, 96
    %v5772 = vpop.permute.xlu0 %5771
    %5773 = vrot.lane.b32.xlu0 %v5484, 96
    %v5774 = vpop.permute.xlu0 %5773
    %5775 = vrot.lane.b32.xlu0 %v5486, 96
    %v5776 = vpop.permute.xlu0 %5775
    %v5785 = vcombine.low %v5762, %v5770
    %v5786 = vcombine.high %v5762, %v5770
    %v5788 = vunpack.c.l.s4 1983009808
    %v5789 = vunpack.c.0.s8 %v5788
    %v5790 = vlaneseq
    %v5791 = vshrl.u32 %v5790, 7
    %v5792 = vsub.s32 %v5789, %v5791
    %v5793 = vrot.slane %v5785, %v5792
    %v5795 = vunpack.c.l.s4 1983009808
    %v5796 = vunpack.c.0.s8 %v5795
    %v5797 = vlaneseq
    %v5798 = vshrl.u32 %v5797, 7
    %v5799 = vsub.s32 %v5796, %v5798
    %v5800 = vrot.slane %v5786, %v5799
    %v5801 = vcombine.low %v5766, %v5774
    %v5802 = vcombine.high %v5766, %v5774
    %v5804 = vunpack.c.l.s4 1983009808
    %v5805 = vunpack.c.0.s8 %v5804
    %v5806 = vlaneseq
    %v5807 = vshrl.u32 %v5806, 7
    %v5808 = vsub.s32 %v5805, %v5807
    %v5809 = vrot.slane %v5801, %v5808
    %v5811 = vunpack.c.l.s4 1983009808
    %v5812 = vunpack.c.0.s8 %v5811
    %v5813 = vlaneseq
    %v5814 = vshrl.u32 %v5813, 7
    %v5815 = vsub.s32 %v5812, %v5814
    %v5816 = vrot.slane %v5802, %v5815
    %v5817 = vcombine.low %v5793, %v5809
    %v5818 = vcombine.high %v5793, %v5809
    %v5820 = vunpack.c.l.s4 1934713408
    %v5821 = vunpack.c.0.s8 %v5820
    %v5822 = vlaneseq
    %v5823 = vshrl.u32 %v5822, 7
    %v5824 = vsub.s32 %v5821, %v5823
    %v5825 = vrot.slane %v5817, %v5824
    %v5827 = vunpack.c.l.s4 1934713408
    %v5828 = vunpack.c.0.s8 %v5827
    %v5829 = vlaneseq
    %v5830 = vshrl.u32 %v5829, 7
    %v5831 = vsub.s32 %v5828, %v5830
    %v5832 = vrot.slane %v5818, %v5831
    %v5833 = vcombine.low %v5800, %v5816
    %v5834 = vcombine.high %v5800, %v5816
    %v5836 = vunpack.c.l.s4 1934713408
    %v5837 = vunpack.c.0.s8 %v5836
    %v5838 = vlaneseq
    %v5839 = vshrl.u32 %v5838, 7
    %v5840 = vsub.s32 %v5837, %v5839
    %v5841 = vrot.slane %v5833, %v5840
    %v5843 = vunpack.c.l.s4 1934713408
    %v5844 = vunpack.c.0.s8 %v5843
    %v5845 = vlaneseq
    %v5846 = vshrl.u32 %v5845, 7
    %v5847 = vsub.s32 %v5844, %v5846
    %v5848 = vrot.slane %v5834, %v5847
    %v5849 = vcombine.high %v5825, 0.0
    %v5850 = vcombine.high %v5832, 0.0
    %v5851 = vcombine.high %v5841, 0.0
    %v5852 = vcombine.high %v5848, 0.0
    %v5853 = vcombine.low %v5764, %v5772
    %v5854 = vcombine.high %v5764, %v5772
    %v5856 = vunpack.c.l.s4 1983009808
    %v5857 = vunpack.c.0.s8 %v5856
    %v5858 = vlaneseq
    %v5859 = vshrl.u32 %v5858, 7
    %v5860 = vsub.s32 %v5857, %v5859
    %v5861 = vrot.slane %v5853, %v5860
    %v5863 = vunpack.c.l.s4 1983009808
    %v5864 = vunpack.c.0.s8 %v5863
    %v5865 = vlaneseq
    %v5866 = vshrl.u32 %v5865, 7
    %v5867 = vsub.s32 %v5864, %v5866
    %v5868 = vrot.slane %v5854, %v5867
    %v5869 = vcombine.low %v5768, %v5776
    %v5870 = vcombine.high %v5768, %v5776
    %v5872 = vunpack.c.l.s4 1983009808
    %v5873 = vunpack.c.0.s8 %v5872
    %v5874 = vlaneseq
    %v5875 = vshrl.u32 %v5874, 7
    %v5876 = vsub.s32 %v5873, %v5875
    %v5877 = vrot.slane %v5869, %v5876
    %v5879 = vunpack.c.l.s4 1983009808
    %v5880 = vunpack.c.0.s8 %v5879
    %v5881 = vlaneseq
    %v5882 = vshrl.u32 %v5881, 7
    %v5883 = vsub.s32 %v5880, %v5882
    %v5884 = vrot.slane %v5870, %v5883
    %v5885 = vcombine.low %v5861, %v5877
    %v5886 = vcombine.high %v5861, %v5877
    %v5888 = vunpack.c.l.s4 1934713408
    %v5889 = vunpack.c.0.s8 %v5888
    %v5890 = vlaneseq
    %v5891 = vshrl.u32 %v5890, 7
    %v5892 = vsub.s32 %v5889, %v5891
    %v5893 = vrot.slane %v5885, %v5892
    %v5895 = vunpack.c.l.s4 1934713408
    %v5896 = vunpack.c.0.s8 %v5895
    %v5897 = vlaneseq
    %v5898 = vshrl.u32 %v5897, 7
    %v5899 = vsub.s32 %v5896, %v5898
    %v5900 = vrot.slane %v5886, %v5899
    %v5901 = vcombine.low %v5868, %v5884
    %v5902 = vcombine.high %v5868, %v5884
    %v5904 = vunpack.c.l.s4 1934713408
    %v5905 = vunpack.c.0.s8 %v5904
    %v5906 = vlaneseq
    %v5907 = vshrl.u32 %v5906, 7
    %v5908 = vsub.s32 %v5905, %v5907
    %v5909 = vrot.slane %v5901, %v5908
    %v5911 = vunpack.c.l.s4 1934713408
    %v5912 = vunpack.c.0.s8 %v5911
    %v5913 = vlaneseq
    %v5914 = vshrl.u32 %v5913, 7
    %v5915 = vsub.s32 %v5912, %v5914
    %v5916 = vrot.slane %v5902, %v5915
    %v5917 = vcombine.high %v5893, 0.0
    %v5918 = vcombine.high %v5900, 0.0
    %v5919 = vcombine.high %v5909, 0.0
    %v5920 = vcombine.high %v5916, 0.0
    %v5921 = vcombine.low %v5825, %v5832
    %v5923 = vunpack.c.l.s4 1983009808
    %v5924 = vunpack.c.0.s8 %v5923
    %v5925 = vlaneseq
    %v5926 = vshrl.u32 %v5925, 7
    %v5927 = vsub.s32 %v5924, %v5926
    %v5928 = vrot.slane %v5921, %v5927
    %v5929 = vcombine.low %v5849, %v5850
    %v5931 = vunpack.c.l.s4 1983009808
    %v5932 = vunpack.c.0.s8 %v5931
    %v5933 = vlaneseq
    %v5934 = vshrl.u32 %v5933, 7
    %v5935 = vsub.s32 %v5932, %v5934
    %v5936 = vrot.slane %v5929, %v5935
    %v5937 = vcombine.low %v5841, %v5848
    %v5939 = vunpack.c.l.s4 1983009808
    %v5940 = vunpack.c.0.s8 %v5939
    %v5941 = vlaneseq
    %v5942 = vshrl.u32 %v5941, 7
    %v5943 = vsub.s32 %v5940, %v5942
    %v5944 = vrot.slane %v5937, %v5943
    %v5945 = vcombine.low %v5851, %v5852
    %v5947 = vunpack.c.l.s4 1983009808
    %v5948 = vunpack.c.0.s8 %v5947
    %v5949 = vlaneseq
    %v5950 = vshrl.u32 %v5949, 7
    %v5951 = vsub.s32 %v5948, %v5950
    %v5952 = vrot.slane %v5945, %v5951
    %v5953 = vcombine.low %v5928, %v5936
    %v5954 = vcombine.high %v5928, %v5936
    %v5956 = vunpack.c.l.s4 1934713408
    %v5957 = vunpack.c.0.s8 %v5956
    %v5958 = vlaneseq
    %v5959 = vshrl.u32 %v5958, 7
    %v5960 = vsub.s32 %v5957, %v5959
    %v5961 = vrot.slane %v5953, %v5960
    %v5963 = vunpack.c.l.s4 1934713408
    %v5964 = vunpack.c.0.s8 %v5963
    %v5965 = vlaneseq
    %v5966 = vshrl.u32 %v5965, 7
    %v5967 = vsub.s32 %v5964, %v5966
    %v5968 = vrot.slane %v5954, %v5967
    %v5969 = vcombine.low %v5944, %v5952
    %v5970 = vcombine.high %v5944, %v5952
    %v5972 = vunpack.c.l.s4 1934713408
    %v5973 = vunpack.c.0.s8 %v5972
    %v5974 = vlaneseq
    %v5975 = vshrl.u32 %v5974, 7
    %v5976 = vsub.s32 %v5973, %v5975
    %v5977 = vrot.slane %v5969, %v5976
    %v5979 = vunpack.c.l.s4 1934713408
    %v5980 = vunpack.c.0.s8 %v5979
    %v5981 = vlaneseq
    %v5982 = vshrl.u32 %v5981, 7
    %v5983 = vsub.s32 %v5980, %v5982
    %v5984 = vrot.slane %v5970, %v5983
    %v5985 = vcombine.low %v5961, %v5977
    %v5986 = vcombine.high %v5961, %v5977
    %v5987 = vcombine.low %v5968, %v5984
    %v5988 = vcombine.high %v5968, %v5984
    %v5989 = vcombine.low %v5893, %v5900
    %v5991 = vunpack.c.l.s4 1983009808
    %v5992 = vunpack.c.0.s8 %v5991
    %v5993 = vlaneseq
    %v5994 = vshrl.u32 %v5993, 7
    %v5995 = vsub.s32 %v5992, %v5994
    %v5996 = vrot.slane %v5989, %v5995
    %v5997 = vcombine.low %v5917, %v5918
    %v5999 = vunpack.c.l.s4 1983009808
    %v6000 = vunpack.c.0.s8 %v5999
    %v6001 = vlaneseq
    %v6002 = vshrl.u32 %v6001, 7
    %v6003 = vsub.s32 %v6000, %v6002
    %v6004 = vrot.slane %v5997, %v6003
    %v6005 = vcombine.low %v5909, %v5916
    %v6007 = vunpack.c.l.s4 1983009808
    %v6008 = vunpack.c.0.s8 %v6007
    %v6009 = vlaneseq
    %v6010 = vshrl.u32 %v6009, 7
    %v6011 = vsub.s32 %v6008, %v6010
    %v6012 = vrot.slane %v6005, %v6011
    %v6013 = vcombine.low %v5919, %v5920
    %v6015 = vunpack.c.l.s4 1983009808
    %v6016 = vunpack.c.0.s8 %v6015
    %v6017 = vlaneseq
    %v6018 = vshrl.u32 %v6017, 7
    %v6019 = vsub.s32 %v6016, %v6018
    %v6020 = vrot.slane %v6013, %v6019
    %v6021 = vcombine.low %v5996, %v6004
    %v6022 = vcombine.high %v5996, %v6004
    %v6024 = vunpack.c.l.s4 1934713408
    %v6025 = vunpack.c.0.s8 %v6024
    %v6026 = vlaneseq
    %v6027 = vshrl.u32 %v6026, 7
    %v6028 = vsub.s32 %v6025, %v6027
    %v6029 = vrot.slane %v6021, %v6028
    %v6031 = vunpack.c.l.s4 1934713408
    %v6032 = vunpack.c.0.s8 %v6031
    %v6033 = vlaneseq
    %v6034 = vshrl.u32 %v6033, 7
    %v6035 = vsub.s32 %v6032, %v6034
    %v6036 = vrot.slane %v6022, %v6035
    %v6037 = vcombine.low %v6012, %v6020
    %v6038 = vcombine.high %v6012, %v6020
    %v6040 = vunpack.c.l.s4 1934713408
    %v6041 = vunpack.c.0.s8 %v6040
    %v6042 = vlaneseq
    %v6043 = vshrl.u32 %v6042, 7
    %v6044 = vsub.s32 %v6041, %v6043
    %v6045 = vrot.slane %v6037, %v6044
    %v6047 = vunpack.c.l.s4 1934713408
    %v6048 = vunpack.c.0.s8 %v6047
    %v6049 = vlaneseq
    %v6050 = vshrl.u32 %v6049, 7
    %v6051 = vsub.s32 %v6048, %v6050
    %v6052 = vrot.slane %v6038, %v6051
    %v6053 = vcombine.low %v6029, %v6045
    %v6054 = vcombine.high %v6029, %v6045
    %v6055 = vcombine.low %v6036, %v6052
    %v6056 = vcombine.high %v6036, %v6052
    %6057 = vrot.lane.b32.xlu0 %v5463, 64
    %v6058 = vpop.permute.xlu0 %6057
    %6059 = vrot.lane.b32.xlu0 %v5466, 64
    %v6060 = vpop.permute.xlu0 %6059
    %6061 = vrot.lane.b32.xlu0 %v5472, 64
    %v6062 = vpop.permute.xlu0 %6061
    %6063 = vrot.lane.b32.xlu0 %v5474, 64
    %v6064 = vpop.permute.xlu0 %6063
    %6065 = vrot.lane.b32.xlu0 %v5478, 64
    %v6066 = vpop.permute.xlu0 %6065
    %6067 = vrot.lane.b32.xlu0 %v5480, 64
    %v6068 = vpop.permute.xlu0 %6067
    %6069 = vrot.lane.b32.xlu0 %v5484, 64
    %v6070 = vpop.permute.xlu0 %6069
    %6071 = vrot.lane.b32.xlu0 %v5486, 64
    %v6072 = vpop.permute.xlu0 %6071
    %v6081 = vcombine.low %v6058, %v6066
    %v6082 = vcombine.high %v6058, %v6066
    %v6084 = vunpack.c.l.s4 1983009808
    %v6085 = vunpack.c.0.s8 %v6084
    %v6086 = vlaneseq
    %v6087 = vshrl.u32 %v6086, 7
    %v6088 = vsub.s32 %v6085, %v6087
    %v6089 = vrot.slane %v6081, %v6088
    %v6091 = vunpack.c.l.s4 1983009808
    %v6092 = vunpack.c.0.s8 %v6091
    %v6093 = vlaneseq
    %v6094 = vshrl.u32 %v6093, 7
    %v6095 = vsub.s32 %v6092, %v6094
    %v6096 = vrot.slane %v6082, %v6095
    %v6097 = vcombine.low %v6062, %v6070
    %v6098 = vcombine.high %v6062, %v6070
    %v6100 = vunpack.c.l.s4 1983009808
    %v6101 = vunpack.c.0.s8 %v6100
    %v6102 = vlaneseq
    %v6103 = vshrl.u32 %v6102, 7
    %v6104 = vsub.s32 %v6101, %v6103
    %v6105 = vrot.slane %v6097, %v6104
    %v6107 = vunpack.c.l.s4 1983009808
    %v6108 = vunpack.c.0.s8 %v6107
    %v6109 = vlaneseq
    %v6110 = vshrl.u32 %v6109, 7
    %v6111 = vsub.s32 %v6108, %v6110
    %v6112 = vrot.slane %v6098, %v6111
    %v6113 = vcombine.low %v6089, %v6105
    %v6114 = vcombine.high %v6089, %v6105
    %v6116 = vunpack.c.l.s4 1934713408
    %v6117 = vunpack.c.0.s8 %v6116
    %v6118 = vlaneseq
    %v6119 = vshrl.u32 %v6118, 7
    %v6120 = vsub.s32 %v6117, %v6119
    %v6121 = vrot.slane %v6113, %v6120
    %v6123 = vunpack.c.l.s4 1934713408
    %v6124 = vunpack.c.0.s8 %v6123
    %v6125 = vlaneseq
    %v6126 = vshrl.u32 %v6125, 7
    %v6127 = vsub.s32 %v6124, %v6126
    %v6128 = vrot.slane %v6114, %v6127
    %v6129 = vcombine.low %v6096, %v6112
    %v6130 = vcombine.high %v6096, %v6112
    %v6132 = vunpack.c.l.s4 1934713408
    %v6133 = vunpack.c.0.s8 %v6132
    %v6134 = vlaneseq
    %v6135 = vshrl.u32 %v6134, 7
    %v6136 = vsub.s32 %v6133, %v6135
    %v6137 = vrot.slane %v6129, %v6136
    %v6139 = vunpack.c.l.s4 1934713408
    %v6140 = vunpack.c.0.s8 %v6139
    %v6141 = vlaneseq
    %v6142 = vshrl.u32 %v6141, 7
    %v6143 = vsub.s32 %v6140, %v6142
    %v6144 = vrot.slane %v6130, %v6143
    %v6145 = vcombine.high %v6121, 0.0
    %v6146 = vcombine.high %v6128, 0.0
    %v6147 = vcombine.high %v6137, 0.0
    %v6148 = vcombine.high %v6144, 0.0
    %v6149 = vcombine.low %v6060, %v6068
    %v6150 = vcombine.high %v6060, %v6068
    %v6152 = vunpack.c.l.s4 1983009808
    %v6153 = vunpack.c.0.s8 %v6152
    %v6154 = vlaneseq
    %v6155 = vshrl.u32 %v6154, 7
    %v6156 = vsub.s32 %v6153, %v6155
    %v6157 = vrot.slane %v6149, %v6156
    %v6159 = vunpack.c.l.s4 1983009808
    %v6160 = vunpack.c.0.s8 %v6159
    %v6161 = vlaneseq
    %v6162 = vshrl.u32 %v6161, 7
    %v6163 = vsub.s32 %v6160, %v6162
    %v6164 = vrot.slane %v6150, %v6163
    %v6165 = vcombine.low %v6064, %v6072
    %v6166 = vcombine.high %v6064, %v6072
    %v6168 = vunpack.c.l.s4 1983009808
    %v6169 = vunpack.c.0.s8 %v6168
    %v6170 = vlaneseq
    %v6171 = vshrl.u32 %v6170, 7
    %v6172 = vsub.s32 %v6169, %v6171
    %v6173 = vrot.slane %v6165, %v6172
    %v6175 = vunpack.c.l.s4 1983009808
    %v6176 = vunpack.c.0.s8 %v6175
    %v6177 = vlaneseq
    %v6178 = vshrl.u32 %v6177, 7
    %v6179 = vsub.s32 %v6176, %v6178
    %v6180 = vrot.slane %v6166, %v6179
    %v6181 = vcombine.low %v6157, %v6173
    %v6182 = vcombine.high %v6157, %v6173
    %v6184 = vunpack.c.l.s4 1934713408
    %v6185 = vunpack.c.0.s8 %v6184
    %v6186 = vlaneseq
    %v6187 = vshrl.u32 %v6186, 7
    %v6188 = vsub.s32 %v6185, %v6187
    %v6189 = vrot.slane %v6181, %v6188
    %v6191 = vunpack.c.l.s4 1934713408
    %v6192 = vunpack.c.0.s8 %v6191
    %v6193 = vlaneseq
    %v6194 = vshrl.u32 %v6193, 7
    %v6195 = vsub.s32 %v6192, %v6194
    %v6196 = vrot.slane %v6182, %v6195
    %v6197 = vcombine.low %v6164, %v6180
    %v6198 = vcombine.high %v6164, %v6180
    %v6200 = vunpack.c.l.s4 1934713408
    %v6201 = vunpack.c.0.s8 %v6200
    %v6202 = vlaneseq
    %v6203 = vshrl.u32 %v6202, 7
    %v6204 = vsub.s32 %v6201, %v6203
    %v6205 = vrot.slane %v6197, %v6204
    %v6207 = vunpack.c.l.s4 1934713408
    %v6208 = vunpack.c.0.s8 %v6207
    %v6209 = vlaneseq
    %v6210 = vshrl.u32 %v6209, 7
    %v6211 = vsub.s32 %v6208, %v6210
    %v6212 = vrot.slane %v6198, %v6211
    %v6213 = vcombine.high %v6189, 0.0
    %v6214 = vcombine.high %v6196, 0.0
    %v6215 = vcombine.high %v6205, 0.0
    %v6216 = vcombine.high %v6212, 0.0
    %v6217 = vcombine.low %v6121, %v6128
    %v6219 = vunpack.c.l.s4 1983009808
    %v6220 = vunpack.c.0.s8 %v6219
    %v6221 = vlaneseq
    %v6222 = vshrl.u32 %v6221, 7
    %v6223 = vsub.s32 %v6220, %v6222
    %v6224 = vrot.slane %v6217, %v6223
    %v6225 = vcombine.low %v6145, %v6146
    %v6227 = vunpack.c.l.s4 1983009808
    %v6228 = vunpack.c.0.s8 %v6227
    %v6229 = vlaneseq
    %v6230 = vshrl.u32 %v6229, 7
    %v6231 = vsub.s32 %v6228, %v6230
    %v6232 = vrot.slane %v6225, %v6231
    %v6233 = vcombine.low %v6137, %v6144
    %v6235 = vunpack.c.l.s4 1983009808
    %v6236 = vunpack.c.0.s8 %v6235
    %v6237 = vlaneseq
    %v6238 = vshrl.u32 %v6237, 7
    %v6239 = vsub.s32 %v6236, %v6238
    %v6240 = vrot.slane %v6233, %v6239
    %v6241 = vcombine.low %v6147, %v6148
    %v6243 = vunpack.c.l.s4 1983009808
    %v6244 = vunpack.c.0.s8 %v6243
    %v6245 = vlaneseq
    %v6246 = vshrl.u32 %v6245, 7
    %v6247 = vsub.s32 %v6244, %v6246
    %v6248 = vrot.slane %v6241, %v6247
    %v6249 = vcombine.low %v6224, %v6232
    %v6250 = vcombine.high %v6224, %v6232
    %v6252 = vunpack.c.l.s4 1934713408
    %v6253 = vunpack.c.0.s8 %v6252
    %v6254 = vlaneseq
    %v6255 = vshrl.u32 %v6254, 7
    %v6256 = vsub.s32 %v6253, %v6255
    %v6257 = vrot.slane %v6249, %v6256
    %v6259 = vunpack.c.l.s4 1934713408
    %v6260 = vunpack.c.0.s8 %v6259
    %v6261 = vlaneseq
    %v6262 = vshrl.u32 %v6261, 7
    %v6263 = vsub.s32 %v6260, %v6262
    %v6264 = vrot.slane %v6250, %v6263
    %v6265 = vcombine.low %v6240, %v6248
    %v6266 = vcombine.high %v6240, %v6248
    %v6268 = vunpack.c.l.s4 1934713408
    %v6269 = vunpack.c.0.s8 %v6268
    %v6270 = vlaneseq
    %v6271 = vshrl.u32 %v6270, 7
    %v6272 = vsub.s32 %v6269, %v6271
    %v6273 = vrot.slane %v6265, %v6272
    %v6275 = vunpack.c.l.s4 1934713408
    %v6276 = vunpack.c.0.s8 %v6275
    %v6277 = vlaneseq
    %v6278 = vshrl.u32 %v6277, 7
    %v6279 = vsub.s32 %v6276, %v6278
    %v6280 = vrot.slane %v6266, %v6279
    %v6281 = vcombine.low %v6257, %v6273
    %v6282 = vcombine.high %v6257, %v6273
    %v6283 = vcombine.low %v6264, %v6280
    %v6284 = vcombine.high %v6264, %v6280
    %v6285 = vcombine.low %v6189, %v6196
    %v6287 = vunpack.c.l.s4 1983009808
    %v6288 = vunpack.c.0.s8 %v6287
    %v6289 = vlaneseq
    %v6290 = vshrl.u32 %v6289, 7
    %v6291 = vsub.s32 %v6288, %v6290
    %v6292 = vrot.slane %v6285, %v6291
    %v6293 = vcombine.low %v6213, %v6214
    %v6295 = vunpack.c.l.s4 1983009808
    %v6296 = vunpack.c.0.s8 %v6295
    %v6297 = vlaneseq
    %v6298 = vshrl.u32 %v6297, 7
    %v6299 = vsub.s32 %v6296, %v6298
    %v6300 = vrot.slane %v6293, %v6299
    %v6301 = vcombine.low %v6205, %v6212
    %v6303 = vunpack.c.l.s4 1983009808
    %v6304 = vunpack.c.0.s8 %v6303
    %v6305 = vlaneseq
    %v6306 = vshrl.u32 %v6305, 7
    %v6307 = vsub.s32 %v6304, %v6306
    %v6308 = vrot.slane %v6301, %v6307
    %v6309 = vcombine.low %v6215, %v6216
    %v6311 = vunpack.c.l.s4 1983009808
    %v6312 = vunpack.c.0.s8 %v6311
    %v6313 = vlaneseq
    %v6314 = vshrl.u32 %v6313, 7
    %v6315 = vsub.s32 %v6312, %v6314
    %v6316 = vrot.slane %v6309, %v6315
    %v6317 = vcombine.low %v6292, %v6300
    %v6318 = vcombine.high %v6292, %v6300
    %v6320 = vunpack.c.l.s4 1934713408
    %v6321 = vunpack.c.0.s8 %v6320
    %v6322 = vlaneseq
    %v6323 = vshrl.u32 %v6322, 7
    %v6324 = vsub.s32 %v6321, %v6323
    %v6325 = vrot.slane %v6317, %v6324
    %v6327 = vunpack.c.l.s4 1934713408
    %v6328 = vunpack.c.0.s8 %v6327
    %v6329 = vlaneseq
    %v6330 = vshrl.u32 %v6329, 7
    %v6331 = vsub.s32 %v6328, %v6330
    %v6332 = vrot.slane %v6318, %v6331
    %v6333 = vcombine.low %v6308, %v6316
    %v6334 = vcombine.high %v6308, %v6316
    %v6336 = vunpack.c.l.s4 1934713408
    %v6337 = vunpack.c.0.s8 %v6336
    %v6338 = vlaneseq
    %v6339 = vshrl.u32 %v6338, 7
    %v6340 = vsub.s32 %v6337, %v6339
    %v6341 = vrot.slane %v6333, %v6340
    %v6343 = vunpack.c.l.s4 1934713408
    %v6344 = vunpack.c.0.s8 %v6343
    %v6345 = vlaneseq
    %v6346 = vshrl.u32 %v6345, 7
    %v6347 = vsub.s32 %v6344, %v6346
    %v6348 = vrot.slane %v6334, %v6347
    %v6349 = vcombine.low %v6325, %v6341
    %v6350 = vcombine.high %v6325, %v6341
    %v6351 = vcombine.low %v6332, %v6348
    %v6352 = vcombine.high %v6332, %v6348
    %v6353 = vpack.c.bf16 %v5689, %v5689
    %v6354 = vpack.c.bf16 %v5690, %v5690
    %v6355 = vpack.c.bf16 %v5691, %v5691
    %v6356 = vpack.c.bf16 %v5692, %v5692
    %v6357 = vpack.c.bf16 %v5757, %v5757
    %v6358 = vpack.c.bf16 %v5758, %v5758
    %v6359 = vpack.c.bf16 %v5759, %v5759
    %v6360 = vpack.c.bf16 %v5760, %v5760
    %v6361 = vpack.c.bf16 %v5985, %v5985
    %v6362 = vpack.c.bf16 %v5986, %v5986
    %v6363 = vpack.c.bf16 %v5987, %v5987
    %v6364 = vpack.c.bf16 %v5988, %v5988
    %v6365 = vpack.c.bf16 %v6053, %v6053
    %v6366 = vpack.c.bf16 %v6054, %v6054
    %v6367 = vpack.c.bf16 %v6055, %v6055
    %v6368 = vpack.c.bf16 %v6056, %v6056
    %v6370 = vsel %vm1112, %v6353, 0
    %v6373 = vsel %vm1112, %v6361, 0
    %6375 = vmatprep.subr.bf16.mxu0 0
    %6376 = vmatpush1.bf16.xpose.msra.mxu0 %v6373
    %6377 = vmatprep.subr.bf16.mxu0 0
    %6378 = vmatpush1.bf16.xpose.msra.mxu0 0
    %6379 = vmatprep.subr.bf16.mxu0 0
    %6380 = vmatpush1.bf16.xpose.msra.mxu0 0
    %6381 = vmatprep.subr.bf16.mxu0 0
    %6382 = vmatpush1.bf16.xpose.msra.mxu0 0
    %6383 = vmatprep.subr.bf16.mxu0 0
    %6384 = vmatpush1.bf16.xpose.msra.mxu0 0
    %6385 = vmatprep.subr.bf16.mxu0 0
    %6386 = vmatpush1.bf16.xpose.msra.mxu0 0
    %6387 = vmatprep.subr.bf16.mxu0 0
    %6388 = vmatpush1.bf16.xpose.msra.mxu0 0
    %6389 = vmatprep.subr.bf16.mxu0 0
    %6390 = vmatpush1.bf16.xpose.msra.mxu0 0
    %6391 = vmatprep.subr.bf16.mxu0 0
    %6392 = vmatpush1.bf16.xpose.msra.mxu0 0
    %6393 = vmatprep.subr.bf16.mxu0 0
    %6394 = vmatpush1.bf16.xpose.msra.mxu0 0
    %6395 = vmatprep.subr.bf16.mxu0 0
    %6396 = vmatpush1.bf16.xpose.msra.mxu0 0
    %6397 = vmatprep.subr.bf16.mxu0 0
    %6398 = vmatpush1.bf16.xpose.msra.mxu0 0
    %6399 = vmatprep.subr.bf16.mxu0 0
    %6400 = vmatpush1.bf16.xpose.msra.mxu0 0
    %6401 = vmatprep.subr.bf16.mxu0 0
    %6402 = vmatpush1.bf16.xpose.msra.mxu0 0
    %6403 = vmatprep.subr.bf16.mxu0 0
    %6404 = vmatpush1.bf16.xpose.msra.mxu0 0
    %6405 = vmatprep.subr.bf16.mxu0 0
    %6406 = vmatpush1.bf16.xpose.msra.mxu0 0
    %6407 = vmatprep.mubr.bf16.mxu0 0
    %6408 = vmatmul.mubr.bf16.gmra.mrb[0].mxu0 %v6370
    %v6409 = vpop.f32.mrb[0].mxu0
    %v6410 = vadd.f32 %v105, %v6409
    %v6411 = vpop.f32.mrb[0].mxu0
    %v6412 = vpop.f32.mrb[0].mxu0
    %v6413 = vpop.f32.mrb[0].mxu0
    %6414 = vdwg.mxu0
    %v6416 = vsel %vm1112, %v6354, 0
    %v6419 = vsel %vm1112, %v6362, 0
    %6421 = vmatprep.subr.bf16.mxu0 0
    %6422 = vmatpush1.bf16.xpose.msra.mxu0 %v6419
    %6423 = vmatprep.subr.bf16.mxu0 0
    %6424 = vmatpush1.bf16.xpose.msra.mxu0 0
    %6425 = vmatprep.subr.bf16.mxu0 0
    %6426 = vmatpush1.bf16.xpose.msra.mxu0 0
    %6427 = vmatprep.subr.bf16.mxu0 0
    %6428 = vmatpush1.bf16.xpose.msra.mxu0 0
    %6429 = vmatprep.subr.bf16.mxu0 0
    %6430 = vmatpush1.bf16.xpose.msra.mxu0 0
    %6431 = vmatprep.subr.bf16.mxu0 0
    %6432 = vmatpush1.bf16.xpose.msra.mxu0 0
    %6433 = vmatprep.subr.bf16.mxu0 0
    %6434 = vmatpush1.bf16.xpose.msra.mxu0 0
    %6435 = vmatprep.subr.bf16.mxu0 0
    %6436 = vmatpush1.bf16.xpose.msra.mxu0 0
    %6437 = vmatprep.subr.bf16.mxu0 0
    %6438 = vmatpush1.bf16.xpose.msra.mxu0 0
    %6439 = vmatprep.subr.bf16.mxu0 0
    %6440 = vmatpush1.bf16.xpose.msra.mxu0 0
    %6441 = vmatprep.subr.bf16.mxu0 0
    %6442 = vmatpush1.bf16.xpose.msra.mxu0 0
    %6443 = vmatprep.subr.bf16.mxu0 0
    %6444 = vmatpush1.bf16.xpose.msra.mxu0 0
    %6445 = vmatprep.subr.bf16.mxu0 0
    %6446 = vmatpush1.bf16.xpose.msra.mxu0 0
    %6447 = vmatprep.subr.bf16.mxu0 0
    %6448 = vmatpush1.bf16.xpose.msra.mxu0 0
    %6449 = vmatprep.subr.bf16.mxu0 0
    %6450 = vmatpush1.bf16.xpose.msra.mxu0 0
    %6451 = vmatprep.subr.bf16.mxu0 0
    %6452 = vmatpush1.bf16.xpose.msra.mxu0 0
    %6453 = vmatprep.mubr.bf16.mxu0 0
    %6454 = vmatmul.mubr.bf16.gmra.mrb[0].mxu0 %v6416
    %v6455 = vpop.f32.mrb[0].mxu0
    %v6456 = vadd.f32 %v105, %v6455
    %v6457 = vpop.f32.mrb[0].mxu0
    %v6458 = vpop.f32.mrb[0].mxu0
    %v6459 = vpop.f32.mrb[0].mxu0
    %6460 = vdwg.mxu0
    %v6462 = vsel %vm1112, %v6355, 0
    %v6465 = vsel %vm1112, %v6363, 0
    %6467 = vmatprep.subr.bf16.mxu0 0
    %6468 = vmatpush1.bf16.xpose.msra.mxu0 %v6465
    %6469 = vmatprep.subr.bf16.mxu0 0
    %6470 = vmatpush1.bf16.xpose.msra.mxu0 0
    %6471 = vmatprep.subr.bf16.mxu0 0
    %6472 = vmatpush1.bf16.xpose.msra.mxu0 0
    %6473 = vmatprep.subr.bf16.mxu0 0
    %6474 = vmatpush1.bf16.xpose.msra.mxu0 0
    %6475 = vmatprep.subr.bf16.mxu0 0
    %6476 = vmatpush1.bf16.xpose.msra.mxu0 0
    %6477 = vmatprep.subr.bf16.mxu0 0
    %6478 = vmatpush1.bf16.xpose.msra.mxu0 0
    %6479 = vmatprep.subr.bf16.mxu0 0
    %6480 = vmatpush1.bf16.xpose.msra.mxu0 0
    %6481 = vmatprep.subr.bf16.mxu0 0
    %6482 = vmatpush1.bf16.xpose.msra.mxu0 0
    %6483 = vmatprep.subr.bf16.mxu0 0
    %6484 = vmatpush1.bf16.xpose.msra.mxu0 0
    %6485 = vmatprep.subr.bf16.mxu0 0
    %6486 = vmatpush1.bf16.xpose.msra.mxu0 0
    %6487 = vmatprep.subr.bf16.mxu0 0
    %6488 = vmatpush1.bf16.xpose.msra.mxu0 0
    %6489 = vmatprep.subr.bf16.mxu0 0
    %6490 = vmatpush1.bf16.xpose.msra.mxu0 0
    %6491 = vmatprep.subr.bf16.mxu0 0
    %6492 = vmatpush1.bf16.xpose.msra.mxu0 0
    %6493 = vmatprep.subr.bf16.mxu0 0
    %6494 = vmatpush1.bf16.xpose.msra.mxu0 0
    %6495 = vmatprep.subr.bf16.mxu0 0
    %6496 = vmatpush1.bf16.xpose.msra.mxu0 0
    %6497 = vmatprep.subr.bf16.mxu0 0
    %6498 = vmatpush1.bf16.xpose.msra.mxu0 0
    %6499 = vmatprep.mubr.bf16.mxu0 0
    %6500 = vmatmul.mubr.bf16.gmra.mrb[0].mxu0 %v6462
    %v6501 = vpop.f32.mrb[0].mxu0
    %v6502 = vadd.f32 %v105, %v6501
    %v6503 = vpop.f32.mrb[0].mxu0
    %v6504 = vpop.f32.mrb[0].mxu0
    %v6505 = vpop.f32.mrb[0].mxu0
    %6506 = vdwg.mxu0
    %v6508 = vsel %vm1112, %v6356, 0
    %v6511 = vsel %vm1112, %v6364, 0
    %6513 = vmatprep.subr.bf16.mxu0 0
    %6514 = vmatpush1.bf16.xpose.msra.mxu0 %v6511
    %6515 = vmatprep.subr.bf16.mxu0 0
    %6516 = vmatpush1.bf16.xpose.msra.mxu0 0
    %6517 = vmatprep.subr.bf16.mxu0 0
    %6518 = vmatpush1.bf16.xpose.msra.mxu0 0
    %6519 = vmatprep.subr.bf16.mxu0 0
    %6520 = vmatpush1.bf16.xpose.msra.mxu0 0
    %6521 = vmatprep.subr.bf16.mxu0 0
    %6522 = vmatpush1.bf16.xpose.msra.mxu0 0
    %6523 = vmatprep.subr.bf16.mxu0 0
    %6524 = vmatpush1.bf16.xpose.msra.mxu0 0
    %6525 = vmatprep.subr.bf16.mxu0 0
    %6526 = vmatpush1.bf16.xpose.msra.mxu0 0
    %6527 = vmatprep.subr.bf16.mxu0 0
    %6528 = vmatpush1.bf16.xpose.msra.mxu0 0
    %6529 = vmatprep.subr.bf16.mxu0 0
    %6530 = vmatpush1.bf16.xpose.msra.mxu0 0
    %6531 = vmatprep.subr.bf16.mxu0 0
    %6532 = vmatpush1.bf16.xpose.msra.mxu0 0
    %6533 = vmatprep.subr.bf16.mxu0 0
    %6534 = vmatpush1.bf16.xpose.msra.mxu0 0
    %6535 = vmatprep.subr.bf16.mxu0 0
    %6536 = vmatpush1.bf16.xpose.msra.mxu0 0
    %6537 = vmatprep.subr.bf16.mxu0 0
    %6538 = vmatpush1.bf16.xpose.msra.mxu0 0
    %6539 = vmatprep.subr.bf16.mxu0 0
    %6540 = vmatpush1.bf16.xpose.msra.mxu0 0
    %6541 = vmatprep.subr.bf16.mxu0 0
    %6542 = vmatpush1.bf16.xpose.msra.mxu0 0
    %6543 = vmatprep.subr.bf16.mxu0 0
    %6544 = vmatpush1.bf16.xpose.msra.mxu0 0
    %6545 = vmatprep.mubr.bf16.mxu0 0
    %6546 = vmatmul.mubr.bf16.gmra.mrb[0].mxu0 %v6508
    %v6547 = vpop.f32.mrb[0].mxu0
    %v6548 = vadd.f32 %v105, %v6547
    %v6549 = vpop.f32.mrb[0].mxu0
    %v6550 = vpop.f32.mrb[0].mxu0
    %v6551 = vpop.f32.mrb[0].mxu0
    %6552 = vdwg.mxu0
    %v6554 = vsel %vm1112, %v6357, 0
    %v6557 = vsel %vm1112, %v6365, 0
    %6559 = vmatprep.subr.bf16.mxu0 0
    %6560 = vmatpush1.bf16.xpose.msra.mxu0 %v6557
    %6561 = vmatprep.subr.bf16.mxu0 0
    %6562 = vmatpush1.bf16.xpose.msra.mxu0 0
    %6563 = vmatprep.subr.bf16.mxu0 0
    %6564 = vmatpush1.bf16.xpose.msra.mxu0 0
    %6565 = vmatprep.subr.bf16.mxu0 0
    %6566 = vmatpush1.bf16.xpose.msra.mxu0 0
    %6567 = vmatprep.subr.bf16.mxu0 0
    %6568 = vmatpush1.bf16.xpose.msra.mxu0 0
    %6569 = vmatprep.subr.bf16.mxu0 0
    %6570 = vmatpush1.bf16.xpose.msra.mxu0 0
    %6571 = vmatprep.subr.bf16.mxu0 0
    %6572 = vmatpush1.bf16.xpose.msra.mxu0 0
    %6573 = vmatprep.subr.bf16.mxu0 0
    %6574 = vmatpush1.bf16.xpose.msra.mxu0 0
    %6575 = vmatprep.subr.bf16.mxu0 0
    %6576 = vmatpush1.bf16.xpose.msra.mxu0 0
    %6577 = vmatprep.subr.bf16.mxu0 0
    %6578 = vmatpush1.bf16.xpose.msra.mxu0 0
    %6579 = vmatprep.subr.bf16.mxu0 0
    %6580 = vmatpush1.bf16.xpose.msra.mxu0 0
    %6581 = vmatprep.subr.bf16.mxu0 0
    %6582 = vmatpush1.bf16.xpose.msra.mxu0 0
    %6583 = vmatprep.subr.bf16.mxu0 0
    %6584 = vmatpush1.bf16.xpose.msra.mxu0 0
    %6585 = vmatprep.subr.bf16.mxu0 0
    %6586 = vmatpush1.bf16.xpose.msra.mxu0 0
    %6587 = vmatprep.subr.bf16.mxu0 0
    %6588 = vmatpush1.bf16.xpose.msra.mxu0 0
    %6589 = vmatprep.subr.bf16.mxu0 0
    %6590 = vmatpush1.bf16.xpose.msra.mxu0 0
    %6591 = vmatprep.mubr.bf16.mxu0 0
    %6592 = vmatmul.mubr.bf16.gmra.mrb[0].mxu0 %v6554
    %v6593 = vpop.f32.mrb[0].mxu0
    %v6594 = vadd.f32 %v106, %v6593
    %v6595 = vpop.f32.mrb[0].mxu0
    %v6596 = vpop.f32.mrb[0].mxu0
    %v6597 = vpop.f32.mrb[0].mxu0
    %6598 = vdwg.mxu0
    %v6600 = vsel %vm1112, %v6358, 0
    %v6603 = vsel %vm1112, %v6366, 0
    %6605 = vmatprep.subr.bf16.mxu0 0
    %6606 = vmatpush1.bf16.xpose.msra.mxu0 %v6603
    %6607 = vmatprep.subr.bf16.mxu0 0
    %6608 = vmatpush1.bf16.xpose.msra.mxu0 0
    %6609 = vmatprep.subr.bf16.mxu0 0
    %6610 = vmatpush1.bf16.xpose.msra.mxu0 0
    %6611 = vmatprep.subr.bf16.mxu0 0
    %6612 = vmatpush1.bf16.xpose.msra.mxu0 0
    %6613 = vmatprep.subr.bf16.mxu0 0
    %6614 = vmatpush1.bf16.xpose.msra.mxu0 0
    %6615 = vmatprep.subr.bf16.mxu0 0
    %6616 = vmatpush1.bf16.xpose.msra.mxu0 0
    %6617 = vmatprep.subr.bf16.mxu0 0
    %6618 = vmatpush1.bf16.xpose.msra.mxu0 0
    %6619 = vmatprep.subr.bf16.mxu0 0
    %6620 = vmatpush1.bf16.xpose.msra.mxu0 0
    %6621 = vmatprep.subr.bf16.mxu0 0
    %6622 = vmatpush1.bf16.xpose.msra.mxu0 0
    %6623 = vmatprep.subr.bf16.mxu0 0
    %6624 = vmatpush1.bf16.xpose.msra.mxu0 0
    %6625 = vmatprep.subr.bf16.mxu0 0
    %6626 = vmatpush1.bf16.xpose.msra.mxu0 0
    %6627 = vmatprep.subr.bf16.mxu0 0
    %6628 = vmatpush1.bf16.xpose.msra.mxu0 0
    %6629 = vmatprep.subr.bf16.mxu0 0
    %6630 = vmatpush1.bf16.xpose.msra.mxu0 0
    %6631 = vmatprep.subr.bf16.mxu0 0
    %6632 = vmatpush1.bf16.xpose.msra.mxu0 0
    %6633 = vmatprep.subr.bf16.mxu0 0
    %6634 = vmatpush1.bf16.xpose.msra.mxu0 0
    %6635 = vmatprep.subr.bf16.mxu0 0
    %6636 = vmatpush1.bf16.xpose.msra.mxu0 0
    %6637 = vmatprep.mubr.bf16.mxu0 0
    %6638 = vmatmul.mubr.bf16.gmra.mrb[0].mxu0 %v6600
    %v6639 = vpop.f32.mrb[0].mxu0
    %v6640 = vadd.f32 %v106, %v6639
    %v6641 = vpop.f32.mrb[0].mxu0
    %v6642 = vpop.f32.mrb[0].mxu0
    %v6643 = vpop.f32.mrb[0].mxu0
    %6644 = vdwg.mxu0
    %v6646 = vsel %vm1112, %v6359, 0
    %v6649 = vsel %vm1112, %v6367, 0
    %6651 = vmatprep.subr.bf16.mxu0 0
    %6652 = vmatpush1.bf16.xpose.msra.mxu0 %v6649
    %6653 = vmatprep.subr.bf16.mxu0 0
    %6654 = vmatpush1.bf16.xpose.msra.mxu0 0
    %6655 = vmatprep.subr.bf16.mxu0 0
    %6656 = vmatpush1.bf16.xpose.msra.mxu0 0
    %6657 = vmatprep.subr.bf16.mxu0 0
    %6658 = vmatpush1.bf16.xpose.msra.mxu0 0
    %6659 = vmatprep.subr.bf16.mxu0 0
    %6660 = vmatpush1.bf16.xpose.msra.mxu0 0
    %6661 = vmatprep.subr.bf16.mxu0 0
    %6662 = vmatpush1.bf16.xpose.msra.mxu0 0
    %6663 = vmatprep.subr.bf16.mxu0 0
    %6664 = vmatpush1.bf16.xpose.msra.mxu0 0
    %6665 = vmatprep.subr.bf16.mxu0 0
    %6666 = vmatpush1.bf16.xpose.msra.mxu0 0
    %6667 = vmatprep.subr.bf16.mxu0 0
    %6668 = vmatpush1.bf16.xpose.msra.mxu0 0
    %6669 = vmatprep.subr.bf16.mxu0 0
    %6670 = vmatpush1.bf16.xpose.msra.mxu0 0
    %6671 = vmatprep.subr.bf16.mxu0 0
    %6672 = vmatpush1.bf16.xpose.msra.mxu0 0
    %6673 = vmatprep.subr.bf16.mxu0 0
    %6674 = vmatpush1.bf16.xpose.msra.mxu0 0
    %6675 = vmatprep.subr.bf16.mxu0 0
    %6676 = vmatpush1.bf16.xpose.msra.mxu0 0
    %6677 = vmatprep.subr.bf16.mxu0 0
    %6678 = vmatpush1.bf16.xpose.msra.mxu0 0
    %6679 = vmatprep.subr.bf16.mxu0 0
    %6680 = vmatpush1.bf16.xpose.msra.mxu0 0
    %6681 = vmatprep.subr.bf16.mxu0 0
    %6682 = vmatpush1.bf16.xpose.msra.mxu0 0
    %6683 = vmatprep.mubr.bf16.mxu0 0
    %6684 = vmatmul.mubr.bf16.gmra.mrb[0].mxu0 %v6646
    %v6685 = vpop.f32.mrb[0].mxu0
    %v6686 = vadd.f32 %v106, %v6685
    %v6687 = vpop.f32.mrb[0].mxu0
    %v6688 = vpop.f32.mrb[0].mxu0
    %v6689 = vpop.f32.mrb[0].mxu0
    %6690 = vdwg.mxu0
    %v6692 = vsel %vm1112, %v6360, 0
    %v6695 = vsel %vm1112, %v6368, 0
    %6697 = vmatprep.subr.bf16.mxu0 0
    %6698 = vmatpush1.bf16.xpose.msra.mxu0 %v6695
    %6699 = vmatprep.subr.bf16.mxu0 0
    %6700 = vmatpush1.bf16.xpose.msra.mxu0 0
    %6701 = vmatprep.subr.bf16.mxu0 0
    %6702 = vmatpush1.bf16.xpose.msra.mxu0 0
    %6703 = vmatprep.subr.bf16.mxu0 0
    %6704 = vmatpush1.bf16.xpose.msra.mxu0 0
    %6705 = vmatprep.subr.bf16.mxu0 0
    %6706 = vmatpush1.bf16.xpose.msra.mxu0 0
    %6707 = vmatprep.subr.bf16.mxu0 0
    %6708 = vmatpush1.bf16.xpose.msra.mxu0 0
    %6709 = vmatprep.subr.bf16.mxu0 0
    %6710 = vmatpush1.bf16.xpose.msra.mxu0 0
    %6711 = vmatprep.subr.bf16.mxu0 0
    %6712 = vmatpush1.bf16.xpose.msra.mxu0 0
    %6713 = vmatprep.subr.bf16.mxu0 0
    %6714 = vmatpush1.bf16.xpose.msra.mxu0 0
    %6715 = vmatprep.subr.bf16.mxu0 0
    %6716 = vmatpush1.bf16.xpose.msra.mxu0 0
    %6717 = vmatprep.subr.bf16.mxu0 0
    %6718 = vmatpush1.bf16.xpose.msra.mxu0 0
    %6719 = vmatprep.subr.bf16.mxu0 0
    %6720 = vmatpush1.bf16.xpose.msra.mxu0 0
    %6721 = vmatprep.subr.bf16.mxu0 0
    %6722 = vmatpush1.bf16.xpose.msra.mxu0 0
    %6723 = vmatprep.subr.bf16.mxu0 0
    %6724 = vmatpush1.bf16.xpose.msra.mxu0 0
    %6725 = vmatprep.subr.bf16.mxu0 0
    %6726 = vmatpush1.bf16.xpose.msra.mxu0 0
    %6727 = vmatprep.subr.bf16.mxu0 0
    %6728 = vmatpush1.bf16.xpose.msra.mxu0 0
    %6729 = vmatprep.mubr.bf16.mxu0 0
    %6730 = vmatmul.mubr.bf16.gmra.mrb[0].mxu0 %v6692
    %v6731 = vpop.f32.mrb[0].mxu0
    %v6732 = vadd.f32 %v106, %v6731
    %v6733 = vpop.f32.mrb[0].mxu0
    %v6734 = vpop.f32.mrb[0].mxu0
    %v6735 = vpop.f32.mrb[0].mxu0
    %6736 = vdwg.mxu0
    %v6737 = vsel %vm1112, %v6410, -inf
    %6738 = vmax.xlane.f32.xlu0 %v6737
    %v6739 = vpop.xlane.xlu0 %6738
    %v6740 = vsel %vm1112, %v6456, -inf
    %6741 = vmax.xlane.f32.xlu0 %v6740
    %v6742 = vpop.xlane.xlu0 %6741
    %v6743 = vsel %vm1112, %v6502, -inf
    %6744 = vmax.xlane.f32.xlu0 %v6743
    %v6745 = vpop.xlane.xlu0 %6744
    %v6746 = vsel %vm1112, %v6548, -inf
    %6747 = vmax.xlane.f32.xlu0 %v6746
    %v6748 = vpop.xlane.xlu0 %6747
    %v6749 = vsel %vm1112, %v6594, -inf
    %6750 = vmax.xlane.f32.xlu0 %v6749
    %v6751 = vpop.xlane.xlu0 %6750
    %v6752 = vsel %vm1112, %v6640, -inf
    %6753 = vmax.xlane.f32.xlu0 %v6752
    %v6754 = vpop.xlane.xlu0 %6753
    %v6755 = vsel %vm1112, %v6686, -inf
    %6756 = vmax.xlane.f32.xlu0 %v6755
    %v6757 = vpop.xlane.xlu0 %6756
    %v6758 = vsel %vm1112, %v6732, -inf
    %6759 = vmax.xlane.f32.xlu0 %v6758
    %v6760 = vpop.xlane.xlu0 %6759
    %v6761 = vsub.f32 %v6410, %v6739
    %v6762 = vsub.f32 %v6456, %v6742
    %v6763 = vsub.f32 %v6502, %v6745
    %v6764 = vsub.f32 %v6548, %v6748
    %v6765 = vsub.f32 %v6594, %v6751
    %v6766 = vsub.f32 %v6640, %v6754
    %v6767 = vsub.f32 %v6686, %v6757
    %v6768 = vsub.f32 %v6732, %v6760
    %v6769 = vmul.f32 %v6761, 1.442695
    %v6770 = vpow.pop %v6769
    %v6771 = vmul.f32 %v6762, 1.442695
    %v6772 = vpow.pop %v6771
    %v6773 = vmul.f32 %v6763, 1.442695
    %v6774 = vpow.pop %v6773
    %v6775 = vmul.f32 %v6764, 1.442695
    %v6776 = vpow.pop %v6775
    %v6777 = vmul.f32 %v6765, 1.442695
    %v6778 = vpow.pop %v6777
    %v6779 = vmul.f32 %v6766, 1.442695
    %v6780 = vpow.pop %v6779
    %v6781 = vmul.f32 %v6767, 1.442695
    %v6782 = vpow.pop %v6781
    %v6783 = vmul.f32 %v6768, 1.442695
    %v6784 = vpow.pop %v6783
    %v6785 = vsel %vm1112, %v6770, 0.0
    %6786 = vadd.xlane.f32.xlu0 %v6785
    %v6787 = vpop.xlane.xlu0 %6786
    %v6788 = vsel %vm1112, %v6772, 0.0
    %6789 = vadd.xlane.f32.xlu0 %v6788
    %v6790 = vpop.xlane.xlu0 %6789
    %v6791 = vsel %vm1112, %v6774, 0.0
    %6792 = vadd.xlane.f32.xlu0 %v6791
    %v6793 = vpop.xlane.xlu0 %6792
    %v6794 = vsel %vm1112, %v6776, 0.0
    %6795 = vadd.xlane.f32.xlu0 %v6794
    %v6796 = vpop.xlane.xlu0 %6795
    %v6797 = vsel %vm1112, %v6778, 0.0
    %6798 = vadd.xlane.f32.xlu0 %v6797
    %v6799 = vpop.xlane.xlu0 %6798
    %v6800 = vsel %vm1112, %v6780, 0.0
    %6801 = vadd.xlane.f32.xlu0 %v6800
    %v6802 = vpop.xlane.xlu0 %6801
    %v6803 = vsel %vm1112, %v6782, 0.0
    %6804 = vadd.xlane.f32.xlu0 %v6803
    %v6805 = vpop.xlane.xlu0 %6804
    %v6806 = vsel %vm1112, %v6784, 0.0
    %6807 = vadd.xlane.f32.xlu0 %v6806
    %v6808 = vpop.xlane.xlu0 %6807
    %v6809 = vrcp.pop %v6787
    %v6810 = vrcp.pop %v6790
    %v6811 = vrcp.pop %v6793
    %v6812 = vrcp.pop %v6796
    %v6813 = vrcp.pop %v6799
    %v6814 = vrcp.pop %v6802
    %v6815 = vrcp.pop %v6805
    %v6816 = vrcp.pop %v6808
    %v6817 = vmul.f32 %v6770, %v6809
    %v6818 = vmul.f32 %v6772, %v6810
    %v6819 = vmul.f32 %v6774, %v6811
    %v6820 = vmul.f32 %v6776, %v6812
    %v6821 = vmul.f32 %v6778, %v6813
    %v6822 = vmul.f32 %v6780, %v6814
    %v6823 = vmul.f32 %v6782, %v6815
    %v6824 = vmul.f32 %v6784, %v6816
    %v6825 = vpack.c.bf16 %v6817, %v6817
    %v6826 = vpack.c.bf16 %v6818, %v6818
    %v6827 = vpack.c.bf16 %v6819, %v6819
    %v6828 = vpack.c.bf16 %v6820, %v6820
    %v6829 = vpack.c.bf16 %v6821, %v6821
    %v6830 = vpack.c.bf16 %v6822, %v6822
    %v6831 = vpack.c.bf16 %v6823, %v6823
    %v6832 = vpack.c.bf16 %v6824, %v6824
    %v6833 = vpack.c.bf16 %v6281, %v6281
    %v6834 = vpack.c.bf16 %v6282, %v6282
    %v6835 = vpack.c.bf16 %v6283, %v6283
    %v6836 = vpack.c.bf16 %v6284, %v6284
    %v6837 = vpack.c.bf16 %v6349, %v6349
    %v6838 = vpack.c.bf16 %v6350, %v6350
    %v6839 = vpack.c.bf16 %v6351, %v6351
    %v6840 = vpack.c.bf16 %v6352, %v6352
    %v6842 = vsel %vm1112, %v6825, 0
    %v6845 = vsel %vm1588, %v6833, 0
    %6847 = vmatprep.subr.bf16.mxu0 0
    %6848 = vmatpush1.bf16.msra.mxu0 %v6845
    %6849 = vmatprep.subr.bf16.mxu0 0
    %6850 = vmatpush1.bf16.msra.mxu0 0
    %6851 = vmatprep.subr.bf16.mxu0 0
    %6852 = vmatpush1.bf16.msra.mxu0 0
    %6853 = vmatprep.subr.bf16.mxu0 0
    %6854 = vmatpush1.bf16.msra.mxu0 0
    %6855 = vmatprep.subr.bf16.mxu0 0
    %6856 = vmatpush1.bf16.msra.mxu0 0
    %6857 = vmatprep.subr.bf16.mxu0 0
    %6858 = vmatpush1.bf16.msra.mxu0 0
    %6859 = vmatprep.subr.bf16.mxu0 0
    %6860 = vmatpush1.bf16.msra.mxu0 0
    %6861 = vmatprep.subr.bf16.mxu0 0
    %6862 = vmatpush1.bf16.msra.mxu0 0
    %6863 = vmatprep.subr.bf16.mxu0 0
    %6864 = vmatpush1.bf16.msra.mxu0 0
    %6865 = vmatprep.subr.bf16.mxu0 0
    %6866 = vmatpush1.bf16.msra.mxu0 0
    %6867 = vmatprep.subr.bf16.mxu0 0
    %6868 = vmatpush1.bf16.msra.mxu0 0
    %6869 = vmatprep.subr.bf16.mxu0 0
    %6870 = vmatpush1.bf16.msra.mxu0 0
    %6871 = vmatprep.subr.bf16.mxu0 0
    %6872 = vmatpush1.bf16.msra.mxu0 0
    %6873 = vmatprep.subr.bf16.mxu0 0
    %6874 = vmatpush1.bf16.msra.mxu0 0
    %6875 = vmatprep.subr.bf16.mxu0 0
    %6876 = vmatpush1.bf16.msra.mxu0 0
    %6877 = vmatprep.subr.bf16.mxu0 0
    %6878 = vmatpush1.bf16.msra.mxu0 0
    %6879 = vmatprep.mubr.bf16.mxu0 0
    %6880 = vmatmul.mubr.bf16.gmra.mrb[0].mxu0 %v6842
    %v6881 = vpop.f32.mrb[0].mxu0
    %v6882 = vadd.f32 0.0, %v6881
    %v6883 = vpop.f32.mrb[0].mxu0
    %v6884 = vpop.f32.mrb[0].mxu0
    %v6885 = vpop.f32.mrb[0].mxu0
    %6886 = vdwg.mxu0
    %v6888 = vsel %vm1112, %v6826, 0
    %v6891 = vsel %vm1588, %v6834, 0
    %6893 = vmatprep.subr.bf16.mxu0 0
    %6894 = vmatpush1.bf16.msra.mxu0 %v6891
    %6895 = vmatprep.subr.bf16.mxu0 0
    %6896 = vmatpush1.bf16.msra.mxu0 0
    %6897 = vmatprep.subr.bf16.mxu0 0
    %6898 = vmatpush1.bf16.msra.mxu0 0
    %6899 = vmatprep.subr.bf16.mxu0 0
    %6900 = vmatpush1.bf16.msra.mxu0 0
    %6901 = vmatprep.subr.bf16.mxu0 0
    %6902 = vmatpush1.bf16.msra.mxu0 0
    %6903 = vmatprep.subr.bf16.mxu0 0
    %6904 = vmatpush1.bf16.msra.mxu0 0
    %6905 = vmatprep.subr.bf16.mxu0 0
    %6906 = vmatpush1.bf16.msra.mxu0 0
    %6907 = vmatprep.subr.bf16.mxu0 0
    %6908 = vmatpush1.bf16.msra.mxu0 0
    %6909 = vmatprep.subr.bf16.mxu0 0
    %6910 = vmatpush1.bf16.msra.mxu0 0
    %6911 = vmatprep.subr.bf16.mxu0 0
    %6912 = vmatpush1.bf16.msra.mxu0 0
    %6913 = vmatprep.subr.bf16.mxu0 0
    %6914 = vmatpush1.bf16.msra.mxu0 0
    %6915 = vmatprep.subr.bf16.mxu0 0
    %6916 = vmatpush1.bf16.msra.mxu0 0
    %6917 = vmatprep.subr.bf16.mxu0 0
    %6918 = vmatpush1.bf16.msra.mxu0 0
    %6919 = vmatprep.subr.bf16.mxu0 0
    %6920 = vmatpush1.bf16.msra.mxu0 0
    %6921 = vmatprep.subr.bf16.mxu0 0
    %6922 = vmatpush1.bf16.msra.mxu0 0
    %6923 = vmatprep.subr.bf16.mxu0 0
    %6924 = vmatpush1.bf16.msra.mxu0 0
    %6925 = vmatprep.mubr.bf16.mxu0 0
    %6926 = vmatmul.mubr.bf16.gmra.mrb[0].mxu0 %v6888
    %v6927 = vpop.f32.mrb[0].mxu0
    %v6928 = vadd.f32 0.0, %v6927
    %v6929 = vpop.f32.mrb[0].mxu0
    %v6930 = vpop.f32.mrb[0].mxu0
    %v6931 = vpop.f32.mrb[0].mxu0
    %6932 = vdwg.mxu0
    %v6934 = vsel %vm1112, %v6827, 0
    %v6937 = vsel %vm1588, %v6835, 0
    %6939 = vmatprep.subr.bf16.mxu0 0
    %6940 = vmatpush1.bf16.msra.mxu0 %v6937
    %6941 = vmatprep.subr.bf16.mxu0 0
    %6942 = vmatpush1.bf16.msra.mxu0 0
    %6943 = vmatprep.subr.bf16.mxu0 0
    %6944 = vmatpush1.bf16.msra.mxu0 0
    %6945 = vmatprep.subr.bf16.mxu0 0
    %6946 = vmatpush1.bf16.msra.mxu0 0
    %6947 = vmatprep.subr.bf16.mxu0 0
    %6948 = vmatpush1.bf16.msra.mxu0 0
    %6949 = vmatprep.subr.bf16.mxu0 0
    %6950 = vmatpush1.bf16.msra.mxu0 0
    %6951 = vmatprep.subr.bf16.mxu0 0
    %6952 = vmatpush1.bf16.msra.mxu0 0
    %6953 = vmatprep.subr.bf16.mxu0 0
    %6954 = vmatpush1.bf16.msra.mxu0 0
    %6955 = vmatprep.subr.bf16.mxu0 0
    %6956 = vmatpush1.bf16.msra.mxu0 0
    %6957 = vmatprep.subr.bf16.mxu0 0
    %6958 = vmatpush1.bf16.msra.mxu0 0
    %6959 = vmatprep.subr.bf16.mxu0 0
    %6960 = vmatpush1.bf16.msra.mxu0 0
    %6961 = vmatprep.subr.bf16.mxu0 0
    %6962 = vmatpush1.bf16.msra.mxu0 0
    %6963 = vmatprep.subr.bf16.mxu0 0
    %6964 = vmatpush1.bf16.msra.mxu0 0
    %6965 = vmatprep.subr.bf16.mxu0 0
    %6966 = vmatpush1.bf16.msra.mxu0 0
    %6967 = vmatprep.subr.bf16.mxu0 0
    %6968 = vmatpush1.bf16.msra.mxu0 0
    %6969 = vmatprep.subr.bf16.mxu0 0
    %6970 = vmatpush1.bf16.msra.mxu0 0
    %6971 = vmatprep.mubr.bf16.mxu0 0
    %6972 = vmatmul.mubr.bf16.gmra.mrb[0].mxu0 %v6934
    %v6973 = vpop.f32.mrb[0].mxu0
    %v6974 = vadd.f32 0.0, %v6973
    %v6975 = vpop.f32.mrb[0].mxu0
    %v6976 = vpop.f32.mrb[0].mxu0
    %v6977 = vpop.f32.mrb[0].mxu0
    %6978 = vdwg.mxu0
    %v6980 = vsel %vm1112, %v6828, 0
    %v6983 = vsel %vm1588, %v6836, 0
    %6985 = vmatprep.subr.bf16.mxu0 0
    %6986 = vmatpush1.bf16.msra.mxu0 %v6983
    %6987 = vmatprep.subr.bf16.mxu0 0
    %6988 = vmatpush1.bf16.msra.mxu0 0
    %6989 = vmatprep.subr.bf16.mxu0 0
    %6990 = vmatpush1.bf16.msra.mxu0 0
    %6991 = vmatprep.subr.bf16.mxu0 0
    %6992 = vmatpush1.bf16.msra.mxu0 0
    %6993 = vmatprep.subr.bf16.mxu0 0
    %6994 = vmatpush1.bf16.msra.mxu0 0
    %6995 = vmatprep.subr.bf16.mxu0 0
    %6996 = vmatpush1.bf16.msra.mxu0 0
    %6997 = vmatprep.subr.bf16.mxu0 0
    %6998 = vmatpush1.bf16.msra.mxu0 0
    %6999 = vmatprep.subr.bf16.mxu0 0
    %7000 = vmatpush1.bf16.msra.mxu0 0
    %7001 = vmatprep.subr.bf16.mxu0 0
    %7002 = vmatpush1.bf16.msra.mxu0 0
    %7003 = vmatprep.subr.bf16.mxu0 0
    %7004 = vmatpush1.bf16.msra.mxu0 0
    %7005 = vmatprep.subr.bf16.mxu0 0
    %7006 = vmatpush1.bf16.msra.mxu0 0
    %7007 = vmatprep.subr.bf16.mxu0 0
    %7008 = vmatpush1.bf16.msra.mxu0 0
    %7009 = vmatprep.subr.bf16.mxu0 0
    %7010 = vmatpush1.bf16.msra.mxu0 0
    %7011 = vmatprep.subr.bf16.mxu0 0
    %7012 = vmatpush1.bf16.msra.mxu0 0
    %7013 = vmatprep.subr.bf16.mxu0 0
    %7014 = vmatpush1.bf16.msra.mxu0 0
    %7015 = vmatprep.subr.bf16.mxu0 0
    %7016 = vmatpush1.bf16.msra.mxu0 0
    %7017 = vmatprep.mubr.bf16.mxu0 0
    %7018 = vmatmul.mubr.bf16.gmra.mrb[0].mxu0 %v6980
    %v7019 = vpop.f32.mrb[0].mxu0
    %v7020 = vadd.f32 0.0, %v7019
    %v7021 = vpop.f32.mrb[0].mxu0
    %v7022 = vpop.f32.mrb[0].mxu0
    %v7023 = vpop.f32.mrb[0].mxu0
    %7024 = vdwg.mxu0
    %v7026 = vsel %vm1112, %v6829, 0
    %v7029 = vsel %vm1588, %v6837, 0
    %7031 = vmatprep.subr.bf16.mxu0 0
    %7032 = vmatpush1.bf16.msra.mxu0 %v7029
    %7033 = vmatprep.subr.bf16.mxu0 0
    %7034 = vmatpush1.bf16.msra.mxu0 0
    %7035 = vmatprep.subr.bf16.mxu0 0
    %7036 = vmatpush1.bf16.msra.mxu0 0
    %7037 = vmatprep.subr.bf16.mxu0 0
    %7038 = vmatpush1.bf16.msra.mxu0 0
    %7039 = vmatprep.subr.bf16.mxu0 0
    %7040 = vmatpush1.bf16.msra.mxu0 0
    %7041 = vmatprep.subr.bf16.mxu0 0
    %7042 = vmatpush1.bf16.msra.mxu0 0
    %7043 = vmatprep.subr.bf16.mxu0 0
    %7044 = vmatpush1.bf16.msra.mxu0 0
    %7045 = vmatprep.subr.bf16.mxu0 0
    %7046 = vmatpush1.bf16.msra.mxu0 0
    %7047 = vmatprep.subr.bf16.mxu0 0
    %7048 = vmatpush1.bf16.msra.mxu0 0
    %7049 = vmatprep.subr.bf16.mxu0 0
    %7050 = vmatpush1.bf16.msra.mxu0 0
    %7051 = vmatprep.subr.bf16.mxu0 0
    %7052 = vmatpush1.bf16.msra.mxu0 0
    %7053 = vmatprep.subr.bf16.mxu0 0
    %7054 = vmatpush1.bf16.msra.mxu0 0
    %7055 = vmatprep.subr.bf16.mxu0 0
    %7056 = vmatpush1.bf16.msra.mxu0 0
    %7057 = vmatprep.subr.bf16.mxu0 0
    %7058 = vmatpush1.bf16.msra.mxu0 0
    %7059 = vmatprep.subr.bf16.mxu0 0
    %7060 = vmatpush1.bf16.msra.mxu0 0
    %7061 = vmatprep.subr.bf16.mxu0 0
    %7062 = vmatpush1.bf16.msra.mxu0 0
    %7063 = vmatprep.mubr.bf16.mxu0 0
    %7064 = vmatmul.mubr.bf16.gmra.mrb[0].mxu0 %v7026
    %v7065 = vpop.f32.mrb[0].mxu0
    %v7066 = vadd.f32 0.0, %v7065
    %v7067 = vpop.f32.mrb[0].mxu0
    %v7068 = vpop.f32.mrb[0].mxu0
    %v7069 = vpop.f32.mrb[0].mxu0
    %7070 = vdwg.mxu0
    %v7072 = vsel %vm1112, %v6830, 0
    %v7075 = vsel %vm1588, %v6838, 0
    %7077 = vmatprep.subr.bf16.mxu0 0
    %7078 = vmatpush1.bf16.msra.mxu0 %v7075
    %7079 = vmatprep.subr.bf16.mxu0 0
    %7080 = vmatpush1.bf16.msra.mxu0 0
    %7081 = vmatprep.subr.bf16.mxu0 0
    %7082 = vmatpush1.bf16.msra.mxu0 0
    %7083 = vmatprep.subr.bf16.mxu0 0
    %7084 = vmatpush1.bf16.msra.mxu0 0
    %7085 = vmatprep.subr.bf16.mxu0 0
    %7086 = vmatpush1.bf16.msra.mxu0 0
    %7087 = vmatprep.subr.bf16.mxu0 0
    %7088 = vmatpush1.bf16.msra.mxu0 0
    %7089 = vmatprep.subr.bf16.mxu0 0
    %7090 = vmatpush1.bf16.msra.mxu0 0
    %7091 = vmatprep.subr.bf16.mxu0 0
    %7092 = vmatpush1.bf16.msra.mxu0 0
    %7093 = vmatprep.subr.bf16.mxu0 0
    %7094 = vmatpush1.bf16.msra.mxu0 0
    %7095 = vmatprep.subr.bf16.mxu0 0
    %7096 = vmatpush1.bf16.msra.mxu0 0
    %7097 = vmatprep.subr.bf16.mxu0 0
    %7098 = vmatpush1.bf16.msra.mxu0 0
    %7099 = vmatprep.subr.bf16.mxu0 0
    %7100 = vmatpush1.bf16.msra.mxu0 0
    %7101 = vmatprep.subr.bf16.mxu0 0
    %7102 = vmatpush1.bf16.msra.mxu0 0
    %7103 = vmatprep.subr.bf16.mxu0 0
    %7104 = vmatpush1.bf16.msra.mxu0 0
    %7105 = vmatprep.subr.bf16.mxu0 0
    %7106 = vmatpush1.bf16.msra.mxu0 0
    %7107 = vmatprep.subr.bf16.mxu0 0
    %7108 = vmatpush1.bf16.msra.mxu0 0
    %7109 = vmatprep.mubr.bf16.mxu0 0
    %7110 = vmatmul.mubr.bf16.gmra.mrb[0].mxu0 %v7072
    %v7111 = vpop.f32.mrb[0].mxu0
    %v7112 = vadd.f32 0.0, %v7111
    %v7113 = vpop.f32.mrb[0].mxu0
    %v7114 = vpop.f32.mrb[0].mxu0
    %v7115 = vpop.f32.mrb[0].mxu0
    %7116 = vdwg.mxu0
    %v7118 = vsel %vm1112, %v6831, 0
    %v7121 = vsel %vm1588, %v6839, 0
    %7123 = vmatprep.subr.bf16.mxu0 0
    %7124 = vmatpush1.bf16.msra.mxu0 %v7121
    %7125 = vmatprep.subr.bf16.mxu0 0
    %7126 = vmatpush1.bf16.msra.mxu0 0
    %7127 = vmatprep.subr.bf16.mxu0 0
    %7128 = vmatpush1.bf16.msra.mxu0 0
    %7129 = vmatprep.subr.bf16.mxu0 0
    %7130 = vmatpush1.bf16.msra.mxu0 0
    %7131 = vmatprep.subr.bf16.mxu0 0
    %7132 = vmatpush1.bf16.msra.mxu0 0
    %7133 = vmatprep.subr.bf16.mxu0 0
    %7134 = vmatpush1.bf16.msra.mxu0 0
    %7135 = vmatprep.subr.bf16.mxu0 0
    %7136 = vmatpush1.bf16.msra.mxu0 0
    %7137 = vmatprep.subr.bf16.mxu0 0
    %7138 = vmatpush1.bf16.msra.mxu0 0
    %7139 = vmatprep.subr.bf16.mxu0 0
    %7140 = vmatpush1.bf16.msra.mxu0 0
    %7141 = vmatprep.subr.bf16.mxu0 0
    %7142 = vmatpush1.bf16.msra.mxu0 0
    %7143 = vmatprep.subr.bf16.mxu0 0
    %7144 = vmatpush1.bf16.msra.mxu0 0
    %7145 = vmatprep.subr.bf16.mxu0 0
    %7146 = vmatpush1.bf16.msra.mxu0 0
    %7147 = vmatprep.subr.bf16.mxu0 0
    %7148 = vmatpush1.bf16.msra.mxu0 0
    %7149 = vmatprep.subr.bf16.mxu0 0
    %7150 = vmatpush1.bf16.msra.mxu0 0
    %7151 = vmatprep.subr.bf16.mxu0 0
    %7152 = vmatpush1.bf16.msra.mxu0 0
    %7153 = vmatprep.subr.bf16.mxu0 0
    %7154 = vmatpush1.bf16.msra.mxu0 0
    %7155 = vmatprep.mubr.bf16.mxu0 0
    %7156 = vmatmul.mubr.bf16.gmra.mrb[0].mxu0 %v7118
    %v7157 = vpop.f32.mrb[0].mxu0
    %v7158 = vadd.f32 0.0, %v7157
    %v7159 = vpop.f32.mrb[0].mxu0
    %v7160 = vpop.f32.mrb[0].mxu0
    %v7161 = vpop.f32.mrb[0].mxu0
    %7162 = vdwg.mxu0
    %v7164 = vsel %vm1112, %v6832, 0
    %v7167 = vsel %vm1588, %v6840, 0
    %7169 = vmatprep.subr.bf16.mxu0 0
    %7170 = vmatpush1.bf16.msra.mxu0 %v7167
    %7171 = vmatprep.subr.bf16.mxu0 0
    %7172 = vmatpush1.bf16.msra.mxu0 0
    %7173 = vmatprep.subr.bf16.mxu0 0
    %7174 = vmatpush1.bf16.msra.mxu0 0
    %7175 = vmatprep.subr.bf16.mxu0 0
    %7176 = vmatpush1.bf16.msra.mxu0 0
    %7177 = vmatprep.subr.bf16.mxu0 0
    %7178 = vmatpush1.bf16.msra.mxu0 0
    %7179 = vmatprep.subr.bf16.mxu0 0
    %7180 = vmatpush1.bf16.msra.mxu0 0
    %7181 = vmatprep.subr.bf16.mxu0 0
    %7182 = vmatpush1.bf16.msra.mxu0 0
    %7183 = vmatprep.subr.bf16.mxu0 0
    %7184 = vmatpush1.bf16.msra.mxu0 0
    %7185 = vmatprep.subr.bf16.mxu0 0
    %7186 = vmatpush1.bf16.msra.mxu0 0
    %7187 = vmatprep.subr.bf16.mxu0 0
    %7188 = vmatpush1.bf16.msra.mxu0 0
    %7189 = vmatprep.subr.bf16.mxu0 0
    %7190 = vmatpush1.bf16.msra.mxu0 0
    %7191 = vmatprep.subr.bf16.mxu0 0
    %7192 = vmatpush1.bf16.msra.mxu0 0
    %7193 = vmatprep.subr.bf16.mxu0 0
    %7194 = vmatpush1.bf16.msra.mxu0 0
    %7195 = vmatprep.subr.bf16.mxu0 0
    %7196 = vmatpush1.bf16.msra.mxu0 0
    %7197 = vmatprep.subr.bf16.mxu0 0
    %7198 = vmatpush1.bf16.msra.mxu0 0
    %7199 = vmatprep.subr.bf16.mxu0 0
    %7200 = vmatpush1.bf16.msra.mxu0 0
    %7201 = vmatprep.mubr.bf16.mxu0 0
    %7202 = vmatmul.mubr.bf16.gmra.mrb[0].mxu0 %v7164
    %v7203 = vpop.f32.mrb[0].mxu0
    %v7204 = vadd.f32 0.0, %v7203
    %v7205 = vpop.f32.mrb[0].mxu0
    %v7206 = vpop.f32.mrb[0].mxu0
    %v7207 = vpop.f32.mrb[0].mxu0
    %7208 = vdwg.mxu0
    %v7209 = vcombine.low %v6882, %v6974
    %v7210 = vcombine.high %v6882, %v6974
    %v7212 = vunpack.c.l.s4 1983009808
    %v7213 = vunpack.c.0.s8 %v7212
    %v7214 = vlaneseq
    %v7215 = vshrl.u32 %v7214, 7
    %v7216 = vsub.s32 %v7213, %v7215
    %v7217 = vrot.slane %v7209, %v7216
    %v7219 = vunpack.c.l.s4 1983009808
    %v7220 = vunpack.c.0.s8 %v7219
    %v7221 = vlaneseq
    %v7222 = vshrl.u32 %v7221, 7
    %v7223 = vsub.s32 %v7220, %v7222
    %v7224 = vrot.slane %v7210, %v7223
    %v7225 = vcombine.low %v6928, %v7020
    %v7226 = vcombine.high %v6928, %v7020
    %v7228 = vunpack.c.l.s4 1983009808
    %v7229 = vunpack.c.0.s8 %v7228
    %v7230 = vlaneseq
    %v7231 = vshrl.u32 %v7230, 7
    %v7232 = vsub.s32 %v7229, %v7231
    %v7233 = vrot.slane %v7225, %v7232
    %v7235 = vunpack.c.l.s4 1983009808
    %v7236 = vunpack.c.0.s8 %v7235
    %v7237 = vlaneseq
    %v7238 = vshrl.u32 %v7237, 7
    %v7239 = vsub.s32 %v7236, %v7238
    %v7240 = vrot.slane %v7226, %v7239
    %v7241 = vcombine.low %v7217, %v7233
    %v7242 = vcombine.high %v7217, %v7233
    %v7244 = vunpack.c.l.s4 1934713408
    %v7245 = vunpack.c.0.s8 %v7244
    %v7246 = vlaneseq
    %v7247 = vshrl.u32 %v7246, 7
    %v7248 = vsub.s32 %v7245, %v7247
    %v7249 = vrot.slane %v7241, %v7248
    %v7251 = vunpack.c.l.s4 1934713408
    %v7252 = vunpack.c.0.s8 %v7251
    %v7253 = vlaneseq
    %v7254 = vshrl.u32 %v7253, 7
    %v7255 = vsub.s32 %v7252, %v7254
    %v7256 = vrot.slane %v7242, %v7255
    %v7257 = vcombine.low %v7224, %v7240
    %v7258 = vcombine.high %v7224, %v7240
    %v7260 = vunpack.c.l.s4 1934713408
    %v7261 = vunpack.c.0.s8 %v7260
    %v7262 = vlaneseq
    %v7263 = vshrl.u32 %v7262, 7
    %v7264 = vsub.s32 %v7261, %v7263
    %v7265 = vrot.slane %v7257, %v7264
    %v7267 = vunpack.c.l.s4 1934713408
    %v7268 = vunpack.c.0.s8 %v7267
    %v7269 = vlaneseq
    %v7270 = vshrl.u32 %v7269, 7
    %v7271 = vsub.s32 %v7268, %v7270
    %v7272 = vrot.slane %v7258, %v7271
    %v7273 = vcombine.high %v7249, 0.0
    %v7274 = vcombine.high %v7256, 0.0
    %v7275 = vcombine.high %v7265, 0.0
    %v7276 = vcombine.high %v7272, 0.0
    %v7277 = vcombine.low %v7066, %v7158
    %v7278 = vcombine.high %v7066, %v7158
    %v7280 = vunpack.c.l.s4 1983009808
    %v7281 = vunpack.c.0.s8 %v7280
    %v7282 = vlaneseq
    %v7283 = vshrl.u32 %v7282, 7
    %v7284 = vsub.s32 %v7281, %v7283
    %v7285 = vrot.slane %v7277, %v7284
    %v7287 = vunpack.c.l.s4 1983009808
    %v7288 = vunpack.c.0.s8 %v7287
    %v7289 = vlaneseq
    %v7290 = vshrl.u32 %v7289, 7
    %v7291 = vsub.s32 %v7288, %v7290
    %v7292 = vrot.slane %v7278, %v7291
    %v7293 = vcombine.low %v7112, %v7204
    %v7294 = vcombine.high %v7112, %v7204
    %v7296 = vunpack.c.l.s4 1983009808
    %v7297 = vunpack.c.0.s8 %v7296
    %v7298 = vlaneseq
    %v7299 = vshrl.u32 %v7298, 7
    %v7300 = vsub.s32 %v7297, %v7299
    %v7301 = vrot.slane %v7293, %v7300
    %v7303 = vunpack.c.l.s4 1983009808
    %v7304 = vunpack.c.0.s8 %v7303
    %v7305 = vlaneseq
    %v7306 = vshrl.u32 %v7305, 7
    %v7307 = vsub.s32 %v7304, %v7306
    %v7308 = vrot.slane %v7294, %v7307
    %v7309 = vcombine.low %v7285, %v7301
    %v7310 = vcombine.high %v7285, %v7301
    %v7312 = vunpack.c.l.s4 1934713408
    %v7313 = vunpack.c.0.s8 %v7312
    %v7314 = vlaneseq
    %v7315 = vshrl.u32 %v7314, 7
    %v7316 = vsub.s32 %v7313, %v7315
    %v7317 = vrot.slane %v7309, %v7316
    %v7319 = vunpack.c.l.s4 1934713408
    %v7320 = vunpack.c.0.s8 %v7319
    %v7321 = vlaneseq
    %v7322 = vshrl.u32 %v7321, 7
    %v7323 = vsub.s32 %v7320, %v7322
    %v7324 = vrot.slane %v7310, %v7323
    %v7325 = vcombine.low %v7292, %v7308
    %v7326 = vcombine.high %v7292, %v7308
    %v7328 = vunpack.c.l.s4 1934713408
    %v7329 = vunpack.c.0.s8 %v7328
    %v7330 = vlaneseq
    %v7331 = vshrl.u32 %v7330, 7
    %v7332 = vsub.s32 %v7329, %v7331
    %v7333 = vrot.slane %v7325, %v7332
    %v7335 = vunpack.c.l.s4 1934713408
    %v7336 = vunpack.c.0.s8 %v7335
    %v7337 = vlaneseq
    %v7338 = vshrl.u32 %v7337, 7
    %v7339 = vsub.s32 %v7336, %v7338
    %v7340 = vrot.slane %v7326, %v7339
    %v7341 = vcombine.high %v7317, 0.0
    %v7342 = vcombine.high %v7324, 0.0
    %v7343 = vcombine.high %v7333, 0.0
    %v7344 = vcombine.high %v7340, 0.0
    %v7345 = vcombine.low %v7249, %v7256
    %v7347 = vunpack.c.l.s4 1983009808
    %v7348 = vunpack.c.0.s8 %v7347
    %v7349 = vlaneseq
    %v7350 = vshrl.u32 %v7349, 7
    %v7351 = vsub.s32 %v7348, %v7350
    %v7352 = vrot.slane %v7345, %v7351
    %v7353 = vcombine.low %v7273, %v7274
    %v7355 = vunpack.c.l.s4 1983009808
    %v7356 = vunpack.c.0.s8 %v7355
    %v7357 = vlaneseq
    %v7358 = vshrl.u32 %v7357, 7
    %v7359 = vsub.s32 %v7356, %v7358
    %v7360 = vrot.slane %v7353, %v7359
    %v7361 = vcombine.low %v7265, %v7272
    %v7363 = vunpack.c.l.s4 1983009808
    %v7364 = vunpack.c.0.s8 %v7363
    %v7365 = vlaneseq
    %v7366 = vshrl.u32 %v7365, 7
    %v7367 = vsub.s32 %v7364, %v7366
    %v7368 = vrot.slane %v7361, %v7367
    %v7369 = vcombine.low %v7275, %v7276
    %v7371 = vunpack.c.l.s4 1983009808
    %v7372 = vunpack.c.0.s8 %v7371
    %v7373 = vlaneseq
    %v7374 = vshrl.u32 %v7373, 7
    %v7375 = vsub.s32 %v7372, %v7374
    %v7376 = vrot.slane %v7369, %v7375
    %v7377 = vcombine.low %v7352, %v7360
    %v7378 = vcombine.high %v7352, %v7360
    %v7380 = vunpack.c.l.s4 1934713408
    %v7381 = vunpack.c.0.s8 %v7380
    %v7382 = vlaneseq
    %v7383 = vshrl.u32 %v7382, 7
    %v7384 = vsub.s32 %v7381, %v7383
    %v7385 = vrot.slane %v7377, %v7384
    %v7387 = vunpack.c.l.s4 1934713408
    %v7388 = vunpack.c.0.s8 %v7387
    %v7389 = vlaneseq
    %v7390 = vshrl.u32 %v7389, 7
    %v7391 = vsub.s32 %v7388, %v7390
    %v7392 = vrot.slane %v7378, %v7391
    %v7393 = vcombine.low %v7368, %v7376
    %v7394 = vcombine.high %v7368, %v7376
    %v7396 = vunpack.c.l.s4 1934713408
    %v7397 = vunpack.c.0.s8 %v7396
    %v7398 = vlaneseq
    %v7399 = vshrl.u32 %v7398, 7
    %v7400 = vsub.s32 %v7397, %v7399
    %v7401 = vrot.slane %v7393, %v7400
    %v7403 = vunpack.c.l.s4 1934713408
    %v7404 = vunpack.c.0.s8 %v7403
    %v7405 = vlaneseq
    %v7406 = vshrl.u32 %v7405, 7
    %v7407 = vsub.s32 %v7404, %v7406
    %v7408 = vrot.slane %v7394, %v7407
    %v7409 = vcombine.low %v7385, %v7401
    %v7410 = vcombine.high %v7385, %v7401
    %v7411 = vcombine.low %v7392, %v7408
    %v7412 = vcombine.high %v7392, %v7408
    %v7413 = vcombine.low %v7317, %v7324
    %v7415 = vunpack.c.l.s4 1983009808
    %v7416 = vunpack.c.0.s8 %v7415
    %v7417 = vlaneseq
    %v7418 = vshrl.u32 %v7417, 7
    %v7419 = vsub.s32 %v7416, %v7418
    %v7420 = vrot.slane %v7413, %v7419
    %v7421 = vcombine.low %v7341, %v7342
    %v7423 = vunpack.c.l.s4 1983009808
    %v7424 = vunpack.c.0.s8 %v7423
    %v7425 = vlaneseq
    %v7426 = vshrl.u32 %v7425, 7
    %v7427 = vsub.s32 %v7424, %v7426
    %v7428 = vrot.slane %v7421, %v7427
    %v7429 = vcombine.low %v7333, %v7340
    %v7431 = vunpack.c.l.s4 1983009808
    %v7432 = vunpack.c.0.s8 %v7431
    %v7433 = vlaneseq
    %v7434 = vshrl.u32 %v7433, 7
    %v7435 = vsub.s32 %v7432, %v7434
    %v7436 = vrot.slane %v7429, %v7435
    %v7437 = vcombine.low %v7343, %v7344
    %v7439 = vunpack.c.l.s4 1983009808
    %v7440 = vunpack.c.0.s8 %v7439
    %v7441 = vlaneseq
    %v7442 = vshrl.u32 %v7441, 7
    %v7443 = vsub.s32 %v7440, %v7442
    %v7444 = vrot.slane %v7437, %v7443
    %v7445 = vcombine.low %v7420, %v7428
    %v7446 = vcombine.high %v7420, %v7428
    %v7448 = vunpack.c.l.s4 1934713408
    %v7449 = vunpack.c.0.s8 %v7448
    %v7450 = vlaneseq
    %v7451 = vshrl.u32 %v7450, 7
    %v7452 = vsub.s32 %v7449, %v7451
    %v7453 = vrot.slane %v7445, %v7452
    %v7455 = vunpack.c.l.s4 1934713408
    %v7456 = vunpack.c.0.s8 %v7455
    %v7457 = vlaneseq
    %v7458 = vshrl.u32 %v7457, 7
    %v7459 = vsub.s32 %v7456, %v7458
    %v7460 = vrot.slane %v7446, %v7459
    %v7461 = vcombine.low %v7436, %v7444
    %v7462 = vcombine.high %v7436, %v7444
    %v7464 = vunpack.c.l.s4 1934713408
    %v7465 = vunpack.c.0.s8 %v7464
    %v7466 = vlaneseq
    %v7467 = vshrl.u32 %v7466, 7
    %v7468 = vsub.s32 %v7465, %v7467
    %v7469 = vrot.slane %v7461, %v7468
    %v7471 = vunpack.c.l.s4 1934713408
    %v7472 = vunpack.c.0.s8 %v7471
    %v7473 = vlaneseq
    %v7474 = vshrl.u32 %v7473, 7
    %v7475 = vsub.s32 %v7472, %v7474
    %v7476 = vrot.slane %v7462, %v7475
    %v7477 = vcombine.low %v7453, %v7469
    %v7478 = vcombine.high %v7453, %v7469
    %v7479 = vcombine.low %v7460, %v7476
    %v7480 = vcombine.high %v7460, %v7476
    %7483 = vrot.lane.b32.xlu0 %v7410, 8
    %v7484 = vpop.permute.xlu0 %7483
    %7485 = vrot.lane.b32.xlu0 %v7478, 8
    %v7486 = vpop.permute.xlu0 %7485
    %7491 = vrot.lane.b32.xlu0 %v7411, 16
    %v7492 = vpop.permute.xlu0 %7491
    %7493 = vrot.lane.b32.xlu0 %v7479, 16
    %v7494 = vpop.permute.xlu0 %7493
    %7499 = vrot.lane.b32.xlu0 %v7412, 24
    %v7500 = vpop.permute.xlu0 %7499
    %7501 = vrot.lane.b32.xlu0 %v7480, 24
    %v7502 = vpop.permute.xlu0 %7501
    %v7505 = vsel %vm1112, %v7409, %v7484
    %v7506 = vsel %vm1112, %v7477, %v7486
    %v7507 = vsel %vm2252, %v7505, %v7492
    %v7508 = vsel %vm2252, %v7506, %v7494
    %v7509 = vsel %vm2255, %v7507, %v7500
    %v7510 = vsel %vm2255, %v7508, %v7502
    %v7511 = vpack.c.bf16 %v7510, %v7509
    %v7512 = vld [vmem:[%s5407] sm:$0xf]
    %v7513 = vld [vmem:[%s5407 + $0x8] sm:$0xf]
    %v7514 = vld [vmem:[%s5407 + $0x10] sm:$0xf]
    %v7515 = vld [vmem:[%s5407 + $0x18] sm:$0xf]
    %v7520 = vunpack.c.l.b16 %v7512
    %v7521 = vunpack.c.l.b16 %v7513
    %v7522 = vunpack.c.l.b16 %v7514
    %v7523 = vunpack.c.l.b16 %v7515
    %v7524 = vpack.c.b16 %v7521, %v7520
    %v7525 = vpack.c.b16 %v7523, %v7522
    %7526 = vrot.lane.b32.xlu0 %v7524, 32
    %v7527 = vpop.permute.xlu0 %7526
    %7528 = vrot.lane.b32.xlu0 %v7525, 32
    %v7529 = vpop.permute.xlu0 %7528
    %v7533 = vsel %vm114, %v7511, 0
    %7535 = vmatprep.subr.bf16.mxu0 0
    %7536 = vmatpush1.bf16.msra.mxu0 %v7527
    %7537 = vmatprep.subr.bf16.mxu0 0
    %7538 = vmatpush1.bf16.msra.mxu0 %v7529
    %7539 = vmatprep.subr.bf16.mxu0 0
    %7540 = vmatpush1.bf16.msra.mxu0 0
    %7541 = vmatprep.subr.bf16.mxu0 0
    %7542 = vmatpush1.bf16.msra.mxu0 0
    %7543 = vmatprep.subr.bf16.mxu0 0
    %7544 = vmatpush1.bf16.msra.mxu0 0
    %7545 = vmatprep.subr.bf16.mxu0 0
    %7546 = vmatpush1.bf16.msra.mxu0 0
    %7547 = vmatprep.subr.bf16.mxu0 0
    %7548 = vmatpush1.bf16.msra.mxu0 0
    %7549 = vmatprep.subr.bf16.mxu0 0
    %7550 = vmatpush1.bf16.msra.mxu0 0
    %7551 = vmatprep.subr.bf16.mxu0 0
    %7552 = vmatpush1.bf16.msra.mxu0 0
    %7553 = vmatprep.subr.bf16.mxu0 0
    %7554 = vmatpush1.bf16.msra.mxu0 0
    %7555 = vmatprep.subr.bf16.mxu0 0
    %7556 = vmatpush1.bf16.msra.mxu0 0
    %7557 = vmatprep.subr.bf16.mxu0 0
    %7558 = vmatpush1.bf16.msra.mxu0 0
    %7559 = vmatprep.subr.bf16.mxu0 0
    %7560 = vmatpush1.bf16.msra.mxu0 0
    %7561 = vmatprep.subr.bf16.mxu0 0
    %7562 = vmatpush1.bf16.msra.mxu0 0
    %7563 = vmatprep.subr.bf16.mxu0 0
    %7564 = vmatpush1.bf16.msra.mxu0 0
    %7565 = vmatprep.subr.bf16.mxu0 0
    %7566 = vmatpush1.bf16.msra.mxu0 0
    %7567 = vmatprep.mubr.bf16.mxu0 0
    %7568 = vmatmul.mubr.bf16.gmra.mrb[0].mxu0 %v7533
    %v7569 = vpop.f32.mrb[0].mxu0
    %v7570 = vadd.f32 0.0, %v7569
    %v7571 = vpop.f32.mrb[0].mxu0
    %v7572 = vpop.f32.mrb[0].mxu0
    %v7573 = vadd.f32 0.0, %v7572
    %v7574 = vpop.f32.mrb[0].mxu0
    %7575 = vdwg.mxu0
    %v7576 = vadd.f32 %v5368, %v7570
    %v7577 = vadd.f32 %v5369, %v7573
    %v7578 = vld [vmem:[%s5370] ss:$0 sm:$0xff]
    %7580 = vrot.lane.b32.xlu0 %v7578, 32
    %v7581 = vpop.permute.xlu0 %7580
    %v7583 = vadd.f32 %v7576, %v7581
    %v7584 = vadd.f32 %v7577, %v7581
    %v7585 = vld [vmem:[%s5370 + $0x2] ss:$0 sm:$0xff]
    %v7586 = vsel %vm114, %v7583, 0.0
    %7587 = vadd.xlane.f32.xlu0 %v7586
    %v7588 = vpop.xlane.xlu0 %7587
    %v7589 = vsel %vm114, %v7584, 0.0
    %7590 = vadd.xlane.f32.xlu0 %v7589
    %v7591 = vpop.xlane.xlu0 %7590
    %v7592 = vmul.f32 %v7588, %v121
    %v7593 = vmul.f32 %v7591, %v121
    %v7594 = vsub.f32 %v7583, %v7592
    %v7595 = vsub.f32 %v7584, %v7593
    %v7596 = vmul.f32 %v7594, %v7594
    %v7597 = vmul.f32 %v7595, %v7595
    %v7598 = vsel %vm114, %v7596, 0.0
    %7599 = vadd.xlane.f32.xlu0 %v7598
    %v7600 = vpop.xlane.xlu0 %7599
    %v7601 = vsel %vm114, %v7597, 0.0
    %7602 = vadd.xlane.f32.xlu0 %v7601
    %v7603 = vpop.xlane.xlu0 %7602
    %v7604 = vmul.f32 %v7600, %v121
    %v7605 = vmul.f32 %v7603, %v121
    %v7606 = vadd.f32 %v7604, 1e-12
    %v7607 = vadd.f32 %v7605, 1e-12
    %v7608 = vrsqrt.pop %v7606
    %v7609 = vrsqrt.pop %v7607
    %v7610 = vmul.f32 %v7594, %v7608
    %v7611 = vmul.f32 %v7595, %v7609
    %7613 = vrot.lane.b32.xlu0 %v7585, 64
    %v7614 = vpop.permute.xlu0 %7613
    %v7616 = vmul.f32 %v7610, %v7614
    %v7617 = vmul.f32 %v7611, %v7614
    %7618 = vrot.lane.b32.xlu0 %v7585, 32
    %v7619 = vpop.permute.xlu0 %7618
    %v7621 = vadd.f32 %v7616, %v7619
    %v7622 = vadd.f32 %v7617, %v7619
    %v7623 = vpack.c.bf16 %v7622, %v7621
    %v7624 = vld [vmem:[%s5407 + $0x4] sm:$0xf]
    %v7625 = vld [vmem:[%s5407 + $0xc] sm:$0xf]
    %v7626 = vld [vmem:[%s5407 + $0x14] sm:$0xf]
    %v7627 = vld [vmem:[%s5407 + $0x1c] sm:$0xf]
    %v7628 = vld [vmem:[%s5370 + $0x8] ss:$0 sm:$0xff]
    %v7633 = vunpack.c.l.b16 %v7624
    %v7634 = vunpack.c.l.b16 %v7625
    %v7635 = vunpack.c.l.b16 %v7626
    %v7636 = vunpack.c.l.b16 %v7627
    %v7637 = vpack.c.b16 %v7634, %v7633
    %v7638 = vpack.c.b16 %v7636, %v7635
    %v7642 = vsel %vm114, %v7623, 0
    %7644 = vmatprep.subr.bf16.mxu0 0
    %7645 = vmatpush1.bf16.msra.mxu0 %v7637
    %7646 = vmatprep.subr.bf16.mxu0 0
    %7647 = vmatpush1.bf16.msra.mxu0 %v7638
    %7648 = vmatprep.subr.bf16.mxu0 0
    %7649 = vmatpush1.bf16.msra.mxu0 0
    %7650 = vmatprep.subr.bf16.mxu0 0
    %7651 = vmatpush1.bf16.msra.mxu0 0
    %7652 = vmatprep.subr.bf16.mxu0 0
    %7653 = vmatpush1.bf16.msra.mxu0 0
    %7654 = vmatprep.subr.bf16.mxu0 0
    %7655 = vmatpush1.bf16.msra.mxu0 0
    %7656 = vmatprep.subr.bf16.mxu0 0
    %7657 = vmatpush1.bf16.msra.mxu0 0
    %7658 = vmatprep.subr.bf16.mxu0 0
    %7659 = vmatpush1.bf16.msra.mxu0 0
    %7660 = vmatprep.subr.bf16.mxu0 0
    %7661 = vmatpush1.bf16.msra.mxu0 0
    %7662 = vmatprep.subr.bf16.mxu0 0
    %7663 = vmatpush1.bf16.msra.mxu0 0
    %7664 = vmatprep.subr.bf16.mxu0 0
    %7665 = vmatpush1.bf16.msra.mxu0 0
    %7666 = vmatprep.subr.bf16.mxu0 0
    %7667 = vmatpush1.bf16.msra.mxu0 0
    %7668 = vmatprep.subr.bf16.mxu0 0
    %7669 = vmatpush1.bf16.msra.mxu0 0
    %7670 = vmatprep.subr.bf16.mxu0 0
    %7671 = vmatpush1.bf16.msra.mxu0 0
    %7672 = vmatprep.subr.bf16.mxu0 0
    %7673 = vmatpush1.bf16.msra.mxu0 0
    %7674 = vmatprep.subr.bf16.mxu0 0
    %7675 = vmatpush1.bf16.msra.mxu0 0
    %7676 = vmatprep.mubr.bf16.mxu0 0
    %7677 = vmatmul.mubr.bf16.gmra.mrb[0].mxu0 %v7642
    %v7678 = vpop.f32.mrb[0].mxu0
    %v7679 = vadd.f32 %v7628, %v7678
    %v7680 = vpop.f32.mrb[0].mxu0
    %v7681 = vpop.f32.mrb[0].mxu0
    %v7682 = vadd.f32 %v7628, %v7681
    %v7683 = vpop.f32.mrb[0].mxu0
    %7684 = vdwg.mxu0
    %7685 = vrot.lane.b32.xlu0 %v7637, 96
    %v7686 = vpop.permute.xlu0 %7685
    %7687 = vrot.lane.b32.xlu0 %v7638, 96
    %v7688 = vpop.permute.xlu0 %7687
    %7692 = vrot.lane.b32.xlu0 %v7628, 96
    %v7693 = vpop.permute.xlu0 %7692
    %7695 = vmatprep.subr.bf16.mxu0 0
    %7696 = vmatpush1.bf16.msra.mxu0 %v7686
    %7697 = vmatprep.subr.bf16.mxu0 0
    %7698 = vmatpush1.bf16.msra.mxu0 %v7688
    %7699 = vmatprep.subr.bf16.mxu0 0
    %7700 = vmatpush1.bf16.msra.mxu0 0
    %7701 = vmatprep.subr.bf16.mxu0 0
    %7702 = vmatpush1.bf16.msra.mxu0 0
    %7703 = vmatprep.subr.bf16.mxu0 0
    %7704 = vmatpush1.bf16.msra.mxu0 0
    %7705 = vmatprep.subr.bf16.mxu0 0
    %7706 = vmatpush1.bf16.msra.mxu0 0
    %7707 = vmatprep.subr.bf16.mxu0 0
    %7708 = vmatpush1.bf16.msra.mxu0 0
    %7709 = vmatprep.subr.bf16.mxu0 0
    %7710 = vmatpush1.bf16.msra.mxu0 0
    %7711 = vmatprep.subr.bf16.mxu0 0
    %7712 = vmatpush1.bf16.msra.mxu0 0
    %7713 = vmatprep.subr.bf16.mxu0 0
    %7714 = vmatpush1.bf16.msra.mxu0 0
    %7715 = vmatprep.subr.bf16.mxu0 0
    %7716 = vmatpush1.bf16.msra.mxu0 0
    %7717 = vmatprep.subr.bf16.mxu0 0
    %7718 = vmatpush1.bf16.msra.mxu0 0
    %7719 = vmatprep.subr.bf16.mxu0 0
    %7720 = vmatpush1.bf16.msra.mxu0 0
    %7721 = vmatprep.subr.bf16.mxu0 0
    %7722 = vmatpush1.bf16.msra.mxu0 0
    %7723 = vmatprep.subr.bf16.mxu0 0
    %7724 = vmatpush1.bf16.msra.mxu0 0
    %7725 = vmatprep.subr.bf16.mxu0 0
    %7726 = vmatpush1.bf16.msra.mxu0 0
    %7727 = vmatprep.mubr.bf16.mxu0 0
    %7728 = vmatmul.mubr.bf16.gmra.mrb[0].mxu0 %v2443
    %v7729 = vpop.f32.mrb[0].mxu0
    %v7730 = vadd.f32 %v7693, %v7729
    %v7731 = vpop.f32.mrb[0].mxu0
    %v7732 = vpop.f32.mrb[0].mxu0
    %v7733 = vadd.f32 %v7693, %v7732
    %v7734 = vpop.f32.mrb[0].mxu0
    %7735 = vmatprep.mubr.bf16.mxu0 0
    %7736 = vmatmul.mubr.bf16.gmra.mrb[0].mxu0 %v2446
    %v7737 = vpop.f32.mrb[0].mxu0
    %v7738 = vadd.f32 %v7693, %v7737
    %v7739 = vpop.f32.mrb[0].mxu0
    %v7740 = vpop.f32.mrb[0].mxu0
    %v7741 = vadd.f32 %v7693, %v7740
    %v7742 = vpop.f32.mrb[0].mxu0
    %7743 = vdwg.mxu0
    %7746 = vrot.lane.b32.xlu0 %v7679, 120
    %v7747 = vpop.permute.xlu0 %7746
    %7748 = vrot.lane.b32.xlu0 %v7682, 120
    %v7749 = vpop.permute.xlu0 %7748
    %7752 = vrot.lane.b32.xlu0 %v7679, 112
    %v7753 = vpop.permute.xlu0 %7752
    %7754 = vrot.lane.b32.xlu0 %v7682, 112
    %v7755 = vpop.permute.xlu0 %7754
    %7758 = vrot.lane.b32.xlu0 %v7679, 104
    %v7759 = vpop.permute.xlu0 %7758
    %7760 = vrot.lane.b32.xlu0 %v7682, 104
    %v7761 = vpop.permute.xlu0 %7760
    %v7764 = vcombine.low %v7679, %v7753
    %v7765 = vcombine.high %v7679, %v7753
    %v7767 = vunpack.c.l.s4 1983009808
    %v7768 = vunpack.c.0.s8 %v7767
    %v7769 = vlaneseq
    %v7770 = vshrl.u32 %v7769, 7
    %v7771 = vsub.s32 %v7768, %v7770
    %v7772 = vrot.slane %v7764, %v7771
    %v7774 = vunpack.c.l.s4 1983009808
    %v7775 = vunpack.c.0.s8 %v7774
    %v7776 = vlaneseq
    %v7777 = vshrl.u32 %v7776, 7
    %v7778 = vsub.s32 %v7775, %v7777
    %v7779 = vrot.slane %v7765, %v7778
    %v7780 = vcombine.low %v7747, %v7759
    %v7781 = vcombine.high %v7747, %v7759
    %v7783 = vunpack.c.l.s4 1983009808
    %v7784 = vunpack.c.0.s8 %v7783
    %v7785 = vlaneseq
    %v7786 = vshrl.u32 %v7785, 7
    %v7787 = vsub.s32 %v7784, %v7786
    %v7788 = vrot.slane %v7780, %v7787
    %v7790 = vunpack.c.l.s4 1983009808
    %v7791 = vunpack.c.0.s8 %v7790
    %v7792 = vlaneseq
    %v7793 = vshrl.u32 %v7792, 7
    %v7794 = vsub.s32 %v7791, %v7793
    %v7795 = vrot.slane %v7781, %v7794
    %v7796 = vcombine.low %v7772, %v7788
    %v7797 = vcombine.high %v7772, %v7788
    %v7799 = vunpack.c.l.s4 1934713408
    %v7800 = vunpack.c.0.s8 %v7799
    %v7801 = vlaneseq
    %v7802 = vshrl.u32 %v7801, 7
    %v7803 = vsub.s32 %v7800, %v7802
    %v7804 = vrot.slane %v7796, %v7803
    %v7806 = vunpack.c.l.s4 1934713408
    %v7807 = vunpack.c.0.s8 %v7806
    %v7808 = vlaneseq
    %v7809 = vshrl.u32 %v7808, 7
    %v7810 = vsub.s32 %v7807, %v7809
    %v7811 = vrot.slane %v7797, %v7810
    %v7812 = vcombine.low %v7779, %v7795
    %v7813 = vcombine.high %v7779, %v7795
    %v7815 = vunpack.c.l.s4 1934713408
    %v7816 = vunpack.c.0.s8 %v7815
    %v7817 = vlaneseq
    %v7818 = vshrl.u32 %v7817, 7
    %v7819 = vsub.s32 %v7816, %v7818
    %v7820 = vrot.slane %v7812, %v7819
    %v7822 = vunpack.c.l.s4 1934713408
    %v7823 = vunpack.c.0.s8 %v7822
    %v7824 = vlaneseq
    %v7825 = vshrl.u32 %v7824, 7
    %v7826 = vsub.s32 %v7823, %v7825
    %v7827 = vrot.slane %v7813, %v7826
    %v7828 = vcombine.high %v7804, 0.0
    %v7829 = vcombine.high %v7811, 0.0
    %v7830 = vcombine.high %v7820, 0.0
    %v7831 = vcombine.high %v7827, 0.0
    %v7832 = vcombine.low %v7682, %v7755
    %v7833 = vcombine.high %v7682, %v7755
    %v7835 = vunpack.c.l.s4 1983009808
    %v7836 = vunpack.c.0.s8 %v7835
    %v7837 = vlaneseq
    %v7838 = vshrl.u32 %v7837, 7
    %v7839 = vsub.s32 %v7836, %v7838
    %v7840 = vrot.slane %v7832, %v7839
    %v7842 = vunpack.c.l.s4 1983009808
    %v7843 = vunpack.c.0.s8 %v7842
    %v7844 = vlaneseq
    %v7845 = vshrl.u32 %v7844, 7
    %v7846 = vsub.s32 %v7843, %v7845
    %v7847 = vrot.slane %v7833, %v7846
    %v7848 = vcombine.low %v7749, %v7761
    %v7849 = vcombine.high %v7749, %v7761
    %v7851 = vunpack.c.l.s4 1983009808
    %v7852 = vunpack.c.0.s8 %v7851
    %v7853 = vlaneseq
    %v7854 = vshrl.u32 %v7853, 7
    %v7855 = vsub.s32 %v7852, %v7854
    %v7856 = vrot.slane %v7848, %v7855
    %v7858 = vunpack.c.l.s4 1983009808
    %v7859 = vunpack.c.0.s8 %v7858
    %v7860 = vlaneseq
    %v7861 = vshrl.u32 %v7860, 7
    %v7862 = vsub.s32 %v7859, %v7861
    %v7863 = vrot.slane %v7849, %v7862
    %v7864 = vcombine.low %v7840, %v7856
    %v7865 = vcombine.high %v7840, %v7856
    %v7867 = vunpack.c.l.s4 1934713408
    %v7868 = vunpack.c.0.s8 %v7867
    %v7869 = vlaneseq
    %v7870 = vshrl.u32 %v7869, 7
    %v7871 = vsub.s32 %v7868, %v7870
    %v7872 = vrot.slane %v7864, %v7871
    %v7874 = vunpack.c.l.s4 1934713408
    %v7875 = vunpack.c.0.s8 %v7874
    %v7876 = vlaneseq
    %v7877 = vshrl.u32 %v7876, 7
    %v7878 = vsub.s32 %v7875, %v7877
    %v7879 = vrot.slane %v7865, %v7878
    %v7880 = vcombine.low %v7847, %v7863
    %v7881 = vcombine.high %v7847, %v7863
    %v7883 = vunpack.c.l.s4 1934713408
    %v7884 = vunpack.c.0.s8 %v7883
    %v7885 = vlaneseq
    %v7886 = vshrl.u32 %v7885, 7
    %v7887 = vsub.s32 %v7884, %v7886
    %v7888 = vrot.slane %v7880, %v7887
    %v7890 = vunpack.c.l.s4 1934713408
    %v7891 = vunpack.c.0.s8 %v7890
    %v7892 = vlaneseq
    %v7893 = vshrl.u32 %v7892, 7
    %v7894 = vsub.s32 %v7891, %v7893
    %v7895 = vrot.slane %v7881, %v7894
    %v7896 = vcombine.high %v7872, 0.0
    %v7897 = vcombine.high %v7879, 0.0
    %v7898 = vcombine.high %v7888, 0.0
    %v7899 = vcombine.high %v7895, 0.0
    %v7900 = vcombine.low %v7804, %v7811
    %v7902 = vunpack.c.l.s4 1983009808
    %v7903 = vunpack.c.0.s8 %v7902
    %v7904 = vlaneseq
    %v7905 = vshrl.u32 %v7904, 7
    %v7906 = vsub.s32 %v7903, %v7905
    %v7907 = vrot.slane %v7900, %v7906
    %v7908 = vcombine.low %v7828, %v7829
    %v7910 = vunpack.c.l.s4 1983009808
    %v7911 = vunpack.c.0.s8 %v7910
    %v7912 = vlaneseq
    %v7913 = vshrl.u32 %v7912, 7
    %v7914 = vsub.s32 %v7911, %v7913
    %v7915 = vrot.slane %v7908, %v7914
    %v7916 = vcombine.low %v7820, %v7827
    %v7918 = vunpack.c.l.s4 1983009808
    %v7919 = vunpack.c.0.s8 %v7918
    %v7920 = vlaneseq
    %v7921 = vshrl.u32 %v7920, 7
    %v7922 = vsub.s32 %v7919, %v7921
    %v7923 = vrot.slane %v7916, %v7922
    %v7924 = vcombine.low %v7830, %v7831
    %v7926 = vunpack.c.l.s4 1983009808
    %v7927 = vunpack.c.0.s8 %v7926
    %v7928 = vlaneseq
    %v7929 = vshrl.u32 %v7928, 7
    %v7930 = vsub.s32 %v7927, %v7929
    %v7931 = vrot.slane %v7924, %v7930
    %v7932 = vcombine.low %v7907, %v7915
    %v7933 = vcombine.high %v7907, %v7915
    %v7935 = vunpack.c.l.s4 1934713408
    %v7936 = vunpack.c.0.s8 %v7935
    %v7937 = vlaneseq
    %v7938 = vshrl.u32 %v7937, 7
    %v7939 = vsub.s32 %v7936, %v7938
    %v7940 = vrot.slane %v7932, %v7939
    %v7942 = vunpack.c.l.s4 1934713408
    %v7943 = vunpack.c.0.s8 %v7942
    %v7944 = vlaneseq
    %v7945 = vshrl.u32 %v7944, 7
    %v7946 = vsub.s32 %v7943, %v7945
    %v7947 = vrot.slane %v7933, %v7946
    %v7948 = vcombine.low %v7923, %v7931
    %v7949 = vcombine.high %v7923, %v7931
    %v7951 = vunpack.c.l.s4 1934713408
    %v7952 = vunpack.c.0.s8 %v7951
    %v7953 = vlaneseq
    %v7954 = vshrl.u32 %v7953, 7
    %v7955 = vsub.s32 %v7952, %v7954
    %v7956 = vrot.slane %v7948, %v7955
    %v7958 = vunpack.c.l.s4 1934713408
    %v7959 = vunpack.c.0.s8 %v7958
    %v7960 = vlaneseq
    %v7961 = vshrl.u32 %v7960, 7
    %v7962 = vsub.s32 %v7959, %v7961
    %v7963 = vrot.slane %v7949, %v7962
    %v7964 = vcombine.low %v7940, %v7956
    %v7965 = vcombine.high %v7940, %v7956
    %v7966 = vcombine.low %v7947, %v7963
    %v7967 = vcombine.high %v7947, %v7963
    %v7968 = vcombine.low %v7872, %v7879
    %v7970 = vunpack.c.l.s4 1983009808
    %v7971 = vunpack.c.0.s8 %v7970
    %v7972 = vlaneseq
    %v7973 = vshrl.u32 %v7972, 7
    %v7974 = vsub.s32 %v7971, %v7973
    %v7975 = vrot.slane %v7968, %v7974
    %v7976 = vcombine.low %v7896, %v7897
    %v7978 = vunpack.c.l.s4 1983009808
    %v7979 = vunpack.c.0.s8 %v7978
    %v7980 = vlaneseq
    %v7981 = vshrl.u32 %v7980, 7
    %v7982 = vsub.s32 %v7979, %v7981
    %v7983 = vrot.slane %v7976, %v7982
    %v7984 = vcombine.low %v7888, %v7895
    %v7986 = vunpack.c.l.s4 1983009808
    %v7987 = vunpack.c.0.s8 %v7986
    %v7988 = vlaneseq
    %v7989 = vshrl.u32 %v7988, 7
    %v7990 = vsub.s32 %v7987, %v7989
    %v7991 = vrot.slane %v7984, %v7990
    %v7992 = vcombine.low %v7898, %v7899
    %v7994 = vunpack.c.l.s4 1983009808
    %v7995 = vunpack.c.0.s8 %v7994
    %v7996 = vlaneseq
    %v7997 = vshrl.u32 %v7996, 7
    %v7998 = vsub.s32 %v7995, %v7997
    %v7999 = vrot.slane %v7992, %v7998
    %v8000 = vcombine.low %v7975, %v7983
    %v8001 = vcombine.high %v7975, %v7983
    %v8003 = vunpack.c.l.s4 1934713408
    %v8004 = vunpack.c.0.s8 %v8003
    %v8005 = vlaneseq
    %v8006 = vshrl.u32 %v8005, 7
    %v8007 = vsub.s32 %v8004, %v8006
    %v8008 = vrot.slane %v8000, %v8007
    %v8010 = vunpack.c.l.s4 1934713408
    %v8011 = vunpack.c.0.s8 %v8010
    %v8012 = vlaneseq
    %v8013 = vshrl.u32 %v8012, 7
    %v8014 = vsub.s32 %v8011, %v8013
    %v8015 = vrot.slane %v8001, %v8014
    %v8016 = vcombine.low %v7991, %v7999
    %v8017 = vcombine.high %v7991, %v7999
    %v8019 = vunpack.c.l.s4 1934713408
    %v8020 = vunpack.c.0.s8 %v8019
    %v8021 = vlaneseq
    %v8022 = vshrl.u32 %v8021, 7
    %v8023 = vsub.s32 %v8020, %v8022
    %v8024 = vrot.slane %v8016, %v8023
    %v8026 = vunpack.c.l.s4 1934713408
    %v8027 = vunpack.c.0.s8 %v8026
    %v8028 = vlaneseq
    %v8029 = vshrl.u32 %v8028, 7
    %v8030 = vsub.s32 %v8027, %v8029
    %v8031 = vrot.slane %v8017, %v8030
    %v8032 = vcombine.low %v8008, %v8024
    %v8033 = vcombine.high %v8008, %v8024
    %v8034 = vcombine.low %v8015, %v8031
    %v8035 = vcombine.high %v8015, %v8031
    %8040 = vrot.lane.b32.xlu0 %v7730, 120
    %v8041 = vpop.permute.xlu0 %8040
    %8042 = vrot.lane.b32.xlu0 %v7733, 120
    %v8043 = vpop.permute.xlu0 %8042
    %8044 = vrot.lane.b32.xlu0 %v7738, 120
    %v8045 = vpop.permute.xlu0 %8044
    %8046 = vrot.lane.b32.xlu0 %v7741, 120
    %v8047 = vpop.permute.xlu0 %8046
    %8052 = vrot.lane.b32.xlu0 %v7730, 112
    %v8053 = vpop.permute.xlu0 %8052
    %8054 = vrot.lane.b32.xlu0 %v7733, 112
    %v8055 = vpop.permute.xlu0 %8054
    %8056 = vrot.lane.b32.xlu0 %v7738, 112
    %v8057 = vpop.permute.xlu0 %8056
    %8058 = vrot.lane.b32.xlu0 %v7741, 112
    %v8059 = vpop.permute.xlu0 %8058
    %8064 = vrot.lane.b32.xlu0 %v7730, 104
    %v8065 = vpop.permute.xlu0 %8064
    %8066 = vrot.lane.b32.xlu0 %v7733, 104
    %v8067 = vpop.permute.xlu0 %8066
    %8068 = vrot.lane.b32.xlu0 %v7738, 104
    %v8069 = vpop.permute.xlu0 %8068
    %8070 = vrot.lane.b32.xlu0 %v7741, 104
    %v8071 = vpop.permute.xlu0 %8070
    %v8076 = vcombine.low %v7730, %v8053
    %v8077 = vcombine.high %v7730, %v8053
    %v8079 = vunpack.c.l.s4 1983009808
    %v8080 = vunpack.c.0.s8 %v8079
    %v8081 = vlaneseq
    %v8082 = vshrl.u32 %v8081, 7
    %v8083 = vsub.s32 %v8080, %v8082
    %v8084 = vrot.slane %v8076, %v8083
    %v8086 = vunpack.c.l.s4 1983009808
    %v8087 = vunpack.c.0.s8 %v8086
    %v8088 = vlaneseq
    %v8089 = vshrl.u32 %v8088, 7
    %v8090 = vsub.s32 %v8087, %v8089
    %v8091 = vrot.slane %v8077, %v8090
    %v8092 = vcombine.low %v8041, %v8065
    %v8093 = vcombine.high %v8041, %v8065
    %v8095 = vunpack.c.l.s4 1983009808
    %v8096 = vunpack.c.0.s8 %v8095
    %v8097 = vlaneseq
    %v8098 = vshrl.u32 %v8097, 7
    %v8099 = vsub.s32 %v8096, %v8098
    %v8100 = vrot.slane %v8092, %v8099
    %v8102 = vunpack.c.l.s4 1983009808
    %v8103 = vunpack.c.0.s8 %v8102
    %v8104 = vlaneseq
    %v8105 = vshrl.u32 %v8104, 7
    %v8106 = vsub.s32 %v8103, %v8105
    %v8107 = vrot.slane %v8093, %v8106
    %v8108 = vcombine.low %v8084, %v8100
    %v8109 = vcombine.high %v8084, %v8100
    %v8111 = vunpack.c.l.s4 1934713408
    %v8112 = vunpack.c.0.s8 %v8111
    %v8113 = vlaneseq
    %v8114 = vshrl.u32 %v8113, 7
    %v8115 = vsub.s32 %v8112, %v8114
    %v8116 = vrot.slane %v8108, %v8115
    %v8118 = vunpack.c.l.s4 1934713408
    %v8119 = vunpack.c.0.s8 %v8118
    %v8120 = vlaneseq
    %v8121 = vshrl.u32 %v8120, 7
    %v8122 = vsub.s32 %v8119, %v8121
    %v8123 = vrot.slane %v8109, %v8122
    %v8124 = vcombine.low %v8091, %v8107
    %v8125 = vcombine.high %v8091, %v8107
    %v8127 = vunpack.c.l.s4 1934713408
    %v8128 = vunpack.c.0.s8 %v8127
    %v8129 = vlaneseq
    %v8130 = vshrl.u32 %v8129, 7
    %v8131 = vsub.s32 %v8128, %v8130
    %v8132 = vrot.slane %v8124, %v8131
    %v8134 = vunpack.c.l.s4 1934713408
    %v8135 = vunpack.c.0.s8 %v8134
    %v8136 = vlaneseq
    %v8137 = vshrl.u32 %v8136, 7
    %v8138 = vsub.s32 %v8135, %v8137
    %v8139 = vrot.slane %v8125, %v8138
    %v8140 = vcombine.high %v8116, 0.0
    %v8141 = vcombine.high %v8123, 0.0
    %v8142 = vcombine.high %v8132, 0.0
    %v8143 = vcombine.high %v8139, 0.0
    %v8144 = vcombine.low %v7733, %v8055
    %v8145 = vcombine.high %v7733, %v8055
    %v8147 = vunpack.c.l.s4 1983009808
    %v8148 = vunpack.c.0.s8 %v8147
    %v8149 = vlaneseq
    %v8150 = vshrl.u32 %v8149, 7
    %v8151 = vsub.s32 %v8148, %v8150
    %v8152 = vrot.slane %v8144, %v8151
    %v8154 = vunpack.c.l.s4 1983009808
    %v8155 = vunpack.c.0.s8 %v8154
    %v8156 = vlaneseq
    %v8157 = vshrl.u32 %v8156, 7
    %v8158 = vsub.s32 %v8155, %v8157
    %v8159 = vrot.slane %v8145, %v8158
    %v8160 = vcombine.low %v8043, %v8067
    %v8161 = vcombine.high %v8043, %v8067
    %v8163 = vunpack.c.l.s4 1983009808
    %v8164 = vunpack.c.0.s8 %v8163
    %v8165 = vlaneseq
    %v8166 = vshrl.u32 %v8165, 7
    %v8167 = vsub.s32 %v8164, %v8166
    %v8168 = vrot.slane %v8160, %v8167
    %v8170 = vunpack.c.l.s4 1983009808
    %v8171 = vunpack.c.0.s8 %v8170
    %v8172 = vlaneseq
    %v8173 = vshrl.u32 %v8172, 7
    %v8174 = vsub.s32 %v8171, %v8173
    %v8175 = vrot.slane %v8161, %v8174
    %v8176 = vcombine.low %v8152, %v8168
    %v8177 = vcombine.high %v8152, %v8168
    %v8179 = vunpack.c.l.s4 1934713408
    %v8180 = vunpack.c.0.s8 %v8179
    %v8181 = vlaneseq
    %v8182 = vshrl.u32 %v8181, 7
    %v8183 = vsub.s32 %v8180, %v8182
    %v8184 = vrot.slane %v8176, %v8183
    %v8186 = vunpack.c.l.s4 1934713408
    %v8187 = vunpack.c.0.s8 %v8186
    %v8188 = vlaneseq
    %v8189 = vshrl.u32 %v8188, 7
    %v8190 = vsub.s32 %v8187, %v8189
    %v8191 = vrot.slane %v8177, %v8190
    %v8192 = vcombine.low %v8159, %v8175
    %v8193 = vcombine.high %v8159, %v8175
    %v8195 = vunpack.c.l.s4 1934713408
    %v8196 = vunpack.c.0.s8 %v8195
    %v8197 = vlaneseq
    %v8198 = vshrl.u32 %v8197, 7
    %v8199 = vsub.s32 %v8196, %v8198
    %v8200 = vrot.slane %v8192, %v8199
    %v8202 = vunpack.c.l.s4 1934713408
    %v8203 = vunpack.c.0.s8 %v8202
    %v8204 = vlaneseq
    %v8205 = vshrl.u32 %v8204, 7
    %v8206 = vsub.s32 %v8203, %v8205
    %v8207 = vrot.slane %v8193, %v8206
    %v8208 = vcombine.high %v8184, 0.0
    %v8209 = vcombine.high %v8191, 0.0
    %v8210 = vcombine.high %v8200, 0.0
    %v8211 = vcombine.high %v8207, 0.0
    %v8212 = vcombine.low %v7738, %v8057
    %v8213 = vcombine.high %v7738, %v8057
    %v8215 = vunpack.c.l.s4 1983009808
    %v8216 = vunpack.c.0.s8 %v8215
    %v8217 = vlaneseq
    %v8218 = vshrl.u32 %v8217, 7
    %v8219 = vsub.s32 %v8216, %v8218
    %v8220 = vrot.slane %v8212, %v8219
    %v8222 = vunpack.c.l.s4 1983009808
    %v8223 = vunpack.c.0.s8 %v8222
    %v8224 = vlaneseq
    %v8225 = vshrl.u32 %v8224, 7
    %v8226 = vsub.s32 %v8223, %v8225
    %v8227 = vrot.slane %v8213, %v8226
    %v8228 = vcombine.low %v8045, %v8069
    %v8229 = vcombine.high %v8045, %v8069
    %v8231 = vunpack.c.l.s4 1983009808
    %v8232 = vunpack.c.0.s8 %v8231
    %v8233 = vlaneseq
    %v8234 = vshrl.u32 %v8233, 7
    %v8235 = vsub.s32 %v8232, %v8234
    %v8236 = vrot.slane %v8228, %v8235
    %v8238 = vunpack.c.l.s4 1983009808
    %v8239 = vunpack.c.0.s8 %v8238
    %v8240 = vlaneseq
    %v8241 = vshrl.u32 %v8240, 7
    %v8242 = vsub.s32 %v8239, %v8241
    %v8243 = vrot.slane %v8229, %v8242
    %v8244 = vcombine.low %v8220, %v8236
    %v8245 = vcombine.high %v8220, %v8236
    %v8247 = vunpack.c.l.s4 1934713408
    %v8248 = vunpack.c.0.s8 %v8247
    %v8249 = vlaneseq
    %v8250 = vshrl.u32 %v8249, 7
    %v8251 = vsub.s32 %v8248, %v8250
    %v8252 = vrot.slane %v8244, %v8251
    %v8254 = vunpack.c.l.s4 1934713408
    %v8255 = vunpack.c.0.s8 %v8254
    %v8256 = vlaneseq
    %v8257 = vshrl.u32 %v8256, 7
    %v8258 = vsub.s32 %v8255, %v8257
    %v8259 = vrot.slane %v8245, %v8258
    %v8260 = vcombine.low %v8227, %v8243
    %v8261 = vcombine.high %v8227, %v8243
    %v8263 = vunpack.c.l.s4 1934713408
    %v8264 = vunpack.c.0.s8 %v8263
    %v8265 = vlaneseq
    %v8266 = vshrl.u32 %v8265, 7
    %v8267 = vsub.s32 %v8264, %v8266
    %v8268 = vrot.slane %v8260, %v8267
    %v8270 = vunpack.c.l.s4 1934713408
    %v8271 = vunpack.c.0.s8 %v8270
    %v8272 = vlaneseq
    %v8273 = vshrl.u32 %v8272, 7
    %v8274 = vsub.s32 %v8271, %v8273
    %v8275 = vrot.slane %v8261, %v8274
    %v8276 = vcombine.high %v8252, 0.0
    %v8277 = vcombine.high %v8259, 0.0
    %v8278 = vcombine.high %v8268, 0.0
    %v8279 = vcombine.high %v8275, 0.0
    %v8280 = vcombine.low %v7741, %v8059
    %v8281 = vcombine.high %v7741, %v8059
    %v8283 = vunpack.c.l.s4 1983009808
    %v8284 = vunpack.c.0.s8 %v8283
    %v8285 = vlaneseq
    %v8286 = vshrl.u32 %v8285, 7
    %v8287 = vsub.s32 %v8284, %v8286
    %v8288 = vrot.slane %v8280, %v8287
    %v8290 = vunpack.c.l.s4 1983009808
    %v8291 = vunpack.c.0.s8 %v8290
    %v8292 = vlaneseq
    %v8293 = vshrl.u32 %v8292, 7
    %v8294 = vsub.s32 %v8291, %v8293
    %v8295 = vrot.slane %v8281, %v8294
    %v8296 = vcombine.low %v8047, %v8071
    %v8297 = vcombine.high %v8047, %v8071
    %v8299 = vunpack.c.l.s4 1983009808
    %v8300 = vunpack.c.0.s8 %v8299
    %v8301 = vlaneseq
    %v8302 = vshrl.u32 %v8301, 7
    %v8303 = vsub.s32 %v8300, %v8302
    %v8304 = vrot.slane %v8296, %v8303
    %v8306 = vunpack.c.l.s4 1983009808
    %v8307 = vunpack.c.0.s8 %v8306
    %v8308 = vlaneseq
    %v8309 = vshrl.u32 %v8308, 7
    %v8310 = vsub.s32 %v8307, %v8309
    %v8311 = vrot.slane %v8297, %v8310
    %v8312 = vcombine.low %v8288, %v8304
    %v8313 = vcombine.high %v8288, %v8304
    %v8315 = vunpack.c.l.s4 1934713408
    %v8316 = vunpack.c.0.s8 %v8315
    %v8317 = vlaneseq
    %v8318 = vshrl.u32 %v8317, 7
    %v8319 = vsub.s32 %v8316, %v8318
    %v8320 = vrot.slane %v8312, %v8319
    %v8322 = vunpack.c.l.s4 1934713408
    %v8323 = vunpack.c.0.s8 %v8322
    %v8324 = vlaneseq
    %v8325 = vshrl.u32 %v8324, 7
    %v8326 = vsub.s32 %v8323, %v8325
    %v8327 = vrot.slane %v8313, %v8326
    %v8328 = vcombine.low %v8295, %v8311
    %v8329 = vcombine.high %v8295, %v8311
    %v8331 = vunpack.c.l.s4 1934713408
    %v8332 = vunpack.c.0.s8 %v8331
    %v8333 = vlaneseq
    %v8334 = vshrl.u32 %v8333, 7
    %v8335 = vsub.s32 %v8332, %v8334
    %v8336 = vrot.slane %v8328, %v8335
    %v8338 = vunpack.c.l.s4 1934713408
    %v8339 = vunpack.c.0.s8 %v8338
    %v8340 = vlaneseq
    %v8341 = vshrl.u32 %v8340, 7
    %v8342 = vsub.s32 %v8339, %v8341
    %v8343 = vrot.slane %v8329, %v8342
    %v8344 = vcombine.high %v8320, 0.0
    %v8345 = vcombine.high %v8327, 0.0
    %v8346 = vcombine.high %v8336, 0.0
    %v8347 = vcombine.high %v8343, 0.0
    %v8348 = vcombine.low %v8116, %v8123
    %v8350 = vunpack.c.l.s4 1983009808
    %v8351 = vunpack.c.0.s8 %v8350
    %v8352 = vlaneseq
    %v8353 = vshrl.u32 %v8352, 7
    %v8354 = vsub.s32 %v8351, %v8353
    %v8355 = vrot.slane %v8348, %v8354
    %v8356 = vcombine.low %v8140, %v8141
    %v8358 = vunpack.c.l.s4 1983009808
    %v8359 = vunpack.c.0.s8 %v8358
    %v8360 = vlaneseq
    %v8361 = vshrl.u32 %v8360, 7
    %v8362 = vsub.s32 %v8359, %v8361
    %v8363 = vrot.slane %v8356, %v8362
    %v8364 = vcombine.low %v8132, %v8139
    %v8366 = vunpack.c.l.s4 1983009808
    %v8367 = vunpack.c.0.s8 %v8366
    %v8368 = vlaneseq
    %v8369 = vshrl.u32 %v8368, 7
    %v8370 = vsub.s32 %v8367, %v8369
    %v8371 = vrot.slane %v8364, %v8370
    %v8372 = vcombine.low %v8142, %v8143
    %v8374 = vunpack.c.l.s4 1983009808
    %v8375 = vunpack.c.0.s8 %v8374
    %v8376 = vlaneseq
    %v8377 = vshrl.u32 %v8376, 7
    %v8378 = vsub.s32 %v8375, %v8377
    %v8379 = vrot.slane %v8372, %v8378
    %v8380 = vcombine.low %v8355, %v8363
    %v8381 = vcombine.high %v8355, %v8363
    %v8383 = vunpack.c.l.s4 1934713408
    %v8384 = vunpack.c.0.s8 %v8383
    %v8385 = vlaneseq
    %v8386 = vshrl.u32 %v8385, 7
    %v8387 = vsub.s32 %v8384, %v8386
    %v8388 = vrot.slane %v8380, %v8387
    %v8390 = vunpack.c.l.s4 1934713408
    %v8391 = vunpack.c.0.s8 %v8390
    %v8392 = vlaneseq
    %v8393 = vshrl.u32 %v8392, 7
    %v8394 = vsub.s32 %v8391, %v8393
    %v8395 = vrot.slane %v8381, %v8394
    %v8396 = vcombine.low %v8371, %v8379
    %v8397 = vcombine.high %v8371, %v8379
    %v8399 = vunpack.c.l.s4 1934713408
    %v8400 = vunpack.c.0.s8 %v8399
    %v8401 = vlaneseq
    %v8402 = vshrl.u32 %v8401, 7
    %v8403 = vsub.s32 %v8400, %v8402
    %v8404 = vrot.slane %v8396, %v8403
    %v8406 = vunpack.c.l.s4 1934713408
    %v8407 = vunpack.c.0.s8 %v8406
    %v8408 = vlaneseq
    %v8409 = vshrl.u32 %v8408, 7
    %v8410 = vsub.s32 %v8407, %v8409
    %v8411 = vrot.slane %v8397, %v8410
    %v8412 = vcombine.low %v8388, %v8404
    %v8413 = vcombine.high %v8388, %v8404
    %v8414 = vcombine.low %v8395, %v8411
    %v8415 = vcombine.high %v8395, %v8411
    %v8416 = vcombine.low %v8184, %v8191
    %v8418 = vunpack.c.l.s4 1983009808
    %v8419 = vunpack.c.0.s8 %v8418
    %v8420 = vlaneseq
    %v8421 = vshrl.u32 %v8420, 7
    %v8422 = vsub.s32 %v8419, %v8421
    %v8423 = vrot.slane %v8416, %v8422
    %v8424 = vcombine.low %v8208, %v8209
    %v8426 = vunpack.c.l.s4 1983009808
    %v8427 = vunpack.c.0.s8 %v8426
    %v8428 = vlaneseq
    %v8429 = vshrl.u32 %v8428, 7
    %v8430 = vsub.s32 %v8427, %v8429
    %v8431 = vrot.slane %v8424, %v8430
    %v8432 = vcombine.low %v8200, %v8207
    %v8434 = vunpack.c.l.s4 1983009808
    %v8435 = vunpack.c.0.s8 %v8434
    %v8436 = vlaneseq
    %v8437 = vshrl.u32 %v8436, 7
    %v8438 = vsub.s32 %v8435, %v8437
    %v8439 = vrot.slane %v8432, %v8438
    %v8440 = vcombine.low %v8210, %v8211
    %v8442 = vunpack.c.l.s4 1983009808
    %v8443 = vunpack.c.0.s8 %v8442
    %v8444 = vlaneseq
    %v8445 = vshrl.u32 %v8444, 7
    %v8446 = vsub.s32 %v8443, %v8445
    %v8447 = vrot.slane %v8440, %v8446
    %v8448 = vcombine.low %v8423, %v8431
    %v8449 = vcombine.high %v8423, %v8431
    %v8451 = vunpack.c.l.s4 1934713408
    %v8452 = vunpack.c.0.s8 %v8451
    %v8453 = vlaneseq
    %v8454 = vshrl.u32 %v8453, 7
    %v8455 = vsub.s32 %v8452, %v8454
    %v8456 = vrot.slane %v8448, %v8455
    %v8458 = vunpack.c.l.s4 1934713408
    %v8459 = vunpack.c.0.s8 %v8458
    %v8460 = vlaneseq
    %v8461 = vshrl.u32 %v8460, 7
    %v8462 = vsub.s32 %v8459, %v8461
    %v8463 = vrot.slane %v8449, %v8462
    %v8464 = vcombine.low %v8439, %v8447
    %v8465 = vcombine.high %v8439, %v8447
    %v8467 = vunpack.c.l.s4 1934713408
    %v8468 = vunpack.c.0.s8 %v8467
    %v8469 = vlaneseq
    %v8470 = vshrl.u32 %v8469, 7
    %v8471 = vsub.s32 %v8468, %v8470
    %v8472 = vrot.slane %v8464, %v8471
    %v8474 = vunpack.c.l.s4 1934713408
    %v8475 = vunpack.c.0.s8 %v8474
    %v8476 = vlaneseq
    %v8477 = vshrl.u32 %v8476, 7
    %v8478 = vsub.s32 %v8475, %v8477
    %v8479 = vrot.slane %v8465, %v8478
    %v8480 = vcombine.low %v8456, %v8472
    %v8481 = vcombine.high %v8456, %v8472
    %v8482 = vcombine.low %v8463, %v8479
    %v8483 = vcombine.high %v8463, %v8479
    %v8484 = vcombine.low %v8252, %v8259
    %v8486 = vunpack.c.l.s4 1983009808
    %v8487 = vunpack.c.0.s8 %v8486
    %v8488 = vlaneseq
    %v8489 = vshrl.u32 %v8488, 7
    %v8490 = vsub.s32 %v8487, %v8489
    %v8491 = vrot.slane %v8484, %v8490
    %v8492 = vcombine.low %v8276, %v8277
    %v8494 = vunpack.c.l.s4 1983009808
    %v8495 = vunpack.c.0.s8 %v8494
    %v8496 = vlaneseq
    %v8497 = vshrl.u32 %v8496, 7
    %v8498 = vsub.s32 %v8495, %v8497
    %v8499 = vrot.slane %v8492, %v8498
    %v8500 = vcombine.low %v8268, %v8275
    %v8502 = vunpack.c.l.s4 1983009808
    %v8503 = vunpack.c.0.s8 %v8502
    %v8504 = vlaneseq
    %v8505 = vshrl.u32 %v8504, 7
    %v8506 = vsub.s32 %v8503, %v8505
    %v8507 = vrot.slane %v8500, %v8506
    %v8508 = vcombine.low %v8278, %v8279
    %v8510 = vunpack.c.l.s4 1983009808
    %v8511 = vunpack.c.0.s8 %v8510
    %v8512 = vlaneseq
    %v8513 = vshrl.u32 %v8512, 7
    %v8514 = vsub.s32 %v8511, %v8513
    %v8515 = vrot.slane %v8508, %v8514
    %v8516 = vcombine.low %v8491, %v8499
    %v8517 = vcombine.high %v8491, %v8499
    %v8519 = vunpack.c.l.s4 1934713408
    %v8520 = vunpack.c.0.s8 %v8519
    %v8521 = vlaneseq
    %v8522 = vshrl.u32 %v8521, 7
    %v8523 = vsub.s32 %v8520, %v8522
    %v8524 = vrot.slane %v8516, %v8523
    %v8526 = vunpack.c.l.s4 1934713408
    %v8527 = vunpack.c.0.s8 %v8526
    %v8528 = vlaneseq
    %v8529 = vshrl.u32 %v8528, 7
    %v8530 = vsub.s32 %v8527, %v8529
    %v8531 = vrot.slane %v8517, %v8530
    %v8532 = vcombine.low %v8507, %v8515
    %v8533 = vcombine.high %v8507, %v8515
    %v8535 = vunpack.c.l.s4 1934713408
    %v8536 = vunpack.c.0.s8 %v8535
    %v8537 = vlaneseq
    %v8538 = vshrl.u32 %v8537, 7
    %v8539 = vsub.s32 %v8536, %v8538
    %v8540 = vrot.slane %v8532, %v8539
    %v8542 = vunpack.c.l.s4 1934713408
    %v8543 = vunpack.c.0.s8 %v8542
    %v8544 = vlaneseq
    %v8545 = vshrl.u32 %v8544, 7
    %v8546 = vsub.s32 %v8543, %v8545
    %v8547 = vrot.slane %v8533, %v8546
    %v8548 = vcombine.low %v8524, %v8540
    %v8549 = vcombine.high %v8524, %v8540
    %v8550 = vcombine.low %v8531, %v8547
    %v8551 = vcombine.high %v8531, %v8547
    %v8552 = vcombine.low %v8320, %v8327
    %v8554 = vunpack.c.l.s4 1983009808
    %v8555 = vunpack.c.0.s8 %v8554
    %v8556 = vlaneseq
    %v8557 = vshrl.u32 %v8556, 7
    %v8558 = vsub.s32 %v8555, %v8557
    %v8559 = vrot.slane %v8552, %v8558
    %v8560 = vcombine.low %v8344, %v8345
    %v8562 = vunpack.c.l.s4 1983009808
    %v8563 = vunpack.c.0.s8 %v8562
    %v8564 = vlaneseq
    %v8565 = vshrl.u32 %v8564, 7
    %v8566 = vsub.s32 %v8563, %v8565
    %v8567 = vrot.slane %v8560, %v8566
    %v8568 = vcombine.low %v8336, %v8343
    %v8570 = vunpack.c.l.s4 1983009808
    %v8571 = vunpack.c.0.s8 %v8570
    %v8572 = vlaneseq
    %v8573 = vshrl.u32 %v8572, 7
    %v8574 = vsub.s32 %v8571, %v8573
    %v8575 = vrot.slane %v8568, %v8574
    %v8576 = vcombine.low %v8346, %v8347
    %v8578 = vunpack.c.l.s4 1983009808
    %v8579 = vunpack.c.0.s8 %v8578
    %v8580 = vlaneseq
    %v8581 = vshrl.u32 %v8580, 7
    %v8582 = vsub.s32 %v8579, %v8581
    %v8583 = vrot.slane %v8576, %v8582
    %v8584 = vcombine.low %v8559, %v8567
    %v8585 = vcombine.high %v8559, %v8567
    %v8587 = vunpack.c.l.s4 1934713408
    %v8588 = vunpack.c.0.s8 %v8587
    %v8589 = vlaneseq
    %v8590 = vshrl.u32 %v8589, 7
    %v8591 = vsub.s32 %v8588, %v8590
    %v8592 = vrot.slane %v8584, %v8591
    %v8594 = vunpack.c.l.s4 1934713408
    %v8595 = vunpack.c.0.s8 %v8594
    %v8596 = vlaneseq
    %v8597 = vshrl.u32 %v8596, 7
    %v8598 = vsub.s32 %v8595, %v8597
    %v8599 = vrot.slane %v8585, %v8598
    %v8600 = vcombine.low %v8575, %v8583
    %v8601 = vcombine.high %v8575, %v8583
    %v8603 = vunpack.c.l.s4 1934713408
    %v8604 = vunpack.c.0.s8 %v8603
    %v8605 = vlaneseq
    %v8606 = vshrl.u32 %v8605, 7
    %v8607 = vsub.s32 %v8604, %v8606
    %v8608 = vrot.slane %v8600, %v8607
    %v8610 = vunpack.c.l.s4 1934713408
    %v8611 = vunpack.c.0.s8 %v8610
    %v8612 = vlaneseq
    %v8613 = vshrl.u32 %v8612, 7
    %v8614 = vsub.s32 %v8611, %v8613
    %v8615 = vrot.slane %v8601, %v8614
    %v8616 = vcombine.low %v8592, %v8608
    %v8617 = vcombine.high %v8592, %v8608
    %v8618 = vcombine.low %v8599, %v8615
    %v8619 = vcombine.high %v8599, %v8615
    %8620 = vrot.lane.b32.xlu0 %v7730, 96
    %v8621 = vpop.permute.xlu0 %8620
    %8622 = vrot.lane.b32.xlu0 %v7733, 96
    %v8623 = vpop.permute.xlu0 %8622
    %8624 = vrot.lane.b32.xlu0 %v7738, 96
    %v8625 = vpop.permute.xlu0 %8624
    %8626 = vrot.lane.b32.xlu0 %v7741, 96
    %v8627 = vpop.permute.xlu0 %8626
    %8628 = vrot.lane.b32.xlu0 %v8041, 96
    %v8629 = vpop.permute.xlu0 %8628
    %8630 = vrot.lane.b32.xlu0 %v8043, 96
    %v8631 = vpop.permute.xlu0 %8630
    %8632 = vrot.lane.b32.xlu0 %v8045, 96
    %v8633 = vpop.permute.xlu0 %8632
    %8634 = vrot.lane.b32.xlu0 %v8047, 96
    %v8635 = vpop.permute.xlu0 %8634
    %8636 = vrot.lane.b32.xlu0 %v8053, 96
    %v8637 = vpop.permute.xlu0 %8636
    %8638 = vrot.lane.b32.xlu0 %v8055, 96
    %v8639 = vpop.permute.xlu0 %8638
    %8640 = vrot.lane.b32.xlu0 %v8057, 96
    %v8641 = vpop.permute.xlu0 %8640
    %8642 = vrot.lane.b32.xlu0 %v8059, 96
    %v8643 = vpop.permute.xlu0 %8642
    %8644 = vrot.lane.b32.xlu0 %v8065, 96
    %v8645 = vpop.permute.xlu0 %8644
    %8646 = vrot.lane.b32.xlu0 %v8067, 96
    %v8647 = vpop.permute.xlu0 %8646
    %8648 = vrot.lane.b32.xlu0 %v8069, 96
    %v8649 = vpop.permute.xlu0 %8648
    %8650 = vrot.lane.b32.xlu0 %v8071, 96
    %v8651 = vpop.permute.xlu0 %8650
    %v8668 = vcombine.low %v8621, %v8637
    %v8669 = vcombine.high %v8621, %v8637
    %v8671 = vunpack.c.l.s4 1983009808
    %v8672 = vunpack.c.0.s8 %v8671
    %v8673 = vlaneseq
    %v8674 = vshrl.u32 %v8673, 7
    %v8675 = vsub.s32 %v8672, %v8674
    %v8676 = vrot.slane %v8668, %v8675
    %v8678 = vunpack.c.l.s4 1983009808
    %v8679 = vunpack.c.0.s8 %v8678
    %v8680 = vlaneseq
    %v8681 = vshrl.u32 %v8680, 7
    %v8682 = vsub.s32 %v8679, %v8681
    %v8683 = vrot.slane %v8669, %v8682
    %v8684 = vcombine.low %v8629, %v8645
    %v8685 = vcombine.high %v8629, %v8645
    %v8687 = vunpack.c.l.s4 1983009808
    %v8688 = vunpack.c.0.s8 %v8687
    %v8689 = vlaneseq
    %v8690 = vshrl.u32 %v8689, 7
    %v8691 = vsub.s32 %v8688, %v8690
    %v8692 = vrot.slane %v8684, %v8691
    %v8694 = vunpack.c.l.s4 1983009808
    %v8695 = vunpack.c.0.s8 %v8694
    %v8696 = vlaneseq
    %v8697 = vshrl.u32 %v8696, 7
    %v8698 = vsub.s32 %v8695, %v8697
    %v8699 = vrot.slane %v8685, %v8698
    %v8700 = vcombine.low %v8676, %v8692
    %v8701 = vcombine.high %v8676, %v8692
    %v8703 = vunpack.c.l.s4 1934713408
    %v8704 = vunpack.c.0.s8 %v8703
    %v8705 = vlaneseq
    %v8706 = vshrl.u32 %v8705, 7
    %v8707 = vsub.s32 %v8704, %v8706
    %v8708 = vrot.slane %v8700, %v8707
    %v8710 = vunpack.c.l.s4 1934713408
    %v8711 = vunpack.c.0.s8 %v8710
    %v8712 = vlaneseq
    %v8713 = vshrl.u32 %v8712, 7
    %v8714 = vsub.s32 %v8711, %v8713
    %v8715 = vrot.slane %v8701, %v8714
    %v8716 = vcombine.low %v8683, %v8699
    %v8717 = vcombine.high %v8683, %v8699
    %v8719 = vunpack.c.l.s4 1934713408
    %v8720 = vunpack.c.0.s8 %v8719
    %v8721 = vlaneseq
    %v8722 = vshrl.u32 %v8721, 7
    %v8723 = vsub.s32 %v8720, %v8722
    %v8724 = vrot.slane %v8716, %v8723
    %v8726 = vunpack.c.l.s4 1934713408
    %v8727 = vunpack.c.0.s8 %v8726
    %v8728 = vlaneseq
    %v8729 = vshrl.u32 %v8728, 7
    %v8730 = vsub.s32 %v8727, %v8729
    %v8731 = vrot.slane %v8717, %v8730
    %v8732 = vcombine.high %v8708, 0.0
    %v8733 = vcombine.high %v8715, 0.0
    %v8734 = vcombine.high %v8724, 0.0
    %v8735 = vcombine.high %v8731, 0.0
    %v8736 = vcombine.low %v8623, %v8639
    %v8737 = vcombine.high %v8623, %v8639
    %v8739 = vunpack.c.l.s4 1983009808
    %v8740 = vunpack.c.0.s8 %v8739
    %v8741 = vlaneseq
    %v8742 = vshrl.u32 %v8741, 7
    %v8743 = vsub.s32 %v8740, %v8742
    %v8744 = vrot.slane %v8736, %v8743
    %v8746 = vunpack.c.l.s4 1983009808
    %v8747 = vunpack.c.0.s8 %v8746
    %v8748 = vlaneseq
    %v8749 = vshrl.u32 %v8748, 7
    %v8750 = vsub.s32 %v8747, %v8749
    %v8751 = vrot.slane %v8737, %v8750
    %v8752 = vcombine.low %v8631, %v8647
    %v8753 = vcombine.high %v8631, %v8647
    %v8755 = vunpack.c.l.s4 1983009808
    %v8756 = vunpack.c.0.s8 %v8755
    %v8757 = vlaneseq
    %v8758 = vshrl.u32 %v8757, 7
    %v8759 = vsub.s32 %v8756, %v8758
    %v8760 = vrot.slane %v8752, %v8759
    %v8762 = vunpack.c.l.s4 1983009808
    %v8763 = vunpack.c.0.s8 %v8762
    %v8764 = vlaneseq
    %v8765 = vshrl.u32 %v8764, 7
    %v8766 = vsub.s32 %v8763, %v8765
    %v8767 = vrot.slane %v8753, %v8766
    %v8768 = vcombine.low %v8744, %v8760
    %v8769 = vcombine.high %v8744, %v8760
    %v8771 = vunpack.c.l.s4 1934713408
    %v8772 = vunpack.c.0.s8 %v8771
    %v8773 = vlaneseq
    %v8774 = vshrl.u32 %v8773, 7
    %v8775 = vsub.s32 %v8772, %v8774
    %v8776 = vrot.slane %v8768, %v8775
    %v8778 = vunpack.c.l.s4 1934713408
    %v8779 = vunpack.c.0.s8 %v8778
    %v8780 = vlaneseq
    %v8781 = vshrl.u32 %v8780, 7
    %v8782 = vsub.s32 %v8779, %v8781
    %v8783 = vrot.slane %v8769, %v8782
    %v8784 = vcombine.low %v8751, %v8767
    %v8785 = vcombine.high %v8751, %v8767
    %v8787 = vunpack.c.l.s4 1934713408
    %v8788 = vunpack.c.0.s8 %v8787
    %v8789 = vlaneseq
    %v8790 = vshrl.u32 %v8789, 7
    %v8791 = vsub.s32 %v8788, %v8790
    %v8792 = vrot.slane %v8784, %v8791
    %v8794 = vunpack.c.l.s4 1934713408
    %v8795 = vunpack.c.0.s8 %v8794
    %v8796 = vlaneseq
    %v8797 = vshrl.u32 %v8796, 7
    %v8798 = vsub.s32 %v8795, %v8797
    %v8799 = vrot.slane %v8785, %v8798
    %v8800 = vcombine.high %v8776, 0.0
    %v8801 = vcombine.high %v8783, 0.0
    %v8802 = vcombine.high %v8792, 0.0
    %v8803 = vcombine.high %v8799, 0.0
    %v8804 = vcombine.low %v8625, %v8641
    %v8805 = vcombine.high %v8625, %v8641
    %v8807 = vunpack.c.l.s4 1983009808
    %v8808 = vunpack.c.0.s8 %v8807
    %v8809 = vlaneseq
    %v8810 = vshrl.u32 %v8809, 7
    %v8811 = vsub.s32 %v8808, %v8810
    %v8812 = vrot.slane %v8804, %v8811
    %v8814 = vunpack.c.l.s4 1983009808
    %v8815 = vunpack.c.0.s8 %v8814
    %v8816 = vlaneseq
    %v8817 = vshrl.u32 %v8816, 7
    %v8818 = vsub.s32 %v8815, %v8817
    %v8819 = vrot.slane %v8805, %v8818
    %v8820 = vcombine.low %v8633, %v8649
    %v8821 = vcombine.high %v8633, %v8649
    %v8823 = vunpack.c.l.s4 1983009808
    %v8824 = vunpack.c.0.s8 %v8823
    %v8825 = vlaneseq
    %v8826 = vshrl.u32 %v8825, 7
    %v8827 = vsub.s32 %v8824, %v8826
    %v8828 = vrot.slane %v8820, %v8827
    %v8830 = vunpack.c.l.s4 1983009808
    %v8831 = vunpack.c.0.s8 %v8830
    %v8832 = vlaneseq
    %v8833 = vshrl.u32 %v8832, 7
    %v8834 = vsub.s32 %v8831, %v8833
    %v8835 = vrot.slane %v8821, %v8834
    %v8836 = vcombine.low %v8812, %v8828
    %v8837 = vcombine.high %v8812, %v8828
    %v8839 = vunpack.c.l.s4 1934713408
    %v8840 = vunpack.c.0.s8 %v8839
    %v8841 = vlaneseq
    %v8842 = vshrl.u32 %v8841, 7
    %v8843 = vsub.s32 %v8840, %v8842
    %v8844 = vrot.slane %v8836, %v8843
    %v8846 = vunpack.c.l.s4 1934713408
    %v8847 = vunpack.c.0.s8 %v8846
    %v8848 = vlaneseq
    %v8849 = vshrl.u32 %v8848, 7
    %v8850 = vsub.s32 %v8847, %v8849
    %v8851 = vrot.slane %v8837, %v8850
    %v8852 = vcombine.low %v8819, %v8835
    %v8853 = vcombine.high %v8819, %v8835
    %v8855 = vunpack.c.l.s4 1934713408
    %v8856 = vunpack.c.0.s8 %v8855
    %v8857 = vlaneseq
    %v8858 = vshrl.u32 %v8857, 7
    %v8859 = vsub.s32 %v8856, %v8858
    %v8860 = vrot.slane %v8852, %v8859
    %v8862 = vunpack.c.l.s4 1934713408
    %v8863 = vunpack.c.0.s8 %v8862
    %v8864 = vlaneseq
    %v8865 = vshrl.u32 %v8864, 7
    %v8866 = vsub.s32 %v8863, %v8865
    %v8867 = vrot.slane %v8853, %v8866
    %v8868 = vcombine.high %v8844, 0.0
    %v8869 = vcombine.high %v8851, 0.0
    %v8870 = vcombine.high %v8860, 0.0
    %v8871 = vcombine.high %v8867, 0.0
    %v8872 = vcombine.low %v8627, %v8643
    %v8873 = vcombine.high %v8627, %v8643
    %v8875 = vunpack.c.l.s4 1983009808
    %v8876 = vunpack.c.0.s8 %v8875
    %v8877 = vlaneseq
    %v8878 = vshrl.u32 %v8877, 7
    %v8879 = vsub.s32 %v8876, %v8878
    %v8880 = vrot.slane %v8872, %v8879
    %v8882 = vunpack.c.l.s4 1983009808
    %v8883 = vunpack.c.0.s8 %v8882
    %v8884 = vlaneseq
    %v8885 = vshrl.u32 %v8884, 7
    %v8886 = vsub.s32 %v8883, %v8885
    %v8887 = vrot.slane %v8873, %v8886
    %v8888 = vcombine.low %v8635, %v8651
    %v8889 = vcombine.high %v8635, %v8651
    %v8891 = vunpack.c.l.s4 1983009808
    %v8892 = vunpack.c.0.s8 %v8891
    %v8893 = vlaneseq
    %v8894 = vshrl.u32 %v8893, 7
    %v8895 = vsub.s32 %v8892, %v8894
    %v8896 = vrot.slane %v8888, %v8895
    %v8898 = vunpack.c.l.s4 1983009808
    %v8899 = vunpack.c.0.s8 %v8898
    %v8900 = vlaneseq
    %v8901 = vshrl.u32 %v8900, 7
    %v8902 = vsub.s32 %v8899, %v8901
    %v8903 = vrot.slane %v8889, %v8902
    %v8904 = vcombine.low %v8880, %v8896
    %v8905 = vcombine.high %v8880, %v8896
    %v8907 = vunpack.c.l.s4 1934713408
    %v8908 = vunpack.c.0.s8 %v8907
    %v8909 = vlaneseq
    %v8910 = vshrl.u32 %v8909, 7
    %v8911 = vsub.s32 %v8908, %v8910
    %v8912 = vrot.slane %v8904, %v8911
    %v8914 = vunpack.c.l.s4 1934713408
    %v8915 = vunpack.c.0.s8 %v8914
    %v8916 = vlaneseq
    %v8917 = vshrl.u32 %v8916, 7
    %v8918 = vsub.s32 %v8915, %v8917
    %v8919 = vrot.slane %v8905, %v8918
    %v8920 = vcombine.low %v8887, %v8903
    %v8921 = vcombine.high %v8887, %v8903
    %v8923 = vunpack.c.l.s4 1934713408
    %v8924 = vunpack.c.0.s8 %v8923
    %v8925 = vlaneseq
    %v8926 = vshrl.u32 %v8925, 7
    %v8927 = vsub.s32 %v8924, %v8926
    %v8928 = vrot.slane %v8920, %v8927
    %v8930 = vunpack.c.l.s4 1934713408
    %v8931 = vunpack.c.0.s8 %v8930
    %v8932 = vlaneseq
    %v8933 = vshrl.u32 %v8932, 7
    %v8934 = vsub.s32 %v8931, %v8933
    %v8935 = vrot.slane %v8921, %v8934
    %v8936 = vcombine.high %v8912, 0.0
    %v8937 = vcombine.high %v8919, 0.0
    %v8938 = vcombine.high %v8928, 0.0
    %v8939 = vcombine.high %v8935, 0.0
    %v8940 = vcombine.low %v8708, %v8715
    %v8942 = vunpack.c.l.s4 1983009808
    %v8943 = vunpack.c.0.s8 %v8942
    %v8944 = vlaneseq
    %v8945 = vshrl.u32 %v8944, 7
    %v8946 = vsub.s32 %v8943, %v8945
    %v8947 = vrot.slane %v8940, %v8946
    %v8948 = vcombine.low %v8732, %v8733
    %v8950 = vunpack.c.l.s4 1983009808
    %v8951 = vunpack.c.0.s8 %v8950
    %v8952 = vlaneseq
    %v8953 = vshrl.u32 %v8952, 7
    %v8954 = vsub.s32 %v8951, %v8953
    %v8955 = vrot.slane %v8948, %v8954
    %v8956 = vcombine.low %v8724, %v8731
    %v8958 = vunpack.c.l.s4 1983009808
    %v8959 = vunpack.c.0.s8 %v8958
    %v8960 = vlaneseq
    %v8961 = vshrl.u32 %v8960, 7
    %v8962 = vsub.s32 %v8959, %v8961
    %v8963 = vrot.slane %v8956, %v8962
    %v8964 = vcombine.low %v8734, %v8735
    %v8966 = vunpack.c.l.s4 1983009808
    %v8967 = vunpack.c.0.s8 %v8966
    %v8968 = vlaneseq
    %v8969 = vshrl.u32 %v8968, 7
    %v8970 = vsub.s32 %v8967, %v8969
    %v8971 = vrot.slane %v8964, %v8970
    %v8972 = vcombine.low %v8947, %v8955
    %v8973 = vcombine.high %v8947, %v8955
    %v8975 = vunpack.c.l.s4 1934713408
    %v8976 = vunpack.c.0.s8 %v8975
    %v8977 = vlaneseq
    %v8978 = vshrl.u32 %v8977, 7
    %v8979 = vsub.s32 %v8976, %v8978
    %v8980 = vrot.slane %v8972, %v8979
    %v8982 = vunpack.c.l.s4 1934713408
    %v8983 = vunpack.c.0.s8 %v8982
    %v8984 = vlaneseq
    %v8985 = vshrl.u32 %v8984, 7
    %v8986 = vsub.s32 %v8983, %v8985
    %v8987 = vrot.slane %v8973, %v8986
    %v8988 = vcombine.low %v8963, %v8971
    %v8989 = vcombine.high %v8963, %v8971
    %v8991 = vunpack.c.l.s4 1934713408
    %v8992 = vunpack.c.0.s8 %v8991
    %v8993 = vlaneseq
    %v8994 = vshrl.u32 %v8993, 7
    %v8995 = vsub.s32 %v8992, %v8994
    %v8996 = vrot.slane %v8988, %v8995
    %v8998 = vunpack.c.l.s4 1934713408
    %v8999 = vunpack.c.0.s8 %v8998
    %v9000 = vlaneseq
    %v9001 = vshrl.u32 %v9000, 7
    %v9002 = vsub.s32 %v8999, %v9001
    %v9003 = vrot.slane %v8989, %v9002
    %v9004 = vcombine.low %v8980, %v8996
    %v9005 = vcombine.high %v8980, %v8996
    %v9006 = vcombine.low %v8987, %v9003
    %v9007 = vcombine.high %v8987, %v9003
    %v9008 = vcombine.low %v8776, %v8783
    %v9010 = vunpack.c.l.s4 1983009808
    %v9011 = vunpack.c.0.s8 %v9010
    %v9012 = vlaneseq
    %v9013 = vshrl.u32 %v9012, 7
    %v9014 = vsub.s32 %v9011, %v9013
    %v9015 = vrot.slane %v9008, %v9014
    %v9016 = vcombine.low %v8800, %v8801
    %v9018 = vunpack.c.l.s4 1983009808
    %v9019 = vunpack.c.0.s8 %v9018
    %v9020 = vlaneseq
    %v9021 = vshrl.u32 %v9020, 7
    %v9022 = vsub.s32 %v9019, %v9021
    %v9023 = vrot.slane %v9016, %v9022
    %v9024 = vcombine.low %v8792, %v8799
    %v9026 = vunpack.c.l.s4 1983009808
    %v9027 = vunpack.c.0.s8 %v9026
    %v9028 = vlaneseq
    %v9029 = vshrl.u32 %v9028, 7
    %v9030 = vsub.s32 %v9027, %v9029
    %v9031 = vrot.slane %v9024, %v9030
    %v9032 = vcombine.low %v8802, %v8803
    %v9034 = vunpack.c.l.s4 1983009808
    %v9035 = vunpack.c.0.s8 %v9034
    %v9036 = vlaneseq
    %v9037 = vshrl.u32 %v9036, 7
    %v9038 = vsub.s32 %v9035, %v9037
    %v9039 = vrot.slane %v9032, %v9038
    %v9040 = vcombine.low %v9015, %v9023
    %v9041 = vcombine.high %v9015, %v9023
    %v9043 = vunpack.c.l.s4 1934713408
    %v9044 = vunpack.c.0.s8 %v9043
    %v9045 = vlaneseq
    %v9046 = vshrl.u32 %v9045, 7
    %v9047 = vsub.s32 %v9044, %v9046
    %v9048 = vrot.slane %v9040, %v9047
    %v9050 = vunpack.c.l.s4 1934713408
    %v9051 = vunpack.c.0.s8 %v9050
    %v9052 = vlaneseq
    %v9053 = vshrl.u32 %v9052, 7
    %v9054 = vsub.s32 %v9051, %v9053
    %v9055 = vrot.slane %v9041, %v9054
    %v9056 = vcombine.low %v9031, %v9039
    %v9057 = vcombine.high %v9031, %v9039
    %v9059 = vunpack.c.l.s4 1934713408
    %v9060 = vunpack.c.0.s8 %v9059
    %v9061 = vlaneseq
    %v9062 = vshrl.u32 %v9061, 7
    %v9063 = vsub.s32 %v9060, %v9062
    %v9064 = vrot.slane %v9056, %v9063
    %v9066 = vunpack.c.l.s4 1934713408
    %v9067 = vunpack.c.0.s8 %v9066
    %v9068 = vlaneseq
    %v9069 = vshrl.u32 %v9068, 7
    %v9070 = vsub.s32 %v9067, %v9069
    %v9071 = vrot.slane %v9057, %v9070
    %v9072 = vcombine.low %v9048, %v9064
    %v9073 = vcombine.high %v9048, %v9064
    %v9074 = vcombine.low %v9055, %v9071
    %v9075 = vcombine.high %v9055, %v9071
    %v9076 = vcombine.low %v8844, %v8851
    %v9078 = vunpack.c.l.s4 1983009808
    %v9079 = vunpack.c.0.s8 %v9078
    %v9080 = vlaneseq
    %v9081 = vshrl.u32 %v9080, 7
    %v9082 = vsub.s32 %v9079, %v9081
    %v9083 = vrot.slane %v9076, %v9082
    %v9084 = vcombine.low %v8868, %v8869
    %v9086 = vunpack.c.l.s4 1983009808
    %v9087 = vunpack.c.0.s8 %v9086
    %v9088 = vlaneseq
    %v9089 = vshrl.u32 %v9088, 7
    %v9090 = vsub.s32 %v9087, %v9089
    %v9091 = vrot.slane %v9084, %v9090
    %v9092 = vcombine.low %v8860, %v8867
    %v9094 = vunpack.c.l.s4 1983009808
    %v9095 = vunpack.c.0.s8 %v9094
    %v9096 = vlaneseq
    %v9097 = vshrl.u32 %v9096, 7
    %v9098 = vsub.s32 %v9095, %v9097
    %v9099 = vrot.slane %v9092, %v9098
    %v9100 = vcombine.low %v8870, %v8871
    %v9102 = vunpack.c.l.s4 1983009808
    %v9103 = vunpack.c.0.s8 %v9102
    %v9104 = vlaneseq
    %v9105 = vshrl.u32 %v9104, 7
    %v9106 = vsub.s32 %v9103, %v9105
    %v9107 = vrot.slane %v9100, %v9106
    %v9108 = vcombine.low %v9083, %v9091
    %v9109 = vcombine.high %v9083, %v9091
    %v9111 = vunpack.c.l.s4 1934713408
    %v9112 = vunpack.c.0.s8 %v9111
    %v9113 = vlaneseq
    %v9114 = vshrl.u32 %v9113, 7
    %v9115 = vsub.s32 %v9112, %v9114
    %v9116 = vrot.slane %v9108, %v9115
    %v9118 = vunpack.c.l.s4 1934713408
    %v9119 = vunpack.c.0.s8 %v9118
    %v9120 = vlaneseq
    %v9121 = vshrl.u32 %v9120, 7
    %v9122 = vsub.s32 %v9119, %v9121
    %v9123 = vrot.slane %v9109, %v9122
    %v9124 = vcombine.low %v9099, %v9107
    %v9125 = vcombine.high %v9099, %v9107
    %v9127 = vunpack.c.l.s4 1934713408
    %v9128 = vunpack.c.0.s8 %v9127
    %v9129 = vlaneseq
    %v9130 = vshrl.u32 %v9129, 7
    %v9131 = vsub.s32 %v9128, %v9130
    %v9132 = vrot.slane %v9124, %v9131
    %v9134 = vunpack.c.l.s4 1934713408
    %v9135 = vunpack.c.0.s8 %v9134
    %v9136 = vlaneseq
    %v9137 = vshrl.u32 %v9136, 7
    %v9138 = vsub.s32 %v9135, %v9137
    %v9139 = vrot.slane %v9125, %v9138
    %v9140 = vcombine.low %v9116, %v9132
    %v9141 = vcombine.high %v9116, %v9132
    %v9142 = vcombine.low %v9123, %v9139
    %v9143 = vcombine.high %v9123, %v9139
    %v9144 = vcombine.low %v8912, %v8919
    %v9146 = vunpack.c.l.s4 1983009808
    %v9147 = vunpack.c.0.s8 %v9146
    %v9148 = vlaneseq
    %v9149 = vshrl.u32 %v9148, 7
    %v9150 = vsub.s32 %v9147, %v9149
    %v9151 = vrot.slane %v9144, %v9150
    %v9152 = vcombine.low %v8936, %v8937
    %v9154 = vunpack.c.l.s4 1983009808
    %v9155 = vunpack.c.0.s8 %v9154
    %v9156 = vlaneseq
    %v9157 = vshrl.u32 %v9156, 7
    %v9158 = vsub.s32 %v9155, %v9157
    %v9159 = vrot.slane %v9152, %v9158
    %v9160 = vcombine.low %v8928, %v8935
    %v9162 = vunpack.c.l.s4 1983009808
    %v9163 = vunpack.c.0.s8 %v9162
    %v9164 = vlaneseq
    %v9165 = vshrl.u32 %v9164, 7
    %v9166 = vsub.s32 %v9163, %v9165
    %v9167 = vrot.slane %v9160, %v9166
    %v9168 = vcombine.low %v8938, %v8939
    %v9170 = vunpack.c.l.s4 1983009808
    %v9171 = vunpack.c.0.s8 %v9170
    %v9172 = vlaneseq
    %v9173 = vshrl.u32 %v9172, 7
    %v9174 = vsub.s32 %v9171, %v9173
    %v9175 = vrot.slane %v9168, %v9174
    %v9176 = vcombine.low %v9151, %v9159
    %v9177 = vcombine.high %v9151, %v9159
    %v9179 = vunpack.c.l.s4 1934713408
    %v9180 = vunpack.c.0.s8 %v9179
    %v9181 = vlaneseq
    %v9182 = vshrl.u32 %v9181, 7
    %v9183 = vsub.s32 %v9180, %v9182
    %v9184 = vrot.slane %v9176, %v9183
    %v9186 = vunpack.c.l.s4 1934713408
    %v9187 = vunpack.c.0.s8 %v9186
    %v9188 = vlaneseq
    %v9189 = vshrl.u32 %v9188, 7
    %v9190 = vsub.s32 %v9187, %v9189
    %v9191 = vrot.slane %v9177, %v9190
    %v9192 = vcombine.low %v9167, %v9175
    %v9193 = vcombine.high %v9167, %v9175
    %v9195 = vunpack.c.l.s4 1934713408
    %v9196 = vunpack.c.0.s8 %v9195
    %v9197 = vlaneseq
    %v9198 = vshrl.u32 %v9197, 7
    %v9199 = vsub.s32 %v9196, %v9198
    %v9200 = vrot.slane %v9192, %v9199
    %v9202 = vunpack.c.l.s4 1934713408
    %v9203 = vunpack.c.0.s8 %v9202
    %v9204 = vlaneseq
    %v9205 = vshrl.u32 %v9204, 7
    %v9206 = vsub.s32 %v9203, %v9205
    %v9207 = vrot.slane %v9193, %v9206
    %v9208 = vcombine.low %v9184, %v9200
    %v9209 = vcombine.high %v9184, %v9200
    %v9210 = vcombine.low %v9191, %v9207
    %v9211 = vcombine.high %v9191, %v9207
    %v9212 = vpack.c.bf16 %v7964, %v7964
    %v9213 = vpack.c.bf16 %v7965, %v7965
    %v9214 = vpack.c.bf16 %v7966, %v7966
    %v9215 = vpack.c.bf16 %v7967, %v7967
    %v9216 = vpack.c.bf16 %v8032, %v8032
    %v9217 = vpack.c.bf16 %v8033, %v8033
    %v9218 = vpack.c.bf16 %v8034, %v8034
    %v9219 = vpack.c.bf16 %v8035, %v8035
    %v9220 = vpack.c.bf16 %v8480, %v8412
    %v9221 = vpack.c.bf16 %v8481, %v8413
    %v9222 = vpack.c.bf16 %v8482, %v8414
    %v9223 = vpack.c.bf16 %v8483, %v8415
    %v9224 = vpack.c.bf16 %v8616, %v8548
    %v9225 = vpack.c.bf16 %v8617, %v8549
    %v9226 = vpack.c.bf16 %v8618, %v8550
    %v9227 = vpack.c.bf16 %v8619, %v8551
    %v9229 = vsel %vm1112, %v9212, 0
    %v9232 = vsel %vm1112, %v9220, 0
    %9234 = vmatprep.subr.bf16.mxu0 0
    %9235 = vmatpush1.bf16.xpose.msra.mxu0 %v9232
    %9236 = vmatprep.subr.bf16.mxu0 0
    %9237 = vmatpush1.bf16.xpose.msra.mxu0 0
    %9238 = vmatprep.subr.bf16.mxu0 0
    %9239 = vmatpush1.bf16.xpose.msra.mxu0 0
    %9240 = vmatprep.subr.bf16.mxu0 0
    %9241 = vmatpush1.bf16.xpose.msra.mxu0 0
    %9242 = vmatprep.subr.bf16.mxu0 0
    %9243 = vmatpush1.bf16.xpose.msra.mxu0 0
    %9244 = vmatprep.subr.bf16.mxu0 0
    %9245 = vmatpush1.bf16.xpose.msra.mxu0 0
    %9246 = vmatprep.subr.bf16.mxu0 0
    %9247 = vmatpush1.bf16.xpose.msra.mxu0 0
    %9248 = vmatprep.subr.bf16.mxu0 0
    %9249 = vmatpush1.bf16.xpose.msra.mxu0 0
    %9250 = vmatprep.subr.bf16.mxu0 0
    %9251 = vmatpush1.bf16.xpose.msra.mxu0 0
    %9252 = vmatprep.subr.bf16.mxu0 0
    %9253 = vmatpush1.bf16.xpose.msra.mxu0 0
    %9254 = vmatprep.subr.bf16.mxu0 0
    %9255 = vmatpush1.bf16.xpose.msra.mxu0 0
    %9256 = vmatprep.subr.bf16.mxu0 0
    %9257 = vmatpush1.bf16.xpose.msra.mxu0 0
    %9258 = vmatprep.subr.bf16.mxu0 0
    %9259 = vmatpush1.bf16.xpose.msra.mxu0 0
    %9260 = vmatprep.subr.bf16.mxu0 0
    %9261 = vmatpush1.bf16.xpose.msra.mxu0 0
    %9262 = vmatprep.subr.bf16.mxu0 0
    %9263 = vmatpush1.bf16.xpose.msra.mxu0 0
    %9264 = vmatprep.subr.bf16.mxu0 0
    %9265 = vmatpush1.bf16.xpose.msra.mxu0 0
    %9266 = vmatprep.mubr.bf16.mxu0 0
    %9267 = vmatmul.mubr.bf16.gmra.mrb[0].mxu0 %v9229
    %v9268 = vpop.f32.mrb[0].mxu0
    %v9269 = vadd.f32 %v3986, %v9268
    %v9270 = vpop.f32.mrb[0].mxu0
    %v9271 = vpop.f32.mrb[0].mxu0
    %v9272 = vpop.f32.mrb[0].mxu0
    %9273 = vdwg.mxu0
    %v9275 = vsel %vm1112, %v9213, 0
    %v9278 = vsel %vm1112, %v9221, 0
    %9280 = vmatprep.subr.bf16.mxu0 0
    %9281 = vmatpush1.bf16.xpose.msra.mxu0 %v9278
    %9282 = vmatprep.subr.bf16.mxu0 0
    %9283 = vmatpush1.bf16.xpose.msra.mxu0 0
    %9284 = vmatprep.subr.bf16.mxu0 0
    %9285 = vmatpush1.bf16.xpose.msra.mxu0 0
    %9286 = vmatprep.subr.bf16.mxu0 0
    %9287 = vmatpush1.bf16.xpose.msra.mxu0 0
    %9288 = vmatprep.subr.bf16.mxu0 0
    %9289 = vmatpush1.bf16.xpose.msra.mxu0 0
    %9290 = vmatprep.subr.bf16.mxu0 0
    %9291 = vmatpush1.bf16.xpose.msra.mxu0 0
    %9292 = vmatprep.subr.bf16.mxu0 0
    %9293 = vmatpush1.bf16.xpose.msra.mxu0 0
    %9294 = vmatprep.subr.bf16.mxu0 0
    %9295 = vmatpush1.bf16.xpose.msra.mxu0 0
    %9296 = vmatprep.subr.bf16.mxu0 0
    %9297 = vmatpush1.bf16.xpose.msra.mxu0 0
    %9298 = vmatprep.subr.bf16.mxu0 0
    %9299 = vmatpush1.bf16.xpose.msra.mxu0 0
    %9300 = vmatprep.subr.bf16.mxu0 0
    %9301 = vmatpush1.bf16.xpose.msra.mxu0 0
    %9302 = vmatprep.subr.bf16.mxu0 0
    %9303 = vmatpush1.bf16.xpose.msra.mxu0 0
    %9304 = vmatprep.subr.bf16.mxu0 0
    %9305 = vmatpush1.bf16.xpose.msra.mxu0 0
    %9306 = vmatprep.subr.bf16.mxu0 0
    %9307 = vmatpush1.bf16.xpose.msra.mxu0 0
    %9308 = vmatprep.subr.bf16.mxu0 0
    %9309 = vmatpush1.bf16.xpose.msra.mxu0 0
    %9310 = vmatprep.subr.bf16.mxu0 0
    %9311 = vmatpush1.bf16.xpose.msra.mxu0 0
    %9312 = vmatprep.mubr.bf16.mxu0 0
    %9313 = vmatmul.mubr.bf16.gmra.mrb[0].mxu0 %v9275
    %v9314 = vpop.f32.mrb[0].mxu0
    %v9315 = vadd.f32 %v3986, %v9314
    %v9316 = vpop.f32.mrb[0].mxu0
    %v9317 = vpop.f32.mrb[0].mxu0
    %v9318 = vpop.f32.mrb[0].mxu0
    %9319 = vdwg.mxu0
    %v9321 = vsel %vm1112, %v9214, 0
    %v9324 = vsel %vm1112, %v9222, 0
    %9326 = vmatprep.subr.bf16.mxu0 0
    %9327 = vmatpush1.bf16.xpose.msra.mxu0 %v9324
    %9328 = vmatprep.subr.bf16.mxu0 0
    %9329 = vmatpush1.bf16.xpose.msra.mxu0 0
    %9330 = vmatprep.subr.bf16.mxu0 0
    %9331 = vmatpush1.bf16.xpose.msra.mxu0 0
    %9332 = vmatprep.subr.bf16.mxu0 0
    %9333 = vmatpush1.bf16.xpose.msra.mxu0 0
    %9334 = vmatprep.subr.bf16.mxu0 0
    %9335 = vmatpush1.bf16.xpose.msra.mxu0 0
    %9336 = vmatprep.subr.bf16.mxu0 0
    %9337 = vmatpush1.bf16.xpose.msra.mxu0 0
    %9338 = vmatprep.subr.bf16.mxu0 0
    %9339 = vmatpush1.bf16.xpose.msra.mxu0 0
    %9340 = vmatprep.subr.bf16.mxu0 0
    %9341 = vmatpush1.bf16.xpose.msra.mxu0 0
    %9342 = vmatprep.subr.bf16.mxu0 0
    %9343 = vmatpush1.bf16.xpose.msra.mxu0 0
    %9344 = vmatprep.subr.bf16.mxu0 0
    %9345 = vmatpush1.bf16.xpose.msra.mxu0 0
    %9346 = vmatprep.subr.bf16.mxu0 0
    %9347 = vmatpush1.bf16.xpose.msra.mxu0 0
    %9348 = vmatprep.subr.bf16.mxu0 0
    %9349 = vmatpush1.bf16.xpose.msra.mxu0 0
    %9350 = vmatprep.subr.bf16.mxu0 0
    %9351 = vmatpush1.bf16.xpose.msra.mxu0 0
    %9352 = vmatprep.subr.bf16.mxu0 0
    %9353 = vmatpush1.bf16.xpose.msra.mxu0 0
    %9354 = vmatprep.subr.bf16.mxu0 0
    %9355 = vmatpush1.bf16.xpose.msra.mxu0 0
    %9356 = vmatprep.subr.bf16.mxu0 0
    %9357 = vmatpush1.bf16.xpose.msra.mxu0 0
    %9358 = vmatprep.mubr.bf16.mxu0 0
    %9359 = vmatmul.mubr.bf16.gmra.mrb[0].mxu0 %v9321
    %v9360 = vpop.f32.mrb[0].mxu0
    %v9361 = vadd.f32 %v3986, %v9360
    %v9362 = vpop.f32.mrb[0].mxu0
    %v9363 = vpop.f32.mrb[0].mxu0
    %v9364 = vpop.f32.mrb[0].mxu0
    %9365 = vdwg.mxu0
    %v9367 = vsel %vm1112, %v9215, 0
    %v9370 = vsel %vm1112, %v9223, 0
    %9372 = vmatprep.subr.bf16.mxu0 0
    %9373 = vmatpush1.bf16.xpose.msra.mxu0 %v9370
    %9374 = vmatprep.subr.bf16.mxu0 0
    %9375 = vmatpush1.bf16.xpose.msra.mxu0 0
    %9376 = vmatprep.subr.bf16.mxu0 0
    %9377 = vmatpush1.bf16.xpose.msra.mxu0 0
    %9378 = vmatprep.subr.bf16.mxu0 0
    %9379 = vmatpush1.bf16.xpose.msra.mxu0 0
    %9380 = vmatprep.subr.bf16.mxu0 0
    %9381 = vmatpush1.bf16.xpose.msra.mxu0 0
    %9382 = vmatprep.subr.bf16.mxu0 0
    %9383 = vmatpush1.bf16.xpose.msra.mxu0 0
    %9384 = vmatprep.subr.bf16.mxu0 0
    %9385 = vmatpush1.bf16.xpose.msra.mxu0 0
    %9386 = vmatprep.subr.bf16.mxu0 0
    %9387 = vmatpush1.bf16.xpose.msra.mxu0 0
    %9388 = vmatprep.subr.bf16.mxu0 0
    %9389 = vmatpush1.bf16.xpose.msra.mxu0 0
    %9390 = vmatprep.subr.bf16.mxu0 0
    %9391 = vmatpush1.bf16.xpose.msra.mxu0 0
    %9392 = vmatprep.subr.bf16.mxu0 0
    %9393 = vmatpush1.bf16.xpose.msra.mxu0 0
    %9394 = vmatprep.subr.bf16.mxu0 0
    %9395 = vmatpush1.bf16.xpose.msra.mxu0 0
    %9396 = vmatprep.subr.bf16.mxu0 0
    %9397 = vmatpush1.bf16.xpose.msra.mxu0 0
    %9398 = vmatprep.subr.bf16.mxu0 0
    %9399 = vmatpush1.bf16.xpose.msra.mxu0 0
    %9400 = vmatprep.subr.bf16.mxu0 0
    %9401 = vmatpush1.bf16.xpose.msra.mxu0 0
    %9402 = vmatprep.subr.bf16.mxu0 0
    %9403 = vmatpush1.bf16.xpose.msra.mxu0 0
    %9404 = vmatprep.mubr.bf16.mxu0 0
    %9405 = vmatmul.mubr.bf16.gmra.mrb[0].mxu0 %v9367
    %v9406 = vpop.f32.mrb[0].mxu0
    %v9407 = vadd.f32 %v3986, %v9406
    %v9408 = vpop.f32.mrb[0].mxu0
    %v9409 = vpop.f32.mrb[0].mxu0
    %v9410 = vpop.f32.mrb[0].mxu0
    %9411 = vdwg.mxu0
    %v9413 = vsel %vm1112, %v9216, 0
    %v9416 = vsel %vm1112, %v9224, 0
    %9418 = vmatprep.subr.bf16.mxu0 0
    %9419 = vmatpush1.bf16.xpose.msra.mxu0 %v9416
    %9420 = vmatprep.subr.bf16.mxu0 0
    %9421 = vmatpush1.bf16.xpose.msra.mxu0 0
    %9422 = vmatprep.subr.bf16.mxu0 0
    %9423 = vmatpush1.bf16.xpose.msra.mxu0 0
    %9424 = vmatprep.subr.bf16.mxu0 0
    %9425 = vmatpush1.bf16.xpose.msra.mxu0 0
    %9426 = vmatprep.subr.bf16.mxu0 0
    %9427 = vmatpush1.bf16.xpose.msra.mxu0 0
    %9428 = vmatprep.subr.bf16.mxu0 0
    %9429 = vmatpush1.bf16.xpose.msra.mxu0 0
    %9430 = vmatprep.subr.bf16.mxu0 0
    %9431 = vmatpush1.bf16.xpose.msra.mxu0 0
    %9432 = vmatprep.subr.bf16.mxu0 0
    %9433 = vmatpush1.bf16.xpose.msra.mxu0 0
    %9434 = vmatprep.subr.bf16.mxu0 0
    %9435 = vmatpush1.bf16.xpose.msra.mxu0 0
    %9436 = vmatprep.subr.bf16.mxu0 0
    %9437 = vmatpush1.bf16.xpose.msra.mxu0 0
    %9438 = vmatprep.subr.bf16.mxu0 0
    %9439 = vmatpush1.bf16.xpose.msra.mxu0 0
    %9440 = vmatprep.subr.bf16.mxu0 0
    %9441 = vmatpush1.bf16.xpose.msra.mxu0 0
    %9442 = vmatprep.subr.bf16.mxu0 0
    %9443 = vmatpush1.bf16.xpose.msra.mxu0 0
    %9444 = vmatprep.subr.bf16.mxu0 0
    %9445 = vmatpush1.bf16.xpose.msra.mxu0 0
    %9446 = vmatprep.subr.bf16.mxu0 0
    %9447 = vmatpush1.bf16.xpose.msra.mxu0 0
    %9448 = vmatprep.subr.bf16.mxu0 0
    %9449 = vmatpush1.bf16.xpose.msra.mxu0 0
    %9450 = vmatprep.mubr.bf16.mxu0 0
    %9451 = vmatmul.mubr.bf16.gmra.mrb[0].mxu0 %v9413
    %v9452 = vpop.f32.mrb[0].mxu0
    %v9453 = vadd.f32 %v3990, %v9452
    %v9454 = vpop.f32.mrb[0].mxu0
    %v9455 = vpop.f32.mrb[0].mxu0
    %v9456 = vpop.f32.mrb[0].mxu0
    %9457 = vdwg.mxu0
    %v9459 = vsel %vm1112, %v9217, 0
    %v9462 = vsel %vm1112, %v9225, 0
    %9464 = vmatprep.subr.bf16.mxu0 0
    %9465 = vmatpush1.bf16.xpose.msra.mxu0 %v9462
    %9466 = vmatprep.subr.bf16.mxu0 0
    %9467 = vmatpush1.bf16.xpose.msra.mxu0 0
    %9468 = vmatprep.subr.bf16.mxu0 0
    %9469 = vmatpush1.bf16.xpose.msra.mxu0 0
    %9470 = vmatprep.subr.bf16.mxu0 0
    %9471 = vmatpush1.bf16.xpose.msra.mxu0 0
    %9472 = vmatprep.subr.bf16.mxu0 0
    %9473 = vmatpush1.bf16.xpose.msra.mxu0 0
    %9474 = vmatprep.subr.bf16.mxu0 0
    %9475 = vmatpush1.bf16.xpose.msra.mxu0 0
    %9476 = vmatprep.subr.bf16.mxu0 0
    %9477 = vmatpush1.bf16.xpose.msra.mxu0 0
    %9478 = vmatprep.subr.bf16.mxu0 0
    %9479 = vmatpush1.bf16.xpose.msra.mxu0 0
    %9480 = vmatprep.subr.bf16.mxu0 0
    %9481 = vmatpush1.bf16.xpose.msra.mxu0 0
    %9482 = vmatprep.subr.bf16.mxu0 0
    %9483 = vmatpush1.bf16.xpose.msra.mxu0 0
    %9484 = vmatprep.subr.bf16.mxu0 0
    %9485 = vmatpush1.bf16.xpose.msra.mxu0 0
    %9486 = vmatprep.subr.bf16.mxu0 0
    %9487 = vmatpush1.bf16.xpose.msra.mxu0 0
    %9488 = vmatprep.subr.bf16.mxu0 0
    %9489 = vmatpush1.bf16.xpose.msra.mxu0 0
    %9490 = vmatprep.subr.bf16.mxu0 0
    %9491 = vmatpush1.bf16.xpose.msra.mxu0 0
    %9492 = vmatprep.subr.bf16.mxu0 0
    %9493 = vmatpush1.bf16.xpose.msra.mxu0 0
    %9494 = vmatprep.subr.bf16.mxu0 0
    %9495 = vmatpush1.bf16.xpose.msra.mxu0 0
    %9496 = vmatprep.mubr.bf16.mxu0 0
    %9497 = vmatmul.mubr.bf16.gmra.mrb[0].mxu0 %v9459
    %v9498 = vpop.f32.mrb[0].mxu0
    %v9499 = vadd.f32 %v3990, %v9498
    %v9500 = vpop.f32.mrb[0].mxu0
    %v9501 = vpop.f32.mrb[0].mxu0
    %v9502 = vpop.f32.mrb[0].mxu0
    %9503 = vdwg.mxu0
    %v9505 = vsel %vm1112, %v9218, 0
    %v9508 = vsel %vm1112, %v9226, 0
    %9510 = vmatprep.subr.bf16.mxu0 0
    %9511 = vmatpush1.bf16.xpose.msra.mxu0 %v9508
    %9512 = vmatprep.subr.bf16.mxu0 0
    %9513 = vmatpush1.bf16.xpose.msra.mxu0 0
    %9514 = vmatprep.subr.bf16.mxu0 0
    %9515 = vmatpush1.bf16.xpose.msra.mxu0 0
    %9516 = vmatprep.subr.bf16.mxu0 0
    %9517 = vmatpush1.bf16.xpose.msra.mxu0 0
    %9518 = vmatprep.subr.bf16.mxu0 0
    %9519 = vmatpush1.bf16.xpose.msra.mxu0 0
    %9520 = vmatprep.subr.bf16.mxu0 0
    %9521 = vmatpush1.bf16.xpose.msra.mxu0 0
    %9522 = vmatprep.subr.bf16.mxu0 0
    %9523 = vmatpush1.bf16.xpose.msra.mxu0 0
    %9524 = vmatprep.subr.bf16.mxu0 0
    %9525 = vmatpush1.bf16.xpose.msra.mxu0 0
    %9526 = vmatprep.subr.bf16.mxu0 0
    %9527 = vmatpush1.bf16.xpose.msra.mxu0 0
    %9528 = vmatprep.subr.bf16.mxu0 0
    %9529 = vmatpush1.bf16.xpose.msra.mxu0 0
    %9530 = vmatprep.subr.bf16.mxu0 0
    %9531 = vmatpush1.bf16.xpose.msra.mxu0 0
    %9532 = vmatprep.subr.bf16.mxu0 0
    %9533 = vmatpush1.bf16.xpose.msra.mxu0 0
    %9534 = vmatprep.subr.bf16.mxu0 0
    %9535 = vmatpush1.bf16.xpose.msra.mxu0 0
    %9536 = vmatprep.subr.bf16.mxu0 0
    %9537 = vmatpush1.bf16.xpose.msra.mxu0 0
    %9538 = vmatprep.subr.bf16.mxu0 0
    %9539 = vmatpush1.bf16.xpose.msra.mxu0 0
    %9540 = vmatprep.subr.bf16.mxu0 0
    %9541 = vmatpush1.bf16.xpose.msra.mxu0 0
    %9542 = vmatprep.mubr.bf16.mxu0 0
    %9543 = vmatmul.mubr.bf16.gmra.mrb[0].mxu0 %v9505
    %v9544 = vpop.f32.mrb[0].mxu0
    %v9545 = vadd.f32 %v3990, %v9544
    %v9546 = vpop.f32.mrb[0].mxu0
    %v9547 = vpop.f32.mrb[0].mxu0
    %v9548 = vpop.f32.mrb[0].mxu0
    %9549 = vdwg.mxu0
    %v9551 = vsel %vm1112, %v9219, 0
    %v9554 = vsel %vm1112, %v9227, 0
    %9556 = vmatprep.subr.bf16.mxu0 0
    %9557 = vmatpush1.bf16.xpose.msra.mxu0 %v9554
    %9558 = vmatprep.subr.bf16.mxu0 0
    %9559 = vmatpush1.bf16.xpose.msra.mxu0 0
    %9560 = vmatprep.subr.bf16.mxu0 0
    %9561 = vmatpush1.bf16.xpose.msra.mxu0 0
    %9562 = vmatprep.subr.bf16.mxu0 0
    %9563 = vmatpush1.bf16.xpose.msra.mxu0 0
    %9564 = vmatprep.subr.bf16.mxu0 0
    %9565 = vmatpush1.bf16.xpose.msra.mxu0 0
    %9566 = vmatprep.subr.bf16.mxu0 0
    %9567 = vmatpush1.bf16.xpose.msra.mxu0 0
    %9568 = vmatprep.subr.bf16.mxu0 0
    %9569 = vmatpush1.bf16.xpose.msra.mxu0 0
    %9570 = vmatprep.subr.bf16.mxu0 0
    %9571 = vmatpush1.bf16.xpose.msra.mxu0 0
    %9572 = vmatprep.subr.bf16.mxu0 0
    %9573 = vmatpush1.bf16.xpose.msra.mxu0 0
    %9574 = vmatprep.subr.bf16.mxu0 0
    %9575 = vmatpush1.bf16.xpose.msra.mxu0 0
    %9576 = vmatprep.subr.bf16.mxu0 0
    %9577 = vmatpush1.bf16.xpose.msra.mxu0 0
    %9578 = vmatprep.subr.bf16.mxu0 0
    %9579 = vmatpush1.bf16.xpose.msra.mxu0 0
    %9580 = vmatprep.subr.bf16.mxu0 0
    %9581 = vmatpush1.bf16.xpose.msra.mxu0 0
    %9582 = vmatprep.subr.bf16.mxu0 0
    %9583 = vmatpush1.bf16.xpose.msra.mxu0 0
    %9584 = vmatprep.subr.bf16.mxu0 0
    %9585 = vmatpush1.bf16.xpose.msra.mxu0 0
    %9586 = vmatprep.subr.bf16.mxu0 0
    %9587 = vmatpush1.bf16.xpose.msra.mxu0 0
    %9588 = vmatprep.mubr.bf16.mxu0 0
    %9589 = vmatmul.mubr.bf16.gmra.mrb[0].mxu0 %v9551
    %v9590 = vpop.f32.mrb[0].mxu0
    %v9591 = vadd.f32 %v3990, %v9590
    %v9592 = vpop.f32.mrb[0].mxu0
    %v9593 = vpop.f32.mrb[0].mxu0
    %v9594 = vpop.f32.mrb[0].mxu0
    %9595 = vdwg.mxu0
    %v9596 = vsel %vm2252, %v9269, -inf
    %9597 = vmax.xlane.f32.xlu0 %v9596
    %v9598 = vpop.xlane.xlu0 %9597
    %v9599 = vsel %vm2252, %v9315, -inf
    %9600 = vmax.xlane.f32.xlu0 %v9599
    %v9601 = vpop.xlane.xlu0 %9600
    %v9602 = vsel %vm2252, %v9361, -inf
    %9603 = vmax.xlane.f32.xlu0 %v9602
    %v9604 = vpop.xlane.xlu0 %9603
    %v9605 = vsel %vm2252, %v9407, -inf
    %9606 = vmax.xlane.f32.xlu0 %v9605
    %v9607 = vpop.xlane.xlu0 %9606
    %v9608 = vsel %vm2252, %v9453, -inf
    %9609 = vmax.xlane.f32.xlu0 %v9608
    %v9610 = vpop.xlane.xlu0 %9609
    %v9611 = vsel %vm2252, %v9499, -inf
    %9612 = vmax.xlane.f32.xlu0 %v9611
    %v9613 = vpop.xlane.xlu0 %9612
    %v9614 = vsel %vm2252, %v9545, -inf
    %9615 = vmax.xlane.f32.xlu0 %v9614
    %v9616 = vpop.xlane.xlu0 %9615
    %v9617 = vsel %vm2252, %v9591, -inf
    %9618 = vmax.xlane.f32.xlu0 %v9617
    %v9619 = vpop.xlane.xlu0 %9618
    %v9620 = vsub.f32 %v9269, %v9598
    %v9621 = vsub.f32 %v9315, %v9601
    %v9622 = vsub.f32 %v9361, %v9604
    %v9623 = vsub.f32 %v9407, %v9607
    %v9624 = vsub.f32 %v9453, %v9610
    %v9625 = vsub.f32 %v9499, %v9613
    %v9626 = vsub.f32 %v9545, %v9616
    %v9627 = vsub.f32 %v9591, %v9619
    %v9628 = vmul.f32 %v9620, 1.442695
    %v9629 = vpow.pop %v9628
    %v9630 = vmul.f32 %v9621, 1.442695
    %v9631 = vpow.pop %v9630
    %v9632 = vmul.f32 %v9622, 1.442695
    %v9633 = vpow.pop %v9632
    %v9634 = vmul.f32 %v9623, 1.442695
    %v9635 = vpow.pop %v9634
    %v9636 = vmul.f32 %v9624, 1.442695
    %v9637 = vpow.pop %v9636
    %v9638 = vmul.f32 %v9625, 1.442695
    %v9639 = vpow.pop %v9638
    %v9640 = vmul.f32 %v9626, 1.442695
    %v9641 = vpow.pop %v9640
    %v9642 = vmul.f32 %v9627, 1.442695
    %v9643 = vpow.pop %v9642
    %v9644 = vsel %vm2252, %v9629, 0.0
    %9645 = vadd.xlane.f32.xlu0 %v9644
    %v9646 = vpop.xlane.xlu0 %9645
    %v9647 = vsel %vm2252, %v9631, 0.0
    %9648 = vadd.xlane.f32.xlu0 %v9647
    %v9649 = vpop.xlane.xlu0 %9648
    %v9650 = vsel %vm2252, %v9633, 0.0
    %9651 = vadd.xlane.f32.xlu0 %v9650
    %v9652 = vpop.xlane.xlu0 %9651
    %v9653 = vsel %vm2252, %v9635, 0.0
    %9654 = vadd.xlane.f32.xlu0 %v9653
    %v9655 = vpop.xlane.xlu0 %9654
    %v9656 = vsel %vm2252, %v9637, 0.0
    %9657 = vadd.xlane.f32.xlu0 %v9656
    %v9658 = vpop.xlane.xlu0 %9657
    %v9659 = vsel %vm2252, %v9639, 0.0
    %9660 = vadd.xlane.f32.xlu0 %v9659
    %v9661 = vpop.xlane.xlu0 %9660
    %v9662 = vsel %vm2252, %v9641, 0.0
    %9663 = vadd.xlane.f32.xlu0 %v9662
    %v9664 = vpop.xlane.xlu0 %9663
    %v9665 = vsel %vm2252, %v9643, 0.0
    %9666 = vadd.xlane.f32.xlu0 %v9665
    %v9667 = vpop.xlane.xlu0 %9666
    %v9668 = vrcp.pop %v9646
    %v9669 = vrcp.pop %v9649
    %v9670 = vrcp.pop %v9652
    %v9671 = vrcp.pop %v9655
    %v9672 = vrcp.pop %v9658
    %v9673 = vrcp.pop %v9661
    %v9674 = vrcp.pop %v9664
    %v9675 = vrcp.pop %v9667
    %v9676 = vmul.f32 %v9629, %v9668
    %v9677 = vmul.f32 %v9631, %v9669
    %v9678 = vmul.f32 %v9633, %v9670
    %v9679 = vmul.f32 %v9635, %v9671
    %v9680 = vmul.f32 %v9637, %v9672
    %v9681 = vmul.f32 %v9639, %v9673
    %v9682 = vmul.f32 %v9641, %v9674
    %v9683 = vmul.f32 %v9643, %v9675
    %v9684 = vpack.c.bf16 %v9676, %v9676
    %v9685 = vpack.c.bf16 %v9677, %v9677
    %v9686 = vpack.c.bf16 %v9678, %v9678
    %v9687 = vpack.c.bf16 %v9679, %v9679
    %v9688 = vpack.c.bf16 %v9680, %v9680
    %v9689 = vpack.c.bf16 %v9681, %v9681
    %v9690 = vpack.c.bf16 %v9682, %v9682
    %v9691 = vpack.c.bf16 %v9683, %v9683
    %v9692 = vpack.c.bf16 %v9072, %v9004
    %v9693 = vpack.c.bf16 %v9073, %v9005
    %v9694 = vpack.c.bf16 %v9074, %v9006
    %v9695 = vpack.c.bf16 %v9075, %v9007
    %v9696 = vpack.c.bf16 %v9208, %v9140
    %v9697 = vpack.c.bf16 %v9209, %v9141
    %v9698 = vpack.c.bf16 %v9210, %v9142
    %v9699 = vpack.c.bf16 %v9211, %v9143
    %v9701 = vsel %vm2252, %v9684, 0
    %9703 = vmatprep.subr.bf16.mxu0 0
    %9704 = vmatpush1.bf16.msra.mxu0 %v9692
    %9705 = vmatprep.subr.bf16.mxu0 0
    %9706 = vmatpush1.bf16.msra.mxu0 0
    %9707 = vmatprep.subr.bf16.mxu0 0
    %9708 = vmatpush1.bf16.msra.mxu0 0
    %9709 = vmatprep.subr.bf16.mxu0 0
    %9710 = vmatpush1.bf16.msra.mxu0 0
    %9711 = vmatprep.subr.bf16.mxu0 0
    %9712 = vmatpush1.bf16.msra.mxu0 0
    %9713 = vmatprep.subr.bf16.mxu0 0
    %9714 = vmatpush1.bf16.msra.mxu0 0
    %9715 = vmatprep.subr.bf16.mxu0 0
    %9716 = vmatpush1.bf16.msra.mxu0 0
    %9717 = vmatprep.subr.bf16.mxu0 0
    %9718 = vmatpush1.bf16.msra.mxu0 0
    %9719 = vmatprep.subr.bf16.mxu0 0
    %9720 = vmatpush1.bf16.msra.mxu0 0
    %9721 = vmatprep.subr.bf16.mxu0 0
    %9722 = vmatpush1.bf16.msra.mxu0 0
    %9723 = vmatprep.subr.bf16.mxu0 0
    %9724 = vmatpush1.bf16.msra.mxu0 0
    %9725 = vmatprep.subr.bf16.mxu0 0
    %9726 = vmatpush1.bf16.msra.mxu0 0
    %9727 = vmatprep.subr.bf16.mxu0 0
    %9728 = vmatpush1.bf16.msra.mxu0 0
    %9729 = vmatprep.subr.bf16.mxu0 0
    %9730 = vmatpush1.bf16.msra.mxu0 0
    %9731 = vmatprep.subr.bf16.mxu0 0
    %9732 = vmatpush1.bf16.msra.mxu0 0
    %9733 = vmatprep.subr.bf16.mxu0 0
    %9734 = vmatpush1.bf16.msra.mxu0 0
    %9735 = vmatprep.mubr.bf16.mxu0 0
    %9736 = vmatmul.mubr.bf16.gmra.mrb[0].mxu0 %v9701
    %v9737 = vpop.f32.mrb[0].mxu0
    %v9738 = vadd.f32 0.0, %v9737
    %v9739 = vpop.f32.mrb[0].mxu0
    %v9740 = vpop.f32.mrb[0].mxu0
    %v9741 = vpop.f32.mrb[0].mxu0
    %9742 = vdwg.mxu0
    %v9744 = vsel %vm2252, %v9685, 0
    %9746 = vmatprep.subr.bf16.mxu0 0
    %9747 = vmatpush1.bf16.msra.mxu0 %v9693
    %9748 = vmatprep.subr.bf16.mxu0 0
    %9749 = vmatpush1.bf16.msra.mxu0 0
    %9750 = vmatprep.subr.bf16.mxu0 0
    %9751 = vmatpush1.bf16.msra.mxu0 0
    %9752 = vmatprep.subr.bf16.mxu0 0
    %9753 = vmatpush1.bf16.msra.mxu0 0
    %9754 = vmatprep.subr.bf16.mxu0 0
    %9755 = vmatpush1.bf16.msra.mxu0 0
    %9756 = vmatprep.subr.bf16.mxu0 0
    %9757 = vmatpush1.bf16.msra.mxu0 0
    %9758 = vmatprep.subr.bf16.mxu0 0
    %9759 = vmatpush1.bf16.msra.mxu0 0
    %9760 = vmatprep.subr.bf16.mxu0 0
    %9761 = vmatpush1.bf16.msra.mxu0 0
    %9762 = vmatprep.subr.bf16.mxu0 0
    %9763 = vmatpush1.bf16.msra.mxu0 0
    %9764 = vmatprep.subr.bf16.mxu0 0
    %9765 = vmatpush1.bf16.msra.mxu0 0
    %9766 = vmatprep.subr.bf16.mxu0 0
    %9767 = vmatpush1.bf16.msra.mxu0 0
    %9768 = vmatprep.subr.bf16.mxu0 0
    %9769 = vmatpush1.bf16.msra.mxu0 0
    %9770 = vmatprep.subr.bf16.mxu0 0
    %9771 = vmatpush1.bf16.msra.mxu0 0
    %9772 = vmatprep.subr.bf16.mxu0 0
    %9773 = vmatpush1.bf16.msra.mxu0 0
    %9774 = vmatprep.subr.bf16.mxu0 0
    %9775 = vmatpush1.bf16.msra.mxu0 0
    %9776 = vmatprep.subr.bf16.mxu0 0
    %9777 = vmatpush1.bf16.msra.mxu0 0
    %9778 = vmatprep.mubr.bf16.mxu0 0
    %9779 = vmatmul.mubr.bf16.gmra.mrb[0].mxu0 %v9744
    %v9780 = vpop.f32.mrb[0].mxu0
    %v9781 = vadd.f32 0.0, %v9780
    %v9782 = vpop.f32.mrb[0].mxu0
    %v9783 = vpop.f32.mrb[0].mxu0
    %v9784 = vpop.f32.mrb[0].mxu0
    %9785 = vdwg.mxu0
    %v9787 = vsel %vm2252, %v9686, 0
    %9789 = vmatprep.subr.bf16.mxu0 0
    %9790 = vmatpush1.bf16.msra.mxu0 %v9694
    %9791 = vmatprep.subr.bf16.mxu0 0
    %9792 = vmatpush1.bf16.msra.mxu0 0
    %9793 = vmatprep.subr.bf16.mxu0 0
    %9794 = vmatpush1.bf16.msra.mxu0 0
    %9795 = vmatprep.subr.bf16.mxu0 0
    %9796 = vmatpush1.bf16.msra.mxu0 0
    %9797 = vmatprep.subr.bf16.mxu0 0
    %9798 = vmatpush1.bf16.msra.mxu0 0
    %9799 = vmatprep.subr.bf16.mxu0 0
    %9800 = vmatpush1.bf16.msra.mxu0 0
    %9801 = vmatprep.subr.bf16.mxu0 0
    %9802 = vmatpush1.bf16.msra.mxu0 0
    %9803 = vmatprep.subr.bf16.mxu0 0
    %9804 = vmatpush1.bf16.msra.mxu0 0
    %9805 = vmatprep.subr.bf16.mxu0 0
    %9806 = vmatpush1.bf16.msra.mxu0 0
    %9807 = vmatprep.subr.bf16.mxu0 0
    %9808 = vmatpush1.bf16.msra.mxu0 0
    %9809 = vmatprep.subr.bf16.mxu0 0
    %9810 = vmatpush1.bf16.msra.mxu0 0
    %9811 = vmatprep.subr.bf16.mxu0 0
    %9812 = vmatpush1.bf16.msra.mxu0 0
    %9813 = vmatprep.subr.bf16.mxu0 0
    %9814 = vmatpush1.bf16.msra.mxu0 0
    %9815 = vmatprep.subr.bf16.mxu0 0
    %9816 = vmatpush1.bf16.msra.mxu0 0
    %9817 = vmatprep.subr.bf16.mxu0 0
    %9818 = vmatpush1.bf16.msra.mxu0 0
    %9819 = vmatprep.subr.bf16.mxu0 0
    %9820 = vmatpush1.bf16.msra.mxu0 0
    %9821 = vmatprep.mubr.bf16.mxu0 0
    %9822 = vmatmul.mubr.bf16.gmra.mrb[0].mxu0 %v9787
    %v9823 = vpop.f32.mrb[0].mxu0
    %v9824 = vadd.f32 0.0, %v9823
    %v9825 = vpop.f32.mrb[0].mxu0
    %v9826 = vpop.f32.mrb[0].mxu0
    %v9827 = vpop.f32.mrb[0].mxu0
    %9828 = vdwg.mxu0
    %v9830 = vsel %vm2252, %v9687, 0
    %9832 = vmatprep.subr.bf16.mxu0 0
    %9833 = vmatpush1.bf16.msra.mxu0 %v9695
    %9834 = vmatprep.subr.bf16.mxu0 0
    %9835 = vmatpush1.bf16.msra.mxu0 0
    %9836 = vmatprep.subr.bf16.mxu0 0
    %9837 = vmatpush1.bf16.msra.mxu0 0
    %9838 = vmatprep.subr.bf16.mxu0 0
    %9839 = vmatpush1.bf16.msra.mxu0 0
    %9840 = vmatprep.subr.bf16.mxu0 0
    %9841 = vmatpush1.bf16.msra.mxu0 0
    %9842 = vmatprep.subr.bf16.mxu0 0
    %9843 = vmatpush1.bf16.msra.mxu0 0
    %9844 = vmatprep.subr.bf16.mxu0 0
    %9845 = vmatpush1.bf16.msra.mxu0 0
    %9846 = vmatprep.subr.bf16.mxu0 0
    %9847 = vmatpush1.bf16.msra.mxu0 0
    %9848 = vmatprep.subr.bf16.mxu0 0
    %9849 = vmatpush1.bf16.msra.mxu0 0
    %9850 = vmatprep.subr.bf16.mxu0 0
    %9851 = vmatpush1.bf16.msra.mxu0 0
    %9852 = vmatprep.subr.bf16.mxu0 0
    %9853 = vmatpush1.bf16.msra.mxu0 0
    %9854 = vmatprep.subr.bf16.mxu0 0
    %9855 = vmatpush1.bf16.msra.mxu0 0
    %9856 = vmatprep.subr.bf16.mxu0 0
    %9857 = vmatpush1.bf16.msra.mxu0 0
    %9858 = vmatprep.subr.bf16.mxu0 0
    %9859 = vmatpush1.bf16.msra.mxu0 0
    %9860 = vmatprep.subr.bf16.mxu0 0
    %9861 = vmatpush1.bf16.msra.mxu0 0
    %9862 = vmatprep.subr.bf16.mxu0 0
    %9863 = vmatpush1.bf16.msra.mxu0 0
    %9864 = vmatprep.mubr.bf16.mxu0 0
    %9865 = vmatmul.mubr.bf16.gmra.mrb[0].mxu0 %v9830
    %v9866 = vpop.f32.mrb[0].mxu0
    %v9867 = vadd.f32 0.0, %v9866
    %v9868 = vpop.f32.mrb[0].mxu0
    %v9869 = vpop.f32.mrb[0].mxu0
    %v9870 = vpop.f32.mrb[0].mxu0
    %9871 = vdwg.mxu0
    %v9873 = vsel %vm2252, %v9688, 0
    %9875 = vmatprep.subr.bf16.mxu0 0
    %9876 = vmatpush1.bf16.msra.mxu0 %v9696
    %9877 = vmatprep.subr.bf16.mxu0 0
    %9878 = vmatpush1.bf16.msra.mxu0 0
    %9879 = vmatprep.subr.bf16.mxu0 0
    %9880 = vmatpush1.bf16.msra.mxu0 0
    %9881 = vmatprep.subr.bf16.mxu0 0
    %9882 = vmatpush1.bf16.msra.mxu0 0
    %9883 = vmatprep.subr.bf16.mxu0 0
    %9884 = vmatpush1.bf16.msra.mxu0 0
    %9885 = vmatprep.subr.bf16.mxu0 0
    %9886 = vmatpush1.bf16.msra.mxu0 0
    %9887 = vmatprep.subr.bf16.mxu0 0
    %9888 = vmatpush1.bf16.msra.mxu0 0
    %9889 = vmatprep.subr.bf16.mxu0 0
    %9890 = vmatpush1.bf16.msra.mxu0 0
    %9891 = vmatprep.subr.bf16.mxu0 0
    %9892 = vmatpush1.bf16.msra.mxu0 0
    %9893 = vmatprep.subr.bf16.mxu0 0
    %9894 = vmatpush1.bf16.msra.mxu0 0
    %9895 = vmatprep.subr.bf16.mxu0 0
    %9896 = vmatpush1.bf16.msra.mxu0 0
    %9897 = vmatprep.subr.bf16.mxu0 0
    %9898 = vmatpush1.bf16.msra.mxu0 0
    %9899 = vmatprep.subr.bf16.mxu0 0
    %9900 = vmatpush1.bf16.msra.mxu0 0
    %9901 = vmatprep.subr.bf16.mxu0 0
    %9902 = vmatpush1.bf16.msra.mxu0 0
    %9903 = vmatprep.subr.bf16.mxu0 0
    %9904 = vmatpush1.bf16.msra.mxu0 0
    %9905 = vmatprep.subr.bf16.mxu0 0
    %9906 = vmatpush1.bf16.msra.mxu0 0
    %9907 = vmatprep.mubr.bf16.mxu0 0
    %9908 = vmatmul.mubr.bf16.gmra.mrb[0].mxu0 %v9873
    %v9909 = vpop.f32.mrb[0].mxu0
    %v9910 = vadd.f32 0.0, %v9909
    %v9911 = vpop.f32.mrb[0].mxu0
    %v9912 = vpop.f32.mrb[0].mxu0
    %v9913 = vpop.f32.mrb[0].mxu0
    %9914 = vdwg.mxu0
    %v9916 = vsel %vm2252, %v9689, 0
    %9918 = vmatprep.subr.bf16.mxu0 0
    %9919 = vmatpush1.bf16.msra.mxu0 %v9697
    %9920 = vmatprep.subr.bf16.mxu0 0
    %9921 = vmatpush1.bf16.msra.mxu0 0
    %9922 = vmatprep.subr.bf16.mxu0 0
    %9923 = vmatpush1.bf16.msra.mxu0 0
    %9924 = vmatprep.subr.bf16.mxu0 0
    %9925 = vmatpush1.bf16.msra.mxu0 0
    %9926 = vmatprep.subr.bf16.mxu0 0
    %9927 = vmatpush1.bf16.msra.mxu0 0
    %9928 = vmatprep.subr.bf16.mxu0 0
    %9929 = vmatpush1.bf16.msra.mxu0 0
    %9930 = vmatprep.subr.bf16.mxu0 0
    %9931 = vmatpush1.bf16.msra.mxu0 0
    %9932 = vmatprep.subr.bf16.mxu0 0
    %9933 = vmatpush1.bf16.msra.mxu0 0
    %9934 = vmatprep.subr.bf16.mxu0 0
    %9935 = vmatpush1.bf16.msra.mxu0 0
    %9936 = vmatprep.subr.bf16.mxu0 0
    %9937 = vmatpush1.bf16.msra.mxu0 0
    %9938 = vmatprep.subr.bf16.mxu0 0
    %9939 = vmatpush1.bf16.msra.mxu0 0
    %9940 = vmatprep.subr.bf16.mxu0 0
    %9941 = vmatpush1.bf16.msra.mxu0 0
    %9942 = vmatprep.subr.bf16.mxu0 0
    %9943 = vmatpush1.bf16.msra.mxu0 0
    %9944 = vmatprep.subr.bf16.mxu0 0
    %9945 = vmatpush1.bf16.msra.mxu0 0
    %9946 = vmatprep.subr.bf16.mxu0 0
    %9947 = vmatpush1.bf16.msra.mxu0 0
    %9948 = vmatprep.subr.bf16.mxu0 0
    %9949 = vmatpush1.bf16.msra.mxu0 0
    %9950 = vmatprep.mubr.bf16.mxu0 0
    %9951 = vmatmul.mubr.bf16.gmra.mrb[0].mxu0 %v9916
    %v9952 = vpop.f32.mrb[0].mxu0
    %v9953 = vadd.f32 0.0, %v9952
    %v9954 = vpop.f32.mrb[0].mxu0
    %v9955 = vpop.f32.mrb[0].mxu0
    %v9956 = vpop.f32.mrb[0].mxu0
    %9957 = vdwg.mxu0
    %v9959 = vsel %vm2252, %v9690, 0
    %9961 = vmatprep.subr.bf16.mxu0 0
    %9962 = vmatpush1.bf16.msra.mxu0 %v9698
    %9963 = vmatprep.subr.bf16.mxu0 0
    %9964 = vmatpush1.bf16.msra.mxu0 0
    %9965 = vmatprep.subr.bf16.mxu0 0
    %9966 = vmatpush1.bf16.msra.mxu0 0
    %9967 = vmatprep.subr.bf16.mxu0 0
    %9968 = vmatpush1.bf16.msra.mxu0 0
    %9969 = vmatprep.subr.bf16.mxu0 0
    %9970 = vmatpush1.bf16.msra.mxu0 0
    %9971 = vmatprep.subr.bf16.mxu0 0
    %9972 = vmatpush1.bf16.msra.mxu0 0
    %9973 = vmatprep.subr.bf16.mxu0 0
    %9974 = vmatpush1.bf16.msra.mxu0 0
    %9975 = vmatprep.subr.bf16.mxu0 0
    %9976 = vmatpush1.bf16.msra.mxu0 0
    %9977 = vmatprep.subr.bf16.mxu0 0
    %9978 = vmatpush1.bf16.msra.mxu0 0
    %9979 = vmatprep.subr.bf16.mxu0 0
    %9980 = vmatpush1.bf16.msra.mxu0 0
    %9981 = vmatprep.subr.bf16.mxu0 0
    %9982 = vmatpush1.bf16.msra.mxu0 0
    %9983 = vmatprep.subr.bf16.mxu0 0
    %9984 = vmatpush1.bf16.msra.mxu0 0
    %9985 = vmatprep.subr.bf16.mxu0 0
    %9986 = vmatpush1.bf16.msra.mxu0 0
    %9987 = vmatprep.subr.bf16.mxu0 0
    %9988 = vmatpush1.bf16.msra.mxu0 0
    %9989 = vmatprep.subr.bf16.mxu0 0
    %9990 = vmatpush1.bf16.msra.mxu0 0
    %9991 = vmatprep.subr.bf16.mxu0 0
    %9992 = vmatpush1.bf16.msra.mxu0 0
    %9993 = vmatprep.mubr.bf16.mxu0 0
    %9994 = vmatmul.mubr.bf16.gmra.mrb[0].mxu0 %v9959
    %v9995 = vpop.f32.mrb[0].mxu0
    %v9996 = vadd.f32 0.0, %v9995
    %v9997 = vpop.f32.mrb[0].mxu0
    %v9998 = vpop.f32.mrb[0].mxu0
    %v9999 = vpop.f32.mrb[0].mxu0
    %10000 = vdwg.mxu0
    %v10002 = vsel %vm2252, %v9691, 0
    %10004 = vmatprep.subr.bf16.mxu0 0
    %10005 = vmatpush1.bf16.msra.mxu0 %v9699
    %10006 = vmatprep.subr.bf16.mxu0 0
    %10007 = vmatpush1.bf16.msra.mxu0 0
    %10008 = vmatprep.subr.bf16.mxu0 0
    %10009 = vmatpush1.bf16.msra.mxu0 0
    %10010 = vmatprep.subr.bf16.mxu0 0
    %10011 = vmatpush1.bf16.msra.mxu0 0
    %10012 = vmatprep.subr.bf16.mxu0 0
    %10013 = vmatpush1.bf16.msra.mxu0 0
    %10014 = vmatprep.subr.bf16.mxu0 0
    %10015 = vmatpush1.bf16.msra.mxu0 0
    %10016 = vmatprep.subr.bf16.mxu0 0
    %10017 = vmatpush1.bf16.msra.mxu0 0
    %10018 = vmatprep.subr.bf16.mxu0 0
    %10019 = vmatpush1.bf16.msra.mxu0 0
    %10020 = vmatprep.subr.bf16.mxu0 0
    %10021 = vmatpush1.bf16.msra.mxu0 0
    %10022 = vmatprep.subr.bf16.mxu0 0
    %10023 = vmatpush1.bf16.msra.mxu0 0
    %10024 = vmatprep.subr.bf16.mxu0 0
    %10025 = vmatpush1.bf16.msra.mxu0 0
    %10026 = vmatprep.subr.bf16.mxu0 0
    %10027 = vmatpush1.bf16.msra.mxu0 0
    %10028 = vmatprep.subr.bf16.mxu0 0
    %10029 = vmatpush1.bf16.msra.mxu0 0
    %10030 = vmatprep.subr.bf16.mxu0 0
    %10031 = vmatpush1.bf16.msra.mxu0 0
    %10032 = vmatprep.subr.bf16.mxu0 0
    %10033 = vmatpush1.bf16.msra.mxu0 0
    %10034 = vmatprep.subr.bf16.mxu0 0
    %10035 = vmatpush1.bf16.msra.mxu0 0
    %10036 = vmatprep.mubr.bf16.mxu0 0
    %10037 = vmatmul.mubr.bf16.gmra.mrb[0].mxu0 %v10002
    %v10038 = vpop.f32.mrb[0].mxu0
    %v10039 = vadd.f32 0.0, %v10038
    %v10040 = vpop.f32.mrb[0].mxu0
    %v10041 = vpop.f32.mrb[0].mxu0
    %v10042 = vpop.f32.mrb[0].mxu0
    %10043 = vdwg.mxu0
    %v10044 = vcombine.low %v9738, %v9824
    %v10045 = vcombine.high %v9738, %v9824
    %v10047 = vunpack.c.l.s4 1983009808
    %v10048 = vunpack.c.0.s8 %v10047
    %v10049 = vlaneseq
    %v10050 = vshrl.u32 %v10049, 7
    %v10051 = vsub.s32 %v10048, %v10050
    %v10052 = vrot.slane %v10044, %v10051
    %v10054 = vunpack.c.l.s4 1983009808
    %v10055 = vunpack.c.0.s8 %v10054
    %v10056 = vlaneseq
    %v10057 = vshrl.u32 %v10056, 7
    %v10058 = vsub.s32 %v10055, %v10057
    %v10059 = vrot.slane %v10045, %v10058
    %v10060 = vcombine.low %v9781, %v9867
    %v10061 = vcombine.high %v9781, %v9867
    %v10063 = vunpack.c.l.s4 1983009808
    %v10064 = vunpack.c.0.s8 %v10063
    %v10065 = vlaneseq
    %v10066 = vshrl.u32 %v10065, 7
    %v10067 = vsub.s32 %v10064, %v10066
    %v10068 = vrot.slane %v10060, %v10067
    %v10070 = vunpack.c.l.s4 1983009808
    %v10071 = vunpack.c.0.s8 %v10070
    %v10072 = vlaneseq
    %v10073 = vshrl.u32 %v10072, 7
    %v10074 = vsub.s32 %v10071, %v10073
    %v10075 = vrot.slane %v10061, %v10074
    %v10076 = vcombine.low %v10052, %v10068
    %v10077 = vcombine.high %v10052, %v10068
    %v10079 = vunpack.c.l.s4 1934713408
    %v10080 = vunpack.c.0.s8 %v10079
    %v10081 = vlaneseq
    %v10082 = vshrl.u32 %v10081, 7
    %v10083 = vsub.s32 %v10080, %v10082
    %v10084 = vrot.slane %v10076, %v10083
    %v10086 = vunpack.c.l.s4 1934713408
    %v10087 = vunpack.c.0.s8 %v10086
    %v10088 = vlaneseq
    %v10089 = vshrl.u32 %v10088, 7
    %v10090 = vsub.s32 %v10087, %v10089
    %v10091 = vrot.slane %v10077, %v10090
    %v10092 = vcombine.low %v10059, %v10075
    %v10093 = vcombine.high %v10059, %v10075
    %v10095 = vunpack.c.l.s4 1934713408
    %v10096 = vunpack.c.0.s8 %v10095
    %v10097 = vlaneseq
    %v10098 = vshrl.u32 %v10097, 7
    %v10099 = vsub.s32 %v10096, %v10098
    %v10100 = vrot.slane %v10092, %v10099
    %v10102 = vunpack.c.l.s4 1934713408
    %v10103 = vunpack.c.0.s8 %v10102
    %v10104 = vlaneseq
    %v10105 = vshrl.u32 %v10104, 7
    %v10106 = vsub.s32 %v10103, %v10105
    %v10107 = vrot.slane %v10093, %v10106
    %v10108 = vcombine.high %v10084, 0.0
    %v10109 = vcombine.high %v10091, 0.0
    %v10110 = vcombine.high %v10100, 0.0
    %v10111 = vcombine.high %v10107, 0.0
    %v10112 = vcombine.low %v9910, %v9996
    %v10113 = vcombine.high %v9910, %v9996
    %v10115 = vunpack.c.l.s4 1983009808
    %v10116 = vunpack.c.0.s8 %v10115
    %v10117 = vlaneseq
    %v10118 = vshrl.u32 %v10117, 7
    %v10119 = vsub.s32 %v10116, %v10118
    %v10120 = vrot.slane %v10112, %v10119
    %v10122 = vunpack.c.l.s4 1983009808
    %v10123 = vunpack.c.0.s8 %v10122
    %v10124 = vlaneseq
    %v10125 = vshrl.u32 %v10124, 7
    %v10126 = vsub.s32 %v10123, %v10125
    %v10127 = vrot.slane %v10113, %v10126
    %v10128 = vcombine.low %v9953, %v10039
    %v10129 = vcombine.high %v9953, %v10039
    %v10131 = vunpack.c.l.s4 1983009808
    %v10132 = vunpack.c.0.s8 %v10131
    %v10133 = vlaneseq
    %v10134 = vshrl.u32 %v10133, 7
    %v10135 = vsub.s32 %v10132, %v10134
    %v10136 = vrot.slane %v10128, %v10135
    %v10138 = vunpack.c.l.s4 1983009808
    %v10139 = vunpack.c.0.s8 %v10138
    %v10140 = vlaneseq
    %v10141 = vshrl.u32 %v10140, 7
    %v10142 = vsub.s32 %v10139, %v10141
    %v10143 = vrot.slane %v10129, %v10142
    %v10144 = vcombine.low %v10120, %v10136
    %v10145 = vcombine.high %v10120, %v10136
    %v10147 = vunpack.c.l.s4 1934713408
    %v10148 = vunpack.c.0.s8 %v10147
    %v10149 = vlaneseq
    %v10150 = vshrl.u32 %v10149, 7
    %v10151 = vsub.s32 %v10148, %v10150
    %v10152 = vrot.slane %v10144, %v10151
    %v10154 = vunpack.c.l.s4 1934713408
    %v10155 = vunpack.c.0.s8 %v10154
    %v10156 = vlaneseq
    %v10157 = vshrl.u32 %v10156, 7
    %v10158 = vsub.s32 %v10155, %v10157
    %v10159 = vrot.slane %v10145, %v10158
    %v10160 = vcombine.low %v10127, %v10143
    %v10161 = vcombine.high %v10127, %v10143
    %v10163 = vunpack.c.l.s4 1934713408
    %v10164 = vunpack.c.0.s8 %v10163
    %v10165 = vlaneseq
    %v10166 = vshrl.u32 %v10165, 7
    %v10167 = vsub.s32 %v10164, %v10166
    %v10168 = vrot.slane %v10160, %v10167
    %v10170 = vunpack.c.l.s4 1934713408
    %v10171 = vunpack.c.0.s8 %v10170
    %v10172 = vlaneseq
    %v10173 = vshrl.u32 %v10172, 7
    %v10174 = vsub.s32 %v10171, %v10173
    %v10175 = vrot.slane %v10161, %v10174
    %v10176 = vcombine.high %v10152, 0.0
    %v10177 = vcombine.high %v10159, 0.0
    %v10178 = vcombine.high %v10168, 0.0
    %v10179 = vcombine.high %v10175, 0.0
    %v10180 = vcombine.low %v10084, %v10091
    %v10182 = vunpack.c.l.s4 1983009808
    %v10183 = vunpack.c.0.s8 %v10182
    %v10184 = vlaneseq
    %v10185 = vshrl.u32 %v10184, 7
    %v10186 = vsub.s32 %v10183, %v10185
    %v10187 = vrot.slane %v10180, %v10186
    %v10188 = vcombine.low %v10108, %v10109
    %v10190 = vunpack.c.l.s4 1983009808
    %v10191 = vunpack.c.0.s8 %v10190
    %v10192 = vlaneseq
    %v10193 = vshrl.u32 %v10192, 7
    %v10194 = vsub.s32 %v10191, %v10193
    %v10195 = vrot.slane %v10188, %v10194
    %v10196 = vcombine.low %v10100, %v10107
    %v10198 = vunpack.c.l.s4 1983009808
    %v10199 = vunpack.c.0.s8 %v10198
    %v10200 = vlaneseq
    %v10201 = vshrl.u32 %v10200, 7
    %v10202 = vsub.s32 %v10199, %v10201
    %v10203 = vrot.slane %v10196, %v10202
    %v10204 = vcombine.low %v10110, %v10111
    %v10206 = vunpack.c.l.s4 1983009808
    %v10207 = vunpack.c.0.s8 %v10206
    %v10208 = vlaneseq
    %v10209 = vshrl.u32 %v10208, 7
    %v10210 = vsub.s32 %v10207, %v10209
    %v10211 = vrot.slane %v10204, %v10210
    %v10212 = vcombine.low %v10187, %v10195
    %v10213 = vcombine.high %v10187, %v10195
    %v10215 = vunpack.c.l.s4 1934713408
    %v10216 = vunpack.c.0.s8 %v10215
    %v10217 = vlaneseq
    %v10218 = vshrl.u32 %v10217, 7
    %v10219 = vsub.s32 %v10216, %v10218
    %v10220 = vrot.slane %v10212, %v10219
    %v10222 = vunpack.c.l.s4 1934713408
    %v10223 = vunpack.c.0.s8 %v10222
    %v10224 = vlaneseq
    %v10225 = vshrl.u32 %v10224, 7
    %v10226 = vsub.s32 %v10223, %v10225
    %v10227 = vrot.slane %v10213, %v10226
    %v10228 = vcombine.low %v10203, %v10211
    %v10229 = vcombine.high %v10203, %v10211
    %v10231 = vunpack.c.l.s4 1934713408
    %v10232 = vunpack.c.0.s8 %v10231
    %v10233 = vlaneseq
    %v10234 = vshrl.u32 %v10233, 7
    %v10235 = vsub.s32 %v10232, %v10234
    %v10236 = vrot.slane %v10228, %v10235
    %v10238 = vunpack.c.l.s4 1934713408
    %v10239 = vunpack.c.0.s8 %v10238
    %v10240 = vlaneseq
    %v10241 = vshrl.u32 %v10240, 7
    %v10242 = vsub.s32 %v10239, %v10241
    %v10243 = vrot.slane %v10229, %v10242
    %v10244 = vcombine.low %v10220, %v10236
    %v10245 = vcombine.high %v10220, %v10236
    %v10246 = vcombine.low %v10227, %v10243
    %v10247 = vcombine.high %v10227, %v10243
    %v10248 = vcombine.low %v10152, %v10159
    %v10250 = vunpack.c.l.s4 1983009808
    %v10251 = vunpack.c.0.s8 %v10250
    %v10252 = vlaneseq
    %v10253 = vshrl.u32 %v10252, 7
    %v10254 = vsub.s32 %v10251, %v10253
    %v10255 = vrot.slane %v10248, %v10254
    %v10256 = vcombine.low %v10176, %v10177
    %v10258 = vunpack.c.l.s4 1983009808
    %v10259 = vunpack.c.0.s8 %v10258
    %v10260 = vlaneseq
    %v10261 = vshrl.u32 %v10260, 7
    %v10262 = vsub.s32 %v10259, %v10261
    %v10263 = vrot.slane %v10256, %v10262
    %v10264 = vcombine.low %v10168, %v10175
    %v10266 = vunpack.c.l.s4 1983009808
    %v10267 = vunpack.c.0.s8 %v10266
    %v10268 = vlaneseq
    %v10269 = vshrl.u32 %v10268, 7
    %v10270 = vsub.s32 %v10267, %v10269
    %v10271 = vrot.slane %v10264, %v10270
    %v10272 = vcombine.low %v10178, %v10179
    %v10274 = vunpack.c.l.s4 1983009808
    %v10275 = vunpack.c.0.s8 %v10274
    %v10276 = vlaneseq
    %v10277 = vshrl.u32 %v10276, 7
    %v10278 = vsub.s32 %v10275, %v10277
    %v10279 = vrot.slane %v10272, %v10278
    %v10280 = vcombine.low %v10255, %v10263
    %v10281 = vcombine.high %v10255, %v10263
    %v10283 = vunpack.c.l.s4 1934713408
    %v10284 = vunpack.c.0.s8 %v10283
    %v10285 = vlaneseq
    %v10286 = vshrl.u32 %v10285, 7
    %v10287 = vsub.s32 %v10284, %v10286
    %v10288 = vrot.slane %v10280, %v10287
    %v10290 = vunpack.c.l.s4 1934713408
    %v10291 = vunpack.c.0.s8 %v10290
    %v10292 = vlaneseq
    %v10293 = vshrl.u32 %v10292, 7
    %v10294 = vsub.s32 %v10291, %v10293
    %v10295 = vrot.slane %v10281, %v10294
    %v10296 = vcombine.low %v10271, %v10279
    %v10297 = vcombine.high %v10271, %v10279
    %v10299 = vunpack.c.l.s4 1934713408
    %v10300 = vunpack.c.0.s8 %v10299
    %v10301 = vlaneseq
    %v10302 = vshrl.u32 %v10301, 7
    %v10303 = vsub.s32 %v10300, %v10302
    %v10304 = vrot.slane %v10296, %v10303
    %v10306 = vunpack.c.l.s4 1934713408
    %v10307 = vunpack.c.0.s8 %v10306
    %v10308 = vlaneseq
    %v10309 = vshrl.u32 %v10308, 7
    %v10310 = vsub.s32 %v10307, %v10309
    %v10311 = vrot.slane %v10297, %v10310
    %v10312 = vcombine.low %v10288, %v10304
    %v10313 = vcombine.high %v10288, %v10304
    %v10314 = vcombine.low %v10295, %v10311
    %v10315 = vcombine.high %v10295, %v10311
    %10318 = vrot.lane.b32.xlu0 %v10245, 8
    %v10319 = vpop.permute.xlu0 %10318
    %10320 = vrot.lane.b32.xlu0 %v10313, 8
    %v10321 = vpop.permute.xlu0 %10320
    %10326 = vrot.lane.b32.xlu0 %v10246, 16
    %v10327 = vpop.permute.xlu0 %10326
    %10328 = vrot.lane.b32.xlu0 %v10314, 16
    %v10329 = vpop.permute.xlu0 %10328
    %10334 = vrot.lane.b32.xlu0 %v10247, 24
    %v10335 = vpop.permute.xlu0 %10334
    %10336 = vrot.lane.b32.xlu0 %v10315, 24
    %v10337 = vpop.permute.xlu0 %10336
    %v10340 = vsel %vm1112, %v10244, %v10319
    %v10341 = vsel %vm1112, %v10312, %v10321
    %v10342 = vsel %vm2252, %v10340, %v10327
    %v10343 = vsel %vm2252, %v10341, %v10329
    %v10344 = vsel %vm2255, %v10342, %v10335
    %v10345 = vsel %vm2255, %v10343, %v10337
    %v10346 = vpack.c.bf16 %v10345, %v10344
    %v10347 = vld [vmem:[%s5407 + $0x4] sm:$0xf]
    %v10348 = vld [vmem:[%s5407 + $0xc] sm:$0xf]
    %v10349 = vld [vmem:[%s5407 + $0x14] sm:$0xf]
    %v10350 = vld [vmem:[%s5407 + $0x1c] sm:$0xf]
    %v10355 = vunpack.c.l.b16 %v10347
    %v10356 = vunpack.c.l.b16 %v10348
    %v10357 = vunpack.c.l.b16 %v10349
    %v10358 = vunpack.c.l.b16 %v10350
    %v10359 = vpack.c.b16 %v10356, %v10355
    %v10360 = vpack.c.b16 %v10358, %v10357
    %10361 = vrot.lane.b32.xlu0 %v10359, 32
    %v10362 = vpop.permute.xlu0 %10361
    %10363 = vrot.lane.b32.xlu0 %v10360, 32
    %v10364 = vpop.permute.xlu0 %10363
    %v10368 = vsel %vm114, %v10346, 0
    %10370 = vmatprep.subr.bf16.mxu0 0
    %10371 = vmatpush1.bf16.msra.mxu0 %v10362
    %10372 = vmatprep.subr.bf16.mxu0 0
    %10373 = vmatpush1.bf16.msra.mxu0 %v10364
    %10374 = vmatprep.subr.bf16.mxu0 0
    %10375 = vmatpush1.bf16.msra.mxu0 0
    %10376 = vmatprep.subr.bf16.mxu0 0
    %10377 = vmatpush1.bf16.msra.mxu0 0
    %10378 = vmatprep.subr.bf16.mxu0 0
    %10379 = vmatpush1.bf16.msra.mxu0 0
    %10380 = vmatprep.subr.bf16.mxu0 0
    %10381 = vmatpush1.bf16.msra.mxu0 0
    %10382 = vmatprep.subr.bf16.mxu0 0
    %10383 = vmatpush1.bf16.msra.mxu0 0
    %10384 = vmatprep.subr.bf16.mxu0 0
    %10385 = vmatpush1.bf16.msra.mxu0 0
    %10386 = vmatprep.subr.bf16.mxu0 0
    %10387 = vmatpush1.bf16.msra.mxu0 0
    %10388 = vmatprep.subr.bf16.mxu0 0
    %10389 = vmatpush1.bf16.msra.mxu0 0
    %10390 = vmatprep.subr.bf16.mxu0 0
    %10391 = vmatpush1.bf16.msra.mxu0 0
    %10392 = vmatprep.subr.bf16.mxu0 0
    %10393 = vmatpush1.bf16.msra.mxu0 0
    %10394 = vmatprep.subr.bf16.mxu0 0
    %10395 = vmatpush1.bf16.msra.mxu0 0
    %10396 = vmatprep.subr.bf16.mxu0 0
    %10397 = vmatpush1.bf16.msra.mxu0 0
    %10398 = vmatprep.subr.bf16.mxu0 0
    %10399 = vmatpush1.bf16.msra.mxu0 0
    %10400 = vmatprep.subr.bf16.mxu0 0
    %10401 = vmatpush1.bf16.msra.mxu0 0
    %10402 = vmatprep.mubr.bf16.mxu0 0
    %10403 = vmatmul.mubr.bf16.gmra.mrb[0].mxu0 %v10368
    %v10404 = vpop.f32.mrb[0].mxu0
    %v10405 = vadd.f32 0.0, %v10404
    %v10406 = vpop.f32.mrb[0].mxu0
    %v10407 = vpop.f32.mrb[0].mxu0
    %v10408 = vadd.f32 0.0, %v10407
    %v10409 = vpop.f32.mrb[0].mxu0
    %10410 = vdwg.mxu0
    %v10411 = vadd.f32 %v7583, %v10405
    %v10412 = vadd.f32 %v7584, %v10408
    %v10413 = vld [vmem:[%s5370 + $0x8] ss:$0 sm:$0xff]
    %10415 = vrot.lane.b32.xlu0 %v10413, 32
    %v10416 = vpop.permute.xlu0 %10415
    %v10418 = vadd.f32 %v10411, %v10416
    %v10419 = vadd.f32 %v10412, %v10416
    %v10420 = vld [vmem:[%s5370 + $0xa] ss:$0 sm:$0xff]
    %v10421 = vsel %vm114, %v10418, 0.0
    %10422 = vadd.xlane.f32.xlu0 %v10421
    %v10423 = vpop.xlane.xlu0 %10422
    %v10424 = vsel %vm114, %v10419, 0.0
    %10425 = vadd.xlane.f32.xlu0 %v10424
    %v10426 = vpop.xlane.xlu0 %10425
    %v10427 = vmul.f32 %v10423, %v121
    %v10428 = vmul.f32 %v10426, %v121
    %v10429 = vsub.f32 %v10418, %v10427
    %v10430 = vsub.f32 %v10419, %v10428
    %v10431 = vmul.f32 %v10429, %v10429
    %v10432 = vmul.f32 %v10430, %v10430
    %v10433 = vsel %vm114, %v10431, 0.0
    %10434 = vadd.xlane.f32.xlu0 %v10433
    %v10435 = vpop.xlane.xlu0 %10434
    %v10436 = vsel %vm114, %v10432, 0.0
    %10437 = vadd.xlane.f32.xlu0 %v10436
    %v10438 = vpop.xlane.xlu0 %10437
    %v10439 = vmul.f32 %v10435, %v121
    %v10440 = vmul.f32 %v10438, %v121
    %v10441 = vadd.f32 %v10439, 1e-12
    %v10442 = vadd.f32 %v10440, 1e-12
    %v10443 = vrsqrt.pop %v10441
    %v10444 = vrsqrt.pop %v10442
    %v10445 = vmul.f32 %v10429, %v10443
    %v10446 = vmul.f32 %v10430, %v10444
    %v10447 = vmul.f32 %v10445, %v10420
    %v10448 = vmul.f32 %v10446, %v10420
    %10450 = vrot.lane.b32.xlu0 %v10420, 96
    %v10451 = vpop.permute.xlu0 %10450
    %v10453 = vadd.f32 %v10447, %v10451
    %v10454 = vadd.f32 %v10448, %v10451
    %v10455 = vpack.c.bf16 %v10454, %v10453
    %v10456 = vld [vmem:[%s5407 + $0x20] sm:$0xf]
    %v10457 = vld [vmem:[%s5407 + $0x28] sm:$0xf]
    %v10458 = vld [vmem:[%s5407 + $0x30] sm:$0xf]
    %v10459 = vld [vmem:[%s5407 + $0x38] sm:$0xf]
    %v10460 = vld [vmem:[%s5370 + $0x1] ss:$0 sm:$0xff]
    %v10465 = vunpack.c.l.b16 %v10456
    %v10466 = vunpack.c.l.b16 %v10457
    %v10467 = vunpack.c.l.b16 %v10458
    %v10468 = vunpack.c.l.b16 %v10459
    %v10469 = vpack.c.b16 %v10466, %v10465
    %v10470 = vpack.c.b16 %v10468, %v10467
    %v10474 = vsel %vm114, %v10455, 0
    %10476 = vmatprep.subr.bf16.mxu0 0
    %10477 = vmatpush1.bf16.msra.mxu0 %v10469
    %10478 = vmatprep.subr.bf16.mxu0 0
    %10479 = vmatpush1.bf16.msra.mxu0 %v10470
    %10480 = vmatprep.subr.bf16.mxu0 0
    %10481 = vmatpush1.bf16.msra.mxu0 0
    %10482 = vmatprep.subr.bf16.mxu0 0
    %10483 = vmatpush1.bf16.msra.mxu0 0
    %10484 = vmatprep.subr.bf16.mxu0 0
    %10485 = vmatpush1.bf16.msra.mxu0 0
    %10486 = vmatprep.subr.bf16.mxu0 0
    %10487 = vmatpush1.bf16.msra.mxu0 0
    %10488 = vmatprep.subr.bf16.mxu0 0
    %10489 = vmatpush1.bf16.msra.mxu0 0
    %10490 = vmatprep.subr.bf16.mxu0 0
    %10491 = vmatpush1.bf16.msra.mxu0 0
    %10492 = vmatprep.subr.bf16.mxu0 0
    %10493 = vmatpush1.bf16.msra.mxu0 0
    %10494 = vmatprep.subr.bf16.mxu0 0
    %10495 = vmatpush1.bf16.msra.mxu0 0
    %10496 = vmatprep.subr.bf16.mxu0 0
    %10497 = vmatpush1.bf16.msra.mxu0 0
    %10498 = vmatprep.subr.bf16.mxu0 0
    %10499 = vmatpush1.bf16.msra.mxu0 0
    %10500 = vmatprep.subr.bf16.mxu0 0
    %10501 = vmatpush1.bf16.msra.mxu0 0
    %10502 = vmatprep.subr.bf16.mxu0 0
    %10503 = vmatpush1.bf16.msra.mxu0 0
    %10504 = vmatprep.subr.bf16.mxu0 0
    %10505 = vmatpush1.bf16.msra.mxu0 0
    %10506 = vmatprep.subr.bf16.mxu0 0
    %10507 = vmatpush1.bf16.msra.mxu0 0
    %10508 = vmatprep.mubr.bf16.mxu0 0
    %10509 = vmatmul.mubr.bf16.gmra.mrb[0].mxu0 %v10474
    %v10510 = vpop.f32.mrb[0].mxu0
    %v10511 = vadd.f32 %v10460, %v10510
    %v10512 = vpop.f32.mrb[0].mxu0
    %v10513 = vpop.f32.mrb[0].mxu0
    %v10514 = vadd.f32 %v10460, %v10513
    %v10515 = vpop.f32.mrb[0].mxu0
    %10516 = vdwg.mxu0
    %v10517 = vmax.f32 %v10511, 0.0
    %v10518 = vmax.f32 %v10514, 0.0
    %v10519 = vpack.c.bf16 %v10518, %v10517
    %v10520 = vld [vmem:[%s5407 + $0x40] sm:$0xf]
    %v10521 = vld [vmem:[%s5407 + $0x48] sm:$0xf]
    %v10522 = vld [vmem:[%s5407 + $0x50] sm:$0xf]
    %v10523 = vld [vmem:[%s5407 + $0x58] sm:$0xf]
    %v10524 = vld [vmem:[%s5407 + $0x60] sm:$0xf]
    %v10525 = vld [vmem:[%s5407 + $0x68] sm:$0xf]
    %v10526 = vld [vmem:[%s5407 + $0x70] sm:$0xf]
    %v10527 = vld [vmem:[%s5407 + $0x78] sm:$0xf]
    %v10536 = vunpack.c.l.b16 %v10520
    %v10537 = vunpack.c.l.b16 %v10521
    %v10538 = vunpack.c.l.b16 %v10522
    %v10539 = vunpack.c.l.b16 %v10523
    %v10540 = vunpack.c.l.b16 %v10524
    %v10541 = vunpack.c.l.b16 %v10525
    %v10542 = vunpack.c.l.b16 %v10526
    %v10543 = vunpack.c.l.b16 %v10527
    %v10544 = vpack.c.b16 %v10537, %v10536
    %v10545 = vpack.c.b16 %v10539, %v10538
    %v10546 = vpack.c.b16 %v10541, %v10540
    %v10547 = vpack.c.b16 %v10543, %v10542
    %v10553 = vsel %vm5317, %v10519, 0
    %10555 = vmatprep.subr.bf16.mxu0 0
    %10556 = vmatpush1.bf16.msra.mxu0 %v10544
    %10557 = vmatprep.subr.bf16.mxu0 0
    %10558 = vmatpush1.bf16.msra.mxu0 %v10545
    %10559 = vmatprep.subr.bf16.mxu0 0
    %10560 = vmatpush1.bf16.msra.mxu0 %v10546
    %10561 = vmatprep.subr.bf16.mxu0 0
    %10562 = vmatpush1.bf16.msra.mxu0 %v10547
    %10563 = vmatprep.subr.bf16.mxu0 0
    %10564 = vmatpush1.bf16.msra.mxu0 0
    %10565 = vmatprep.subr.bf16.mxu0 0
    %10566 = vmatpush1.bf16.msra.mxu0 0
    %10567 = vmatprep.subr.bf16.mxu0 0
    %10568 = vmatpush1.bf16.msra.mxu0 0
    %10569 = vmatprep.subr.bf16.mxu0 0
    %10570 = vmatpush1.bf16.msra.mxu0 0
    %10571 = vmatprep.subr.bf16.mxu0 0
    %10572 = vmatpush1.bf16.msra.mxu0 0
    %10573 = vmatprep.subr.bf16.mxu0 0
    %10574 = vmatpush1.bf16.msra.mxu0 0
    %10575 = vmatprep.subr.bf16.mxu0 0
    %10576 = vmatpush1.bf16.msra.mxu0 0
    %10577 = vmatprep.subr.bf16.mxu0 0
    %10578 = vmatpush1.bf16.msra.mxu0 0
    %10579 = vmatprep.subr.bf16.mxu0 0
    %10580 = vmatpush1.bf16.msra.mxu0 0
    %10581 = vmatprep.subr.bf16.mxu0 0
    %10582 = vmatpush1.bf16.msra.mxu0 0
    %10583 = vmatprep.subr.bf16.mxu0 0
    %10584 = vmatpush1.bf16.msra.mxu0 0
    %10585 = vmatprep.subr.bf16.mxu0 0
    %10586 = vmatpush1.bf16.msra.mxu0 0
    %10587 = vmatprep.mubr.bf16.mxu0 0
    %10588 = vmatmul.mubr.bf16.gmra.mrb[0].mxu0 %v10553
    %v10589 = vpop.f32.mrb[0].mxu0
    %v10590 = vadd.f32 0.0, %v10589
    %v10591 = vpop.f32.mrb[0].mxu0
    %v10592 = vpop.f32.mrb[0].mxu0
    %v10593 = vadd.f32 0.0, %v10592
    %v10594 = vpop.f32.mrb[0].mxu0
    %10595 = vdwg.mxu0
    %v10596 = vadd.f32 %v10418, %v10590
    %v10597 = vadd.f32 %v10419, %v10593
    %10599 = vrot.lane.b32.xlu0 %v10460, 64
    %v10600 = vpop.permute.xlu0 %10599
    %v10602 = vadd.f32 %v10596, %v10600
    %v10603 = vadd.f32 %v10597, %v10600
    %s10604 = scalar_lea.vmem [#allocation10], 32
    %v10605 = vld [vmem:[%s10604 + $0x2] ss:$0 sm:$0xff]
    %v10606 = vsel %vm114, %v10602, 0.0
    %10607 = vadd.xlane.f32.xlu0 %v10606
    %v10608 = vpop.xlane.xlu0 %10607
    %v10609 = vsel %vm114, %v10603, 0.0
    %10610 = vadd.xlane.f32.xlu0 %v10609
    %v10611 = vpop.xlane.xlu0 %10610
    %v10612 = vmul.f32 %v10608, %v121
    %v10613 = vmul.f32 %v10611, %v121
    %v10614 = vsub.f32 %v10602, %v10612
    %v10615 = vsub.f32 %v10603, %v10613
    %v10616 = vmul.f32 %v10614, %v10614
    %v10617 = vmul.f32 %v10615, %v10615
    %v10618 = vsel %vm114, %v10616, 0.0
    %10619 = vadd.xlane.f32.xlu0 %v10618
    %v10620 = vpop.xlane.xlu0 %10619
    %v10621 = vsel %vm114, %v10617, 0.0
    %10622 = vadd.xlane.f32.xlu0 %v10621
    %v10623 = vpop.xlane.xlu0 %10622
    %v10624 = vmul.f32 %v10620, %v121
    %v10625 = vmul.f32 %v10623, %v121
    %v10626 = vadd.f32 %v10624, 1e-12
    %v10627 = vadd.f32 %v10625, 1e-12
    %v10628 = vrsqrt.pop %v10626
    %v10629 = vrsqrt.pop %v10627
    %v10630 = vmul.f32 %v10614, %v10628
    %v10631 = vmul.f32 %v10615, %v10629
    %v10632 = vmul.f32 %v10630, %v10605
    %v10633 = vmul.f32 %v10631, %v10605
    %10635 = vrot.lane.b32.xlu0 %v10605, 96
    %v10636 = vpop.permute.xlu0 %10635
    %v10638 = vadd.f32 %v10632, %v10636
    %v10639 = vadd.f32 %v10633, %v10636
    %v10640 = vpack.c.bf16 %v10639, %v10638
    %s10641 = scalar_lea.vmem [#allocation8], 256
    %v10642 = vld [vmem:[%s10641] sm:$0xf]
    %v10643 = vld [vmem:[%s10641 + $0x8] sm:$0xf]
    %v10644 = vld [vmem:[%s10641 + $0x10] sm:$0xf]
    %v10645 = vld [vmem:[%s10641 + $0x18] sm:$0xf]
    %v10646 = vld [vmem:[%s10604] ss:$0 sm:$0xff]
    %v10651 = vunpack.c.l.b16 %v10642
    %v10652 = vunpack.c.l.b16 %v10643
    %v10653 = vunpack.c.l.b16 %v10644
    %v10654 = vunpack.c.l.b16 %v10645
    %v10655 = vpack.c.b16 %v10652, %v10651
    %v10656 = vpack.c.b16 %v10654, %v10653
    %v10660 = vsel %vm114, %v10640, 0
    %10662 = vmatprep.subr.bf16.mxu0 0
    %10663 = vmatpush1.bf16.msra.mxu0 %v10655
    %10664 = vmatprep.subr.bf16.mxu0 0
    %10665 = vmatpush1.bf16.msra.mxu0 %v10656
    %10666 = vmatprep.subr.bf16.mxu0 0
    %10667 = vmatpush1.bf16.msra.mxu0 0
    %10668 = vmatprep.subr.bf16.mxu0 0
    %10669 = vmatpush1.bf16.msra.mxu0 0
    %10670 = vmatprep.subr.bf16.mxu0 0
    %10671 = vmatpush1.bf16.msra.mxu0 0
    %10672 = vmatprep.subr.bf16.mxu0 0
    %10673 = vmatpush1.bf16.msra.mxu0 0
    %10674 = vmatprep.subr.bf16.mxu0 0
    %10675 = vmatpush1.bf16.msra.mxu0 0
    %10676 = vmatprep.subr.bf16.mxu0 0
    %10677 = vmatpush1.bf16.msra.mxu0 0
    %10678 = vmatprep.subr.bf16.mxu0 0
    %10679 = vmatpush1.bf16.msra.mxu0 0
    %10680 = vmatprep.subr.bf16.mxu0 0
    %10681 = vmatpush1.bf16.msra.mxu0 0
    %10682 = vmatprep.subr.bf16.mxu0 0
    %10683 = vmatpush1.bf16.msra.mxu0 0
    %10684 = vmatprep.subr.bf16.mxu0 0
    %10685 = vmatpush1.bf16.msra.mxu0 0
    %10686 = vmatprep.subr.bf16.mxu0 0
    %10687 = vmatpush1.bf16.msra.mxu0 0
    %10688 = vmatprep.subr.bf16.mxu0 0
    %10689 = vmatpush1.bf16.msra.mxu0 0
    %10690 = vmatprep.subr.bf16.mxu0 0
    %10691 = vmatpush1.bf16.msra.mxu0 0
    %10692 = vmatprep.subr.bf16.mxu0 0
    %10693 = vmatpush1.bf16.msra.mxu0 0
    %10694 = vmatprep.mubr.bf16.mxu0 0
    %10695 = vmatmul.mubr.bf16.gmra.mrb[0].mxu0 %v10660
    %v10696 = vpop.f32.mrb[0].mxu0
    %v10697 = vadd.f32 %v10646, %v10696
    %v10698 = vpop.f32.mrb[0].mxu0
    %v10699 = vpop.f32.mrb[0].mxu0
    %v10700 = vadd.f32 %v10646, %v10699
    %v10701 = vpop.f32.mrb[0].mxu0
    %10702 = vdwg.mxu0
    %10703 = vst [vmem:[#allocation11] sm:$0xff] %v10697
    %10704 = vst [vmem:[#allocation11 + $0x8] sm:$0xff] %v10700
    // Predicated region
    $region46: #{tpu_custom_call.1} parent=1 // pred_check
      _
    $region47: #{tpu_custom_call.1} parent=1 // pred_check_branch
      %10706 = sbr.rel (0) target = $region49
    $region48: #{tpu_custom_call.1} parent=1 // pred_region
      %s10708 = ssub.s32 256, 256
      %10709 = vsyncadd [#allocation4], %s10708
      %s10710 = sshll.u32 [#allocation11], 4
      %s10711 = int_to_ptr.vmem [resolvable:$true] %s10710
      %10716 = dma.vmem_to_hbm [thread:$0]  %s10711, 256, %s6, [#allocation4], 128, 128, 8
    $region49: #{tpu_custom_call.1} parent=1 // pred_fallthru
      _
    // Predicated region
    $region50: #{tpu_custom_call.1} parent=1 // pred_check
      _
    $region51: #{tpu_custom_call.1} parent=1 // pred_check_branch
      %10718 = sbr.rel (0) target = $region53
    $region52: #{tpu_custom_call.1} parent=1 // pred_region
      %10719 = dma.done [#allocation4], 256
    $region53: #{tpu_custom_call.1} parent=1 // pred_fallthru
      _
    %10720 = vsyncpa [#allocation3], 1
    %10721 = vsyncpa [#allocation6], 1
    %10722 = vsyncpa [#allocation9], 1
    %10723 = vsyncpa [#allocation4], 1

</llo_original>
